<compile_context>
chip_gen: v7x
topology: tpu7x:2x2x1
jax: 0.10.0
libtpu: 0.0.40
codegen_flags: <defaults>
</compile_context>

<pallas_src>
import math

import jax
import jax.numpy as jnp
from jax.experimental import pallas as pl
from jax.experimental.pallas import tpu as pltpu


# ----------------------------------------------------------------------------
# Fused BetaVAE forward kernel
# ----------------------------------------------------------------------------
def beta_vae_kernel(
        x_ref, eps_ref,
        e0_wi_ref, e0_wh_ref, e0_bi_ref, e0_bhn_ref,
        e1_wi_ref, e1_wh_ref, e1_bi_ref, e1_bhn_ref,
        w_ml_ref, b_ml_ref,
        w_lh_ref, b_lh_ref,
        d0_wh_ref, d0_bi_ref, d0_bhn_ref,
        d1_wi_ref, d1_wh_ref, d1_bi_ref, d1_bhn_ref,
        w_out_ref, b_out_ref,
        recon_ref, mu_ref, logvar_ref,
        yd1_scr):
    f32 = jnp.float32
    Bp, L = mu_ref.shape                   # padded batch (sublane tile), latent
    T = x_ref.shape[0] // Bp               # sequence length
    H = e0_wh_ref.shape[0]                 # hidden dim

    # ---- hoisted per-layer bias broadcasts (outside the unrolled loops) ----
    e1_bi_b = jnp.broadcast_to(e1_bi_ref[...], (Bp, 3 * H))
    d1_bi_b = jnp.broadcast_to(d1_bi_ref[...], (Bp, 3 * H))
    d0_gi_b = jnp.broadcast_to(d0_bi_ref[...], (Bp, 3 * H))   # zero-input layer
    e0_bhn_b = jnp.broadcast_to(e0_bhn_ref[...], (Bp, H))
    e1_bhn_b = jnp.broadcast_to(e1_bhn_ref[...], (Bp, H))
    d0_bhn_b = jnp.broadcast_to(d0_bhn_ref[...], (Bp, H))
    d1_bhn_b = jnp.broadcast_to(d1_bhn_ref[...], (Bp, H))

    def gru_step(gi, h, wh, bhn_b):
        # gi already contains b_ih (all gates) + b_hh (r,z gates).
        gh = jnp.dot(h, wh, preferred_element_type=f32)
        r = jax.nn.sigmoid(gi[:, 0:H] + gh[:, 0:H])
        z = jax.nn.sigmoid(gi[:, H:2 * H] + gh[:, H:2 * H])
        n = jnp.tanh(gi[:, 2 * H:3 * H] + r * (gh[:, 2 * H:3 * H] + bhn_b))
        return (1.0 - z) * n + z * h

    # ------------------------- encoder (wavefronted) -------------------------
    # Layer-0 input projection hoisted over all timesteps: one matmul.
    gi0_all = (jnp.dot(x_ref[...], e0_wi_ref[...], preferred_element_type=f32)
               + e0_bi_ref[...])                                  # (T*Bp, 3H)

    h_e0 = jnp.zeros((Bp, H), f32)
    h_e1 = jnp.zeros((Bp, H), f32)
    for t in range(T):
        h_e0 = gru_step(gi0_all[t * Bp:(t + 1) * Bp, :], h_e0,
                        e0_wh_ref[...], e0_bhn_b)
        gi1 = (jnp.dot(h_e0, e1_wi_ref[...], preferred_element_type=f32)
               + e1_bi_b)
        h_e1 = gru_step(gi1, h_e1, e1_wh_ref[...], e1_bhn_b)

    # -------- fc_mu ++ fc_logvar, reparameterize, fc_latent_to_hidden --------
    ml = jnp.dot(h_e1, w_ml_ref[...], preferred_element_type=f32) + b_ml_ref[...]
    mu = ml[:, 0:L]
    logvar = ml[:, L:2 * L]
    mu_ref[...] = mu
    logvar_ref[...] = logvar
    z = mu + eps_ref[...] * jnp.exp(0.5 * logvar)
    hid = jnp.dot(z, w_lh_ref[...], preferred_element_type=f32) + b_lh_ref[...]

    # ------------------------- decoder (wavefronted) -------------------------
    # Layer-0 input is torch.zeros -> gi is the constant hoisted bias d0_gi_b.
    h_d0 = hid
    h_d1 = hid
    for t in range(T):
        h_d0 = gru_step(d0_gi_b, h_d0, d0_wh_ref[...], d0_bhn_b)
        gi_d1 = (jnp.dot(h_d0, d1_wi_ref[...], preferred_element_type=f32)
                 + d1_bi_b)
        h_d1 = gru_step(gi_d1, h_d1, d1_wh_ref[...], d1_bhn_b)
        yd1_scr[t * Bp:(t + 1) * Bp, :] = h_d1      # tile-aligned (Bp = 8)

    # ---------- output projection: one fused matmul, one store ----------
    recon_ref[...] = (jnp.dot(yd1_scr[...], w_out_ref[...],
                              preferred_element_type=f32) + b_out_ref[...])


# ----------------------------------------------------------------------------
# Wrapper: one pallas_call for the whole forward pass
# ----------------------------------------------------------------------------
def _fold_gru_biases(bi, bh, hidden):
    """Fold b_hh into the input-side bias for the r,z gates; keep b_hh_n."""
    bi_eff = jnp.concatenate(
        [bi[:, :2 * hidden] + bh[:, :2 * hidden], bi[:, 2 * hidden:]], axis=1)
    bhn = bh[:, 2 * hidden:]
    return bi_eff, bhn


@jax.jit
def beta_vae_forward(x, eps, params):
    """x: (B, T, input_dim) batch_first, eps: (B, latent_dim) ~ N(0,1)."""
    B, T, Din = x.shape
    H = params["e0_wh"].shape[0]
    L = eps.shape[1]
    Bp = ((B + 7) // 8) * 8                 # pad batch to a full sublane tile
    pad = Bp - B

    x_p = jnp.pad(x.astype(jnp.float32), ((0, pad), (0, 0), (0, 0)))
    eps_p = jnp.pad(eps.astype(jnp.float32), ((0, pad), (0, 0)))
    # batch-first -> time-major 2-D slab (cheap XLA transpose, outside kernel)
    x_tm = x_p.transpose(1, 0, 2).reshape(T * Bp, Din)

    e0_bi, e0_bhn = _fold_gru_biases(params["e0_bi"], params["e0_bh"], H)
    e1_bi, e1_bhn = _fold_gru_biases(params["e1_bi"], params["e1_bh"], H)
    d0_bi, d0_bhn = _fold_gru_biases(params["d0_bi"], params["d0_bh"], H)
    d1_bi, d1_bhn = _fold_gru_biases(params["d1_bi"], params["d1_bh"], H)

    out_shape = (
        jax.ShapeDtypeStruct((T * Bp, Din), jnp.float32),   # recon (time-major)
        jax.ShapeDtypeStruct((Bp, L), jnp.float32),         # mu
        jax.ShapeDtypeStruct((Bp, L), jnp.float32),         # logvar
    )
    recon_tm, mu_p, logvar_p = pl.pallas_call(
        beta_vae_kernel,
        out_shape=out_shape,
        scratch_shapes=[pltpu.VMEM((T * Bp, H), jnp.float32)],
    )(
        x_tm, eps_p,
        params["e0_wi"], params["e0_wh"], e0_bi, e0_bhn,
        params["e1_wi"], params["e1_wh"], e1_bi, e1_bhn,
        params["w_ml"], params["b_ml"],
        params["w_lh"], params["b_lh"],
        params["d0_wh"], d0_bi, d0_bhn,
        params["d1_wi"], params["d1_wh"], d1_bi, d1_bhn,
        params["w_out"], params["b_out"],
    )
    # time-major -> batch-first + un-pad (cheap XLA ops outside the kernel)
    recon = recon_tm.reshape(T, Bp, Din).transpose(1, 0, 2)[:B]
    return recon, mu_p[:B], logvar_p[:B]


# ----------------------------------------------------------------------------
# Parameter construction (PyTorch shapes / init ranges, gate order r,z,n)
# ----------------------------------------------------------------------------
def _uniform(key, shape, bound):
    return jax.random.uniform(key, shape, jnp.float32, minval=-bound, maxval=bound)


def make_gru_layer_params(key, d_in, hidden):
    """Concatenated-gate weights: Wi (d_in,3H), Wh (H,3H), bi (1,3H), bh (1,3H)."""
    ks = jax.random.split(key, 4)
    bound = 1.0 / math.sqrt(hidden)
    wi = _uniform(ks[0], (d_in, 3 * hidden), bound)
    wh = _uniform(ks[1], (hidden, 3 * hidden), bound)
    bi = _uniform(ks[2], (1, 3 * hidden), bound)
    bh = _uniform(ks[3], (1, 3 * hidden), bound)
    return wi, wh, bi, bh


def make_linear_params(key, d_in, d_out):
    k1, k2 = jax.random.split(key)
    bound = 1.0 / math.sqrt(d_in)
    w_t = _uniform(k1, (d_in, d_out), bound)   # transposed vs PyTorch (d_out,d_in)
    b = _uniform(k2, (1, d_out), bound)
    return w_t, b


def make_params(key, input_dim, hidden_dim, latent_dim):
    ks = jax.random.split(key, 8)
    e0 = make_gru_layer_params(ks[0], input_dim, hidden_dim)
    e1 = make_gru_layer_params(ks[1], hidden_dim, hidden_dim)
    w_mu, b_mu = make_linear_params(ks[2], hidden_dim, latent_dim)
    w_lv, b_lv = make_linear_params(ks[3], hidden_dim, latent_dim)
    w_lh, b_lh = make_linear_params(ks[4], latent_dim, hidden_dim)
    d0 = make_gru_layer_params(ks[5], input_dim, hidden_dim)
    d1 = make_gru_layer_params(ks[6], hidden_dim, hidden_dim)
    w_out, b_out = make_linear_params(ks[7], hidden_dim, input_dim)
    return {
        "e0_wi": e0[0], "e0_wh": e0[1], "e0_bi": e0[2], "e0_bh": e0[3],
        "e1_wi": e1[0], "e1_wh": e1[1], "e1_bi": e1[2], "e1_bh": e1[3],
        "w_ml": jnp.concatenate([w_mu, w_lv], axis=1),   # fc_mu ++ fc_logvar
        "b_ml": jnp.concatenate([b_mu, b_lv], axis=1),
        "w_lh": w_lh, "b_lh": b_lh,
        # d0_wi kept only for the pure-JAX reference: the decoder layer-0
        # input is always torch.zeros, so the kernel skips that matmul.
        "d0_wi": d0[0], "d0_wh": d0[1], "d0_bi": d0[2], "d0_bh": d0[3],
        "d1_wi": d1[0], "d1_wh": d1[1], "d1_bi": d1[2], "d1_bh": d1[3],
        "w_out": w_out, "b_out": b_out,
    }


# ----------------------------------------------------------------------------
# Pure-JAX reference (standard GRU math, raw un-folded biases)
# ----------------------------------------------------------------------------
def _gru_layer_ref(x_steps, h0, wi, wh, bi, bh, H):
    h = h0
    outs = []
    for xt in x_steps:
        gi = xt @ wi + bi
        gh = h @ wh + bh
        r = jax.nn.sigmoid(gi[:, :H] + gh[:, :H])
        z = jax.nn.sigmoid(gi[:, H:2 * H] + gh[:, H:2 * H])
        n = jnp.tanh(gi[:, 2 * H:] + r * gh[:, 2 * H:])
        h = (1.0 - z) * n + z * h
        outs.append(h)
    return h, outs


def beta_vae_reference(x, eps, params):
    B, T, Din = x.shape
    H = params["e0_wh"].shape[0]
    L = eps.shape[1]
    h0 = jnp.zeros((B, H), jnp.float32)

    x_steps = [x[:, t, :] for t in range(T)]
    _, y0 = _gru_layer_ref(x_steps, h0, params["e0_wi"], params["e0_wh"],
                           params["e0_bi"], params["e0_bh"], H)
    h_last, _ = _gru_layer_ref(y0, h0, params["e1_wi"], params["e1_wh"],
                               params["e1_bi"], params["e1_bh"], H)

    ml = h_last @ params["w_ml"] + params["b_ml"]
    mu, logvar = ml[:, :L], ml[:, L:]
    z = mu + eps * jnp.exp(0.5 * logvar)
    hid = z @ params["w_lh"] + params["b_lh"]

    zeros_in = [jnp.zeros((B, Din), jnp.float32)] * T
    _, yd0 = _gru_layer_ref(zeros_in, hid, params["d0_wi"], params["d0_wh"],
                            params["d0_bi"], params["d0_bh"], H)
    _, yd1 = _gru_layer_ref(yd0, hid, params["d1_wi"], params["d1_wh"],
                            params["d1_bi"], params["d1_bh"], H)

    out = jnp.stack(yd1, axis=1).reshape(B * T, H) @ params["w_out"] + params["b_out"]
    return out.reshape(B, T, Din), mu, logvar


# ----------------------------------------------------------------------------
if __name__ == "__main__":
    input_dim, hidden_dim, latent_dim = 32, 32, 16
    batch, seq_len = 4, 8

    key = jax.random.PRNGKey(0)
    k_params, k_x, k_eps = jax.random.split(key, 3)

    params = make_params(k_params, input_dim, hidden_dim, latent_dim)
    x = jax.random.normal(k_x, (batch, seq_len, input_dim), jnp.float32)
    eps = jax.random.normal(k_eps, (batch, latent_dim), jnp.float32)  # randn_like(std)

    recon, mu, logvar = beta_vae_forward(x, eps, params)
    jax.block_until_ready((recon, mu, logvar))

    assert recon.shape == (batch, seq_len, input_dim)
    assert mu.shape == (batch, latent_dim)
    assert logvar.shape == (batch, latent_dim)

    # Correctness check against a pure-JAX reference of the same math.
    recon_r, mu_r, logvar_r = beta_vae_reference(x, eps, params)
    assert bool(jnp.allclose(mu, mu_r, atol=1e-4, rtol=1e-4))
    assert bool(jnp.allclose(logvar, logvar_r, atol=1e-4, rtol=1e-4))
    assert bool(jnp.allclose(recon, recon_r, atol=1e-4, rtol=1e-4))

    # TODO(synk): loss_function / save_weights / load_weights are not part of
    # the forward pass and are not implemented as kernels.
    print("KERNEL_OK")
</pallas_src>

<mosaic_0001>
module attributes {stable_mosaic.version = 11 : i64} {
  func.func @beta_vae_kernel(%arg0: memref<64x32xf32, #tpu.memory_space<vmem>>, %arg1: memref<8x16xf32, #tpu.memory_space<vmem>>, %arg2: memref<32x96xf32, #tpu.memory_space<vmem>>, %arg3: memref<32x96xf32, #tpu.memory_space<vmem>>, %arg4: memref<1x96xf32, #tpu.memory_space<vmem>>, %arg5: memref<1x32xf32, #tpu.memory_space<vmem>>, %arg6: memref<32x96xf32, #tpu.memory_space<vmem>>, %arg7: memref<32x96xf32, #tpu.memory_space<vmem>>, %arg8: memref<1x96xf32, #tpu.memory_space<vmem>>, %arg9: memref<1x32xf32, #tpu.memory_space<vmem>>, %arg10: memref<32x32xf32, #tpu.memory_space<vmem>>, %arg11: memref<1x32xf32, #tpu.memory_space<vmem>>, %arg12: memref<16x32xf32, #tpu.memory_space<vmem>>, %arg13: memref<1x32xf32, #tpu.memory_space<vmem>>, %arg14: memref<32x96xf32, #tpu.memory_space<vmem>>, %arg15: memref<1x96xf32, #tpu.memory_space<vmem>>, %arg16: memref<1x32xf32, #tpu.memory_space<vmem>>, %arg17: memref<32x96xf32, #tpu.memory_space<vmem>>, %arg18: memref<32x96xf32, #tpu.memory_space<vmem>>, %arg19: memref<1x96xf32, #tpu.memory_space<vmem>>, %arg20: memref<1x32xf32, #tpu.memory_space<vmem>>, %arg21: memref<32x32xf32, #tpu.memory_space<vmem>>, %arg22: memref<1x32xf32, #tpu.memory_space<vmem>>, %arg23: memref<64x32xf32, #tpu.memory_space<vmem>>, %arg24: memref<8x16xf32, #tpu.memory_space<vmem>>, %arg25: memref<8x16xf32, #tpu.memory_space<vmem>>, %arg26: memref<64x32xf32, #tpu.memory_space<vmem>>) attributes {dimension_semantics = [], scalar_prefetch = 0 : i64, scratch_operands = 1 : i64, tpu.core_type = #tpu.core_type<tc>} {
    %c0 = arith.constant 0 : index
    %c0_0 = arith.constant 0 : index
    %0 = vector.load %arg8[%c0, %c0_0] : memref<1x96xf32, #tpu.memory_space<vmem>>, vector<1x96xf32>
    %1 = vector.shape_cast %0 : vector<1x96xf32> to vector<1x96xf32>
    %2 = vector.broadcast %1 : vector<1x96xf32> to vector<8x96xf32>
    %c0_1 = arith.constant 0 : index
    %c0_2 = arith.constant 0 : index
    %3 = vector.load %arg19[%c0_1, %c0_2] : memref<1x96xf32, #tpu.memory_space<vmem>>, vector<1x96xf32>
    %4 = vector.shape_cast %3 : vector<1x96xf32> to vector<1x96xf32>
    %5 = vector.broadcast %4 : vector<1x96xf32> to vector<8x96xf32>
    %c0_3 = arith.constant 0 : index
    %c0_4 = arith.constant 0 : index
    %6 = vector.load %arg15[%c0_3, %c0_4] : memref<1x96xf32, #tpu.memory_space<vmem>>, vector<1x96xf32>
    %7 = vector.shape_cast %6 : vector<1x96xf32> to vector<1x96xf32>
    %8 = vector.broadcast %7 : vector<1x96xf32> to vector<8x96xf32>
    %c0_5 = arith.constant 0 : index
    %c0_6 = arith.constant 0 : index
    %9 = vector.load %arg5[%c0_5, %c0_6] : memref<1x32xf32, #tpu.memory_space<vmem>>, vector<1x32xf32>
    %10 = vector.shape_cast %9 : vector<1x32xf32> to vector<1x32xf32>
    %11 = vector.broadcast %10 : vector<1x32xf32> to vector<8x32xf32>
    %c0_7 = arith.constant 0 : index
    %c0_8 = arith.constant 0 : index
    %12 = vector.load %arg9[%c0_7, %c0_8] : memref<1x32xf32, #tpu.memory_space<vmem>>, vector<1x32xf32>
    %13 = vector.shape_cast %12 : vector<1x32xf32> to vector<1x32xf32>
    %14 = vector.broadcast %13 : vector<1x32xf32> to vector<8x32xf32>
    %c0_9 = arith.constant 0 : index
    %c0_10 = arith.constant 0 : index
    %15 = vector.load %arg16[%c0_9, %c0_10] : memref<1x32xf32, #tpu.memory_space<vmem>>, vector<1x32xf32>
    %16 = vector.shape_cast %15 : vector<1x32xf32> to vector<1x32xf32>
    %17 = vector.broadcast %16 : vector<1x32xf32> to vector<8x32xf32>
    %c0_11 = arith.constant 0 : index
    %c0_12 = arith.constant 0 : index
    %18 = vector.load %arg20[%c0_11, %c0_12] : memref<1x32xf32, #tpu.memory_space<vmem>>, vector<1x32xf32>
    %19 = vector.shape_cast %18 : vector<1x32xf32> to vector<1x32xf32>
    %20 = vector.broadcast %19 : vector<1x32xf32> to vector<8x32xf32>
    %c0_13 = arith.constant 0 : index
    %c0_14 = arith.constant 0 : index
    %21 = vector.load %arg0[%c0_13, %c0_14] : memref<64x32xf32, #tpu.memory_space<vmem>>, vector<64x32xf32>
    %c0_15 = arith.constant 0 : index
    %c0_16 = arith.constant 0 : index
    %22 = vector.load %arg2[%c0_15, %c0_16] : memref<32x96xf32, #tpu.memory_space<vmem>>, vector<32x96xf32>
    %cst = arith.constant dense<0.000000e+00> : vector<64x96xf32>
    %23 = tpu.matmul %21, %22, %cst {dimension_numbers = #tpu.dot_dimension_numbers<[1], [0], [0], [1], [0, 0, 1, 1], [], []>} : vector<64x32xf32>, vector<32x96xf32>, vector<64x96xf32> -> vector<64x96xf32>
    %c0_17 = arith.constant 0 : index
    %c0_18 = arith.constant 0 : index
    %24 = vector.load %arg4[%c0_17, %c0_18] : memref<1x96xf32, #tpu.memory_space<vmem>>, vector<1x96xf32>
    %25 = vector.broadcast %24 : vector<1x96xf32> to vector<64x96xf32>
    %26 = arith.addf %23, %25 : vector<64x96xf32>
    %cst_19 = arith.constant 0.000000e+00 : f32
    %27 = vector.broadcast %cst_19 : f32 to vector<8x32xf32>
    %cst_20 = arith.constant 0.000000e+00 : f32
    %28 = vector.broadcast %cst_20 : f32 to vector<8x32xf32>
    %29 = vector.extract_strided_slice %26 {offsets = [0, 0], sizes = [8, 96], strides = [1, 1]} : vector<64x96xf32> to vector<8x96xf32>
    %c0_21 = arith.constant 0 : index
    %c0_22 = arith.constant 0 : index
    %30 = vector.load %arg3[%c0_21, %c0_22] : memref<32x96xf32, #tpu.memory_space<vmem>>, vector<32x96xf32>
    %cst_23 = arith.constant dense<0.000000e+00> : vector<8x96xf32>
    %31 = tpu.matmul %27, %30, %cst_23 {dimension_numbers = #tpu.dot_dimension_numbers<[1], [0], [0], [1], [0, 0, 1, 1], [], []>} : vector<8x32xf32>, vector<32x96xf32>, vector<8x96xf32> -> vector<8x96xf32>
    %32 = vector.extract_strided_slice %29 {offsets = [0, 0], sizes = [8, 32], strides = [1, 1]} : vector<8x96xf32> to vector<8x32xf32>
    %33 = vector.extract_strided_slice %31 {offsets = [0, 0], sizes = [8, 32], strides = [1, 1]} : vector<8x96xf32> to vector<8x32xf32>
    %34 = arith.addf %32, %33 : vector<8x32xf32>
    %35 = arith.negf %34 : vector<8x32xf32>
    %36 = math.exp %35 : vector<8x32xf32>
    %cst_24 = arith.constant 1.000000e+00 : f32
    %37 = vector.broadcast %cst_24 : f32 to vector<8x32xf32>
    %38 = arith.addf %37, %36 : vector<8x32xf32>
    %39 = arith.divf %37, %38 : vector<8x32xf32>
    %40 = vector.extract_strided_slice %29 {offsets = [0, 32], sizes = [8, 32], strides = [1, 1]} : vector<8x96xf32> to vector<8x32xf32>
    %41 = vector.extract_strided_slice %31 {offsets = [0, 32], sizes = [8, 32], strides = [1, 1]} : vector<8x96xf32> to vector<8x32xf32>
    %42 = arith.addf %40, %41 : vector<8x32xf32>
    %43 = arith.negf %42 : vector<8x32xf32>
    %44 = math.exp %43 : vector<8x32xf32>
    %cst_25 = arith.constant 1.000000e+00 : f32
    %45 = vector.broadcast %cst_25 : f32 to vector<8x32xf32>
    %46 = arith.addf %45, %44 : vector<8x32xf32>
    %47 = arith.divf %45, %46 : vector<8x32xf32>
    %48 = vector.extract_strided_slice %29 {offsets = [0, 64], sizes = [8, 32], strides = [1, 1]} : vector<8x96xf32> to vector<8x32xf32>
    %49 = vector.extract_strided_slice %31 {offsets = [0, 64], sizes = [8, 32], strides = [1, 1]} : vector<8x96xf32> to vector<8x32xf32>
    %50 = arith.addf %49, %11 : vector<8x32xf32>
    %51 = arith.mulf %39, %50 : vector<8x32xf32>
    %52 = arith.addf %48, %51 : vector<8x32xf32>
    %53 = math.tanh %52 : vector<8x32xf32>
    %cst_26 = arith.constant 1.000000e+00 : f32
    %54 = vector.broadcast %cst_26 : f32 to vector<8x32xf32>
    %55 = arith.subf %54, %47 : vector<8x32xf32>
    %56 = arith.mulf %55, %53 : vector<8x32xf32>
    %57 = arith.mulf %47, %27 : vector<8x32xf32>
    %58 = arith.addf %56, %57 : vector<8x32xf32>
    %c0_27 = arith.constant 0 : index
    %c0_28 = arith.constant 0 : index
    %59 = vector.load %arg6[%c0_27, %c0_28] : memref<32x96xf32, #tpu.memory_space<vmem>>, vector<32x96xf32>
    %cst_29 = arith.constant dense<0.000000e+00> : vector<8x96xf32>
    %60 = tpu.matmul %58, %59, %cst_29 {dimension_numbers = #tpu.dot_dimension_numbers<[1], [0], [0], [1], [0, 0, 1, 1], [], []>} : vector<8x32xf32>, vector<32x96xf32>, vector<8x96xf32> -> vector<8x96xf32>
    %61 = arith.addf %60, %2 : vector<8x96xf32>
    %c0_30 = arith.constant 0 : index
    %c0_31 = arith.constant 0 : index
    %62 = vector.load %arg7[%c0_30, %c0_31] : memref<32x96xf32, #tpu.memory_space<vmem>>, vector<32x96xf32>
    %cst_32 = arith.constant dense<0.000000e+00> : vector<8x96xf32>
    %63 = tpu.matmul %28, %62, %cst_32 {dimension_numbers = #tpu.dot_dimension_numbers<[1], [0], [0], [1], [0, 0, 1, 1], [], []>} : vector<8x32xf32>, vector<32x96xf32>, vector<8x96xf32> -> vector<8x96xf32>
    %64 = vector.extract_strided_slice %61 {offsets = [0, 0], sizes = [8, 32], strides = [1, 1]} : vector<8x96xf32> to vector<8x32xf32>
    %65 = vector.extract_strided_slice %63 {offsets = [0, 0], sizes = [8, 32], strides = [1, 1]} : vector<8x96xf32> to vector<8x32xf32>
    %66 = arith.addf %64, %65 : vector<8x32xf32>
    %67 = arith.negf %66 : vector<8x32xf32>
    %68 = math.exp %67 : vector<8x32xf32>
    %cst_33 = arith.constant 1.000000e+00 : f32
    %69 = vector.broadcast %cst_33 : f32 to vector<8x32xf32>
    %70 = arith.addf %69, %68 : vector<8x32xf32>
    %71 = arith.divf %69, %70 : vector<8x32xf32>
    %72 = vector.extract_strided_slice %61 {offsets = [0, 32], sizes = [8, 32], strides = [1, 1]} : vector<8x96xf32> to vector<8x32xf32>
    %73 = vector.extract_strided_slice %63 {offsets = [0, 32], sizes = [8, 32], strides = [1, 1]} : vector<8x96xf32> to vector<8x32xf32>
    %74 = arith.addf %72, %73 : vector<8x32xf32>
    %75 = arith.negf %74 : vector<8x32xf32>
    %76 = math.exp %75 : vector<8x32xf32>
    %cst_34 = arith.constant 1.000000e+00 : f32
    %77 = vector.broadcast %cst_34 : f32 to vector<8x32xf32>
    %78 = arith.addf %77, %76 : vector<8x32xf32>
    %79 = arith.divf %77, %78 : vector<8x32xf32>
    %80 = vector.extract_strided_slice %61 {offsets = [0, 64], sizes = [8, 32], strides = [1, 1]} : vector<8x96xf32> to vector<8x32xf32>
    %81 = vector.extract_strided_slice %63 {offsets = [0, 64], sizes = [8, 32], strides = [1, 1]} : vector<8x96xf32> to vector<8x32xf32>
    %82 = arith.addf %81, %14 : vector<8x32xf32>
    %83 = arith.mulf %71, %82 : vector<8x32xf32>
    %84 = arith.addf %80, %83 : vector<8x32xf32>
    %85 = math.tanh %84 : vector<8x32xf32>
    %cst_35 = arith.constant 1.000000e+00 : f32
    %86 = vector.broadcast %cst_35 : f32 to vector<8x32xf32>
    %87 = arith.subf %86, %79 : vector<8x32xf32>
    %88 = arith.mulf %87, %85 : vector<8x32xf32>
    %89 = arith.mulf %79, %28 : vector<8x32xf32>
    %90 = arith.addf %88, %89 : vector<8x32xf32>
    %91 = vector.extract_strided_slice %26 {offsets = [8, 0], sizes = [8, 96], strides = [1, 1]} : vector<64x96xf32> to vector<8x96xf32>
    %c0_36 = arith.constant 0 : index
    %c0_37 = arith.constant 0 : index
    %92 = vector.load %arg3[%c0_36, %c0_37] : memref<32x96xf32, #tpu.memory_space<vmem>>, vector<32x96xf32>
    %cst_38 = arith.constant dense<0.000000e+00> : vector<8x96xf32>
    %93 = tpu.matmul %58, %92, %cst_38 {dimension_numbers = #tpu.dot_dimension_numbers<[1], [0], [0], [1], [0, 0, 1, 1], [], []>} : vector<8x32xf32>, vector<32x96xf32>, vector<8x96xf32> -> vector<8x96xf32>
    %94 = vector.extract_strided_slice %91 {offsets = [0, 0], sizes = [8, 32], strides = [1, 1]} : vector<8x96xf32> to vector<8x32xf32>
    %95 = vector.extract_strided_slice %93 {offsets = [0, 0], sizes = [8, 32], strides = [1, 1]} : vector<8x96xf32> to vector<8x32xf32>
    %96 = arith.addf %94, %95 : vector<8x32xf32>
    %97 = arith.negf %96 : vector<8x32xf32>
    %98 = math.exp %97 : vector<8x32xf32>
    %cst_39 = arith.constant 1.000000e+00 : f32
    %99 = vector.broadcast %cst_39 : f32 to vector<8x32xf32>
    %100 = arith.addf %99, %98 : vector<8x32xf32>
    %101 = arith.divf %99, %100 : vector<8x32xf32>
    %102 = vector.extract_strided_slice %91 {offsets = [0, 32], sizes = [8, 32], strides = [1, 1]} : vector<8x96xf32> to vector<8x32xf32>
    %103 = vector.extract_strided_slice %93 {offsets = [0, 32], sizes = [8, 32], strides = [1, 1]} : vector<8x96xf32> to vector<8x32xf32>
    %104 = arith.addf %102, %103 : vector<8x32xf32>
    %105 = arith.negf %104 : vector<8x32xf32>
    %106 = math.exp %105 : vector<8x32xf32>
    %cst_40 = arith.constant 1.000000e+00 : f32
    %107 = vector.broadcast %cst_40 : f32 to vector<8x32xf32>
    %108 = arith.addf %107, %106 : vector<8x32xf32>
    %109 = arith.divf %107, %108 : vector<8x32xf32>
    %110 = vector.extract_strided_slice %91 {offsets = [0, 64], sizes = [8, 32], strides = [1, 1]} : vector<8x96xf32> to vector<8x32xf32>
    %111 = vector.extract_strided_slice %93 {offsets = [0, 64], sizes = [8, 32], strides = [1, 1]} : vector<8x96xf32> to vector<8x32xf32>
    %112 = arith.addf %111, %11 : vector<8x32xf32>
    %113 = arith.mulf %101, %112 : vector<8x32xf32>
    %114 = arith.addf %110, %113 : vector<8x32xf32>
    %115 = math.tanh %114 : vector<8x32xf32>
    %cst_41 = arith.constant 1.000000e+00 : f32
    %116 = vector.broadcast %cst_41 : f32 to vector<8x32xf32>
    %117 = arith.subf %116, %109 : vector<8x32xf32>
    %118 = arith.mulf %117, %115 : vector<8x32xf32>
    %119 = arith.mulf %109, %58 : vector<8x32xf32>
    %120 = arith.addf %118, %119 : vector<8x32xf32>
    %c0_42 = arith.constant 0 : index
    %c0_43 = arith.constant 0 : index
    %121 = vector.load %arg6[%c0_42, %c0_43] : memref<32x96xf32, #tpu.memory_space<vmem>>, vector<32x96xf32>
    %cst_44 = arith.constant dense<0.000000e+00> : vector<8x96xf32>
    %122 = tpu.matmul %120, %121, %cst_44 {dimension_numbers = #tpu.dot_dimension_numbers<[1], [0], [0], [1], [0, 0, 1, 1], [], []>} : vector<8x32xf32>, vector<32x96xf32>, vector<8x96xf32> -> vector<8x96xf32>
    %123 = arith.addf %122, %2 : vector<8x96xf32>
    %c0_45 = arith.constant 0 : index
    %c0_46 = arith.constant 0 : index
    %124 = vector.load %arg7[%c0_45, %c0_46] : memref<32x96xf32, #tpu.memory_space<vmem>>, vector<32x96xf32>
    %cst_47 = arith.constant dense<0.000000e+00> : vector<8x96xf32>
    %125 = tpu.matmul %90, %124, %cst_47 {dimension_numbers = #tpu.dot_dimension_numbers<[1], [0], [0], [1], [0, 0, 1, 1], [], []>} : vector<8x32xf32>, vector<32x96xf32>, vector<8x96xf32> -> vector<8x96xf32>
    %126 = vector.extract_strided_slice %123 {offsets = [0, 0], sizes = [8, 32], strides = [1, 1]} : vector<8x96xf32> to vector<8x32xf32>
    %127 = vector.extract_strided_slice %125 {offsets = [0, 0], sizes = [8, 32], strides = [1, 1]} : vector<8x96xf32> to vector<8x32xf32>
    %128 = arith.addf %126, %127 : vector<8x32xf32>
    %129 = arith.negf %128 : vector<8x32xf32>
    %130 = math.exp %129 : vector<8x32xf32>
    %cst_48 = arith.constant 1.000000e+00 : f32
    %131 = vector.broadcast %cst_48 : f32 to vector<8x32xf32>
    %132 = arith.addf %131, %130 : vector<8x32xf32>
    %133 = arith.divf %131, %132 : vector<8x32xf32>
    %134 = vector.extract_strided_slice %123 {offsets = [0, 32], sizes = [8, 32], strides = [1, 1]} : vector<8x96xf32> to vector<8x32xf32>
    %135 = vector.extract_strided_slice %125 {offsets = [0, 32], sizes = [8, 32], strides = [1, 1]} : vector<8x96xf32> to vector<8x32xf32>
    %136 = arith.addf %134, %135 : vector<8x32xf32>
    %137 = arith.negf %136 : vector<8x32xf32>
    %138 = math.exp %137 : vector<8x32xf32>
    %cst_49 = arith.constant 1.000000e+00 : f32
    %139 = vector.broadcast %cst_49 : f32 to vector<8x32xf32>
    %140 = arith.addf %139, %138 : vector<8x32xf32>
    %141 = arith.divf %139, %140 : vector<8x32xf32>
    %142 = vector.extract_strided_slice %123 {offsets = [0, 64], sizes = [8, 32], strides = [1, 1]} : vector<8x96xf32> to vector<8x32xf32>
    %143 = vector.extract_strided_slice %125 {offsets = [0, 64], sizes = [8, 32], strides = [1, 1]} : vector<8x96xf32> to vector<8x32xf32>
    %144 = arith.addf %143, %14 : vector<8x32xf32>
    %145 = arith.mulf %133, %144 : vector<8x32xf32>
    %146 = arith.addf %142, %145 : vector<8x32xf32>
    %147 = math.tanh %146 : vector<8x32xf32>
    %cst_50 = arith.constant 1.000000e+00 : f32
    %148 = vector.broadcast %cst_50 : f32 to vector<8x32xf32>
    %149 = arith.subf %148, %141 : vector<8x32xf32>
    %150 = arith.mulf %149, %147 : vector<8x32xf32>
    %151 = arith.mulf %141, %90 : vector<8x32xf32>
    %152 = arith.addf %150, %151 : vector<8x32xf32>
    %153 = vector.extract_strided_slice %26 {offsets = [16, 0], sizes = [8, 96], strides = [1, 1]} : vector<64x96xf32> to vector<8x96xf32>
    %c0_51 = arith.constant 0 : index
    %c0_52 = arith.constant 0 : index
    %154 = vector.load %arg3[%c0_51, %c0_52] : memref<32x96xf32, #tpu.memory_space<vmem>>, vector<32x96xf32>
    %cst_53 = arith.constant dense<0.000000e+00> : vector<8x96xf32>
    %155 = tpu.matmul %120, %154, %cst_53 {dimension_numbers = #tpu.dot_dimension_numbers<[1], [0], [0], [1], [0, 0, 1, 1], [], []>} : vector<8x32xf32>, vector<32x96xf32>, vector<8x96xf32> -> vector<8x96xf32>
    %156 = vector.extract_strided_slice %153 {offsets = [0, 0], sizes = [8, 32], strides = [1, 1]} : vector<8x96xf32> to vector<8x32xf32>
    %157 = vector.extract_strided_slice %155 {offsets = [0, 0], sizes = [8, 32], strides = [1, 1]} : vector<8x96xf32> to vector<8x32xf32>
    %158 = arith.addf %156, %157 : vector<8x32xf32>
    %159 = arith.negf %158 : vector<8x32xf32>
    %160 = math.exp %159 : vector<8x32xf32>
    %cst_54 = arith.constant 1.000000e+00 : f32
    %161 = vector.broadcast %cst_54 : f32 to vector<8x32xf32>
    %162 = arith.addf %161, %160 : vector<8x32xf32>
    %163 = arith.divf %161, %162 : vector<8x32xf32>
    %164 = vector.extract_strided_slice %153 {offsets = [0, 32], sizes = [8, 32], strides = [1, 1]} : vector<8x96xf32> to vector<8x32xf32>
    %165 = vector.extract_strided_slice %155 {offsets = [0, 32], sizes = [8, 32], strides = [1, 1]} : vector<8x96xf32> to vector<8x32xf32>
    %166 = arith.addf %164, %165 : vector<8x32xf32>
    %167 = arith.negf %166 : vector<8x32xf32>
    %168 = math.exp %167 : vector<8x32xf32>
    %cst_55 = arith.constant 1.000000e+00 : f32
    %169 = vector.broadcast %cst_55 : f32 to vector<8x32xf32>
    %170 = arith.addf %169, %168 : vector<8x32xf32>
    %171 = arith.divf %169, %170 : vector<8x32xf32>
    %172 = vector.extract_strided_slice %153 {offsets = [0, 64], sizes = [8, 32], strides = [1, 1]} : vector<8x96xf32> to vector<8x32xf32>
    %173 = vector.extract_strided_slice %155 {offsets = [0, 64], sizes = [8, 32], strides = [1, 1]} : vector<8x96xf32> to vector<8x32xf32>
    %174 = arith.addf %173, %11 : vector<8x32xf32>
    %175 = arith.mulf %163, %174 : vector<8x32xf32>
    %176 = arith.addf %172, %175 : vector<8x32xf32>
    %177 = math.tanh %176 : vector<8x32xf32>
    %cst_56 = arith.constant 1.000000e+00 : f32
    %178 = vector.broadcast %cst_56 : f32 to vector<8x32xf32>
    %179 = arith.subf %178, %171 : vector<8x32xf32>
    %180 = arith.mulf %179, %177 : vector<8x32xf32>
    %181 = arith.mulf %171, %120 : vector<8x32xf32>
    %182 = arith.addf %180, %181 : vector<8x32xf32>
    %c0_57 = arith.constant 0 : index
    %c0_58 = arith.constant 0 : index
    %183 = vector.load %arg6[%c0_57, %c0_58] : memref<32x96xf32, #tpu.memory_space<vmem>>, vector<32x96xf32>
    %cst_59 = arith.constant dense<0.000000e+00> : vector<8x96xf32>
    %184 = tpu.matmul %182, %183, %cst_59 {dimension_numbers = #tpu.dot_dimension_numbers<[1], [0], [0], [1], [0, 0, 1, 1], [], []>} : vector<8x32xf32>, vector<32x96xf32>, vector<8x96xf32> -> vector<8x96xf32>
    %185 = arith.addf %184, %2 : vector<8x96xf32>
    %c0_60 = arith.constant 0 : index
    %c0_61 = arith.constant 0 : index
    %186 = vector.load %arg7[%c0_60, %c0_61] : memref<32x96xf32, #tpu.memory_space<vmem>>, vector<32x96xf32>
    %cst_62 = arith.constant dense<0.000000e+00> : vector<8x96xf32>
    %187 = tpu.matmul %152, %186, %cst_62 {dimension_numbers = #tpu.dot_dimension_numbers<[1], [0], [0], [1], [0, 0, 1, 1], [], []>} : vector<8x32xf32>, vector<32x96xf32>, vector<8x96xf32> -> vector<8x96xf32>
    %188 = vector.extract_strided_slice %185 {offsets = [0, 0], sizes = [8, 32], strides = [1, 1]} : vector<8x96xf32> to vector<8x32xf32>
    %189 = vector.extract_strided_slice %187 {offsets = [0, 0], sizes = [8, 32], strides = [1, 1]} : vector<8x96xf32> to vector<8x32xf32>
    %190 = arith.addf %188, %189 : vector<8x32xf32>
    %191 = arith.negf %190 : vector<8x32xf32>
    %192 = math.exp %191 : vector<8x32xf32>
    %cst_63 = arith.constant 1.000000e+00 : f32
    %193 = vector.broadcast %cst_63 : f32 to vector<8x32xf32>
    %194 = arith.addf %193, %192 : vector<8x32xf32>
    %195 = arith.divf %193, %194 : vector<8x32xf32>
    %196 = vector.extract_strided_slice %185 {offsets = [0, 32], sizes = [8, 32], strides = [1, 1]} : vector<8x96xf32> to vector<8x32xf32>
    %197 = vector.extract_strided_slice %187 {offsets = [0, 32], sizes = [8, 32], strides = [1, 1]} : vector<8x96xf32> to vector<8x32xf32>
    %198 = arith.addf %196, %197 : vector<8x32xf32>
    %199 = arith.negf %198 : vector<8x32xf32>
    %200 = math.exp %199 : vector<8x32xf32>
    %cst_64 = arith.constant 1.000000e+00 : f32
    %201 = vector.broadcast %cst_64 : f32 to vector<8x32xf32>
    %202 = arith.addf %201, %200 : vector<8x32xf32>
    %203 = arith.divf %201, %202 : vector<8x32xf32>
    %204 = vector.extract_strided_slice %185 {offsets = [0, 64], sizes = [8, 32], strides = [1, 1]} : vector<8x96xf32> to vector<8x32xf32>
    %205 = vector.extract_strided_slice %187 {offsets = [0, 64], sizes = [8, 32], strides = [1, 1]} : vector<8x96xf32> to vector<8x32xf32>
    %206 = arith.addf %205, %14 : vector<8x32xf32>
    %207 = arith.mulf %195, %206 : vector<8x32xf32>
    %208 = arith.addf %204, %207 : vector<8x32xf32>
    %209 = math.tanh %208 : vector<8x32xf32>
    %cst_65 = arith.constant 1.000000e+00 : f32
    %210 = vector.broadcast %cst_65 : f32 to vector<8x32xf32>
    %211 = arith.subf %210, %203 : vector<8x32xf32>
    %212 = arith.mulf %211, %209 : vector<8x32xf32>
    %213 = arith.mulf %203, %152 : vector<8x32xf32>
    %214 = arith.addf %212, %213 : vector<8x32xf32>
    %215 = vector.extract_strided_slice %26 {offsets = [24, 0], sizes = [8, 96], strides = [1, 1]} : vector<64x96xf32> to vector<8x96xf32>
    %c0_66 = arith.constant 0 : index
    %c0_67 = arith.constant 0 : index
    %216 = vector.load %arg3[%c0_66, %c0_67] : memref<32x96xf32, #tpu.memory_space<vmem>>, vector<32x96xf32>
    %cst_68 = arith.constant dense<0.000000e+00> : vector<8x96xf32>
    %217 = tpu.matmul %182, %216, %cst_68 {dimension_numbers = #tpu.dot_dimension_numbers<[1], [0], [0], [1], [0, 0, 1, 1], [], []>} : vector<8x32xf32>, vector<32x96xf32>, vector<8x96xf32> -> vector<8x96xf32>
    %218 = vector.extract_strided_slice %215 {offsets = [0, 0], sizes = [8, 32], strides = [1, 1]} : vector<8x96xf32> to vector<8x32xf32>
    %219 = vector.extract_strided_slice %217 {offsets = [0, 0], sizes = [8, 32], strides = [1, 1]} : vector<8x96xf32> to vector<8x32xf32>
    %220 = arith.addf %218, %219 : vector<8x32xf32>
    %221 = arith.negf %220 : vector<8x32xf32>
    %222 = math.exp %221 : vector<8x32xf32>
    %cst_69 = arith.constant 1.000000e+00 : f32
    %223 = vector.broadcast %cst_69 : f32 to vector<8x32xf32>
    %224 = arith.addf %223, %222 : vector<8x32xf32>
    %225 = arith.divf %223, %224 : vector<8x32xf32>
    %226 = vector.extract_strided_slice %215 {offsets = [0, 32], sizes = [8, 32], strides = [1, 1]} : vector<8x96xf32> to vector<8x32xf32>
    %227 = vector.extract_strided_slice %217 {offsets = [0, 32], sizes = [8, 32], strides = [1, 1]} : vector<8x96xf32> to vector<8x32xf32>
    %228 = arith.addf %226, %227 : vector<8x32xf32>
    %229 = arith.negf %228 : vector<8x32xf32>
    %230 = math.exp %229 : vector<8x32xf32>
    %cst_70 = arith.constant 1.000000e+00 : f32
    %231 = vector.broadcast %cst_70 : f32 to vector<8x32xf32>
    %232 = arith.addf %231, %230 : vector<8x32xf32>
    %233 = arith.divf %231, %232 : vector<8x32xf32>
    %234 = vector.extract_strided_slice %215 {offsets = [0, 64], sizes = [8, 32], strides = [1, 1]} : vector<8x96xf32> to vector<8x32xf32>
    %235 = vector.extract_strided_slice %217 {offsets = [0, 64], sizes = [8, 32], strides = [1, 1]} : vector<8x96xf32> to vector<8x32xf32>
    %236 = arith.addf %235, %11 : vector<8x32xf32>
    %237 = arith.mulf %225, %236 : vector<8x32xf32>
    %238 = arith.addf %234, %237 : vector<8x32xf32>
    %239 = math.tanh %238 : vector<8x32xf32>
    %cst_71 = arith.constant 1.000000e+00 : f32
    %240 = vector.broadcast %cst_71 : f32 to vector<8x32xf32>
    %241 = arith.subf %240, %233 : vector<8x32xf32>
    %242 = arith.mulf %241, %239 : vector<8x32xf32>
    %243 = arith.mulf %233, %182 : vector<8x32xf32>
    %244 = arith.addf %242, %243 : vector<8x32xf32>
    %c0_72 = arith.constant 0 : index
    %c0_73 = arith.constant 0 : index
    %245 = vector.load %arg6[%c0_72, %c0_73] : memref<32x96xf32, #tpu.memory_space<vmem>>, vector<32x96xf32>
    %cst_74 = arith.constant dense<0.000000e+00> : vector<8x96xf32>
    %246 = tpu.matmul %244, %245, %cst_74 {dimension_numbers = #tpu.dot_dimension_numbers<[1], [0], [0], [1], [0, 0, 1, 1], [], []>} : vector<8x32xf32>, vector<32x96xf32>, vector<8x96xf32> -> vector<8x96xf32>
    %247 = arith.addf %246, %2 : vector<8x96xf32>
    %c0_75 = arith.constant 0 : index
    %c0_76 = arith.constant 0 : index
    %248 = vector.load %arg7[%c0_75, %c0_76] : memref<32x96xf32, #tpu.memory_space<vmem>>, vector<32x96xf32>
    %cst_77 = arith.constant dense<0.000000e+00> : vector<8x96xf32>
    %249 = tpu.matmul %214, %248, %cst_77 {dimension_numbers = #tpu.dot_dimension_numbers<[1], [0], [0], [1], [0, 0, 1, 1], [], []>} : vector<8x32xf32>, vector<32x96xf32>, vector<8x96xf32> -> vector<8x96xf32>
    %250 = vector.extract_strided_slice %247 {offsets = [0, 0], sizes = [8, 32], strides = [1, 1]} : vector<8x96xf32> to vector<8x32xf32>
    %251 = vector.extract_strided_slice %249 {offsets = [0, 0], sizes = [8, 32], strides = [1, 1]} : vector<8x96xf32> to vector<8x32xf32>
    %252 = arith.addf %250, %251 : vector<8x32xf32>
    %253 = arith.negf %252 : vector<8x32xf32>
    %254 = math.exp %253 : vector<8x32xf32>
    %cst_78 = arith.constant 1.000000e+00 : f32
    %255 = vector.broadcast %cst_78 : f32 to vector<8x32xf32>
    %256 = arith.addf %255, %254 : vector<8x32xf32>
    %257 = arith.divf %255, %256 : vector<8x32xf32>
    %258 = vector.extract_strided_slice %247 {offsets = [0, 32], sizes = [8, 32], strides = [1, 1]} : vector<8x96xf32> to vector<8x32xf32>
    %259 = vector.extract_strided_slice %249 {offsets = [0, 32], sizes = [8, 32], strides = [1, 1]} : vector<8x96xf32> to vector<8x32xf32>
    %260 = arith.addf %258, %259 : vector<8x32xf32>
    %261 = arith.negf %260 : vector<8x32xf32>
    %262 = math.exp %261 : vector<8x32xf32>
    %cst_79 = arith.constant 1.000000e+00 : f32
    %263 = vector.broadcast %cst_79 : f32 to vector<8x32xf32>
    %264 = arith.addf %263, %262 : vector<8x32xf32>
    %265 = arith.divf %263, %264 : vector<8x32xf32>
    %266 = vector.extract_strided_slice %247 {offsets = [0, 64], sizes = [8, 32], strides = [1, 1]} : vector<8x96xf32> to vector<8x32xf32>
    %267 = vector.extract_strided_slice %249 {offsets = [0, 64], sizes = [8, 32], strides = [1, 1]} : vector<8x96xf32> to vector<8x32xf32>
    %268 = arith.addf %267, %14 : vector<8x32xf32>
    %269 = arith.mulf %257, %268 : vector<8x32xf32>
    %270 = arith.addf %266, %269 : vector<8x32xf32>
    %271 = math.tanh %270 : vector<8x32xf32>
    %cst_80 = arith.constant 1.000000e+00 : f32
    %272 = vector.broadcast %cst_80 : f32 to vector<8x32xf32>
    %273 = arith.subf %272, %265 : vector<8x32xf32>
    %274 = arith.mulf %273, %271 : vector<8x32xf32>
    %275 = arith.mulf %265, %214 : vector<8x32xf32>
    %276 = arith.addf %274, %275 : vector<8x32xf32>
    %277 = vector.extract_strided_slice %26 {offsets = [32, 0], sizes = [8, 96], strides = [1, 1]} : vector<64x96xf32> to vector<8x96xf32>
    %c0_81 = arith.constant 0 : index
    %c0_82 = arith.constant 0 : index
    %278 = vector.load %arg3[%c0_81, %c0_82] : memref<32x96xf32, #tpu.memory_space<vmem>>, vector<32x96xf32>
    %cst_83 = arith.constant dense<0.000000e+00> : vector<8x96xf32>
    %279 = tpu.matmul %244, %278, %cst_83 {dimension_numbers = #tpu.dot_dimension_numbers<[1], [0], [0], [1], [0, 0, 1, 1], [], []>} : vector<8x32xf32>, vector<32x96xf32>, vector<8x96xf32> -> vector<8x96xf32>
    %280 = vector.extract_strided_slice %277 {offsets = [0, 0], sizes = [8, 32], strides = [1, 1]} : vector<8x96xf32> to vector<8x32xf32>
    %281 = vector.extract_strided_slice %279 {offsets = [0, 0], sizes = [8, 32], strides = [1, 1]} : vector<8x96xf32> to vector<8x32xf32>
    %282 = arith.addf %280, %281 : vector<8x32xf32>
    %283 = arith.negf %282 : vector<8x32xf32>
    %284 = math.exp %283 : vector<8x32xf32>
    %cst_84 = arith.constant 1.000000e+00 : f32
    %285 = vector.broadcast %cst_84 : f32 to vector<8x32xf32>
    %286 = arith.addf %285, %284 : vector<8x32xf32>
    %287 = arith.divf %285, %286 : vector<8x32xf32>
    %288 = vector.extract_strided_slice %277 {offsets = [0, 32], sizes = [8, 32], strides = [1, 1]} : vector<8x96xf32> to vector<8x32xf32>
    %289 = vector.extract_strided_slice %279 {offsets = [0, 32], sizes = [8, 32], strides = [1, 1]} : vector<8x96xf32> to vector<8x32xf32>
    %290 = arith.addf %288, %289 : vector<8x32xf32>
    %291 = arith.negf %290 : vector<8x32xf32>
    %292 = math.exp %291 : vector<8x32xf32>
    %cst_85 = arith.constant 1.000000e+00 : f32
    %293 = vector.broadcast %cst_85 : f32 to vector<8x32xf32>
    %294 = arith.addf %293, %292 : vector<8x32xf32>
    %295 = arith.divf %293, %294 : vector<8x32xf32>
    %296 = vector.extract_strided_slice %277 {offsets = [0, 64], sizes = [8, 32], strides = [1, 1]} : vector<8x96xf32> to vector<8x32xf32>
    %297 = vector.extract_strided_slice %279 {offsets = [0, 64], sizes = [8, 32], strides = [1, 1]} : vector<8x96xf32> to vector<8x32xf32>
    %298 = arith.addf %297, %11 : vector<8x32xf32>
    %299 = arith.mulf %287, %298 : vector<8x32xf32>
    %300 = arith.addf %296, %299 : vector<8x32xf32>
    %301 = math.tanh %300 : vector<8x32xf32>
    %cst_86 = arith.constant 1.000000e+00 : f32
    %302 = vector.broadcast %cst_86 : f32 to vector<8x32xf32>
    %303 = arith.subf %302, %295 : vector<8x32xf32>
    %304 = arith.mulf %303, %301 : vector<8x32xf32>
    %305 = arith.mulf %295, %244 : vector<8x32xf32>
    %306 = arith.addf %304, %305 : vector<8x32xf32>
    %c0_87 = arith.constant 0 : index
    %c0_88 = arith.constant 0 : index
    %307 = vector.load %arg6[%c0_87, %c0_88] : memref<32x96xf32, #tpu.memory_space<vmem>>, vector<32x96xf32>
    %cst_89 = arith.constant dense<0.000000e+00> : vector<8x96xf32>
    %308 = tpu.matmul %306, %307, %cst_89 {dimension_numbers = #tpu.dot_dimension_numbers<[1], [0], [0], [1], [0, 0, 1, 1], [], []>} : vector<8x32xf32>, vector<32x96xf32>, vector<8x96xf32> -> vector<8x96xf32>
    %309 = arith.addf %308, %2 : vector<8x96xf32>
    %c0_90 = arith.constant 0 : index
    %c0_91 = arith.constant 0 : index
    %310 = vector.load %arg7[%c0_90, %c0_91] : memref<32x96xf32, #tpu.memory_space<vmem>>, vector<32x96xf32>
    %cst_92 = arith.constant dense<0.000000e+00> : vector<8x96xf32>
    %311 = tpu.matmul %276, %310, %cst_92 {dimension_numbers = #tpu.dot_dimension_numbers<[1], [0], [0], [1], [0, 0, 1, 1], [], []>} : vector<8x32xf32>, vector<32x96xf32>, vector<8x96xf32> -> vector<8x96xf32>
    %312 = vector.extract_strided_slice %309 {offsets = [0, 0], sizes = [8, 32], strides = [1, 1]} : vector<8x96xf32> to vector<8x32xf32>
    %313 = vector.extract_strided_slice %311 {offsets = [0, 0], sizes = [8, 32], strides = [1, 1]} : vector<8x96xf32> to vector<8x32xf32>
    %314 = arith.addf %312, %313 : vector<8x32xf32>
    %315 = arith.negf %314 : vector<8x32xf32>
    %316 = math.exp %315 : vector<8x32xf32>
    %cst_93 = arith.constant 1.000000e+00 : f32
    %317 = vector.broadcast %cst_93 : f32 to vector<8x32xf32>
    %318 = arith.addf %317, %316 : vector<8x32xf32>
    %319 = arith.divf %317, %318 : vector<8x32xf32>
    %320 = vector.extract_strided_slice %309 {offsets = [0, 32], sizes = [8, 32], strides = [1, 1]} : vector<8x96xf32> to vector<8x32xf32>
    %321 = vector.extract_strided_slice %311 {offsets = [0, 32], sizes = [8, 32], strides = [1, 1]} : vector<8x96xf32> to vector<8x32xf32>
    %322 = arith.addf %320, %321 : vector<8x32xf32>
    %323 = arith.negf %322 : vector<8x32xf32>
    %324 = math.exp %323 : vector<8x32xf32>
    %cst_94 = arith.constant 1.000000e+00 : f32
    %325 = vector.broadcast %cst_94 : f32 to vector<8x32xf32>
    %326 = arith.addf %325, %324 : vector<8x32xf32>
    %327 = arith.divf %325, %326 : vector<8x32xf32>
    %328 = vector.extract_strided_slice %309 {offsets = [0, 64], sizes = [8, 32], strides = [1, 1]} : vector<8x96xf32> to vector<8x32xf32>
    %329 = vector.extract_strided_slice %311 {offsets = [0, 64], sizes = [8, 32], strides = [1, 1]} : vector<8x96xf32> to vector<8x32xf32>
    %330 = arith.addf %329, %14 : vector<8x32xf32>
    %331 = arith.mulf %319, %330 : vector<8x32xf32>
    %332 = arith.addf %328, %331 : vector<8x32xf32>
    %333 = math.tanh %332 : vector<8x32xf32>
    %cst_95 = arith.constant 1.000000e+00 : f32
    %334 = vector.broadcast %cst_95 : f32 to vector<8x32xf32>
    %335 = arith.subf %334, %327 : vector<8x32xf32>
    %336 = arith.mulf %335, %333 : vector<8x32xf32>
    %337 = arith.mulf %327, %276 : vector<8x32xf32>
    %338 = arith.addf %336, %337 : vector<8x32xf32>
    %339 = vector.extract_strided_slice %26 {offsets = [40, 0], sizes = [8, 96], strides = [1, 1]} : vector<64x96xf32> to vector<8x96xf32>
    %c0_96 = arith.constant 0 : index
    %c0_97 = arith.constant 0 : index
    %340 = vector.load %arg3[%c0_96, %c0_97] : memref<32x96xf32, #tpu.memory_space<vmem>>, vector<32x96xf32>
    %cst_98 = arith.constant dense<0.000000e+00> : vector<8x96xf32>
    %341 = tpu.matmul %306, %340, %cst_98 {dimension_numbers = #tpu.dot_dimension_numbers<[1], [0], [0], [1], [0, 0, 1, 1], [], []>} : vector<8x32xf32>, vector<32x96xf32>, vector<8x96xf32> -> vector<8x96xf32>
    %342 = vector.extract_strided_slice %339 {offsets = [0, 0], sizes = [8, 32], strides = [1, 1]} : vector<8x96xf32> to vector<8x32xf32>
    %343 = vector.extract_strided_slice %341 {offsets = [0, 0], sizes = [8, 32], strides = [1, 1]} : vector<8x96xf32> to vector<8x32xf32>
    %344 = arith.addf %342, %343 : vector<8x32xf32>
    %345 = arith.negf %344 : vector<8x32xf32>
    %346 = math.exp %345 : vector<8x32xf32>
    %cst_99 = arith.constant 1.000000e+00 : f32
    %347 = vector.broadcast %cst_99 : f32 to vector<8x32xf32>
    %348 = arith.addf %347, %346 : vector<8x32xf32>
    %349 = arith.divf %347, %348 : vector<8x32xf32>
    %350 = vector.extract_strided_slice %339 {offsets = [0, 32], sizes = [8, 32], strides = [1, 1]} : vector<8x96xf32> to vector<8x32xf32>
    %351 = vector.extract_strided_slice %341 {offsets = [0, 32], sizes = [8, 32], strides = [1, 1]} : vector<8x96xf32> to vector<8x32xf32>
    %352 = arith.addf %350, %351 : vector<8x32xf32>
    %353 = arith.negf %352 : vector<8x32xf32>
    %354 = math.exp %353 : vector<8x32xf32>
    %cst_100 = arith.constant 1.000000e+00 : f32
    %355 = vector.broadcast %cst_100 : f32 to vector<8x32xf32>
    %356 = arith.addf %355, %354 : vector<8x32xf32>
    %357 = arith.divf %355, %356 : vector<8x32xf32>
    %358 = vector.extract_strided_slice %339 {offsets = [0, 64], sizes = [8, 32], strides = [1, 1]} : vector<8x96xf32> to vector<8x32xf32>
    %359 = vector.extract_strided_slice %341 {offsets = [0, 64], sizes = [8, 32], strides = [1, 1]} : vector<8x96xf32> to vector<8x32xf32>
    %360 = arith.addf %359, %11 : vector<8x32xf32>
    %361 = arith.mulf %349, %360 : vector<8x32xf32>
    %362 = arith.addf %358, %361 : vector<8x32xf32>
    %363 = math.tanh %362 : vector<8x32xf32>
    %cst_101 = arith.constant 1.000000e+00 : f32
    %364 = vector.broadcast %cst_101 : f32 to vector<8x32xf32>
    %365 = arith.subf %364, %357 : vector<8x32xf32>
    %366 = arith.mulf %365, %363 : vector<8x32xf32>
    %367 = arith.mulf %357, %306 : vector<8x32xf32>
    %368 = arith.addf %366, %367 : vector<8x32xf32>
    %c0_102 = arith.constant 0 : index
    %c0_103 = arith.constant 0 : index
    %369 = vector.load %arg6[%c0_102, %c0_103] : memref<32x96xf32, #tpu.memory_space<vmem>>, vector<32x96xf32>
    %cst_104 = arith.constant dense<0.000000e+00> : vector<8x96xf32>
    %370 = tpu.matmul %368, %369, %cst_104 {dimension_numbers = #tpu.dot_dimension_numbers<[1], [0], [0], [1], [0, 0, 1, 1], [], []>} : vector<8x32xf32>, vector<32x96xf32>, vector<8x96xf32> -> vector<8x96xf32>
    %371 = arith.addf %370, %2 : vector<8x96xf32>
    %c0_105 = arith.constant 0 : index
    %c0_106 = arith.constant 0 : index
    %372 = vector.load %arg7[%c0_105, %c0_106] : memref<32x96xf32, #tpu.memory_space<vmem>>, vector<32x96xf32>
    %cst_107 = arith.constant dense<0.000000e+00> : vector<8x96xf32>
    %373 = tpu.matmul %338, %372, %cst_107 {dimension_numbers = #tpu.dot_dimension_numbers<[1], [0], [0], [1], [0, 0, 1, 1], [], []>} : vector<8x32xf32>, vector<32x96xf32>, vector<8x96xf32> -> vector<8x96xf32>
    %374 = vector.extract_strided_slice %371 {offsets = [0, 0], sizes = [8, 32], strides = [1, 1]} : vector<8x96xf32> to vector<8x32xf32>
    %375 = vector.extract_strided_slice %373 {offsets = [0, 0], sizes = [8, 32], strides = [1, 1]} : vector<8x96xf32> to vector<8x32xf32>
    %376 = arith.addf %374, %375 : vector<8x32xf32>
    %377 = arith.negf %376 : vector<8x32xf32>
    %378 = math.exp %377 : vector<8x32xf32>
    %cst_108 = arith.constant 1.000000e+00 : f32
    %379 = vector.broadcast %cst_108 : f32 to vector<8x32xf32>
    %380 = arith.addf %379, %378 : vector<8x32xf32>
    %381 = arith.divf %379, %380 : vector<8x32xf32>
    %382 = vector.extract_strided_slice %371 {offsets = [0, 32], sizes = [8, 32], strides = [1, 1]} : vector<8x96xf32> to vector<8x32xf32>
    %383 = vector.extract_strided_slice %373 {offsets = [0, 32], sizes = [8, 32], strides = [1, 1]} : vector<8x96xf32> to vector<8x32xf32>
    %384 = arith.addf %382, %383 : vector<8x32xf32>
    %385 = arith.negf %384 : vector<8x32xf32>
    %386 = math.exp %385 : vector<8x32xf32>
    %cst_109 = arith.constant 1.000000e+00 : f32
    %387 = vector.broadcast %cst_109 : f32 to vector<8x32xf32>
    %388 = arith.addf %387, %386 : vector<8x32xf32>
    %389 = arith.divf %387, %388 : vector<8x32xf32>
    %390 = vector.extract_strided_slice %371 {offsets = [0, 64], sizes = [8, 32], strides = [1, 1]} : vector<8x96xf32> to vector<8x32xf32>
    %391 = vector.extract_strided_slice %373 {offsets = [0, 64], sizes = [8, 32], strides = [1, 1]} : vector<8x96xf32> to vector<8x32xf32>
    %392 = arith.addf %391, %14 : vector<8x32xf32>
    %393 = arith.mulf %381, %392 : vector<8x32xf32>
    %394 = arith.addf %390, %393 : vector<8x32xf32>
    %395 = math.tanh %394 : vector<8x32xf32>
    %cst_110 = arith.constant 1.000000e+00 : f32
    %396 = vector.broadcast %cst_110 : f32 to vector<8x32xf32>
    %397 = arith.subf %396, %389 : vector<8x32xf32>
    %398 = arith.mulf %397, %395 : vector<8x32xf32>
    %399 = arith.mulf %389, %338 : vector<8x32xf32>
    %400 = arith.addf %398, %399 : vector<8x32xf32>
    %401 = vector.extract_strided_slice %26 {offsets = [48, 0], sizes = [8, 96], strides = [1, 1]} : vector<64x96xf32> to vector<8x96xf32>
    %c0_111 = arith.constant 0 : index
    %c0_112 = arith.constant 0 : index
    %402 = vector.load %arg3[%c0_111, %c0_112] : memref<32x96xf32, #tpu.memory_space<vmem>>, vector<32x96xf32>
    %cst_113 = arith.constant dense<0.000000e+00> : vector<8x96xf32>
    %403 = tpu.matmul %368, %402, %cst_113 {dimension_numbers = #tpu.dot_dimension_numbers<[1], [0], [0], [1], [0, 0, 1, 1], [], []>} : vector<8x32xf32>, vector<32x96xf32>, vector<8x96xf32> -> vector<8x96xf32>
    %404 = vector.extract_strided_slice %401 {offsets = [0, 0], sizes = [8, 32], strides = [1, 1]} : vector<8x96xf32> to vector<8x32xf32>
    %405 = vector.extract_strided_slice %403 {offsets = [0, 0], sizes = [8, 32], strides = [1, 1]} : vector<8x96xf32> to vector<8x32xf32>
    %406 = arith.addf %404, %405 : vector<8x32xf32>
    %407 = arith.negf %406 : vector<8x32xf32>
    %408 = math.exp %407 : vector<8x32xf32>
    %cst_114 = arith.constant 1.000000e+00 : f32
    %409 = vector.broadcast %cst_114 : f32 to vector<8x32xf32>
    %410 = arith.addf %409, %408 : vector<8x32xf32>
    %411 = arith.divf %409, %410 : vector<8x32xf32>
    %412 = vector.extract_strided_slice %401 {offsets = [0, 32], sizes = [8, 32], strides = [1, 1]} : vector<8x96xf32> to vector<8x32xf32>
    %413 = vector.extract_strided_slice %403 {offsets = [0, 32], sizes = [8, 32], strides = [1, 1]} : vector<8x96xf32> to vector<8x32xf32>
    %414 = arith.addf %412, %413 : vector<8x32xf32>
    %415 = arith.negf %414 : vector<8x32xf32>
    %416 = math.exp %415 : vector<8x32xf32>
    %cst_115 = arith.constant 1.000000e+00 : f32
    %417 = vector.broadcast %cst_115 : f32 to vector<8x32xf32>
    %418 = arith.addf %417, %416 : vector<8x32xf32>
    %419 = arith.divf %417, %418 : vector<8x32xf32>
    %420 = vector.extract_strided_slice %401 {offsets = [0, 64], sizes = [8, 32], strides = [1, 1]} : vector<8x96xf32> to vector<8x32xf32>
    %421 = vector.extract_strided_slice %403 {offsets = [0, 64], sizes = [8, 32], strides = [1, 1]} : vector<8x96xf32> to vector<8x32xf32>
    %422 = arith.addf %421, %11 : vector<8x32xf32>
    %423 = arith.mulf %411, %422 : vector<8x32xf32>
    %424 = arith.addf %420, %423 : vector<8x32xf32>
    %425 = math.tanh %424 : vector<8x32xf32>
    %cst_116 = arith.constant 1.000000e+00 : f32
    %426 = vector.broadcast %cst_116 : f32 to vector<8x32xf32>
    %427 = arith.subf %426, %419 : vector<8x32xf32>
    %428 = arith.mulf %427, %425 : vector<8x32xf32>
    %429 = arith.mulf %419, %368 : vector<8x32xf32>
    %430 = arith.addf %428, %429 : vector<8x32xf32>
    %c0_117 = arith.constant 0 : index
    %c0_118 = arith.constant 0 : index
    %431 = vector.load %arg6[%c0_117, %c0_118] : memref<32x96xf32, #tpu.memory_space<vmem>>, vector<32x96xf32>
    %cst_119 = arith.constant dense<0.000000e+00> : vector<8x96xf32>
    %432 = tpu.matmul %430, %431, %cst_119 {dimension_numbers = #tpu.dot_dimension_numbers<[1], [0], [0], [1], [0, 0, 1, 1], [], []>} : vector<8x32xf32>, vector<32x96xf32>, vector<8x96xf32> -> vector<8x96xf32>
    %433 = arith.addf %432, %2 : vector<8x96xf32>
    %c0_120 = arith.constant 0 : index
    %c0_121 = arith.constant 0 : index
    %434 = vector.load %arg7[%c0_120, %c0_121] : memref<32x96xf32, #tpu.memory_space<vmem>>, vector<32x96xf32>
    %cst_122 = arith.constant dense<0.000000e+00> : vector<8x96xf32>
    %435 = tpu.matmul %400, %434, %cst_122 {dimension_numbers = #tpu.dot_dimension_numbers<[1], [0], [0], [1], [0, 0, 1, 1], [], []>} : vector<8x32xf32>, vector<32x96xf32>, vector<8x96xf32> -> vector<8x96xf32>
    %436 = vector.extract_strided_slice %433 {offsets = [0, 0], sizes = [8, 32], strides = [1, 1]} : vector<8x96xf32> to vector<8x32xf32>
    %437 = vector.extract_strided_slice %435 {offsets = [0, 0], sizes = [8, 32], strides = [1, 1]} : vector<8x96xf32> to vector<8x32xf32>
    %438 = arith.addf %436, %437 : vector<8x32xf32>
    %439 = arith.negf %438 : vector<8x32xf32>
    %440 = math.exp %439 : vector<8x32xf32>
    %cst_123 = arith.constant 1.000000e+00 : f32
    %441 = vector.broadcast %cst_123 : f32 to vector<8x32xf32>
    %442 = arith.addf %441, %440 : vector<8x32xf32>
    %443 = arith.divf %441, %442 : vector<8x32xf32>
    %444 = vector.extract_strided_slice %433 {offsets = [0, 32], sizes = [8, 32], strides = [1, 1]} : vector<8x96xf32> to vector<8x32xf32>
    %445 = vector.extract_strided_slice %435 {offsets = [0, 32], sizes = [8, 32], strides = [1, 1]} : vector<8x96xf32> to vector<8x32xf32>
    %446 = arith.addf %444, %445 : vector<8x32xf32>
    %447 = arith.negf %446 : vector<8x32xf32>
    %448 = math.exp %447 : vector<8x32xf32>
    %cst_124 = arith.constant 1.000000e+00 : f32
    %449 = vector.broadcast %cst_124 : f32 to vector<8x32xf32>
    %450 = arith.addf %449, %448 : vector<8x32xf32>
    %451 = arith.divf %449, %450 : vector<8x32xf32>
    %452 = vector.extract_strided_slice %433 {offsets = [0, 64], sizes = [8, 32], strides = [1, 1]} : vector<8x96xf32> to vector<8x32xf32>
    %453 = vector.extract_strided_slice %435 {offsets = [0, 64], sizes = [8, 32], strides = [1, 1]} : vector<8x96xf32> to vector<8x32xf32>
    %454 = arith.addf %453, %14 : vector<8x32xf32>
    %455 = arith.mulf %443, %454 : vector<8x32xf32>
    %456 = arith.addf %452, %455 : vector<8x32xf32>
    %457 = math.tanh %456 : vector<8x32xf32>
    %cst_125 = arith.constant 1.000000e+00 : f32
    %458 = vector.broadcast %cst_125 : f32 to vector<8x32xf32>
    %459 = arith.subf %458, %451 : vector<8x32xf32>
    %460 = arith.mulf %459, %457 : vector<8x32xf32>
    %461 = arith.mulf %451, %400 : vector<8x32xf32>
    %462 = arith.addf %460, %461 : vector<8x32xf32>
    %463 = vector.extract_strided_slice %26 {offsets = [56, 0], sizes = [8, 96], strides = [1, 1]} : vector<64x96xf32> to vector<8x96xf32>
    %c0_126 = arith.constant 0 : index
    %c0_127 = arith.constant 0 : index
    %464 = vector.load %arg3[%c0_126, %c0_127] : memref<32x96xf32, #tpu.memory_space<vmem>>, vector<32x96xf32>
    %cst_128 = arith.constant dense<0.000000e+00> : vector<8x96xf32>
    %465 = tpu.matmul %430, %464, %cst_128 {dimension_numbers = #tpu.dot_dimension_numbers<[1], [0], [0], [1], [0, 0, 1, 1], [], []>} : vector<8x32xf32>, vector<32x96xf32>, vector<8x96xf32> -> vector<8x96xf32>
    %466 = vector.extract_strided_slice %463 {offsets = [0, 0], sizes = [8, 32], strides = [1, 1]} : vector<8x96xf32> to vector<8x32xf32>
    %467 = vector.extract_strided_slice %465 {offsets = [0, 0], sizes = [8, 32], strides = [1, 1]} : vector<8x96xf32> to vector<8x32xf32>
    %468 = arith.addf %466, %467 : vector<8x32xf32>
    %469 = arith.negf %468 : vector<8x32xf32>
    %470 = math.exp %469 : vector<8x32xf32>
    %cst_129 = arith.constant 1.000000e+00 : f32
    %471 = vector.broadcast %cst_129 : f32 to vector<8x32xf32>
    %472 = arith.addf %471, %470 : vector<8x32xf32>
    %473 = arith.divf %471, %472 : vector<8x32xf32>
    %474 = vector.extract_strided_slice %463 {offsets = [0, 32], sizes = [8, 32], strides = [1, 1]} : vector<8x96xf32> to vector<8x32xf32>
    %475 = vector.extract_strided_slice %465 {offsets = [0, 32], sizes = [8, 32], strides = [1, 1]} : vector<8x96xf32> to vector<8x32xf32>
    %476 = arith.addf %474, %475 : vector<8x32xf32>
    %477 = arith.negf %476 : vector<8x32xf32>
    %478 = math.exp %477 : vector<8x32xf32>
    %cst_130 = arith.constant 1.000000e+00 : f32
    %479 = vector.broadcast %cst_130 : f32 to vector<8x32xf32>
    %480 = arith.addf %479, %478 : vector<8x32xf32>
    %481 = arith.divf %479, %480 : vector<8x32xf32>
    %482 = vector.extract_strided_slice %463 {offsets = [0, 64], sizes = [8, 32], strides = [1, 1]} : vector<8x96xf32> to vector<8x32xf32>
    %483 = vector.extract_strided_slice %465 {offsets = [0, 64], sizes = [8, 32], strides = [1, 1]} : vector<8x96xf32> to vector<8x32xf32>
    %484 = arith.addf %483, %11 : vector<8x32xf32>
    %485 = arith.mulf %473, %484 : vector<8x32xf32>
    %486 = arith.addf %482, %485 : vector<8x32xf32>
    %487 = math.tanh %486 : vector<8x32xf32>
    %cst_131 = arith.constant 1.000000e+00 : f32
    %488 = vector.broadcast %cst_131 : f32 to vector<8x32xf32>
    %489 = arith.subf %488, %481 : vector<8x32xf32>
    %490 = arith.mulf %489, %487 : vector<8x32xf32>
    %491 = arith.mulf %481, %430 : vector<8x32xf32>
    %492 = arith.addf %490, %491 : vector<8x32xf32>
    %c0_132 = arith.constant 0 : index
    %c0_133 = arith.constant 0 : index
    %493 = vector.load %arg6[%c0_132, %c0_133] : memref<32x96xf32, #tpu.memory_space<vmem>>, vector<32x96xf32>
    %cst_134 = arith.constant dense<0.000000e+00> : vector<8x96xf32>
    %494 = tpu.matmul %492, %493, %cst_134 {dimension_numbers = #tpu.dot_dimension_numbers<[1], [0], [0], [1], [0, 0, 1, 1], [], []>} : vector<8x32xf32>, vector<32x96xf32>, vector<8x96xf32> -> vector<8x96xf32>
    %495 = arith.addf %494, %2 : vector<8x96xf32>
    %c0_135 = arith.constant 0 : index
    %c0_136 = arith.constant 0 : index
    %496 = vector.load %arg7[%c0_135, %c0_136] : memref<32x96xf32, #tpu.memory_space<vmem>>, vector<32x96xf32>
    %cst_137 = arith.constant dense<0.000000e+00> : vector<8x96xf32>
    %497 = tpu.matmul %462, %496, %cst_137 {dimension_numbers = #tpu.dot_dimension_numbers<[1], [0], [0], [1], [0, 0, 1, 1], [], []>} : vector<8x32xf32>, vector<32x96xf32>, vector<8x96xf32> -> vector<8x96xf32>
    %498 = vector.extract_strided_slice %495 {offsets = [0, 0], sizes = [8, 32], strides = [1, 1]} : vector<8x96xf32> to vector<8x32xf32>
    %499 = vector.extract_strided_slice %497 {offsets = [0, 0], sizes = [8, 32], strides = [1, 1]} : vector<8x96xf32> to vector<8x32xf32>
    %500 = arith.addf %498, %499 : vector<8x32xf32>
    %501 = arith.negf %500 : vector<8x32xf32>
    %502 = math.exp %501 : vector<8x32xf32>
    %cst_138 = arith.constant 1.000000e+00 : f32
    %503 = vector.broadcast %cst_138 : f32 to vector<8x32xf32>
    %504 = arith.addf %503, %502 : vector<8x32xf32>
    %505 = arith.divf %503, %504 : vector<8x32xf32>
    %506 = vector.extract_strided_slice %495 {offsets = [0, 32], sizes = [8, 32], strides = [1, 1]} : vector<8x96xf32> to vector<8x32xf32>
    %507 = vector.extract_strided_slice %497 {offsets = [0, 32], sizes = [8, 32], strides = [1, 1]} : vector<8x96xf32> to vector<8x32xf32>
    %508 = arith.addf %506, %507 : vector<8x32xf32>
    %509 = arith.negf %508 : vector<8x32xf32>
    %510 = math.exp %509 : vector<8x32xf32>
    %cst_139 = arith.constant 1.000000e+00 : f32
    %511 = vector.broadcast %cst_139 : f32 to vector<8x32xf32>
    %512 = arith.addf %511, %510 : vector<8x32xf32>
    %513 = arith.divf %511, %512 : vector<8x32xf32>
    %514 = vector.extract_strided_slice %495 {offsets = [0, 64], sizes = [8, 32], strides = [1, 1]} : vector<8x96xf32> to vector<8x32xf32>
    %515 = vector.extract_strided_slice %497 {offsets = [0, 64], sizes = [8, 32], strides = [1, 1]} : vector<8x96xf32> to vector<8x32xf32>
    %516 = arith.addf %515, %14 : vector<8x32xf32>
    %517 = arith.mulf %505, %516 : vector<8x32xf32>
    %518 = arith.addf %514, %517 : vector<8x32xf32>
    %519 = math.tanh %518 : vector<8x32xf32>
    %cst_140 = arith.constant 1.000000e+00 : f32
    %520 = vector.broadcast %cst_140 : f32 to vector<8x32xf32>
    %521 = arith.subf %520, %513 : vector<8x32xf32>
    %522 = arith.mulf %521, %519 : vector<8x32xf32>
    %523 = arith.mulf %513, %462 : vector<8x32xf32>
    %524 = arith.addf %522, %523 : vector<8x32xf32>
    %c0_141 = arith.constant 0 : index
    %c0_142 = arith.constant 0 : index
    %525 = vector.load %arg10[%c0_141, %c0_142] : memref<32x32xf32, #tpu.memory_space<vmem>>, vector<32x32xf32>
    %cst_143 = arith.constant dense<0.000000e+00> : vector<8x32xf32>
    %526 = tpu.matmul %524, %525, %cst_143 {dimension_numbers = #tpu.dot_dimension_numbers<[1], [0], [0], [1], [0, 0, 1, 1], [], []>} : vector<8x32xf32>, vector<32x32xf32>, vector<8x32xf32> -> vector<8x32xf32>
    %c0_144 = arith.constant 0 : index
    %c0_145 = arith.constant 0 : index
    %527 = vector.load %arg11[%c0_144, %c0_145] : memref<1x32xf32, #tpu.memory_space<vmem>>, vector<1x32xf32>
    %528 = vector.broadcast %527 : vector<1x32xf32> to vector<8x32xf32>
    %529 = arith.addf %526, %528 : vector<8x32xf32>
    %530 = vector.extract_strided_slice %529 {offsets = [0, 0], sizes = [8, 16], strides = [1, 1]} : vector<8x32xf32> to vector<8x16xf32>
    %531 = vector.extract_strided_slice %529 {offsets = [0, 16], sizes = [8, 16], strides = [1, 1]} : vector<8x32xf32> to vector<8x16xf32>
    %c0_146 = arith.constant 0 : index
    %c0_147 = arith.constant 0 : index
    %532 = vector.load %arg24[%c0_146, %c0_147] : memref<8x16xf32, #tpu.memory_space<vmem>>, vector<8x16xf32>
    tpu.vector_store %arg24[%c0_146, %c0_147], %530 {strides = array<i32>} : memref<8x16xf32, #tpu.memory_space<vmem>>, vector<8x16xf32>,
    %c0_148 = arith.constant 0 : index
    %c0_149 = arith.constant 0 : index
    %533 = vector.load %arg25[%c0_148, %c0_149] : memref<8x16xf32, #tpu.memory_space<vmem>>, vector<8x16xf32>
    tpu.vector_store %arg25[%c0_148, %c0_149], %531 {strides = array<i32>} : memref<8x16xf32, #tpu.memory_space<vmem>>, vector<8x16xf32>,
    %c0_150 = arith.constant 0 : index
    %c0_151 = arith.constant 0 : index
    %534 = vector.load %arg1[%c0_150, %c0_151] : memref<8x16xf32, #tpu.memory_space<vmem>>, vector<8x16xf32>
    %cst_152 = arith.constant 5.000000e-01 : f32
    %535 = vector.broadcast %cst_152 : f32 to vector<8x16xf32>
    %536 = arith.mulf %535, %531 : vector<8x16xf32>
    %537 = math.exp %536 : vector<8x16xf32>
    %538 = arith.mulf %534, %537 : vector<8x16xf32>
    %539 = arith.addf %530, %538 : vector<8x16xf32>
    %c0_153 = arith.constant 0 : index
    %c0_154 = arith.constant 0 : index
    %540 = vector.load %arg12[%c0_153, %c0_154] : memref<16x32xf32, #tpu.memory_space<vmem>>, vector<16x32xf32>
    %cst_155 = arith.constant dense<0.000000e+00> : vector<8x32xf32>
    %541 = tpu.matmul %539, %540, %cst_155 {dimension_numbers = #tpu.dot_dimension_numbers<[1], [0], [0], [1], [0, 0, 1, 1], [], []>} : vector<8x16xf32>, vector<16x32xf32>, vector<8x32xf32> -> vector<8x32xf32>
    %c0_156 = arith.constant 0 : index
    %c0_157 = arith.constant 0 : index
    %542 = vector.load %arg13[%c0_156, %c0_157] : memref<1x32xf32, #tpu.memory_space<vmem>>, vector<1x32xf32>
    %543 = vector.broadcast %542 : vector<1x32xf32> to vector<8x32xf32>
    %544 = arith.addf %541, %543 : vector<8x32xf32>
    %c0_158 = arith.constant 0 : index
    %c0_159 = arith.constant 0 : index
    %545 = vector.load %arg14[%c0_158, %c0_159] : memref<32x96xf32, #tpu.memory_space<vmem>>, vector<32x96xf32>
    %cst_160 = arith.constant dense<0.000000e+00> : vector<8x96xf32>
    %546 = tpu.matmul %544, %545, %cst_160 {dimension_numbers = #tpu.dot_dimension_numbers<[1], [0], [0], [1], [0, 0, 1, 1], [], []>} : vector<8x32xf32>, vector<32x96xf32>, vector<8x96xf32> -> vector<8x96xf32>
    %547 = vector.extract_strided_slice %8 {offsets = [0, 0], sizes = [8, 32], strides = [1, 1]} : vector<8x96xf32> to vector<8x32xf32>
    %548 = vector.extract_strided_slice %546 {offsets = [0, 0], sizes = [8, 32], strides = [1, 1]} : vector<8x96xf32> to vector<8x32xf32>
    %549 = arith.addf %547, %548 : vector<8x32xf32>
    %550 = arith.negf %549 : vector<8x32xf32>
    %551 = math.exp %550 : vector<8x32xf32>
    %cst_161 = arith.constant 1.000000e+00 : f32
    %552 = vector.broadcast %cst_161 : f32 to vector<8x32xf32>
    %553 = arith.addf %552, %551 : vector<8x32xf32>
    %554 = arith.divf %552, %553 : vector<8x32xf32>
    %555 = vector.extract_strided_slice %8 {offsets = [0, 32], sizes = [8, 32], strides = [1, 1]} : vector<8x96xf32> to vector<8x32xf32>
    %556 = vector.extract_strided_slice %546 {offsets = [0, 32], sizes = [8, 32], strides = [1, 1]} : vector<8x96xf32> to vector<8x32xf32>
    %557 = arith.addf %555, %556 : vector<8x32xf32>
    %558 = arith.negf %557 : vector<8x32xf32>
    %559 = math.exp %558 : vector<8x32xf32>
    %cst_162 = arith.constant 1.000000e+00 : f32
    %560 = vector.broadcast %cst_162 : f32 to vector<8x32xf32>
    %561 = arith.addf %560, %559 : vector<8x32xf32>
    %562 = arith.divf %560, %561 : vector<8x32xf32>
    %563 = vector.extract_strided_slice %8 {offsets = [0, 64], sizes = [8, 32], strides = [1, 1]} : vector<8x96xf32> to vector<8x32xf32>
    %564 = vector.extract_strided_slice %546 {offsets = [0, 64], sizes = [8, 32], strides = [1, 1]} : vector<8x96xf32> to vector<8x32xf32>
    %565 = arith.addf %564, %17 : vector<8x32xf32>
    %566 = arith.mulf %554, %565 : vector<8x32xf32>
    %567 = arith.addf %563, %566 : vector<8x32xf32>
    %568 = math.tanh %567 : vector<8x32xf32>
    %cst_163 = arith.constant 1.000000e+00 : f32
    %569 = vector.broadcast %cst_163 : f32 to vector<8x32xf32>
    %570 = arith.subf %569, %562 : vector<8x32xf32>
    %571 = arith.mulf %570, %568 : vector<8x32xf32>
    %572 = arith.mulf %562, %544 : vector<8x32xf32>
    %573 = arith.addf %571, %572 : vector<8x32xf32>
    %c0_164 = arith.constant 0 : index
    %c0_165 = arith.constant 0 : index
    %574 = vector.load %arg17[%c0_164, %c0_165] : memref<32x96xf32, #tpu.memory_space<vmem>>, vector<32x96xf32>
    %cst_166 = arith.constant dense<0.000000e+00> : vector<8x96xf32>
    %575 = tpu.matmul %573, %574, %cst_166 {dimension_numbers = #tpu.dot_dimension_numbers<[1], [0], [0], [1], [0, 0, 1, 1], [], []>} : vector<8x32xf32>, vector<32x96xf32>, vector<8x96xf32> -> vector<8x96xf32>
    %576 = arith.addf %575, %5 : vector<8x96xf32>
    %c0_167 = arith.constant 0 : index
    %c0_168 = arith.constant 0 : index
    %577 = vector.load %arg18[%c0_167, %c0_168] : memref<32x96xf32, #tpu.memory_space<vmem>>, vector<32x96xf32>
    %cst_169 = arith.constant dense<0.000000e+00> : vector<8x96xf32>
    %578 = tpu.matmul %544, %577, %cst_169 {dimension_numbers = #tpu.dot_dimension_numbers<[1], [0], [0], [1], [0, 0, 1, 1], [], []>} : vector<8x32xf32>, vector<32x96xf32>, vector<8x96xf32> -> vector<8x96xf32>
    %579 = vector.extract_strided_slice %576 {offsets = [0, 0], sizes = [8, 32], strides = [1, 1]} : vector<8x96xf32> to vector<8x32xf32>
    %580 = vector.extract_strided_slice %578 {offsets = [0, 0], sizes = [8, 32], strides = [1, 1]} : vector<8x96xf32> to vector<8x32xf32>
    %581 = arith.addf %579, %580 : vector<8x32xf32>
    %582 = arith.negf %581 : vector<8x32xf32>
    %583 = math.exp %582 : vector<8x32xf32>
    %cst_170 = arith.constant 1.000000e+00 : f32
    %584 = vector.broadcast %cst_170 : f32 to vector<8x32xf32>
    %585 = arith.addf %584, %583 : vector<8x32xf32>
    %586 = arith.divf %584, %585 : vector<8x32xf32>
    %587 = vector.extract_strided_slice %576 {offsets = [0, 32], sizes = [8, 32], strides = [1, 1]} : vector<8x96xf32> to vector<8x32xf32>
    %588 = vector.extract_strided_slice %578 {offsets = [0, 32], sizes = [8, 32], strides = [1, 1]} : vector<8x96xf32> to vector<8x32xf32>
    %589 = arith.addf %587, %588 : vector<8x32xf32>
    %590 = arith.negf %589 : vector<8x32xf32>
    %591 = math.exp %590 : vector<8x32xf32>
    %cst_171 = arith.constant 1.000000e+00 : f32
    %592 = vector.broadcast %cst_171 : f32 to vector<8x32xf32>
    %593 = arith.addf %592, %591 : vector<8x32xf32>
    %594 = arith.divf %592, %593 : vector<8x32xf32>
    %595 = vector.extract_strided_slice %576 {offsets = [0, 64], sizes = [8, 32], strides = [1, 1]} : vector<8x96xf32> to vector<8x32xf32>
    %596 = vector.extract_strided_slice %578 {offsets = [0, 64], sizes = [8, 32], strides = [1, 1]} : vector<8x96xf32> to vector<8x32xf32>
    %597 = arith.addf %596, %20 : vector<8x32xf32>
    %598 = arith.mulf %586, %597 : vector<8x32xf32>
    %599 = arith.addf %595, %598 : vector<8x32xf32>
    %600 = math.tanh %599 : vector<8x32xf32>
    %cst_172 = arith.constant 1.000000e+00 : f32
    %601 = vector.broadcast %cst_172 : f32 to vector<8x32xf32>
    %602 = arith.subf %601, %594 : vector<8x32xf32>
    %603 = arith.mulf %602, %600 : vector<8x32xf32>
    %604 = arith.mulf %594, %544 : vector<8x32xf32>
    %605 = arith.addf %603, %604 : vector<8x32xf32>
    %c0_173 = arith.constant 0 : index
    %c0_174 = arith.constant 0 : index
    %606 = vector.load %arg26[%c0_173, %c0_174] : memref<64x32xf32, #tpu.memory_space<vmem>>, vector<8x32xf32>
    tpu.vector_store %arg26[%c0_173, %c0_174], %605 {strides = array<i32>} : memref<64x32xf32, #tpu.memory_space<vmem>>, vector<8x32xf32>,
    %c0_175 = arith.constant 0 : index
    %c0_176 = arith.constant 0 : index
    %607 = vector.load %arg14[%c0_175, %c0_176] : memref<32x96xf32, #tpu.memory_space<vmem>>, vector<32x96xf32>
    %cst_177 = arith.constant dense<0.000000e+00> : vector<8x96xf32>
    %608 = tpu.matmul %573, %607, %cst_177 {dimension_numbers = #tpu.dot_dimension_numbers<[1], [0], [0], [1], [0, 0, 1, 1], [], []>} : vector<8x32xf32>, vector<32x96xf32>, vector<8x96xf32> -> vector<8x96xf32>
    %609 = vector.extract_strided_slice %8 {offsets = [0, 0], sizes = [8, 32], strides = [1, 1]} : vector<8x96xf32> to vector<8x32xf32>
    %610 = vector.extract_strided_slice %608 {offsets = [0, 0], sizes = [8, 32], strides = [1, 1]} : vector<8x96xf32> to vector<8x32xf32>
    %611 = arith.addf %609, %610 : vector<8x32xf32>
    %612 = arith.negf %611 : vector<8x32xf32>
    %613 = math.exp %612 : vector<8x32xf32>
    %cst_178 = arith.constant 1.000000e+00 : f32
    %614 = vector.broadcast %cst_178 : f32 to vector<8x32xf32>
    %615 = arith.addf %614, %613 : vector<8x32xf32>
    %616 = arith.divf %614, %615 : vector<8x32xf32>
    %617 = vector.extract_strided_slice %8 {offsets = [0, 32], sizes = [8, 32], strides = [1, 1]} : vector<8x96xf32> to vector<8x32xf32>
    %618 = vector.extract_strided_slice %608 {offsets = [0, 32], sizes = [8, 32], strides = [1, 1]} : vector<8x96xf32> to vector<8x32xf32>
    %619 = arith.addf %617, %618 : vector<8x32xf32>
    %620 = arith.negf %619 : vector<8x32xf32>
    %621 = math.exp %620 : vector<8x32xf32>
    %cst_179 = arith.constant 1.000000e+00 : f32
    %622 = vector.broadcast %cst_179 : f32 to vector<8x32xf32>
    %623 = arith.addf %622, %621 : vector<8x32xf32>
    %624 = arith.divf %622, %623 : vector<8x32xf32>
    %625 = vector.extract_strided_slice %8 {offsets = [0, 64], sizes = [8, 32], strides = [1, 1]} : vector<8x96xf32> to vector<8x32xf32>
    %626 = vector.extract_strided_slice %608 {offsets = [0, 64], sizes = [8, 32], strides = [1, 1]} : vector<8x96xf32> to vector<8x32xf32>
    %627 = arith.addf %626, %17 : vector<8x32xf32>
    %628 = arith.mulf %616, %627 : vector<8x32xf32>
    %629 = arith.addf %625, %628 : vector<8x32xf32>
    %630 = math.tanh %629 : vector<8x32xf32>
    %cst_180 = arith.constant 1.000000e+00 : f32
    %631 = vector.broadcast %cst_180 : f32 to vector<8x32xf32>
    %632 = arith.subf %631, %624 : vector<8x32xf32>
    %633 = arith.mulf %632, %630 : vector<8x32xf32>
    %634 = arith.mulf %624, %573 : vector<8x32xf32>
    %635 = arith.addf %633, %634 : vector<8x32xf32>
    %c0_181 = arith.constant 0 : index
    %c0_182 = arith.constant 0 : index
    %636 = vector.load %arg17[%c0_181, %c0_182] : memref<32x96xf32, #tpu.memory_space<vmem>>, vector<32x96xf32>
    %cst_183 = arith.constant dense<0.000000e+00> : vector<8x96xf32>
    %637 = tpu.matmul %635, %636, %cst_183 {dimension_numbers = #tpu.dot_dimension_numbers<[1], [0], [0], [1], [0, 0, 1, 1], [], []>} : vector<8x32xf32>, vector<32x96xf32>, vector<8x96xf32> -> vector<8x96xf32>
    %638 = arith.addf %637, %5 : vector<8x96xf32>
    %c0_184 = arith.constant 0 : index
    %c0_185 = arith.constant 0 : index
    %639 = vector.load %arg18[%c0_184, %c0_185] : memref<32x96xf32, #tpu.memory_space<vmem>>, vector<32x96xf32>
    %cst_186 = arith.constant dense<0.000000e+00> : vector<8x96xf32>
    %640 = tpu.matmul %605, %639, %cst_186 {dimension_numbers = #tpu.dot_dimension_numbers<[1], [0], [0], [1], [0, 0, 1, 1], [], []>} : vector<8x32xf32>, vector<32x96xf32>, vector<8x96xf32> -> vector<8x96xf32>
    %641 = vector.extract_strided_slice %638 {offsets = [0, 0], sizes = [8, 32], strides = [1, 1]} : vector<8x96xf32> to vector<8x32xf32>
    %642 = vector.extract_strided_slice %640 {offsets = [0, 0], sizes = [8, 32], strides = [1, 1]} : vector<8x96xf32> to vector<8x32xf32>
    %643 = arith.addf %641, %642 : vector<8x32xf32>
    %644 = arith.negf %643 : vector<8x32xf32>
    %645 = math.exp %644 : vector<8x32xf32>
    %cst_187 = arith.constant 1.000000e+00 : f32
    %646 = vector.broadcast %cst_187 : f32 to vector<8x32xf32>
    %647 = arith.addf %646, %645 : vector<8x32xf32>
    %648 = arith.divf %646, %647 : vector<8x32xf32>
    %649 = vector.extract_strided_slice %638 {offsets = [0, 32], sizes = [8, 32], strides = [1, 1]} : vector<8x96xf32> to vector<8x32xf32>
    %650 = vector.extract_strided_slice %640 {offsets = [0, 32], sizes = [8, 32], strides = [1, 1]} : vector<8x96xf32> to vector<8x32xf32>
    %651 = arith.addf %649, %650 : vector<8x32xf32>
    %652 = arith.negf %651 : vector<8x32xf32>
    %653 = math.exp %652 : vector<8x32xf32>
    %cst_188 = arith.constant 1.000000e+00 : f32
    %654 = vector.broadcast %cst_188 : f32 to vector<8x32xf32>
    %655 = arith.addf %654, %653 : vector<8x32xf32>
    %656 = arith.divf %654, %655 : vector<8x32xf32>
    %657 = vector.extract_strided_slice %638 {offsets = [0, 64], sizes = [8, 32], strides = [1, 1]} : vector<8x96xf32> to vector<8x32xf32>
    %658 = vector.extract_strided_slice %640 {offsets = [0, 64], sizes = [8, 32], strides = [1, 1]} : vector<8x96xf32> to vector<8x32xf32>
    %659 = arith.addf %658, %20 : vector<8x32xf32>
    %660 = arith.mulf %648, %659 : vector<8x32xf32>
    %661 = arith.addf %657, %660 : vector<8x32xf32>
    %662 = math.tanh %661 : vector<8x32xf32>
    %cst_189 = arith.constant 1.000000e+00 : f32
    %663 = vector.broadcast %cst_189 : f32 to vector<8x32xf32>
    %664 = arith.subf %663, %656 : vector<8x32xf32>
    %665 = arith.mulf %664, %662 : vector<8x32xf32>
    %666 = arith.mulf %656, %605 : vector<8x32xf32>
    %667 = arith.addf %665, %666 : vector<8x32xf32>
    %c8 = arith.constant 8 : index
    %c0_190 = arith.constant 0 : index
    %668 = vector.load %arg26[%c8, %c0_190] : memref<64x32xf32, #tpu.memory_space<vmem>>, vector<8x32xf32>
    tpu.vector_store %arg26[%c8, %c0_190], %667 {strides = array<i32>} : memref<64x32xf32, #tpu.memory_space<vmem>>, vector<8x32xf32>,
    %c0_191 = arith.constant 0 : index
    %c0_192 = arith.constant 0 : index
    %669 = vector.load %arg14[%c0_191, %c0_192] : memref<32x96xf32, #tpu.memory_space<vmem>>, vector<32x96xf32>
    %cst_193 = arith.constant dense<0.000000e+00> : vector<8x96xf32>
    %670 = tpu.matmul %635, %669, %cst_193 {dimension_numbers = #tpu.dot_dimension_numbers<[1], [0], [0], [1], [0, 0, 1, 1], [], []>} : vector<8x32xf32>, vector<32x96xf32>, vector<8x96xf32> -> vector<8x96xf32>
    %671 = vector.extract_strided_slice %8 {offsets = [0, 0], sizes = [8, 32], strides = [1, 1]} : vector<8x96xf32> to vector<8x32xf32>
    %672 = vector.extract_strided_slice %670 {offsets = [0, 0], sizes = [8, 32], strides = [1, 1]} : vector<8x96xf32> to vector<8x32xf32>
    %673 = arith.addf %671, %672 : vector<8x32xf32>
    %674 = arith.negf %673 : vector<8x32xf32>
    %675 = math.exp %674 : vector<8x32xf32>
    %cst_194 = arith.constant 1.000000e+00 : f32
    %676 = vector.broadcast %cst_194 : f32 to vector<8x32xf32>
    %677 = arith.addf %676, %675 : vector<8x32xf32>
    %678 = arith.divf %676, %677 : vector<8x32xf32>
    %679 = vector.extract_strided_slice %8 {offsets = [0, 32], sizes = [8, 32], strides = [1, 1]} : vector<8x96xf32> to vector<8x32xf32>
    %680 = vector.extract_strided_slice %670 {offsets = [0, 32], sizes = [8, 32], strides = [1, 1]} : vector<8x96xf32> to vector<8x32xf32>
    %681 = arith.addf %679, %680 : vector<8x32xf32>
    %682 = arith.negf %681 : vector<8x32xf32>
    %683 = math.exp %682 : vector<8x32xf32>
    %cst_195 = arith.constant 1.000000e+00 : f32
    %684 = vector.broadcast %cst_195 : f32 to vector<8x32xf32>
    %685 = arith.addf %684, %683 : vector<8x32xf32>
    %686 = arith.divf %684, %685 : vector<8x32xf32>
    %687 = vector.extract_strided_slice %8 {offsets = [0, 64], sizes = [8, 32], strides = [1, 1]} : vector<8x96xf32> to vector<8x32xf32>
    %688 = vector.extract_strided_slice %670 {offsets = [0, 64], sizes = [8, 32], strides = [1, 1]} : vector<8x96xf32> to vector<8x32xf32>
    %689 = arith.addf %688, %17 : vector<8x32xf32>
    %690 = arith.mulf %678, %689 : vector<8x32xf32>
    %691 = arith.addf %687, %690 : vector<8x32xf32>
    %692 = math.tanh %691 : vector<8x32xf32>
    %cst_196 = arith.constant 1.000000e+00 : f32
    %693 = vector.broadcast %cst_196 : f32 to vector<8x32xf32>
    %694 = arith.subf %693, %686 : vector<8x32xf32>
    %695 = arith.mulf %694, %692 : vector<8x32xf32>
    %696 = arith.mulf %686, %635 : vector<8x32xf32>
    %697 = arith.addf %695, %696 : vector<8x32xf32>
    %c0_197 = arith.constant 0 : index
    %c0_198 = arith.constant 0 : index
    %698 = vector.load %arg17[%c0_197, %c0_198] : memref<32x96xf32, #tpu.memory_space<vmem>>, vector<32x96xf32>
    %cst_199 = arith.constant dense<0.000000e+00> : vector<8x96xf32>
    %699 = tpu.matmul %697, %698, %cst_199 {dimension_numbers = #tpu.dot_dimension_numbers<[1], [0], [0], [1], [0, 0, 1, 1], [], []>} : vector<8x32xf32>, vector<32x96xf32>, vector<8x96xf32> -> vector<8x96xf32>
    %700 = arith.addf %699, %5 : vector<8x96xf32>
    %c0_200 = arith.constant 0 : index
    %c0_201 = arith.constant 0 : index
    %701 = vector.load %arg18[%c0_200, %c0_201] : memref<32x96xf32, #tpu.memory_space<vmem>>, vector<32x96xf32>
    %cst_202 = arith.constant dense<0.000000e+00> : vector<8x96xf32>
    %702 = tpu.matmul %667, %701, %cst_202 {dimension_numbers = #tpu.dot_dimension_numbers<[1], [0], [0], [1], [0, 0, 1, 1], [], []>} : vector<8x32xf32>, vector<32x96xf32>, vector<8x96xf32> -> vector<8x96xf32>
    %703 = vector.extract_strided_slice %700 {offsets = [0, 0], sizes = [8, 32], strides = [1, 1]} : vector<8x96xf32> to vector<8x32xf32>
    %704 = vector.extract_strided_slice %702 {offsets = [0, 0], sizes = [8, 32], strides = [1, 1]} : vector<8x96xf32> to vector<8x32xf32>
    %705 = arith.addf %703, %704 : vector<8x32xf32>
    %706 = arith.negf %705 : vector<8x32xf32>
    %707 = math.exp %706 : vector<8x32xf32>
    %cst_203 = arith.constant 1.000000e+00 : f32
    %708 = vector.broadcast %cst_203 : f32 to vector<8x32xf32>
    %709 = arith.addf %708, %707 : vector<8x32xf32>
    %710 = arith.divf %708, %709 : vector<8x32xf32>
    %711 = vector.extract_strided_slice %700 {offsets = [0, 32], sizes = [8, 32], strides = [1, 1]} : vector<8x96xf32> to vector<8x32xf32>
    %712 = vector.extract_strided_slice %702 {offsets = [0, 32], sizes = [8, 32], strides = [1, 1]} : vector<8x96xf32> to vector<8x32xf32>
    %713 = arith.addf %711, %712 : vector<8x32xf32>
    %714 = arith.negf %713 : vector<8x32xf32>
    %715 = math.exp %714 : vector<8x32xf32>
    %cst_204 = arith.constant 1.000000e+00 : f32
    %716 = vector.broadcast %cst_204 : f32 to vector<8x32xf32>
    %717 = arith.addf %716, %715 : vector<8x32xf32>
    %718 = arith.divf %716, %717 : vector<8x32xf32>
    %719 = vector.extract_strided_slice %700 {offsets = [0, 64], sizes = [8, 32], strides = [1, 1]} : vector<8x96xf32> to vector<8x32xf32>
    %720 = vector.extract_strided_slice %702 {offsets = [0, 64], sizes = [8, 32], strides = [1, 1]} : vector<8x96xf32> to vector<8x32xf32>
    %721 = arith.addf %720, %20 : vector<8x32xf32>
    %722 = arith.mulf %710, %721 : vector<8x32xf32>
    %723 = arith.addf %719, %722 : vector<8x32xf32>
    %724 = math.tanh %723 : vector<8x32xf32>
    %cst_205 = arith.constant 1.000000e+00 : f32
    %725 = vector.broadcast %cst_205 : f32 to vector<8x32xf32>
    %726 = arith.subf %725, %718 : vector<8x32xf32>
    %727 = arith.mulf %726, %724 : vector<8x32xf32>
    %728 = arith.mulf %718, %667 : vector<8x32xf32>
    %729 = arith.addf %727, %728 : vector<8x32xf32>
    %c16 = arith.constant 16 : index
    %c0_206 = arith.constant 0 : index
    %730 = vector.load %arg26[%c16, %c0_206] : memref<64x32xf32, #tpu.memory_space<vmem>>, vector<8x32xf32>
    tpu.vector_store %arg26[%c16, %c0_206], %729 {strides = array<i32>} : memref<64x32xf32, #tpu.memory_space<vmem>>, vector<8x32xf32>,
    %c0_207 = arith.constant 0 : index
    %c0_208 = arith.constant 0 : index
    %731 = vector.load %arg14[%c0_207, %c0_208] : memref<32x96xf32, #tpu.memory_space<vmem>>, vector<32x96xf32>
    %cst_209 = arith.constant dense<0.000000e+00> : vector<8x96xf32>
    %732 = tpu.matmul %697, %731, %cst_209 {dimension_numbers = #tpu.dot_dimension_numbers<[1], [0], [0], [1], [0, 0, 1, 1], [], []>} : vector<8x32xf32>, vector<32x96xf32>, vector<8x96xf32> -> vector<8x96xf32>
    %733 = vector.extract_strided_slice %8 {offsets = [0, 0], sizes = [8, 32], strides = [1, 1]} : vector<8x96xf32> to vector<8x32xf32>
    %734 = vector.extract_strided_slice %732 {offsets = [0, 0], sizes = [8, 32], strides = [1, 1]} : vector<8x96xf32> to vector<8x32xf32>
    %735 = arith.addf %733, %734 : vector<8x32xf32>
    %736 = arith.negf %735 : vector<8x32xf32>
    %737 = math.exp %736 : vector<8x32xf32>
    %cst_210 = arith.constant 1.000000e+00 : f32
    %738 = vector.broadcast %cst_210 : f32 to vector<8x32xf32>
    %739 = arith.addf %738, %737 : vector<8x32xf32>
    %740 = arith.divf %738, %739 : vector<8x32xf32>
    %741 = vector.extract_strided_slice %8 {offsets = [0, 32], sizes = [8, 32], strides = [1, 1]} : vector<8x96xf32> to vector<8x32xf32>
    %742 = vector.extract_strided_slice %732 {offsets = [0, 32], sizes = [8, 32], strides = [1, 1]} : vector<8x96xf32> to vector<8x32xf32>
    %743 = arith.addf %741, %742 : vector<8x32xf32>
    %744 = arith.negf %743 : vector<8x32xf32>
    %745 = math.exp %744 : vector<8x32xf32>
    %cst_211 = arith.constant 1.000000e+00 : f32
    %746 = vector.broadcast %cst_211 : f32 to vector<8x32xf32>
    %747 = arith.addf %746, %745 : vector<8x32xf32>
    %748 = arith.divf %746, %747 : vector<8x32xf32>
    %749 = vector.extract_strided_slice %8 {offsets = [0, 64], sizes = [8, 32], strides = [1, 1]} : vector<8x96xf32> to vector<8x32xf32>
    %750 = vector.extract_strided_slice %732 {offsets = [0, 64], sizes = [8, 32], strides = [1, 1]} : vector<8x96xf32> to vector<8x32xf32>
    %751 = arith.addf %750, %17 : vector<8x32xf32>
    %752 = arith.mulf %740, %751 : vector<8x32xf32>
    %753 = arith.addf %749, %752 : vector<8x32xf32>
    %754 = math.tanh %753 : vector<8x32xf32>
    %cst_212 = arith.constant 1.000000e+00 : f32
    %755 = vector.broadcast %cst_212 : f32 to vector<8x32xf32>
    %756 = arith.subf %755, %748 : vector<8x32xf32>
    %757 = arith.mulf %756, %754 : vector<8x32xf32>
    %758 = arith.mulf %748, %697 : vector<8x32xf32>
    %759 = arith.addf %757, %758 : vector<8x32xf32>
    %c0_213 = arith.constant 0 : index
    %c0_214 = arith.constant 0 : index
    %760 = vector.load %arg17[%c0_213, %c0_214] : memref<32x96xf32, #tpu.memory_space<vmem>>, vector<32x96xf32>
    %cst_215 = arith.constant dense<0.000000e+00> : vector<8x96xf32>
    %761 = tpu.matmul %759, %760, %cst_215 {dimension_numbers = #tpu.dot_dimension_numbers<[1], [0], [0], [1], [0, 0, 1, 1], [], []>} : vector<8x32xf32>, vector<32x96xf32>, vector<8x96xf32> -> vector<8x96xf32>
    %762 = arith.addf %761, %5 : vector<8x96xf32>
    %c0_216 = arith.constant 0 : index
    %c0_217 = arith.constant 0 : index
    %763 = vector.load %arg18[%c0_216, %c0_217] : memref<32x96xf32, #tpu.memory_space<vmem>>, vector<32x96xf32>
    %cst_218 = arith.constant dense<0.000000e+00> : vector<8x96xf32>
    %764 = tpu.matmul %729, %763, %cst_218 {dimension_numbers = #tpu.dot_dimension_numbers<[1], [0], [0], [1], [0, 0, 1, 1], [], []>} : vector<8x32xf32>, vector<32x96xf32>, vector<8x96xf32> -> vector<8x96xf32>
    %765 = vector.extract_strided_slice %762 {offsets = [0, 0], sizes = [8, 32], strides = [1, 1]} : vector<8x96xf32> to vector<8x32xf32>
    %766 = vector.extract_strided_slice %764 {offsets = [0, 0], sizes = [8, 32], strides = [1, 1]} : vector<8x96xf32> to vector<8x32xf32>
    %767 = arith.addf %765, %766 : vector<8x32xf32>
    %768 = arith.negf %767 : vector<8x32xf32>
    %769 = math.exp %768 : vector<8x32xf32>
    %cst_219 = arith.constant 1.000000e+00 : f32
    %770 = vector.broadcast %cst_219 : f32 to vector<8x32xf32>
    %771 = arith.addf %770, %769 : vector<8x32xf32>
    %772 = arith.divf %770, %771 : vector<8x32xf32>
    %773 = vector.extract_strided_slice %762 {offsets = [0, 32], sizes = [8, 32], strides = [1, 1]} : vector<8x96xf32> to vector<8x32xf32>
    %774 = vector.extract_strided_slice %764 {offsets = [0, 32], sizes = [8, 32], strides = [1, 1]} : vector<8x96xf32> to vector<8x32xf32>
    %775 = arith.addf %773, %774 : vector<8x32xf32>
    %776 = arith.negf %775 : vector<8x32xf32>
    %777 = math.exp %776 : vector<8x32xf32>
    %cst_220 = arith.constant 1.000000e+00 : f32
    %778 = vector.broadcast %cst_220 : f32 to vector<8x32xf32>
    %779 = arith.addf %778, %777 : vector<8x32xf32>
    %780 = arith.divf %778, %779 : vector<8x32xf32>
    %781 = vector.extract_strided_slice %762 {offsets = [0, 64], sizes = [8, 32], strides = [1, 1]} : vector<8x96xf32> to vector<8x32xf32>
    %782 = vector.extract_strided_slice %764 {offsets = [0, 64], sizes = [8, 32], strides = [1, 1]} : vector<8x96xf32> to vector<8x32xf32>
    %783 = arith.addf %782, %20 : vector<8x32xf32>
    %784 = arith.mulf %772, %783 : vector<8x32xf32>
    %785 = arith.addf %781, %784 : vector<8x32xf32>
    %786 = math.tanh %785 : vector<8x32xf32>
    %cst_221 = arith.constant 1.000000e+00 : f32
    %787 = vector.broadcast %cst_221 : f32 to vector<8x32xf32>
    %788 = arith.subf %787, %780 : vector<8x32xf32>
    %789 = arith.mulf %788, %786 : vector<8x32xf32>
    %790 = arith.mulf %780, %729 : vector<8x32xf32>
    %791 = arith.addf %789, %790 : vector<8x32xf32>
    %c24 = arith.constant 24 : index
    %c0_222 = arith.constant 0 : index
    %792 = vector.load %arg26[%c24, %c0_222] : memref<64x32xf32, #tpu.memory_space<vmem>>, vector<8x32xf32>
    tpu.vector_store %arg26[%c24, %c0_222], %791 {strides = array<i32>} : memref<64x32xf32, #tpu.memory_space<vmem>>, vector<8x32xf32>,
    %c0_223 = arith.constant 0 : index
    %c0_224 = arith.constant 0 : index
    %793 = vector.load %arg14[%c0_223, %c0_224] : memref<32x96xf32, #tpu.memory_space<vmem>>, vector<32x96xf32>
    %cst_225 = arith.constant dense<0.000000e+00> : vector<8x96xf32>
    %794 = tpu.matmul %759, %793, %cst_225 {dimension_numbers = #tpu.dot_dimension_numbers<[1], [0], [0], [1], [0, 0, 1, 1], [], []>} : vector<8x32xf32>, vector<32x96xf32>, vector<8x96xf32> -> vector<8x96xf32>
    %795 = vector.extract_strided_slice %8 {offsets = [0, 0], sizes = [8, 32], strides = [1, 1]} : vector<8x96xf32> to vector<8x32xf32>
    %796 = vector.extract_strided_slice %794 {offsets = [0, 0], sizes = [8, 32], strides = [1, 1]} : vector<8x96xf32> to vector<8x32xf32>
    %797 = arith.addf %795, %796 : vector<8x32xf32>
    %798 = arith.negf %797 : vector<8x32xf32>
    %799 = math.exp %798 : vector<8x32xf32>
    %cst_226 = arith.constant 1.000000e+00 : f32
    %800 = vector.broadcast %cst_226 : f32 to vector<8x32xf32>
    %801 = arith.addf %800, %799 : vector<8x32xf32>
    %802 = arith.divf %800, %801 : vector<8x32xf32>
    %803 = vector.extract_strided_slice %8 {offsets = [0, 32], sizes = [8, 32], strides = [1, 1]} : vector<8x96xf32> to vector<8x32xf32>
    %804 = vector.extract_strided_slice %794 {offsets = [0, 32], sizes = [8, 32], strides = [1, 1]} : vector<8x96xf32> to vector<8x32xf32>
    %805 = arith.addf %803, %804 : vector<8x32xf32>
    %806 = arith.negf %805 : vector<8x32xf32>
    %807 = math.exp %806 : vector<8x32xf32>
    %cst_227 = arith.constant 1.000000e+00 : f32
    %808 = vector.broadcast %cst_227 : f32 to vector<8x32xf32>
    %809 = arith.addf %808, %807 : vector<8x32xf32>
    %810 = arith.divf %808, %809 : vector<8x32xf32>
    %811 = vector.extract_strided_slice %8 {offsets = [0, 64], sizes = [8, 32], strides = [1, 1]} : vector<8x96xf32> to vector<8x32xf32>
    %812 = vector.extract_strided_slice %794 {offsets = [0, 64], sizes = [8, 32], strides = [1, 1]} : vector<8x96xf32> to vector<8x32xf32>
    %813 = arith.addf %812, %17 : vector<8x32xf32>
    %814 = arith.mulf %802, %813 : vector<8x32xf32>
    %815 = arith.addf %811, %814 : vector<8x32xf32>
    %816 = math.tanh %815 : vector<8x32xf32>
    %cst_228 = arith.constant 1.000000e+00 : f32
    %817 = vector.broadcast %cst_228 : f32 to vector<8x32xf32>
    %818 = arith.subf %817, %810 : vector<8x32xf32>
    %819 = arith.mulf %818, %816 : vector<8x32xf32>
    %820 = arith.mulf %810, %759 : vector<8x32xf32>
    %821 = arith.addf %819, %820 : vector<8x32xf32>
    %c0_229 = arith.constant 0 : index
    %c0_230 = arith.constant 0 : index
    %822 = vector.load %arg17[%c0_229, %c0_230] : memref<32x96xf32, #tpu.memory_space<vmem>>, vector<32x96xf32>
    %cst_231 = arith.constant dense<0.000000e+00> : vector<8x96xf32>
    %823 = tpu.matmul %821, %822, %cst_231 {dimension_numbers = #tpu.dot_dimension_numbers<[1], [0], [0], [1], [0, 0, 1, 1], [], []>} : vector<8x32xf32>, vector<32x96xf32>, vector<8x96xf32> -> vector<8x96xf32>
    %824 = arith.addf %823, %5 : vector<8x96xf32>
    %c0_232 = arith.constant 0 : index
    %c0_233 = arith.constant 0 : index
    %825 = vector.load %arg18[%c0_232, %c0_233] : memref<32x96xf32, #tpu.memory_space<vmem>>, vector<32x96xf32>
    %cst_234 = arith.constant dense<0.000000e+00> : vector<8x96xf32>
    %826 = tpu.matmul %791, %825, %cst_234 {dimension_numbers = #tpu.dot_dimension_numbers<[1], [0], [0], [1], [0, 0, 1, 1], [], []>} : vector<8x32xf32>, vector<32x96xf32>, vector<8x96xf32> -> vector<8x96xf32>
    %827 = vector.extract_strided_slice %824 {offsets = [0, 0], sizes = [8, 32], strides = [1, 1]} : vector<8x96xf32> to vector<8x32xf32>
    %828 = vector.extract_strided_slice %826 {offsets = [0, 0], sizes = [8, 32], strides = [1, 1]} : vector<8x96xf32> to vector<8x32xf32>
    %829 = arith.addf %827, %828 : vector<8x32xf32>
    %830 = arith.negf %829 : vector<8x32xf32>
    %831 = math.exp %830 : vector<8x32xf32>
    %cst_235 = arith.constant 1.000000e+00 : f32
    %832 = vector.broadcast %cst_235 : f32 to vector<8x32xf32>
    %833 = arith.addf %832, %831 : vector<8x32xf32>
    %834 = arith.divf %832, %833 : vector<8x32xf32>
    %835 = vector.extract_strided_slice %824 {offsets = [0, 32], sizes = [8, 32], strides = [1, 1]} : vector<8x96xf32> to vector<8x32xf32>
    %836 = vector.extract_strided_slice %826 {offsets = [0, 32], sizes = [8, 32], strides = [1, 1]} : vector<8x96xf32> to vector<8x32xf32>
    %837 = arith.addf %835, %836 : vector<8x32xf32>
    %838 = arith.negf %837 : vector<8x32xf32>
    %839 = math.exp %838 : vector<8x32xf32>
    %cst_236 = arith.constant 1.000000e+00 : f32
    %840 = vector.broadcast %cst_236 : f32 to vector<8x32xf32>
    %841 = arith.addf %840, %839 : vector<8x32xf32>
    %842 = arith.divf %840, %841 : vector<8x32xf32>
    %843 = vector.extract_strided_slice %824 {offsets = [0, 64], sizes = [8, 32], strides = [1, 1]} : vector<8x96xf32> to vector<8x32xf32>
    %844 = vector.extract_strided_slice %826 {offsets = [0, 64], sizes = [8, 32], strides = [1, 1]} : vector<8x96xf32> to vector<8x32xf32>
    %845 = arith.addf %844, %20 : vector<8x32xf32>
    %846 = arith.mulf %834, %845 : vector<8x32xf32>
    %847 = arith.addf %843, %846 : vector<8x32xf32>
    %848 = math.tanh %847 : vector<8x32xf32>
    %cst_237 = arith.constant 1.000000e+00 : f32
    %849 = vector.broadcast %cst_237 : f32 to vector<8x32xf32>
    %850 = arith.subf %849, %842 : vector<8x32xf32>
    %851 = arith.mulf %850, %848 : vector<8x32xf32>
    %852 = arith.mulf %842, %791 : vector<8x32xf32>
    %853 = arith.addf %851, %852 : vector<8x32xf32>
    %c32 = arith.constant 32 : index
    %c0_238 = arith.constant 0 : index
    %854 = vector.load %arg26[%c32, %c0_238] : memref<64x32xf32, #tpu.memory_space<vmem>>, vector<8x32xf32>
    tpu.vector_store %arg26[%c32, %c0_238], %853 {strides = array<i32>} : memref<64x32xf32, #tpu.memory_space<vmem>>, vector<8x32xf32>,
    %c0_239 = arith.constant 0 : index
    %c0_240 = arith.constant 0 : index
    %855 = vector.load %arg14[%c0_239, %c0_240] : memref<32x96xf32, #tpu.memory_space<vmem>>, vector<32x96xf32>
    %cst_241 = arith.constant dense<0.000000e+00> : vector<8x96xf32>
    %856 = tpu.matmul %821, %855, %cst_241 {dimension_numbers = #tpu.dot_dimension_numbers<[1], [0], [0], [1], [0, 0, 1, 1], [], []>} : vector<8x32xf32>, vector<32x96xf32>, vector<8x96xf32> -> vector<8x96xf32>
    %857 = vector.extract_strided_slice %8 {offsets = [0, 0], sizes = [8, 32], strides = [1, 1]} : vector<8x96xf32> to vector<8x32xf32>
    %858 = vector.extract_strided_slice %856 {offsets = [0, 0], sizes = [8, 32], strides = [1, 1]} : vector<8x96xf32> to vector<8x32xf32>
    %859 = arith.addf %857, %858 : vector<8x32xf32>
    %860 = arith.negf %859 : vector<8x32xf32>
    %861 = math.exp %860 : vector<8x32xf32>
    %cst_242 = arith.constant 1.000000e+00 : f32
    %862 = vector.broadcast %cst_242 : f32 to vector<8x32xf32>
    %863 = arith.addf %862, %861 : vector<8x32xf32>
    %864 = arith.divf %862, %863 : vector<8x32xf32>
    %865 = vector.extract_strided_slice %8 {offsets = [0, 32], sizes = [8, 32], strides = [1, 1]} : vector<8x96xf32> to vector<8x32xf32>
    %866 = vector.extract_strided_slice %856 {offsets = [0, 32], sizes = [8, 32], strides = [1, 1]} : vector<8x96xf32> to vector<8x32xf32>
    %867 = arith.addf %865, %866 : vector<8x32xf32>
    %868 = arith.negf %867 : vector<8x32xf32>
    %869 = math.exp %868 : vector<8x32xf32>
    %cst_243 = arith.constant 1.000000e+00 : f32
    %870 = vector.broadcast %cst_243 : f32 to vector<8x32xf32>
    %871 = arith.addf %870, %869 : vector<8x32xf32>
    %872 = arith.divf %870, %871 : vector<8x32xf32>
    %873 = vector.extract_strided_slice %8 {offsets = [0, 64], sizes = [8, 32], strides = [1, 1]} : vector<8x96xf32> to vector<8x32xf32>
    %874 = vector.extract_strided_slice %856 {offsets = [0, 64], sizes = [8, 32], strides = [1, 1]} : vector<8x96xf32> to vector<8x32xf32>
    %875 = arith.addf %874, %17 : vector<8x32xf32>
    %876 = arith.mulf %864, %875 : vector<8x32xf32>
    %877 = arith.addf %873, %876 : vector<8x32xf32>
    %878 = math.tanh %877 : vector<8x32xf32>
    %cst_244 = arith.constant 1.000000e+00 : f32
    %879 = vector.broadcast %cst_244 : f32 to vector<8x32xf32>
    %880 = arith.subf %879, %872 : vector<8x32xf32>
    %881 = arith.mulf %880, %878 : vector<8x32xf32>
    %882 = arith.mulf %872, %821 : vector<8x32xf32>
    %883 = arith.addf %881, %882 : vector<8x32xf32>
    %c0_245 = arith.constant 0 : index
    %c0_246 = arith.constant 0 : index
    %884 = vector.load %arg17[%c0_245, %c0_246] : memref<32x96xf32, #tpu.memory_space<vmem>>, vector<32x96xf32>
    %cst_247 = arith.constant dense<0.000000e+00> : vector<8x96xf32>
    %885 = tpu.matmul %883, %884, %cst_247 {dimension_numbers = #tpu.dot_dimension_numbers<[1], [0], [0], [1], [0, 0, 1, 1], [], []>} : vector<8x32xf32>, vector<32x96xf32>, vector<8x96xf32> -> vector<8x96xf32>
    %886 = arith.addf %885, %5 : vector<8x96xf32>
    %c0_248 = arith.constant 0 : index
    %c0_249 = arith.constant 0 : index
    %887 = vector.load %arg18[%c0_248, %c0_249] : memref<32x96xf32, #tpu.memory_space<vmem>>, vector<32x96xf32>
    %cst_250 = arith.constant dense<0.000000e+00> : vector<8x96xf32>
    %888 = tpu.matmul %853, %887, %cst_250 {dimension_numbers = #tpu.dot_dimension_numbers<[1], [0], [0], [1], [0, 0, 1, 1], [], []>} : vector<8x32xf32>, vector<32x96xf32>, vector<8x96xf32> -> vector<8x96xf32>
    %889 = vector.extract_strided_slice %886 {offsets = [0, 0], sizes = [8, 32], strides = [1, 1]} : vector<8x96xf32> to vector<8x32xf32>
    %890 = vector.extract_strided_slice %888 {offsets = [0, 0], sizes = [8, 32], strides = [1, 1]} : vector<8x96xf32> to vector<8x32xf32>
    %891 = arith.addf %889, %890 : vector<8x32xf32>
    %892 = arith.negf %891 : vector<8x32xf32>
    %893 = math.exp %892 : vector<8x32xf32>
    %cst_251 = arith.constant 1.000000e+00 : f32
    %894 = vector.broadcast %cst_251 : f32 to vector<8x32xf32>
    %895 = arith.addf %894, %893 : vector<8x32xf32>
    %896 = arith.divf %894, %895 : vector<8x32xf32>
    %897 = vector.extract_strided_slice %886 {offsets = [0, 32], sizes = [8, 32], strides = [1, 1]} : vector<8x96xf32> to vector<8x32xf32>
    %898 = vector.extract_strided_slice %888 {offsets = [0, 32], sizes = [8, 32], strides = [1, 1]} : vector<8x96xf32> to vector<8x32xf32>
    %899 = arith.addf %897, %898 : vector<8x32xf32>
    %900 = arith.negf %899 : vector<8x32xf32>
    %901 = math.exp %900 : vector<8x32xf32>
    %cst_252 = arith.constant 1.000000e+00 : f32
    %902 = vector.broadcast %cst_252 : f32 to vector<8x32xf32>
    %903 = arith.addf %902, %901 : vector<8x32xf32>
    %904 = arith.divf %902, %903 : vector<8x32xf32>
    %905 = vector.extract_strided_slice %886 {offsets = [0, 64], sizes = [8, 32], strides = [1, 1]} : vector<8x96xf32> to vector<8x32xf32>
    %906 = vector.extract_strided_slice %888 {offsets = [0, 64], sizes = [8, 32], strides = [1, 1]} : vector<8x96xf32> to vector<8x32xf32>
    %907 = arith.addf %906, %20 : vector<8x32xf32>
    %908 = arith.mulf %896, %907 : vector<8x32xf32>
    %909 = arith.addf %905, %908 : vector<8x32xf32>
    %910 = math.tanh %909 : vector<8x32xf32>
    %cst_253 = arith.constant 1.000000e+00 : f32
    %911 = vector.broadcast %cst_253 : f32 to vector<8x32xf32>
    %912 = arith.subf %911, %904 : vector<8x32xf32>
    %913 = arith.mulf %912, %910 : vector<8x32xf32>
    %914 = arith.mulf %904, %853 : vector<8x32xf32>
    %915 = arith.addf %913, %914 : vector<8x32xf32>
    %c40 = arith.constant 40 : index
    %c0_254 = arith.constant 0 : index
    %916 = vector.load %arg26[%c40, %c0_254] : memref<64x32xf32, #tpu.memory_space<vmem>>, vector<8x32xf32>
    tpu.vector_store %arg26[%c40, %c0_254], %915 {strides = array<i32>} : memref<64x32xf32, #tpu.memory_space<vmem>>, vector<8x32xf32>,
    %c0_255 = arith.constant 0 : index
    %c0_256 = arith.constant 0 : index
    %917 = vector.load %arg14[%c0_255, %c0_256] : memref<32x96xf32, #tpu.memory_space<vmem>>, vector<32x96xf32>
    %cst_257 = arith.constant dense<0.000000e+00> : vector<8x96xf32>
    %918 = tpu.matmul %883, %917, %cst_257 {dimension_numbers = #tpu.dot_dimension_numbers<[1], [0], [0], [1], [0, 0, 1, 1], [], []>} : vector<8x32xf32>, vector<32x96xf32>, vector<8x96xf32> -> vector<8x96xf32>
    %919 = vector.extract_strided_slice %8 {offsets = [0, 0], sizes = [8, 32], strides = [1, 1]} : vector<8x96xf32> to vector<8x32xf32>
    %920 = vector.extract_strided_slice %918 {offsets = [0, 0], sizes = [8, 32], strides = [1, 1]} : vector<8x96xf32> to vector<8x32xf32>
    %921 = arith.addf %919, %920 : vector<8x32xf32>
    %922 = arith.negf %921 : vector<8x32xf32>
    %923 = math.exp %922 : vector<8x32xf32>
    %cst_258 = arith.constant 1.000000e+00 : f32
    %924 = vector.broadcast %cst_258 : f32 to vector<8x32xf32>
    %925 = arith.addf %924, %923 : vector<8x32xf32>
    %926 = arith.divf %924, %925 : vector<8x32xf32>
    %927 = vector.extract_strided_slice %8 {offsets = [0, 32], sizes = [8, 32], strides = [1, 1]} : vector<8x96xf32> to vector<8x32xf32>
    %928 = vector.extract_strided_slice %918 {offsets = [0, 32], sizes = [8, 32], strides = [1, 1]} : vector<8x96xf32> to vector<8x32xf32>
    %929 = arith.addf %927, %928 : vector<8x32xf32>
    %930 = arith.negf %929 : vector<8x32xf32>
    %931 = math.exp %930 : vector<8x32xf32>
    %cst_259 = arith.constant 1.000000e+00 : f32
    %932 = vector.broadcast %cst_259 : f32 to vector<8x32xf32>
    %933 = arith.addf %932, %931 : vector<8x32xf32>
    %934 = arith.divf %932, %933 : vector<8x32xf32>
    %935 = vector.extract_strided_slice %8 {offsets = [0, 64], sizes = [8, 32], strides = [1, 1]} : vector<8x96xf32> to vector<8x32xf32>
    %936 = vector.extract_strided_slice %918 {offsets = [0, 64], sizes = [8, 32], strides = [1, 1]} : vector<8x96xf32> to vector<8x32xf32>
    %937 = arith.addf %936, %17 : vector<8x32xf32>
    %938 = arith.mulf %926, %937 : vector<8x32xf32>
    %939 = arith.addf %935, %938 : vector<8x32xf32>
    %940 = math.tanh %939 : vector<8x32xf32>
    %cst_260 = arith.constant 1.000000e+00 : f32
    %941 = vector.broadcast %cst_260 : f32 to vector<8x32xf32>
    %942 = arith.subf %941, %934 : vector<8x32xf32>
    %943 = arith.mulf %942, %940 : vector<8x32xf32>
    %944 = arith.mulf %934, %883 : vector<8x32xf32>
    %945 = arith.addf %943, %944 : vector<8x32xf32>
    %c0_261 = arith.constant 0 : index
    %c0_262 = arith.constant 0 : index
    %946 = vector.load %arg17[%c0_261, %c0_262] : memref<32x96xf32, #tpu.memory_space<vmem>>, vector<32x96xf32>
    %cst_263 = arith.constant dense<0.000000e+00> : vector<8x96xf32>
    %947 = tpu.matmul %945, %946, %cst_263 {dimension_numbers = #tpu.dot_dimension_numbers<[1], [0], [0], [1], [0, 0, 1, 1], [], []>} : vector<8x32xf32>, vector<32x96xf32>, vector<8x96xf32> -> vector<8x96xf32>
    %948 = arith.addf %947, %5 : vector<8x96xf32>
    %c0_264 = arith.constant 0 : index
    %c0_265 = arith.constant 0 : index
    %949 = vector.load %arg18[%c0_264, %c0_265] : memref<32x96xf32, #tpu.memory_space<vmem>>, vector<32x96xf32>
    %cst_266 = arith.constant dense<0.000000e+00> : vector<8x96xf32>
    %950 = tpu.matmul %915, %949, %cst_266 {dimension_numbers = #tpu.dot_dimension_numbers<[1], [0], [0], [1], [0, 0, 1, 1], [], []>} : vector<8x32xf32>, vector<32x96xf32>, vector<8x96xf32> -> vector<8x96xf32>
    %951 = vector.extract_strided_slice %948 {offsets = [0, 0], sizes = [8, 32], strides = [1, 1]} : vector<8x96xf32> to vector<8x32xf32>
    %952 = vector.extract_strided_slice %950 {offsets = [0, 0], sizes = [8, 32], strides = [1, 1]} : vector<8x96xf32> to vector<8x32xf32>
    %953 = arith.addf %951, %952 : vector<8x32xf32>
    %954 = arith.negf %953 : vector<8x32xf32>
    %955 = math.exp %954 : vector<8x32xf32>
    %cst_267 = arith.constant 1.000000e+00 : f32
    %956 = vector.broadcast %cst_267 : f32 to vector<8x32xf32>
    %957 = arith.addf %956, %955 : vector<8x32xf32>
    %958 = arith.divf %956, %957 : vector<8x32xf32>
    %959 = vector.extract_strided_slice %948 {offsets = [0, 32], sizes = [8, 32], strides = [1, 1]} : vector<8x96xf32> to vector<8x32xf32>
    %960 = vector.extract_strided_slice %950 {offsets = [0, 32], sizes = [8, 32], strides = [1, 1]} : vector<8x96xf32> to vector<8x32xf32>
    %961 = arith.addf %959, %960 : vector<8x32xf32>
    %962 = arith.negf %961 : vector<8x32xf32>
    %963 = math.exp %962 : vector<8x32xf32>
    %cst_268 = arith.constant 1.000000e+00 : f32
    %964 = vector.broadcast %cst_268 : f32 to vector<8x32xf32>
    %965 = arith.addf %964, %963 : vector<8x32xf32>
    %966 = arith.divf %964, %965 : vector<8x32xf32>
    %967 = vector.extract_strided_slice %948 {offsets = [0, 64], sizes = [8, 32], strides = [1, 1]} : vector<8x96xf32> to vector<8x32xf32>
    %968 = vector.extract_strided_slice %950 {offsets = [0, 64], sizes = [8, 32], strides = [1, 1]} : vector<8x96xf32> to vector<8x32xf32>
    %969 = arith.addf %968, %20 : vector<8x32xf32>
    %970 = arith.mulf %958, %969 : vector<8x32xf32>
    %971 = arith.addf %967, %970 : vector<8x32xf32>
    %972 = math.tanh %971 : vector<8x32xf32>
    %cst_269 = arith.constant 1.000000e+00 : f32
    %973 = vector.broadcast %cst_269 : f32 to vector<8x32xf32>
    %974 = arith.subf %973, %966 : vector<8x32xf32>
    %975 = arith.mulf %974, %972 : vector<8x32xf32>
    %976 = arith.mulf %966, %915 : vector<8x32xf32>
    %977 = arith.addf %975, %976 : vector<8x32xf32>
    %c48 = arith.constant 48 : index
    %c0_270 = arith.constant 0 : index
    %978 = vector.load %arg26[%c48, %c0_270] : memref<64x32xf32, #tpu.memory_space<vmem>>, vector<8x32xf32>
    tpu.vector_store %arg26[%c48, %c0_270], %977 {strides = array<i32>} : memref<64x32xf32, #tpu.memory_space<vmem>>, vector<8x32xf32>,
    %c0_271 = arith.constant 0 : index
    %c0_272 = arith.constant 0 : index
    %979 = vector.load %arg14[%c0_271, %c0_272] : memref<32x96xf32, #tpu.memory_space<vmem>>, vector<32x96xf32>
    %cst_273 = arith.constant dense<0.000000e+00> : vector<8x96xf32>
    %980 = tpu.matmul %945, %979, %cst_273 {dimension_numbers = #tpu.dot_dimension_numbers<[1], [0], [0], [1], [0, 0, 1, 1], [], []>} : vector<8x32xf32>, vector<32x96xf32>, vector<8x96xf32> -> vector<8x96xf32>
    %981 = vector.extract_strided_slice %8 {offsets = [0, 0], sizes = [8, 32], strides = [1, 1]} : vector<8x96xf32> to vector<8x32xf32>
    %982 = vector.extract_strided_slice %980 {offsets = [0, 0], sizes = [8, 32], strides = [1, 1]} : vector<8x96xf32> to vector<8x32xf32>
    %983 = arith.addf %981, %982 : vector<8x32xf32>
    %984 = arith.negf %983 : vector<8x32xf32>
    %985 = math.exp %984 : vector<8x32xf32>
    %cst_274 = arith.constant 1.000000e+00 : f32
    %986 = vector.broadcast %cst_274 : f32 to vector<8x32xf32>
    %987 = arith.addf %986, %985 : vector<8x32xf32>
    %988 = arith.divf %986, %987 : vector<8x32xf32>
    %989 = vector.extract_strided_slice %8 {offsets = [0, 32], sizes = [8, 32], strides = [1, 1]} : vector<8x96xf32> to vector<8x32xf32>
    %990 = vector.extract_strided_slice %980 {offsets = [0, 32], sizes = [8, 32], strides = [1, 1]} : vector<8x96xf32> to vector<8x32xf32>
    %991 = arith.addf %989, %990 : vector<8x32xf32>
    %992 = arith.negf %991 : vector<8x32xf32>
    %993 = math.exp %992 : vector<8x32xf32>
    %cst_275 = arith.constant 1.000000e+00 : f32
    %994 = vector.broadcast %cst_275 : f32 to vector<8x32xf32>
    %995 = arith.addf %994, %993 : vector<8x32xf32>
    %996 = arith.divf %994, %995 : vector<8x32xf32>
    %997 = vector.extract_strided_slice %8 {offsets = [0, 64], sizes = [8, 32], strides = [1, 1]} : vector<8x96xf32> to vector<8x32xf32>
    %998 = vector.extract_strided_slice %980 {offsets = [0, 64], sizes = [8, 32], strides = [1, 1]} : vector<8x96xf32> to vector<8x32xf32>
    %999 = arith.addf %998, %17 : vector<8x32xf32>
    %1000 = arith.mulf %988, %999 : vector<8x32xf32>
    %1001 = arith.addf %997, %1000 : vector<8x32xf32>
    %1002 = math.tanh %1001 : vector<8x32xf32>
    %cst_276 = arith.constant 1.000000e+00 : f32
    %1003 = vector.broadcast %cst_276 : f32 to vector<8x32xf32>
    %1004 = arith.subf %1003, %996 : vector<8x32xf32>
    %1005 = arith.mulf %1004, %1002 : vector<8x32xf32>
    %1006 = arith.mulf %996, %945 : vector<8x32xf32>
    %1007 = arith.addf %1005, %1006 : vector<8x32xf32>
    %c0_277 = arith.constant 0 : index
    %c0_278 = arith.constant 0 : index
    %1008 = vector.load %arg17[%c0_277, %c0_278] : memref<32x96xf32, #tpu.memory_space<vmem>>, vector<32x96xf32>
    %cst_279 = arith.constant dense<0.000000e+00> : vector<8x96xf32>
    %1009 = tpu.matmul %1007, %1008, %cst_279 {dimension_numbers = #tpu.dot_dimension_numbers<[1], [0], [0], [1], [0, 0, 1, 1], [], []>} : vector<8x32xf32>, vector<32x96xf32>, vector<8x96xf32> -> vector<8x96xf32>
    %1010 = arith.addf %1009, %5 : vector<8x96xf32>
    %c0_280 = arith.constant 0 : index
    %c0_281 = arith.constant 0 : index
    %1011 = vector.load %arg18[%c0_280, %c0_281] : memref<32x96xf32, #tpu.memory_space<vmem>>, vector<32x96xf32>
    %cst_282 = arith.constant dense<0.000000e+00> : vector<8x96xf32>
    %1012 = tpu.matmul %977, %1011, %cst_282 {dimension_numbers = #tpu.dot_dimension_numbers<[1], [0], [0], [1], [0, 0, 1, 1], [], []>} : vector<8x32xf32>, vector<32x96xf32>, vector<8x96xf32> -> vector<8x96xf32>
    %1013 = vector.extract_strided_slice %1010 {offsets = [0, 0], sizes = [8, 32], strides = [1, 1]} : vector<8x96xf32> to vector<8x32xf32>
    %1014 = vector.extract_strided_slice %1012 {offsets = [0, 0], sizes = [8, 32], strides = [1, 1]} : vector<8x96xf32> to vector<8x32xf32>
    %1015 = arith.addf %1013, %1014 : vector<8x32xf32>
    %1016 = arith.negf %1015 : vector<8x32xf32>
    %1017 = math.exp %1016 : vector<8x32xf32>
    %cst_283 = arith.constant 1.000000e+00 : f32
    %1018 = vector.broadcast %cst_283 : f32 to vector<8x32xf32>
    %1019 = arith.addf %1018, %1017 : vector<8x32xf32>
    %1020 = arith.divf %1018, %1019 : vector<8x32xf32>
    %1021 = vector.extract_strided_slice %1010 {offsets = [0, 32], sizes = [8, 32], strides = [1, 1]} : vector<8x96xf32> to vector<8x32xf32>
    %1022 = vector.extract_strided_slice %1012 {offsets = [0, 32], sizes = [8, 32], strides = [1, 1]} : vector<8x96xf32> to vector<8x32xf32>
    %1023 = arith.addf %1021, %1022 : vector<8x32xf32>
    %1024 = arith.negf %1023 : vector<8x32xf32>
    %1025 = math.exp %1024 : vector<8x32xf32>
    %cst_284 = arith.constant 1.000000e+00 : f32
    %1026 = vector.broadcast %cst_284 : f32 to vector<8x32xf32>
    %1027 = arith.addf %1026, %1025 : vector<8x32xf32>
    %1028 = arith.divf %1026, %1027 : vector<8x32xf32>
    %1029 = vector.extract_strided_slice %1010 {offsets = [0, 64], sizes = [8, 32], strides = [1, 1]} : vector<8x96xf32> to vector<8x32xf32>
    %1030 = vector.extract_strided_slice %1012 {offsets = [0, 64], sizes = [8, 32], strides = [1, 1]} : vector<8x96xf32> to vector<8x32xf32>
    %1031 = arith.addf %1030, %20 : vector<8x32xf32>
    %1032 = arith.mulf %1020, %1031 : vector<8x32xf32>
    %1033 = arith.addf %1029, %1032 : vector<8x32xf32>
    %1034 = math.tanh %1033 : vector<8x32xf32>
    %cst_285 = arith.constant 1.000000e+00 : f32
    %1035 = vector.broadcast %cst_285 : f32 to vector<8x32xf32>
    %1036 = arith.subf %1035, %1028 : vector<8x32xf32>
    %1037 = arith.mulf %1036, %1034 : vector<8x32xf32>
    %1038 = arith.mulf %1028, %977 : vector<8x32xf32>
    %1039 = arith.addf %1037, %1038 : vector<8x32xf32>
    %c56 = arith.constant 56 : index
    %c0_286 = arith.constant 0 : index
    %1040 = vector.load %arg26[%c56, %c0_286] : memref<64x32xf32, #tpu.memory_space<vmem>>, vector<8x32xf32>
    tpu.vector_store %arg26[%c56, %c0_286], %1039 {strides = array<i32>} : memref<64x32xf32, #tpu.memory_space<vmem>>, vector<8x32xf32>,
    %c0_287 = arith.constant 0 : index
    %c0_288 = arith.constant 0 : index
    %1041 = vector.load %arg26[%c0_287, %c0_288] : memref<64x32xf32, #tpu.memory_space<vmem>>, vector<64x32xf32>
    %c0_289 = arith.constant 0 : index
    %c0_290 = arith.constant 0 : index
    %1042 = vector.load %arg21[%c0_289, %c0_290] : memref<32x32xf32, #tpu.memory_space<vmem>>, vector<32x32xf32>
    %cst_291 = arith.constant dense<0.000000e+00> : vector<64x32xf32>
    %1043 = tpu.matmul %1041, %1042, %cst_291 {dimension_numbers = #tpu.dot_dimension_numbers<[1], [0], [0], [1], [0, 0, 1, 1], [], []>} : vector<64x32xf32>, vector<32x32xf32>, vector<64x32xf32> -> vector<64x32xf32>
    %c0_292 = arith.constant 0 : index
    %c0_293 = arith.constant 0 : index
    %1044 = vector.load %arg22[%c0_292, %c0_293] : memref<1x32xf32, #tpu.memory_space<vmem>>, vector<1x32xf32>
    %1045 = vector.broadcast %1044 : vector<1x32xf32> to vector<64x32xf32>
    %1046 = arith.addf %1043, %1045 : vector<64x32xf32>
    %c0_294 = arith.constant 0 : index
    %c0_295 = arith.constant 0 : index
    %1047 = vector.load %arg23[%c0_294, %c0_295] : memref<64x32xf32, #tpu.memory_space<vmem>>, vector<64x32xf32>
    tpu.vector_store %arg23[%c0_294, %c0_295], %1046 {strides = array<i32>} : memref<64x32xf32, #tpu.memory_space<vmem>>, vector<64x32xf32>,
    return
  }
}

</mosaic_0001>

<llo_original>
// kernel: beta_vae_forward.1
$region0: #{beta_vae_forward.1}
  #allocation0 [shape = 'u32[]', space=smem, size = 0x4, offset = 0x4, fixed_abs, tag = 'smem constant byte address 0x4 - core index']
  #allocation1 [shape = 'u32[144,128]{1,0:T(1,128)}', space=vmem, size = 0x12000, scoped, tag = 'internal scratch']
  #allocation2 [shape = 'f32[64,32]{1,0:T(8,128)}', space=vmem, size = 0x8000, scoped, tag = 'scratch operand']
  %s0 = inlined_call_operand.vmem [shape: f32[64,32], index: 0, kind: input, shape index: {}]
  %s1 = inlined_call_operand.vmem [shape: f32[8,16], index: 1, kind: input, shape index: {}]
  %s2 = inlined_call_operand.vmem [shape: f32[32,96], index: 2, kind: input, shape index: {}]
  %s3 = inlined_call_operand.vmem [shape: f32[32,96], index: 3, kind: input, shape index: {}]
  %s4 = inlined_call_operand.vmem [shape: f32[1,96], index: 4, kind: input, shape index: {}]
  %s5 = inlined_call_operand.vmem [shape: f32[1,32], index: 5, kind: input, shape index: {}]
  %s6 = inlined_call_operand.vmem [shape: f32[32,96], index: 6, kind: input, shape index: {}]
  %s7 = inlined_call_operand.vmem [shape: f32[32,96], index: 7, kind: input, shape index: {}]
  %s8 = inlined_call_operand.vmem [shape: f32[1,96], index: 8, kind: input, shape index: {}]
  %s9 = inlined_call_operand.vmem [shape: f32[1,32], index: 9, kind: input, shape index: {}]
  %s10 = inlined_call_operand.vmem [shape: f32[32,32], index: 10, kind: input, shape index: {}]
  %s11 = inlined_call_operand.hbm [shape: f32[1,32], index: 11, kind: input, shape index: {}]
  %s12 = inlined_call_operand.vmem [shape: f32[16,32], index: 12, kind: input, shape index: {}]
  %s13 = inlined_call_operand.hbm [shape: f32[1,32], index: 13, kind: input, shape index: {}]
  %s14 = inlined_call_operand.vmem [shape: f32[32,96], index: 14, kind: input, shape index: {}]
  %s15 = inlined_call_operand.vmem [shape: f32[1,96], index: 15, kind: input, shape index: {}]
  %s16 = inlined_call_operand.vmem [shape: f32[1,32], index: 16, kind: input, shape index: {}]
  %s17 = inlined_call_operand.vmem [shape: f32[32,96], index: 17, kind: input, shape index: {}]
  %s18 = inlined_call_operand.vmem [shape: f32[32,96], index: 18, kind: input, shape index: {}]
  %s19 = inlined_call_operand.vmem [shape: f32[1,96], index: 19, kind: input, shape index: {}]
  %s20 = inlined_call_operand.vmem [shape: f32[1,32], index: 20, kind: input, shape index: {}]
  %s21 = inlined_call_operand.vmem [shape: f32[32,32], index: 21, kind: input, shape index: {}]
  %s22 = inlined_call_operand.hbm [shape: f32[1,32], index: 22, kind: input, shape index: {}]
  %s23 = inlined_call_operand.vmem [shape: f32[64,32], index: 23, kind: output, shape index: {0}]
  %s24 = inlined_call_operand.vmem [shape: f32[8,16], index: 24, kind: output, shape index: {1}]
  %s25 = inlined_call_operand.vmem [shape: f32[8,16], index: 25, kind: output, shape index: {2}]
  %26 = xla_tuple %s23, %s24, %s25
  %s27 = sld [smem:[#allocation0]]
  $region130: #{beta_vae_forward.1} parent=0
    _
  %s29 = ssub.s32 1, %s27
  %s30 = scalar_select 0, %s29, %s27
  $region1: #{beta_vae_forward.1} parent=0
    #allocation3 [shape = 'u8[512]{0}', space=vmem, size = 0x400, scoped, tag = 'input window, operand 11, single buffered']
    #allocation4 [shape = 's32[1]{0}', space=sflag, size = 0x4, scoped, tag = 'scoped memory for beta_vae_forward.1']
    #allocation5 [shape = 'u8[512]{0}', space=vmem, size = 0x400, scoped, tag = 'input window, operand 13, single buffered']
    #allocation6 [shape = 's32[1]{0}', space=sflag, size = 0x4, scoped, tag = 'scoped memory for beta_vae_forward.1']
    #allocation7 [shape = 'u8[512]{0}', space=vmem, size = 0x400, scoped, tag = 'input window, operand 22, single buffered']
    %31 = vsyncpa [#allocation4], 0
    %32 = vsyncpa [#allocation6], 0
    // Predicated region
    $region2: #{beta_vae_forward.1} parent=1 // pred_check
      _
    $region3: #{beta_vae_forward.1} parent=1 // pred_check_branch
      %34 = sbr.rel (0) target = $region5
    $region4: #{beta_vae_forward.1} parent=1 // pred_region
      _
    $region5: #{beta_vae_forward.1} parent=1 // pred_fallthru
      _
    // Predicated region
    $region6: #{beta_vae_forward.1} parent=1 // pred_check
      _
    $region7: #{beta_vae_forward.1} parent=1 // pred_check_branch
      %36 = sbr.rel (0) target = $region9
    $region8: #{beta_vae_forward.1} parent=1 // pred_region
      _
    $region9: #{beta_vae_forward.1} parent=1 // pred_fallthru
      _
    // Predicated region
    $region10: #{beta_vae_forward.1} parent=1 // pred_check
      _
    $region11: #{beta_vae_forward.1} parent=1 // pred_check_branch
      %38 = sbr.rel (0) target = $region13
    $region12: #{beta_vae_forward.1} parent=1 // pred_region
      _
    $region13: #{beta_vae_forward.1} parent=1 // pred_fallthru
      _
    // Predicated region
    $region14: #{beta_vae_forward.1} parent=1 // pred_check
      _
    $region15: #{beta_vae_forward.1} parent=1 // pred_check_branch
      %40 = sbr.rel (0) target = $region17
    $region16: #{beta_vae_forward.1} parent=1 // pred_region
      _
    $region17: #{beta_vae_forward.1} parent=1 // pred_fallthru
      _
    // Predicated region
    $region18: #{beta_vae_forward.1} parent=1 // pred_check
      _
    $region19: #{beta_vae_forward.1} parent=1 // pred_check_branch
      %42 = sbr.rel (0) target = $region21
    $region20: #{beta_vae_forward.1} parent=1 // pred_region
      _
    $region21: #{beta_vae_forward.1} parent=1 // pred_fallthru
      _
    // Predicated region
    $region22: #{beta_vae_forward.1} parent=1 // pred_check
      _
    $region23: #{beta_vae_forward.1} parent=1 // pred_check_branch
      %44 = sbr.rel (0) target = $region25
    $region24: #{beta_vae_forward.1} parent=1 // pred_region
      _
    $region25: #{beta_vae_forward.1} parent=1 // pred_fallthru
      _
    // Predicated region
    $region26: #{beta_vae_forward.1} parent=1 // pred_check
      _
    $region27: #{beta_vae_forward.1} parent=1 // pred_check_branch
      %46 = sbr.rel (0) target = $region29
    $region28: #{beta_vae_forward.1} parent=1 // pred_region
      _
    $region29: #{beta_vae_forward.1} parent=1 // pred_fallthru
      _
    // Predicated region
    $region30: #{beta_vae_forward.1} parent=1 // pred_check
      _
    $region31: #{beta_vae_forward.1} parent=1 // pred_check_branch
      %48 = sbr.rel (0) target = $region33
    $region32: #{beta_vae_forward.1} parent=1 // pred_region
      _
    $region33: #{beta_vae_forward.1} parent=1 // pred_fallthru
      _
    // Predicated region
    $region34: #{beta_vae_forward.1} parent=1 // pred_check
      _
    $region35: #{beta_vae_forward.1} parent=1 // pred_check_branch
      %50 = sbr.rel (0) target = $region37
    $region36: #{beta_vae_forward.1} parent=1 // pred_region
      _
    $region37: #{beta_vae_forward.1} parent=1 // pred_fallthru
      _
    // Predicated region
    $region38: #{beta_vae_forward.1} parent=1 // pred_check
      _
    $region39: #{beta_vae_forward.1} parent=1 // pred_check_branch
      %52 = sbr.rel (0) target = $region41
    $region40: #{beta_vae_forward.1} parent=1 // pred_region
      _
    $region41: #{beta_vae_forward.1} parent=1 // pred_fallthru
      _
    // Predicated region
    $region42: #{beta_vae_forward.1} parent=1 // pred_check
      _
    $region43: #{beta_vae_forward.1} parent=1 // pred_check_branch
      %54 = sbr.rel (0) target = $region45
    $region44: #{beta_vae_forward.1} parent=1 // pred_region
      _
    $region45: #{beta_vae_forward.1} parent=1 // pred_fallthru
      _
    // Predicated region
    $region46: #{beta_vae_forward.1} parent=1 // pred_check
      _
    $region47: #{beta_vae_forward.1} parent=1 // pred_check_branch
      %56 = sbr.rel (0) target = $region49
    $region48: #{beta_vae_forward.1} parent=1 // pred_region
      %s58 = ssub.s32 16, 16
      %59 = vsyncadd [#allocation4], %s58
      %s61 = sshll.u32 [#allocation3], 4
      %s62 = int_to_ptr.vmem [resolvable:$true] %s61
      %64 = dma.hbm_to_vmem [thread:$0]  %s11, 16, %s62, [#allocation4]
    $region49: #{beta_vae_forward.1} parent=1 // pred_fallthru
      _
    // Predicated region
    $region50: #{beta_vae_forward.1} parent=1 // pred_check
      _
    $region51: #{beta_vae_forward.1} parent=1 // pred_check_branch
      %66 = sbr.rel (0) target = $region53
    $region52: #{beta_vae_forward.1} parent=1 // pred_region
      _
    $region53: #{beta_vae_forward.1} parent=1 // pred_fallthru
      _
    // Predicated region
    $region54: #{beta_vae_forward.1} parent=1 // pred_check
      _
    $region55: #{beta_vae_forward.1} parent=1 // pred_check_branch
      %68 = sbr.rel (0) target = $region57
    $region56: #{beta_vae_forward.1} parent=1 // pred_region
      %s70 = ssub.s32 16, 16
      %71 = vsyncadd [#allocation6], %s70
      %s73 = sshll.u32 [#allocation5], 4
      %s74 = int_to_ptr.vmem [resolvable:$true] %s73
      %76 = dma.hbm_to_vmem [thread:$0]  %s13, 16, %s74, [#allocation6]
    $region57: #{beta_vae_forward.1} parent=1 // pred_fallthru
      _
    // Predicated region
    $region58: #{beta_vae_forward.1} parent=1 // pred_check
      _
    $region59: #{beta_vae_forward.1} parent=1 // pred_check_branch
      %78 = sbr.rel (0) target = $region61
    $region60: #{beta_vae_forward.1} parent=1 // pred_region
      _
    $region61: #{beta_vae_forward.1} parent=1 // pred_fallthru
      _
    // Predicated region
    $region62: #{beta_vae_forward.1} parent=1 // pred_check
      _
    $region63: #{beta_vae_forward.1} parent=1 // pred_check_branch
      %80 = sbr.rel (0) target = $region65
    $region64: #{beta_vae_forward.1} parent=1 // pred_region
      _
    $region65: #{beta_vae_forward.1} parent=1 // pred_fallthru
      _
    // Predicated region
    $region66: #{beta_vae_forward.1} parent=1 // pred_check
      _
    $region67: #{beta_vae_forward.1} parent=1 // pred_check_branch
      %82 = sbr.rel (0) target = $region69
    $region68: #{beta_vae_forward.1} parent=1 // pred_region
      _
    $region69: #{beta_vae_forward.1} parent=1 // pred_fallthru
      _
    // Predicated region
    $region70: #{beta_vae_forward.1} parent=1 // pred_check
      _
    $region71: #{beta_vae_forward.1} parent=1 // pred_check_branch
      %84 = sbr.rel (0) target = $region73
    $region72: #{beta_vae_forward.1} parent=1 // pred_region
      _
    $region73: #{beta_vae_forward.1} parent=1 // pred_fallthru
      _
    // Predicated region
    $region74: #{beta_vae_forward.1} parent=1 // pred_check
      _
    $region75: #{beta_vae_forward.1} parent=1 // pred_check_branch
      %86 = sbr.rel (0) target = $region77
    $region76: #{beta_vae_forward.1} parent=1 // pred_region
      _
    $region77: #{beta_vae_forward.1} parent=1 // pred_fallthru
      _
    // Predicated region
    $region78: #{beta_vae_forward.1} parent=1 // pred_check
      _
    $region79: #{beta_vae_forward.1} parent=1 // pred_check_branch
      %88 = sbr.rel (0) target = $region81
    $region80: #{beta_vae_forward.1} parent=1 // pred_region
      _
    $region81: #{beta_vae_forward.1} parent=1 // pred_fallthru
      _
    // Predicated region
    $region82: #{beta_vae_forward.1} parent=1 // pred_check
      _
    $region83: #{beta_vae_forward.1} parent=1 // pred_check_branch
      %90 = sbr.rel (0) target = $region85
    $region84: #{beta_vae_forward.1} parent=1 // pred_region
      _
    $region85: #{beta_vae_forward.1} parent=1 // pred_fallthru
      _
    // Predicated region
    $region86: #{beta_vae_forward.1} parent=1 // pred_check
      _
    $region87: #{beta_vae_forward.1} parent=1 // pred_check_branch
      %92 = sbr.rel (0) target = $region89
    $region88: #{beta_vae_forward.1} parent=1 // pred_region
      _
    $region89: #{beta_vae_forward.1} parent=1 // pred_fallthru
      _
    // Predicated region
    $region90: #{beta_vae_forward.1} parent=1 // pred_check
      _
    $region91: #{beta_vae_forward.1} parent=1 // pred_check_branch
      %94 = sbr.rel (0) target = $region93
    $region92: #{beta_vae_forward.1} parent=1 // pred_region
      %s96 = ssub.s32 16, 16
      %97 = vsyncadd [#allocation6], %s96
      %s99 = sshll.u32 [#allocation7], 4
      %s100 = int_to_ptr.vmem [resolvable:$true] %s99
      %102 = dma.hbm_to_vmem [thread:$0]  %s22, 16, %s100, [#allocation6]
    $region93: #{beta_vae_forward.1} parent=1 // pred_fallthru
      _
    // Predicated region
    $region94: #{beta_vae_forward.1} parent=1 // pred_check
      _
    $region95: #{beta_vae_forward.1} parent=1 // pred_check_branch
      %104 = sbr.rel (0) target = $region97
    $region96: #{beta_vae_forward.1} parent=1 // pred_region
      %105 = dma.done [#allocation4], 16
    $region97: #{beta_vae_forward.1} parent=1 // pred_fallthru
      _
    // Predicated region
    $region98: #{beta_vae_forward.1} parent=1 // pred_check
      _
    $region99: #{beta_vae_forward.1} parent=1 // pred_check_branch
      %107 = sbr.rel (0) target = $region101
    $region100: #{beta_vae_forward.1} parent=1 // pred_region
      %108 = dma.done [#allocation6], 16
    $region101: #{beta_vae_forward.1} parent=1 // pred_fallthru
      _
    // Predicated region
    $region102: #{beta_vae_forward.1} parent=1 // pred_check
      _
    $region103: #{beta_vae_forward.1} parent=1 // pred_check_branch
      %110 = sbr.rel (0) target = $region105
    $region104: #{beta_vae_forward.1} parent=1 // pred_region
      %111 = dma.done [#allocation6], 16
    $region105: #{beta_vae_forward.1} parent=1 // pred_fallthru
      _
    %v112 = vld [vmem:[%s8] sm:$0x1]
    %v114 = vlaneseq
    %v115 = vshrl.u32 %v114, 7
    %v116 = vsub.s32 0, %v115
    %v117 = vrot.slane %v112, %v116
    %v119 = vld [vmem:[%s19] sm:$0x1]
    %v121 = vlaneseq
    %v122 = vshrl.u32 %v121, 7
    %v123 = vsub.s32 0, %v122
    %v124 = vrot.slane %v119, %v123
    %v126 = vld [vmem:[%s15] sm:$0x1]
    %v127 = vld [vmem:[%s5] sm:$0x1]
    %v129 = vlaneseq
    %v130 = vshrl.u32 %v129, 7
    %v131 = vsub.s32 0, %v130
    %v132 = vrot.slane %v127, %v131
    %v133 = vld [vmem:[%s9] sm:$0x1]
    %v135 = vlaneseq
    %v136 = vshrl.u32 %v135, 7
    %v137 = vsub.s32 0, %v136
    %v138 = vrot.slane %v133, %v137
    %v139 = vld [vmem:[%s16] sm:$0x1]
    %v141 = vlaneseq
    %v142 = vshrl.u32 %v141, 7
    %v143 = vsub.s32 0, %v142
    %v144 = vrot.slane %v139, %v143
    %v145 = vld [vmem:[%s20] sm:$0x1]
    %v147 = vlaneseq
    %v148 = vshrl.u32 %v147, 7
    %v149 = vsub.s32 0, %v148
    %v150 = vrot.slane %v145, %v149
    %v151 = vld [vmem:[%s0] sm:$0xff]
    %v152 = vld [vmem:[%s0 + $0x8] sm:$0xff]
    %v153 = vld [vmem:[%s0 + $0x10] sm:$0xff]
    %v154 = vld [vmem:[%s0 + $0x18] sm:$0xff]
    %v155 = vld [vmem:[%s0 + $0x20] sm:$0xff]
    %v156 = vld [vmem:[%s0 + $0x28] sm:$0xff]
    %v157 = vld [vmem:[%s0 + $0x30] sm:$0xff]
    %v158 = vld [vmem:[%s0 + $0x38] sm:$0xff]
    %v159 = vld [vmem:[%s2] sm:$0xff]
    %v160 = vld [vmem:[%s2 + $0x8] sm:$0xff]
    %v161 = vld [vmem:[%s2 + $0x10] sm:$0xff]
    %v162 = vld [vmem:[%s2 + $0x18] sm:$0xff]
    %v163 = vld [vmem:[%s4] sm:$0x1]
    %v165 = vlaneseq
    %v166 = vshrl.u32 %v165, 7
    %v167 = vsub.s32 0, %v166
    %v168 = vrot.slane %v163, %v167
    %vm170 = vcmask 261120
    %v172 = vsel %vm170, %v151, 0
    %v175 = vsel %vm170, %v152, 0
    %v178 = vsel %vm170, %v153, 0
    %v181 = vsel %vm170, %v154, 0
    %v184 = vsel %vm170, %v155, 0
    %v187 = vsel %vm170, %v156, 0
    %v190 = vsel %vm170, %v157, 0
    %v193 = vsel %vm170, %v158, 0
    %195 = vmatprep.subr.mxu0 0.0
    %196 = vmatpush1.msra.mxu0 %v159
    %197 = vmatprep.subr.mxu0 0.0
    %198 = vmatpush1.msra.mxu0 %v160
    %199 = vmatprep.subr.mxu0 0.0
    %200 = vmatpush1.msra.mxu0 %v161
    %201 = vmatprep.subr.mxu0 0.0
    %202 = vmatpush1.msra.mxu0 %v162
    %203 = vmatprep.subr.mxu0 0.0
    %204 = vmatpush1.msra.mxu0 0.0
    %205 = vmatprep.subr.mxu0 0.0
    %206 = vmatpush1.msra.mxu0 0.0
    %207 = vmatprep.subr.mxu0 0.0
    %208 = vmatpush1.msra.mxu0 0.0
    %209 = vmatprep.subr.mxu0 0.0
    %210 = vmatpush1.msra.mxu0 0.0
    %211 = vmatprep.subr.mxu0 0.0
    %212 = vmatpush1.msra.mxu0 0.0
    %213 = vmatprep.subr.mxu0 0.0
    %214 = vmatpush1.msra.mxu0 0.0
    %215 = vmatprep.subr.mxu0 0.0
    %216 = vmatpush1.msra.mxu0 0.0
    %217 = vmatprep.subr.mxu0 0.0
    %218 = vmatpush1.msra.mxu0 0.0
    %219 = vmatprep.subr.mxu0 0.0
    %220 = vmatpush1.msra.mxu0 0.0
    %221 = vmatprep.subr.mxu0 0.0
    %222 = vmatpush1.msra.mxu0 0.0
    %223 = vmatprep.subr.mxu0 0.0
    %224 = vmatpush1.msra.mxu0 0.0
    %225 = vmatprep.subr.mxu0 0.0
    %226 = vmatpush1.msra.mxu0 0.0
    %227 = vmatprep.subr.mxu0 0.0
    %228 = vmatpush1.msra.mxu0 0.0
    %229 = vmatprep.subr.mxu0 0.0
    %230 = vmatpush1.msra.mxu0 0.0
    %231 = vmatprep.subr.mxu0 0.0
    %232 = vmatpush1.msra.mxu0 0.0
    %233 = vmatprep.subr.mxu0 0.0
    %234 = vmatpush1.msra.mxu0 0.0
    %235 = vmatprep.subr.mxu0 0.0
    %236 = vmatpush1.msra.mxu0 0.0
    %237 = vmatprep.subr.mxu0 0.0
    %238 = vmatpush1.msra.mxu0 0.0
    %239 = vmatprep.subr.mxu0 0.0
    %240 = vmatpush1.msra.mxu0 0.0
    %241 = vmatprep.subr.mxu0 0.0
    %242 = vmatpush1.msra.mxu0 0.0
    %243 = vmatprep.subr.mxu0 0.0
    %244 = vmatpush1.msra.mxu0 0.0
    %245 = vmatprep.subr.mxu0 0.0
    %246 = vmatpush1.msra.mxu0 0.0
    %247 = vmatprep.subr.mxu0 0.0
    %248 = vmatpush1.msra.mxu0 0.0
    %249 = vmatprep.subr.mxu0 0.0
    %250 = vmatpush1.msra.mxu0 0.0
    %251 = vmatprep.subr.mxu0 0.0
    %252 = vmatpush1.msra.mxu0 0.0
    %253 = vmatprep.subr.mxu0 0.0
    %254 = vmatpush1.msra.mxu0 0.0
    %255 = vmatprep.subr.mxu0 0.0
    %256 = vmatpush1.msra.mxu0 0.0
    %257 = vmatprep.subr.mxu0 0.0
    %258 = vmatpush1.msra.mxu0 0.0
    %259 = vmatprep.mubr.f32.mxu0 0.0
    %260 = vmatmul.mubr.f32.gmra.mrb[0].mxu0 %v172
    %v261 = vpop.f32.mrb[0].mxu0
    %v262 = vadd.f32 %v168, %v261
    %v263 = vpop.f32.mrb[0].mxu0
    %264 = vmatprep.mubr.f32.mxu0 0.0
    %265 = vmatmul.mubr.f32.gmra.mrb[0].mxu0 %v175
    %v266 = vpop.f32.mrb[0].mxu0
    %v267 = vadd.f32 %v168, %v266
    %v268 = vpop.f32.mrb[0].mxu0
    %269 = vmatprep.mubr.f32.mxu0 0.0
    %270 = vmatmul.mubr.f32.gmra.mrb[0].mxu0 %v178
    %v271 = vpop.f32.mrb[0].mxu0
    %v272 = vadd.f32 %v168, %v271
    %v273 = vpop.f32.mrb[0].mxu0
    %274 = vmatprep.mubr.f32.mxu0 0.0
    %275 = vmatmul.mubr.f32.gmra.mrb[0].mxu0 %v181
    %v276 = vpop.f32.mrb[0].mxu0
    %v277 = vadd.f32 %v168, %v276
    %v278 = vpop.f32.mrb[0].mxu0
    %279 = vmatprep.mubr.f32.mxu0 0.0
    %280 = vmatmul.mubr.f32.gmra.mrb[0].mxu0 %v184
    %v281 = vpop.f32.mrb[0].mxu0
    %v282 = vadd.f32 %v168, %v281
    %v283 = vpop.f32.mrb[0].mxu0
    %284 = vmatprep.mubr.f32.mxu0 0.0
    %285 = vmatmul.mubr.f32.gmra.mrb[0].mxu0 %v187
    %v286 = vpop.f32.mrb[0].mxu0
    %v287 = vadd.f32 %v168, %v286
    %v288 = vpop.f32.mrb[0].mxu0
    %289 = vmatprep.mubr.f32.mxu0 0.0
    %290 = vmatmul.mubr.f32.gmra.mrb[0].mxu0 %v190
    %v291 = vpop.f32.mrb[0].mxu0
    %v292 = vadd.f32 %v168, %v291
    %v293 = vpop.f32.mrb[0].mxu0
    %294 = vmatprep.mubr.f32.mxu0 0.0
    %295 = vmatmul.mubr.f32.gmra.mrb[0].mxu0 %v193
    %v296 = vpop.f32.mrb[0].mxu0
    %v297 = vadd.f32 %v168, %v296
    %v298 = vpop.f32.mrb[0].mxu0
    %299 = vdwg.mxu0
    %v300 = vld [vmem:[%s3] sm:$0xff]
    %v301 = vld [vmem:[%s3 + $0x8] sm:$0xff]
    %v302 = vld [vmem:[%s3 + $0x10] sm:$0xff]
    %v303 = vld [vmem:[%s3 + $0x18] sm:$0xff]
    %v305 = vsel %vm170, 0.0, 0
    %307 = vmatprep.subr.mxu0 0.0
    %308 = vmatpush1.msra.mxu0 %v300
    %309 = vmatprep.subr.mxu0 0.0
    %310 = vmatpush1.msra.mxu0 %v301
    %311 = vmatprep.subr.mxu0 0.0
    %312 = vmatpush1.msra.mxu0 %v302
    %313 = vmatprep.subr.mxu0 0.0
    %314 = vmatpush1.msra.mxu0 %v303
    %315 = vmatprep.subr.mxu0 0.0
    %316 = vmatpush1.msra.mxu0 0.0
    %317 = vmatprep.subr.mxu0 0.0
    %318 = vmatpush1.msra.mxu0 0.0
    %319 = vmatprep.subr.mxu0 0.0
    %320 = vmatpush1.msra.mxu0 0.0
    %321 = vmatprep.subr.mxu0 0.0
    %322 = vmatpush1.msra.mxu0 0.0
    %323 = vmatprep.subr.mxu0 0.0
    %324 = vmatpush1.msra.mxu0 0.0
    %325 = vmatprep.subr.mxu0 0.0
    %326 = vmatpush1.msra.mxu0 0.0
    %327 = vmatprep.subr.mxu0 0.0
    %328 = vmatpush1.msra.mxu0 0.0
    %329 = vmatprep.subr.mxu0 0.0
    %330 = vmatpush1.msra.mxu0 0.0
    %331 = vmatprep.subr.mxu0 0.0
    %332 = vmatpush1.msra.mxu0 0.0
    %333 = vmatprep.subr.mxu0 0.0
    %334 = vmatpush1.msra.mxu0 0.0
    %335 = vmatprep.subr.mxu0 0.0
    %336 = vmatpush1.msra.mxu0 0.0
    %337 = vmatprep.subr.mxu0 0.0
    %338 = vmatpush1.msra.mxu0 0.0
    %339 = vmatprep.subr.mxu0 0.0
    %340 = vmatpush1.msra.mxu0 0.0
    %341 = vmatprep.subr.mxu0 0.0
    %342 = vmatpush1.msra.mxu0 0.0
    %343 = vmatprep.subr.mxu0 0.0
    %344 = vmatpush1.msra.mxu0 0.0
    %345 = vmatprep.subr.mxu0 0.0
    %346 = vmatpush1.msra.mxu0 0.0
    %347 = vmatprep.subr.mxu0 0.0
    %348 = vmatpush1.msra.mxu0 0.0
    %349 = vmatprep.subr.mxu0 0.0
    %350 = vmatpush1.msra.mxu0 0.0
    %351 = vmatprep.subr.mxu0 0.0
    %352 = vmatpush1.msra.mxu0 0.0
    %353 = vmatprep.subr.mxu0 0.0
    %354 = vmatpush1.msra.mxu0 0.0
    %355 = vmatprep.subr.mxu0 0.0
    %356 = vmatpush1.msra.mxu0 0.0
    %357 = vmatprep.subr.mxu0 0.0
    %358 = vmatpush1.msra.mxu0 0.0
    %359 = vmatprep.subr.mxu0 0.0
    %360 = vmatpush1.msra.mxu0 0.0
    %361 = vmatprep.subr.mxu0 0.0
    %362 = vmatpush1.msra.mxu0 0.0
    %363 = vmatprep.subr.mxu0 0.0
    %364 = vmatpush1.msra.mxu0 0.0
    %365 = vmatprep.subr.mxu0 0.0
    %366 = vmatpush1.msra.mxu0 0.0
    %367 = vmatprep.subr.mxu0 0.0
    %368 = vmatpush1.msra.mxu0 0.0
    %369 = vmatprep.subr.mxu0 0.0
    %370 = vmatpush1.msra.mxu0 0.0
    %371 = vmatprep.mubr.f32.mxu0 0.0
    %372 = vmatmul.mubr.f32.gmra.mrb[0].mxu0 %v305
    %v373 = vpop.f32.mrb[0].mxu0
    %v374 = vadd.f32 0.0, %v373
    %v375 = vpop.f32.mrb[0].mxu0
    %376 = vdwg.mxu0
    %v377 = vadd.f32 %v262, %v374
    %v378 = vxor.u32 %v377, 2147483648
    %v379 = vmul.f32 %v378, 1.442695
    %v380 = vpow.pop %v379
    %v381 = vadd.f32 %v380, 1.0
    %v382 = vrcp.pop %v381
    %v383 = vmul.f32 1.0, %v382
    %384 = vrot.lane.b32.xlu0 %v132, 64
    %v385 = vpop.permute.xlu0 %384
    %v387 = vadd.f32 %v374, %v385
    %389 = vrot.lane.b32.xlu0 %v387, 64
    %v390 = vpop.permute.xlu0 %389
    %v392 = vmul.f32 %v383, %v390
    %394 = vrot.lane.b32.xlu0 %v392, 64
    %v395 = vpop.permute.xlu0 %394
    %v397 = vadd.f32 %v262, %v395
    %v398 = vtanh.pop %v397
    %v399 = vsub.f32 1.0, %v383
    %401 = vrot.lane.b32.xlu0 %v398, 96
    %v402 = vpop.permute.xlu0 %401
    %v404 = vmul.f32 %v399, %v402
    %v405 = vmul.f32 %v383, 0.0
    %v406 = vadd.f32 %v404, %v405
    %v407 = vld [vmem:[%s6] sm:$0xff]
    %v408 = vld [vmem:[%s6 + $0x8] sm:$0xff]
    %v409 = vld [vmem:[%s6 + $0x10] sm:$0xff]
    %v410 = vld [vmem:[%s6 + $0x18] sm:$0xff]
    %412 = vrot.lane.b32.xlu0 %v406, 96
    %v413 = vpop.permute.xlu0 %412
    %v414 = vsel %vm170, %v413, 0
    %416 = vmatprep.subr.mxu0 0.0
    %417 = vmatpush1.msra.mxu0 %v407
    %418 = vmatprep.subr.mxu0 0.0
    %419 = vmatpush1.msra.mxu0 %v408
    %420 = vmatprep.subr.mxu0 0.0
    %421 = vmatpush1.msra.mxu0 %v409
    %422 = vmatprep.subr.mxu0 0.0
    %423 = vmatpush1.msra.mxu0 %v410
    %424 = vmatprep.subr.mxu0 0.0
    %425 = vmatpush1.msra.mxu0 0.0
    %426 = vmatprep.subr.mxu0 0.0
    %427 = vmatpush1.msra.mxu0 0.0
    %428 = vmatprep.subr.mxu0 0.0
    %429 = vmatpush1.msra.mxu0 0.0
    %430 = vmatprep.subr.mxu0 0.0
    %431 = vmatpush1.msra.mxu0 0.0
    %432 = vmatprep.subr.mxu0 0.0
    %433 = vmatpush1.msra.mxu0 0.0
    %434 = vmatprep.subr.mxu0 0.0
    %435 = vmatpush1.msra.mxu0 0.0
    %436 = vmatprep.subr.mxu0 0.0
    %437 = vmatpush1.msra.mxu0 0.0
    %438 = vmatprep.subr.mxu0 0.0
    %439 = vmatpush1.msra.mxu0 0.0
    %440 = vmatprep.subr.mxu0 0.0
    %441 = vmatpush1.msra.mxu0 0.0
    %442 = vmatprep.subr.mxu0 0.0
    %443 = vmatpush1.msra.mxu0 0.0
    %444 = vmatprep.subr.mxu0 0.0
    %445 = vmatpush1.msra.mxu0 0.0
    %446 = vmatprep.subr.mxu0 0.0
    %447 = vmatpush1.msra.mxu0 0.0
    %448 = vmatprep.subr.mxu0 0.0
    %449 = vmatpush1.msra.mxu0 0.0
    %450 = vmatprep.subr.mxu0 0.0
    %451 = vmatpush1.msra.mxu0 0.0
    %452 = vmatprep.subr.mxu0 0.0
    %453 = vmatpush1.msra.mxu0 0.0
    %454 = vmatprep.subr.mxu0 0.0
    %455 = vmatpush1.msra.mxu0 0.0
    %456 = vmatprep.subr.mxu0 0.0
    %457 = vmatpush1.msra.mxu0 0.0
    %458 = vmatprep.subr.mxu0 0.0
    %459 = vmatpush1.msra.mxu0 0.0
    %460 = vmatprep.subr.mxu0 0.0
    %461 = vmatpush1.msra.mxu0 0.0
    %462 = vmatprep.subr.mxu0 0.0
    %463 = vmatpush1.msra.mxu0 0.0
    %464 = vmatprep.subr.mxu0 0.0
    %465 = vmatpush1.msra.mxu0 0.0
    %466 = vmatprep.subr.mxu0 0.0
    %467 = vmatpush1.msra.mxu0 0.0
    %468 = vmatprep.subr.mxu0 0.0
    %469 = vmatpush1.msra.mxu0 0.0
    %470 = vmatprep.subr.mxu0 0.0
    %471 = vmatpush1.msra.mxu0 0.0
    %472 = vmatprep.subr.mxu0 0.0
    %473 = vmatpush1.msra.mxu0 0.0
    %474 = vmatprep.subr.mxu0 0.0
    %475 = vmatpush1.msra.mxu0 0.0
    %476 = vmatprep.subr.mxu0 0.0
    %477 = vmatpush1.msra.mxu0 0.0
    %478 = vmatprep.subr.mxu0 0.0
    %479 = vmatpush1.msra.mxu0 0.0
    %480 = vmatprep.mubr.f32.mxu0 0.0
    %481 = vmatmul.mubr.f32.gmra.mrb[0].mxu0 %v414
    %v482 = vpop.f32.mrb[0].mxu0
    %v483 = vadd.f32 %v117, %v482
    %v484 = vpop.f32.mrb[0].mxu0
    %485 = vdwg.mxu0
    %v486 = vld [vmem:[%s7] sm:$0xff]
    %v487 = vld [vmem:[%s7 + $0x8] sm:$0xff]
    %v488 = vld [vmem:[%s7 + $0x10] sm:$0xff]
    %v489 = vld [vmem:[%s7 + $0x18] sm:$0xff]
    %490 = vmatprep.subr.mxu0 0.0
    %491 = vmatpush1.msra.mxu0 %v486
    %492 = vmatprep.subr.mxu0 0.0
    %493 = vmatpush1.msra.mxu0 %v487
    %494 = vmatprep.subr.mxu0 0.0
    %495 = vmatpush1.msra.mxu0 %v488
    %496 = vmatprep.subr.mxu0 0.0
    %497 = vmatpush1.msra.mxu0 %v489
    %498 = vmatprep.subr.mxu0 0.0
    %499 = vmatpush1.msra.mxu0 0.0
    %500 = vmatprep.subr.mxu0 0.0
    %501 = vmatpush1.msra.mxu0 0.0
    %502 = vmatprep.subr.mxu0 0.0
    %503 = vmatpush1.msra.mxu0 0.0
    %504 = vmatprep.subr.mxu0 0.0
    %505 = vmatpush1.msra.mxu0 0.0
    %506 = vmatprep.subr.mxu0 0.0
    %507 = vmatpush1.msra.mxu0 0.0
    %508 = vmatprep.subr.mxu0 0.0
    %509 = vmatpush1.msra.mxu0 0.0
    %510 = vmatprep.subr.mxu0 0.0
    %511 = vmatpush1.msra.mxu0 0.0
    %512 = vmatprep.subr.mxu0 0.0
    %513 = vmatpush1.msra.mxu0 0.0
    %514 = vmatprep.subr.mxu0 0.0
    %515 = vmatpush1.msra.mxu0 0.0
    %516 = vmatprep.subr.mxu0 0.0
    %517 = vmatpush1.msra.mxu0 0.0
    %518 = vmatprep.subr.mxu0 0.0
    %519 = vmatpush1.msra.mxu0 0.0
    %520 = vmatprep.subr.mxu0 0.0
    %521 = vmatpush1.msra.mxu0 0.0
    %522 = vmatprep.subr.mxu0 0.0
    %523 = vmatpush1.msra.mxu0 0.0
    %524 = vmatprep.subr.mxu0 0.0
    %525 = vmatpush1.msra.mxu0 0.0
    %526 = vmatprep.subr.mxu0 0.0
    %527 = vmatpush1.msra.mxu0 0.0
    %528 = vmatprep.subr.mxu0 0.0
    %529 = vmatpush1.msra.mxu0 0.0
    %530 = vmatprep.subr.mxu0 0.0
    %531 = vmatpush1.msra.mxu0 0.0
    %532 = vmatprep.subr.mxu0 0.0
    %533 = vmatpush1.msra.mxu0 0.0
    %534 = vmatprep.subr.mxu0 0.0
    %535 = vmatpush1.msra.mxu0 0.0
    %536 = vmatprep.subr.mxu0 0.0
    %537 = vmatpush1.msra.mxu0 0.0
    %538 = vmatprep.subr.mxu0 0.0
    %539 = vmatpush1.msra.mxu0 0.0
    %540 = vmatprep.subr.mxu0 0.0
    %541 = vmatpush1.msra.mxu0 0.0
    %542 = vmatprep.subr.mxu0 0.0
    %543 = vmatpush1.msra.mxu0 0.0
    %544 = vmatprep.subr.mxu0 0.0
    %545 = vmatpush1.msra.mxu0 0.0
    %546 = vmatprep.subr.mxu0 0.0
    %547 = vmatpush1.msra.mxu0 0.0
    %548 = vmatprep.subr.mxu0 0.0
    %549 = vmatpush1.msra.mxu0 0.0
    %550 = vmatprep.subr.mxu0 0.0
    %551 = vmatpush1.msra.mxu0 0.0
    %552 = vmatprep.subr.mxu0 0.0
    %553 = vmatpush1.msra.mxu0 0.0
    %554 = vmatprep.mubr.f32.mxu0 0.0
    %555 = vmatmul.mubr.f32.gmra.mrb[0].mxu0 %v305
    %v556 = vpop.f32.mrb[0].mxu0
    %v557 = vadd.f32 0.0, %v556
    %v558 = vpop.f32.mrb[0].mxu0
    %559 = vdwg.mxu0
    %v560 = vadd.f32 %v483, %v557
    %v561 = vxor.u32 %v560, 2147483648
    %v562 = vmul.f32 %v561, 1.442695
    %v563 = vpow.pop %v562
    %v564 = vadd.f32 %v563, 1.0
    %v565 = vrcp.pop %v564
    %v566 = vmul.f32 1.0, %v565
    %567 = vrot.lane.b32.xlu0 %v138, 64
    %v568 = vpop.permute.xlu0 %567
    %v570 = vadd.f32 %v557, %v568
    %572 = vrot.lane.b32.xlu0 %v570, 64
    %v573 = vpop.permute.xlu0 %572
    %v575 = vmul.f32 %v566, %v573
    %577 = vrot.lane.b32.xlu0 %v575, 64
    %v578 = vpop.permute.xlu0 %577
    %v580 = vadd.f32 %v483, %v578
    %v581 = vtanh.pop %v580
    %v582 = vsub.f32 1.0, %v566
    %584 = vrot.lane.b32.xlu0 %v581, 96
    %v585 = vpop.permute.xlu0 %584
    %v587 = vmul.f32 %v582, %v585
    %v588 = vmul.f32 %v566, 0.0
    %v589 = vadd.f32 %v587, %v588
    %590 = vmatprep.subr.mxu0 0.0
    %591 = vmatpush1.msra.mxu0 %v300
    %592 = vmatprep.subr.mxu0 0.0
    %593 = vmatpush1.msra.mxu0 %v301
    %594 = vmatprep.subr.mxu0 0.0
    %595 = vmatpush1.msra.mxu0 %v302
    %596 = vmatprep.subr.mxu0 0.0
    %597 = vmatpush1.msra.mxu0 %v303
    %598 = vmatprep.subr.mxu0 0.0
    %599 = vmatpush1.msra.mxu0 0.0
    %600 = vmatprep.subr.mxu0 0.0
    %601 = vmatpush1.msra.mxu0 0.0
    %602 = vmatprep.subr.mxu0 0.0
    %603 = vmatpush1.msra.mxu0 0.0
    %604 = vmatprep.subr.mxu0 0.0
    %605 = vmatpush1.msra.mxu0 0.0
    %606 = vmatprep.subr.mxu0 0.0
    %607 = vmatpush1.msra.mxu0 0.0
    %608 = vmatprep.subr.mxu0 0.0
    %609 = vmatpush1.msra.mxu0 0.0
    %610 = vmatprep.subr.mxu0 0.0
    %611 = vmatpush1.msra.mxu0 0.0
    %612 = vmatprep.subr.mxu0 0.0
    %613 = vmatpush1.msra.mxu0 0.0
    %614 = vmatprep.subr.mxu0 0.0
    %615 = vmatpush1.msra.mxu0 0.0
    %616 = vmatprep.subr.mxu0 0.0
    %617 = vmatpush1.msra.mxu0 0.0
    %618 = vmatprep.subr.mxu0 0.0
    %619 = vmatpush1.msra.mxu0 0.0
    %620 = vmatprep.subr.mxu0 0.0
    %621 = vmatpush1.msra.mxu0 0.0
    %622 = vmatprep.subr.mxu0 0.0
    %623 = vmatpush1.msra.mxu0 0.0
    %624 = vmatprep.subr.mxu0 0.0
    %625 = vmatpush1.msra.mxu0 0.0
    %626 = vmatprep.subr.mxu0 0.0
    %627 = vmatpush1.msra.mxu0 0.0
    %628 = vmatprep.subr.mxu0 0.0
    %629 = vmatpush1.msra.mxu0 0.0
    %630 = vmatprep.subr.mxu0 0.0
    %631 = vmatpush1.msra.mxu0 0.0
    %632 = vmatprep.subr.mxu0 0.0
    %633 = vmatpush1.msra.mxu0 0.0
    %634 = vmatprep.subr.mxu0 0.0
    %635 = vmatpush1.msra.mxu0 0.0
    %636 = vmatprep.subr.mxu0 0.0
    %637 = vmatpush1.msra.mxu0 0.0
    %638 = vmatprep.subr.mxu0 0.0
    %639 = vmatpush1.msra.mxu0 0.0
    %640 = vmatprep.subr.mxu0 0.0
    %641 = vmatpush1.msra.mxu0 0.0
    %642 = vmatprep.subr.mxu0 0.0
    %643 = vmatpush1.msra.mxu0 0.0
    %644 = vmatprep.subr.mxu0 0.0
    %645 = vmatpush1.msra.mxu0 0.0
    %646 = vmatprep.subr.mxu0 0.0
    %647 = vmatpush1.msra.mxu0 0.0
    %648 = vmatprep.subr.mxu0 0.0
    %649 = vmatpush1.msra.mxu0 0.0
    %650 = vmatprep.subr.mxu0 0.0
    %651 = vmatpush1.msra.mxu0 0.0
    %652 = vmatprep.subr.mxu0 0.0
    %653 = vmatpush1.msra.mxu0 0.0
    %654 = vmatprep.mubr.f32.mxu0 0.0
    %655 = vmatmul.mubr.f32.gmra.mrb[0].mxu0 %v414
    %v656 = vpop.f32.mrb[0].mxu0
    %v657 = vadd.f32 0.0, %v656
    %v658 = vpop.f32.mrb[0].mxu0
    %659 = vdwg.mxu0
    %v660 = vadd.f32 %v267, %v657
    %v661 = vxor.u32 %v660, 2147483648
    %v662 = vmul.f32 %v661, 1.442695
    %v663 = vpow.pop %v662
    %v664 = vadd.f32 %v663, 1.0
    %v665 = vrcp.pop %v664
    %v666 = vmul.f32 1.0, %v665
    %v667 = vadd.f32 %v657, %v385
    %669 = vrot.lane.b32.xlu0 %v667, 64
    %v670 = vpop.permute.xlu0 %669
    %v672 = vmul.f32 %v666, %v670
    %674 = vrot.lane.b32.xlu0 %v672, 64
    %v675 = vpop.permute.xlu0 %674
    %v677 = vadd.f32 %v267, %v675
    %v678 = vtanh.pop %v677
    %v679 = vsub.f32 1.0, %v666
    %681 = vrot.lane.b32.xlu0 %v678, 96
    %v682 = vpop.permute.xlu0 %681
    %v684 = vmul.f32 %v679, %v682
    %v685 = vmul.f32 %v666, %v406
    %v686 = vadd.f32 %v684, %v685
    %688 = vrot.lane.b32.xlu0 %v686, 96
    %v689 = vpop.permute.xlu0 %688
    %v690 = vsel %vm170, %v689, 0
    %692 = vmatprep.subr.mxu0 0.0
    %693 = vmatpush1.msra.mxu0 %v407
    %694 = vmatprep.subr.mxu0 0.0
    %695 = vmatpush1.msra.mxu0 %v408
    %696 = vmatprep.subr.mxu0 0.0
    %697 = vmatpush1.msra.mxu0 %v409
    %698 = vmatprep.subr.mxu0 0.0
    %699 = vmatpush1.msra.mxu0 %v410
    %700 = vmatprep.subr.mxu0 0.0
    %701 = vmatpush1.msra.mxu0 0.0
    %702 = vmatprep.subr.mxu0 0.0
    %703 = vmatpush1.msra.mxu0 0.0
    %704 = vmatprep.subr.mxu0 0.0
    %705 = vmatpush1.msra.mxu0 0.0
    %706 = vmatprep.subr.mxu0 0.0
    %707 = vmatpush1.msra.mxu0 0.0
    %708 = vmatprep.subr.mxu0 0.0
    %709 = vmatpush1.msra.mxu0 0.0
    %710 = vmatprep.subr.mxu0 0.0
    %711 = vmatpush1.msra.mxu0 0.0
    %712 = vmatprep.subr.mxu0 0.0
    %713 = vmatpush1.msra.mxu0 0.0
    %714 = vmatprep.subr.mxu0 0.0
    %715 = vmatpush1.msra.mxu0 0.0
    %716 = vmatprep.subr.mxu0 0.0
    %717 = vmatpush1.msra.mxu0 0.0
    %718 = vmatprep.subr.mxu0 0.0
    %719 = vmatpush1.msra.mxu0 0.0
    %720 = vmatprep.subr.mxu0 0.0
    %721 = vmatpush1.msra.mxu0 0.0
    %722 = vmatprep.subr.mxu0 0.0
    %723 = vmatpush1.msra.mxu0 0.0
    %724 = vmatprep.subr.mxu0 0.0
    %725 = vmatpush1.msra.mxu0 0.0
    %726 = vmatprep.subr.mxu0 0.0
    %727 = vmatpush1.msra.mxu0 0.0
    %728 = vmatprep.subr.mxu0 0.0
    %729 = vmatpush1.msra.mxu0 0.0
    %730 = vmatprep.subr.mxu0 0.0
    %731 = vmatpush1.msra.mxu0 0.0
    %732 = vmatprep.subr.mxu0 0.0
    %733 = vmatpush1.msra.mxu0 0.0
    %734 = vmatprep.subr.mxu0 0.0
    %735 = vmatpush1.msra.mxu0 0.0
    %736 = vmatprep.subr.mxu0 0.0
    %737 = vmatpush1.msra.mxu0 0.0
    %738 = vmatprep.subr.mxu0 0.0
    %739 = vmatpush1.msra.mxu0 0.0
    %740 = vmatprep.subr.mxu0 0.0
    %741 = vmatpush1.msra.mxu0 0.0
    %742 = vmatprep.subr.mxu0 0.0
    %743 = vmatpush1.msra.mxu0 0.0
    %744 = vmatprep.subr.mxu0 0.0
    %745 = vmatpush1.msra.mxu0 0.0
    %746 = vmatprep.subr.mxu0 0.0
    %747 = vmatpush1.msra.mxu0 0.0
    %748 = vmatprep.subr.mxu0 0.0
    %749 = vmatpush1.msra.mxu0 0.0
    %750 = vmatprep.subr.mxu0 0.0
    %751 = vmatpush1.msra.mxu0 0.0
    %752 = vmatprep.subr.mxu0 0.0
    %753 = vmatpush1.msra.mxu0 0.0
    %754 = vmatprep.subr.mxu0 0.0
    %755 = vmatpush1.msra.mxu0 0.0
    %756 = vmatprep.mubr.f32.mxu0 0.0
    %757 = vmatmul.mubr.f32.gmra.mrb[0].mxu0 %v690
    %v758 = vpop.f32.mrb[0].mxu0
    %v759 = vadd.f32 %v117, %v758
    %v760 = vpop.f32.mrb[0].mxu0
    %761 = vdwg.mxu0
    %763 = vrot.lane.b32.xlu0 %v589, 96
    %v764 = vpop.permute.xlu0 %763
    %v765 = vsel %vm170, %v764, 0
    %767 = vmatprep.subr.mxu0 0.0
    %768 = vmatpush1.msra.mxu0 %v486
    %769 = vmatprep.subr.mxu0 0.0
    %770 = vmatpush1.msra.mxu0 %v487
    %771 = vmatprep.subr.mxu0 0.0
    %772 = vmatpush1.msra.mxu0 %v488
    %773 = vmatprep.subr.mxu0 0.0
    %774 = vmatpush1.msra.mxu0 %v489
    %775 = vmatprep.subr.mxu0 0.0
    %776 = vmatpush1.msra.mxu0 0.0
    %777 = vmatprep.subr.mxu0 0.0
    %778 = vmatpush1.msra.mxu0 0.0
    %779 = vmatprep.subr.mxu0 0.0
    %780 = vmatpush1.msra.mxu0 0.0
    %781 = vmatprep.subr.mxu0 0.0
    %782 = vmatpush1.msra.mxu0 0.0
    %783 = vmatprep.subr.mxu0 0.0
    %784 = vmatpush1.msra.mxu0 0.0
    %785 = vmatprep.subr.mxu0 0.0
    %786 = vmatpush1.msra.mxu0 0.0
    %787 = vmatprep.subr.mxu0 0.0
    %788 = vmatpush1.msra.mxu0 0.0
    %789 = vmatprep.subr.mxu0 0.0
    %790 = vmatpush1.msra.mxu0 0.0
    %791 = vmatprep.subr.mxu0 0.0
    %792 = vmatpush1.msra.mxu0 0.0
    %793 = vmatprep.subr.mxu0 0.0
    %794 = vmatpush1.msra.mxu0 0.0
    %795 = vmatprep.subr.mxu0 0.0
    %796 = vmatpush1.msra.mxu0 0.0
    %797 = vmatprep.subr.mxu0 0.0
    %798 = vmatpush1.msra.mxu0 0.0
    %799 = vmatprep.subr.mxu0 0.0
    %800 = vmatpush1.msra.mxu0 0.0
    %801 = vmatprep.subr.mxu0 0.0
    %802 = vmatpush1.msra.mxu0 0.0
    %803 = vmatprep.subr.mxu0 0.0
    %804 = vmatpush1.msra.mxu0 0.0
    %805 = vmatprep.subr.mxu0 0.0
    %806 = vmatpush1.msra.mxu0 0.0
    %807 = vmatprep.subr.mxu0 0.0
    %808 = vmatpush1.msra.mxu0 0.0
    %809 = vmatprep.subr.mxu0 0.0
    %810 = vmatpush1.msra.mxu0 0.0
    %811 = vmatprep.subr.mxu0 0.0
    %812 = vmatpush1.msra.mxu0 0.0
    %813 = vmatprep.subr.mxu0 0.0
    %814 = vmatpush1.msra.mxu0 0.0
    %815 = vmatprep.subr.mxu0 0.0
    %816 = vmatpush1.msra.mxu0 0.0
    %817 = vmatprep.subr.mxu0 0.0
    %818 = vmatpush1.msra.mxu0 0.0
    %819 = vmatprep.subr.mxu0 0.0
    %820 = vmatpush1.msra.mxu0 0.0
    %821 = vmatprep.subr.mxu0 0.0
    %822 = vmatpush1.msra.mxu0 0.0
    %823 = vmatprep.subr.mxu0 0.0
    %824 = vmatpush1.msra.mxu0 0.0
    %825 = vmatprep.subr.mxu0 0.0
    %826 = vmatpush1.msra.mxu0 0.0
    %827 = vmatprep.subr.mxu0 0.0
    %828 = vmatpush1.msra.mxu0 0.0
    %829 = vmatprep.subr.mxu0 0.0
    %830 = vmatpush1.msra.mxu0 0.0
    %831 = vmatprep.mubr.f32.mxu0 0.0
    %832 = vmatmul.mubr.f32.gmra.mrb[0].mxu0 %v765
    %v833 = vpop.f32.mrb[0].mxu0
    %v834 = vadd.f32 0.0, %v833
    %v835 = vpop.f32.mrb[0].mxu0
    %836 = vdwg.mxu0
    %v837 = vadd.f32 %v759, %v834
    %v838 = vxor.u32 %v837, 2147483648
    %v839 = vmul.f32 %v838, 1.442695
    %v840 = vpow.pop %v839
    %v841 = vadd.f32 %v840, 1.0
    %v842 = vrcp.pop %v841
    %v843 = vmul.f32 1.0, %v842
    %v844 = vadd.f32 %v834, %v568
    %846 = vrot.lane.b32.xlu0 %v844, 64
    %v847 = vpop.permute.xlu0 %846
    %v849 = vmul.f32 %v843, %v847
    %851 = vrot.lane.b32.xlu0 %v849, 64
    %v852 = vpop.permute.xlu0 %851
    %v854 = vadd.f32 %v759, %v852
    %v855 = vtanh.pop %v854
    %v856 = vsub.f32 1.0, %v843
    %858 = vrot.lane.b32.xlu0 %v855, 96
    %v859 = vpop.permute.xlu0 %858
    %v861 = vmul.f32 %v856, %v859
    %v862 = vmul.f32 %v843, %v589
    %v863 = vadd.f32 %v861, %v862
    %864 = vmatprep.subr.mxu0 0.0
    %865 = vmatpush1.msra.mxu0 %v300
    %866 = vmatprep.subr.mxu0 0.0
    %867 = vmatpush1.msra.mxu0 %v301
    %868 = vmatprep.subr.mxu0 0.0
    %869 = vmatpush1.msra.mxu0 %v302
    %870 = vmatprep.subr.mxu0 0.0
    %871 = vmatpush1.msra.mxu0 %v303
    %872 = vmatprep.subr.mxu0 0.0
    %873 = vmatpush1.msra.mxu0 0.0
    %874 = vmatprep.subr.mxu0 0.0
    %875 = vmatpush1.msra.mxu0 0.0
    %876 = vmatprep.subr.mxu0 0.0
    %877 = vmatpush1.msra.mxu0 0.0
    %878 = vmatprep.subr.mxu0 0.0
    %879 = vmatpush1.msra.mxu0 0.0
    %880 = vmatprep.subr.mxu0 0.0
    %881 = vmatpush1.msra.mxu0 0.0
    %882 = vmatprep.subr.mxu0 0.0
    %883 = vmatpush1.msra.mxu0 0.0
    %884 = vmatprep.subr.mxu0 0.0
    %885 = vmatpush1.msra.mxu0 0.0
    %886 = vmatprep.subr.mxu0 0.0
    %887 = vmatpush1.msra.mxu0 0.0
    %888 = vmatprep.subr.mxu0 0.0
    %889 = vmatpush1.msra.mxu0 0.0
    %890 = vmatprep.subr.mxu0 0.0
    %891 = vmatpush1.msra.mxu0 0.0
    %892 = vmatprep.subr.mxu0 0.0
    %893 = vmatpush1.msra.mxu0 0.0
    %894 = vmatprep.subr.mxu0 0.0
    %895 = vmatpush1.msra.mxu0 0.0
    %896 = vmatprep.subr.mxu0 0.0
    %897 = vmatpush1.msra.mxu0 0.0
    %898 = vmatprep.subr.mxu0 0.0
    %899 = vmatpush1.msra.mxu0 0.0
    %900 = vmatprep.subr.mxu0 0.0
    %901 = vmatpush1.msra.mxu0 0.0
    %902 = vmatprep.subr.mxu0 0.0
    %903 = vmatpush1.msra.mxu0 0.0
    %904 = vmatprep.subr.mxu0 0.0
    %905 = vmatpush1.msra.mxu0 0.0
    %906 = vmatprep.subr.mxu0 0.0
    %907 = vmatpush1.msra.mxu0 0.0
    %908 = vmatprep.subr.mxu0 0.0
    %909 = vmatpush1.msra.mxu0 0.0
    %910 = vmatprep.subr.mxu0 0.0
    %911 = vmatpush1.msra.mxu0 0.0
    %912 = vmatprep.subr.mxu0 0.0
    %913 = vmatpush1.msra.mxu0 0.0
    %914 = vmatprep.subr.mxu0 0.0
    %915 = vmatpush1.msra.mxu0 0.0
    %916 = vmatprep.subr.mxu0 0.0
    %917 = vmatpush1.msra.mxu0 0.0
    %918 = vmatprep.subr.mxu0 0.0
    %919 = vmatpush1.msra.mxu0 0.0
    %920 = vmatprep.subr.mxu0 0.0
    %921 = vmatpush1.msra.mxu0 0.0
    %922 = vmatprep.subr.mxu0 0.0
    %923 = vmatpush1.msra.mxu0 0.0
    %924 = vmatprep.subr.mxu0 0.0
    %925 = vmatpush1.msra.mxu0 0.0
    %926 = vmatprep.subr.mxu0 0.0
    %927 = vmatpush1.msra.mxu0 0.0
    %928 = vmatprep.mubr.f32.mxu0 0.0
    %929 = vmatmul.mubr.f32.gmra.mrb[0].mxu0 %v690
    %v930 = vpop.f32.mrb[0].mxu0
    %v931 = vadd.f32 0.0, %v930
    %v932 = vpop.f32.mrb[0].mxu0
    %933 = vdwg.mxu0
    %v934 = vadd.f32 %v272, %v931
    %v935 = vxor.u32 %v934, 2147483648
    %v936 = vmul.f32 %v935, 1.442695
    %v937 = vpow.pop %v936
    %v938 = vadd.f32 %v937, 1.0
    %v939 = vrcp.pop %v938
    %v940 = vmul.f32 1.0, %v939
    %v941 = vadd.f32 %v931, %v385
    %943 = vrot.lane.b32.xlu0 %v941, 64
    %v944 = vpop.permute.xlu0 %943
    %v946 = vmul.f32 %v940, %v944
    %948 = vrot.lane.b32.xlu0 %v946, 64
    %v949 = vpop.permute.xlu0 %948
    %v951 = vadd.f32 %v272, %v949
    %v952 = vtanh.pop %v951
    %v953 = vsub.f32 1.0, %v940
    %955 = vrot.lane.b32.xlu0 %v952, 96
    %v956 = vpop.permute.xlu0 %955
    %v958 = vmul.f32 %v953, %v956
    %v959 = vmul.f32 %v940, %v686
    %v960 = vadd.f32 %v958, %v959
    %962 = vrot.lane.b32.xlu0 %v960, 96
    %v963 = vpop.permute.xlu0 %962
    %v964 = vsel %vm170, %v963, 0
    %966 = vmatprep.subr.mxu0 0.0
    %967 = vmatpush1.msra.mxu0 %v407
    %968 = vmatprep.subr.mxu0 0.0
    %969 = vmatpush1.msra.mxu0 %v408
    %970 = vmatprep.subr.mxu0 0.0
    %971 = vmatpush1.msra.mxu0 %v409
    %972 = vmatprep.subr.mxu0 0.0
    %973 = vmatpush1.msra.mxu0 %v410
    %974 = vmatprep.subr.mxu0 0.0
    %975 = vmatpush1.msra.mxu0 0.0
    %976 = vmatprep.subr.mxu0 0.0
    %977 = vmatpush1.msra.mxu0 0.0
    %978 = vmatprep.subr.mxu0 0.0
    %979 = vmatpush1.msra.mxu0 0.0
    %980 = vmatprep.subr.mxu0 0.0
    %981 = vmatpush1.msra.mxu0 0.0
    %982 = vmatprep.subr.mxu0 0.0
    %983 = vmatpush1.msra.mxu0 0.0
    %984 = vmatprep.subr.mxu0 0.0
    %985 = vmatpush1.msra.mxu0 0.0
    %986 = vmatprep.subr.mxu0 0.0
    %987 = vmatpush1.msra.mxu0 0.0
    %988 = vmatprep.subr.mxu0 0.0
    %989 = vmatpush1.msra.mxu0 0.0
    %990 = vmatprep.subr.mxu0 0.0
    %991 = vmatpush1.msra.mxu0 0.0
    %992 = vmatprep.subr.mxu0 0.0
    %993 = vmatpush1.msra.mxu0 0.0
    %994 = vmatprep.subr.mxu0 0.0
    %995 = vmatpush1.msra.mxu0 0.0
    %996 = vmatprep.subr.mxu0 0.0
    %997 = vmatpush1.msra.mxu0 0.0
    %998 = vmatprep.subr.mxu0 0.0
    %999 = vmatpush1.msra.mxu0 0.0
    %1000 = vmatprep.subr.mxu0 0.0
    %1001 = vmatpush1.msra.mxu0 0.0
    %1002 = vmatprep.subr.mxu0 0.0
    %1003 = vmatpush1.msra.mxu0 0.0
    %1004 = vmatprep.subr.mxu0 0.0
    %1005 = vmatpush1.msra.mxu0 0.0
    %1006 = vmatprep.subr.mxu0 0.0
    %1007 = vmatpush1.msra.mxu0 0.0
    %1008 = vmatprep.subr.mxu0 0.0
    %1009 = vmatpush1.msra.mxu0 0.0
    %1010 = vmatprep.subr.mxu0 0.0
    %1011 = vmatpush1.msra.mxu0 0.0
    %1012 = vmatprep.subr.mxu0 0.0
    %1013 = vmatpush1.msra.mxu0 0.0
    %1014 = vmatprep.subr.mxu0 0.0
    %1015 = vmatpush1.msra.mxu0 0.0
    %1016 = vmatprep.subr.mxu0 0.0
    %1017 = vmatpush1.msra.mxu0 0.0
    %1018 = vmatprep.subr.mxu0 0.0
    %1019 = vmatpush1.msra.mxu0 0.0
    %1020 = vmatprep.subr.mxu0 0.0
    %1021 = vmatpush1.msra.mxu0 0.0
    %1022 = vmatprep.subr.mxu0 0.0
    %1023 = vmatpush1.msra.mxu0 0.0
    %1024 = vmatprep.subr.mxu0 0.0
    %1025 = vmatpush1.msra.mxu0 0.0
    %1026 = vmatprep.subr.mxu0 0.0
    %1027 = vmatpush1.msra.mxu0 0.0
    %1028 = vmatprep.subr.mxu0 0.0
    %1029 = vmatpush1.msra.mxu0 0.0
    %1030 = vmatprep.mubr.f32.mxu0 0.0
    %1031 = vmatmul.mubr.f32.gmra.mrb[0].mxu0 %v964
    %v1032 = vpop.f32.mrb[0].mxu0
    %v1033 = vadd.f32 %v117, %v1032
    %v1034 = vpop.f32.mrb[0].mxu0
    %1035 = vdwg.mxu0
    %1037 = vrot.lane.b32.xlu0 %v863, 96
    %v1038 = vpop.permute.xlu0 %1037
    %v1039 = vsel %vm170, %v1038, 0
    %1041 = vmatprep.subr.mxu0 0.0
    %1042 = vmatpush1.msra.mxu0 %v486
    %1043 = vmatprep.subr.mxu0 0.0
    %1044 = vmatpush1.msra.mxu0 %v487
    %1045 = vmatprep.subr.mxu0 0.0
    %1046 = vmatpush1.msra.mxu0 %v488
    %1047 = vmatprep.subr.mxu0 0.0
    %1048 = vmatpush1.msra.mxu0 %v489
    %1049 = vmatprep.subr.mxu0 0.0
    %1050 = vmatpush1.msra.mxu0 0.0
    %1051 = vmatprep.subr.mxu0 0.0
    %1052 = vmatpush1.msra.mxu0 0.0
    %1053 = vmatprep.subr.mxu0 0.0
    %1054 = vmatpush1.msra.mxu0 0.0
    %1055 = vmatprep.subr.mxu0 0.0
    %1056 = vmatpush1.msra.mxu0 0.0
    %1057 = vmatprep.subr.mxu0 0.0
    %1058 = vmatpush1.msra.mxu0 0.0
    %1059 = vmatprep.subr.mxu0 0.0
    %1060 = vmatpush1.msra.mxu0 0.0
    %1061 = vmatprep.subr.mxu0 0.0
    %1062 = vmatpush1.msra.mxu0 0.0
    %1063 = vmatprep.subr.mxu0 0.0
    %1064 = vmatpush1.msra.mxu0 0.0
    %1065 = vmatprep.subr.mxu0 0.0
    %1066 = vmatpush1.msra.mxu0 0.0
    %1067 = vmatprep.subr.mxu0 0.0
    %1068 = vmatpush1.msra.mxu0 0.0
    %1069 = vmatprep.subr.mxu0 0.0
    %1070 = vmatpush1.msra.mxu0 0.0
    %1071 = vmatprep.subr.mxu0 0.0
    %1072 = vmatpush1.msra.mxu0 0.0
    %1073 = vmatprep.subr.mxu0 0.0
    %1074 = vmatpush1.msra.mxu0 0.0
    %1075 = vmatprep.subr.mxu0 0.0
    %1076 = vmatpush1.msra.mxu0 0.0
    %1077 = vmatprep.subr.mxu0 0.0
    %1078 = vmatpush1.msra.mxu0 0.0
    %1079 = vmatprep.subr.mxu0 0.0
    %1080 = vmatpush1.msra.mxu0 0.0
    %1081 = vmatprep.subr.mxu0 0.0
    %1082 = vmatpush1.msra.mxu0 0.0
    %1083 = vmatprep.subr.mxu0 0.0
    %1084 = vmatpush1.msra.mxu0 0.0
    %1085 = vmatprep.subr.mxu0 0.0
    %1086 = vmatpush1.msra.mxu0 0.0
    %1087 = vmatprep.subr.mxu0 0.0
    %1088 = vmatpush1.msra.mxu0 0.0
    %1089 = vmatprep.subr.mxu0 0.0
    %1090 = vmatpush1.msra.mxu0 0.0
    %1091 = vmatprep.subr.mxu0 0.0
    %1092 = vmatpush1.msra.mxu0 0.0
    %1093 = vmatprep.subr.mxu0 0.0
    %1094 = vmatpush1.msra.mxu0 0.0
    %1095 = vmatprep.subr.mxu0 0.0
    %1096 = vmatpush1.msra.mxu0 0.0
    %1097 = vmatprep.subr.mxu0 0.0
    %1098 = vmatpush1.msra.mxu0 0.0
    %1099 = vmatprep.subr.mxu0 0.0
    %1100 = vmatpush1.msra.mxu0 0.0
    %1101 = vmatprep.subr.mxu0 0.0
    %1102 = vmatpush1.msra.mxu0 0.0
    %1103 = vmatprep.subr.mxu0 0.0
    %1104 = vmatpush1.msra.mxu0 0.0
    %1105 = vmatprep.mubr.f32.mxu0 0.0
    %1106 = vmatmul.mubr.f32.gmra.mrb[0].mxu0 %v1039
    %v1107 = vpop.f32.mrb[0].mxu0
    %v1108 = vadd.f32 0.0, %v1107
    %v1109 = vpop.f32.mrb[0].mxu0
    %1110 = vdwg.mxu0
    %v1111 = vadd.f32 %v1033, %v1108
    %v1112 = vxor.u32 %v1111, 2147483648
    %v1113 = vmul.f32 %v1112, 1.442695
    %v1114 = vpow.pop %v1113
    %v1115 = vadd.f32 %v1114, 1.0
    %v1116 = vrcp.pop %v1115
    %v1117 = vmul.f32 1.0, %v1116
    %v1118 = vadd.f32 %v1108, %v568
    %1120 = vrot.lane.b32.xlu0 %v1118, 64
    %v1121 = vpop.permute.xlu0 %1120
    %v1123 = vmul.f32 %v1117, %v1121
    %1125 = vrot.lane.b32.xlu0 %v1123, 64
    %v1126 = vpop.permute.xlu0 %1125
    %v1128 = vadd.f32 %v1033, %v1126
    %v1129 = vtanh.pop %v1128
    %v1130 = vsub.f32 1.0, %v1117
    %1132 = vrot.lane.b32.xlu0 %v1129, 96
    %v1133 = vpop.permute.xlu0 %1132
    %v1135 = vmul.f32 %v1130, %v1133
    %v1136 = vmul.f32 %v1117, %v863
    %v1137 = vadd.f32 %v1135, %v1136
    %1138 = vmatprep.subr.mxu0 0.0
    %1139 = vmatpush1.msra.mxu0 %v300
    %1140 = vmatprep.subr.mxu0 0.0
    %1141 = vmatpush1.msra.mxu0 %v301
    %1142 = vmatprep.subr.mxu0 0.0
    %1143 = vmatpush1.msra.mxu0 %v302
    %1144 = vmatprep.subr.mxu0 0.0
    %1145 = vmatpush1.msra.mxu0 %v303
    %1146 = vmatprep.subr.mxu0 0.0
    %1147 = vmatpush1.msra.mxu0 0.0
    %1148 = vmatprep.subr.mxu0 0.0
    %1149 = vmatpush1.msra.mxu0 0.0
    %1150 = vmatprep.subr.mxu0 0.0
    %1151 = vmatpush1.msra.mxu0 0.0
    %1152 = vmatprep.subr.mxu0 0.0
    %1153 = vmatpush1.msra.mxu0 0.0
    %1154 = vmatprep.subr.mxu0 0.0
    %1155 = vmatpush1.msra.mxu0 0.0
    %1156 = vmatprep.subr.mxu0 0.0
    %1157 = vmatpush1.msra.mxu0 0.0
    %1158 = vmatprep.subr.mxu0 0.0
    %1159 = vmatpush1.msra.mxu0 0.0
    %1160 = vmatprep.subr.mxu0 0.0
    %1161 = vmatpush1.msra.mxu0 0.0
    %1162 = vmatprep.subr.mxu0 0.0
    %1163 = vmatpush1.msra.mxu0 0.0
    %1164 = vmatprep.subr.mxu0 0.0
    %1165 = vmatpush1.msra.mxu0 0.0
    %1166 = vmatprep.subr.mxu0 0.0
    %1167 = vmatpush1.msra.mxu0 0.0
    %1168 = vmatprep.subr.mxu0 0.0
    %1169 = vmatpush1.msra.mxu0 0.0
    %1170 = vmatprep.subr.mxu0 0.0
    %1171 = vmatpush1.msra.mxu0 0.0
    %1172 = vmatprep.subr.mxu0 0.0
    %1173 = vmatpush1.msra.mxu0 0.0
    %1174 = vmatprep.subr.mxu0 0.0
    %1175 = vmatpush1.msra.mxu0 0.0
    %1176 = vmatprep.subr.mxu0 0.0
    %1177 = vmatpush1.msra.mxu0 0.0
    %1178 = vmatprep.subr.mxu0 0.0
    %1179 = vmatpush1.msra.mxu0 0.0
    %1180 = vmatprep.subr.mxu0 0.0
    %1181 = vmatpush1.msra.mxu0 0.0
    %1182 = vmatprep.subr.mxu0 0.0
    %1183 = vmatpush1.msra.mxu0 0.0
    %1184 = vmatprep.subr.mxu0 0.0
    %1185 = vmatpush1.msra.mxu0 0.0
    %1186 = vmatprep.subr.mxu0 0.0
    %1187 = vmatpush1.msra.mxu0 0.0
    %1188 = vmatprep.subr.mxu0 0.0
    %1189 = vmatpush1.msra.mxu0 0.0
    %1190 = vmatprep.subr.mxu0 0.0
    %1191 = vmatpush1.msra.mxu0 0.0
    %1192 = vmatprep.subr.mxu0 0.0
    %1193 = vmatpush1.msra.mxu0 0.0
    %1194 = vmatprep.subr.mxu0 0.0
    %1195 = vmatpush1.msra.mxu0 0.0
    %1196 = vmatprep.subr.mxu0 0.0
    %1197 = vmatpush1.msra.mxu0 0.0
    %1198 = vmatprep.subr.mxu0 0.0
    %1199 = vmatpush1.msra.mxu0 0.0
    %1200 = vmatprep.subr.mxu0 0.0
    %1201 = vmatpush1.msra.mxu0 0.0
    %1202 = vmatprep.mubr.f32.mxu0 0.0
    %1203 = vmatmul.mubr.f32.gmra.mrb[0].mxu0 %v964
    %v1204 = vpop.f32.mrb[0].mxu0
    %v1205 = vadd.f32 0.0, %v1204
    %v1206 = vpop.f32.mrb[0].mxu0
    %1207 = vdwg.mxu0
    %v1208 = vadd.f32 %v277, %v1205
    %v1209 = vxor.u32 %v1208, 2147483648
    %v1210 = vmul.f32 %v1209, 1.442695
    %v1211 = vpow.pop %v1210
    %v1212 = vadd.f32 %v1211, 1.0
    %v1213 = vrcp.pop %v1212
    %v1214 = vmul.f32 1.0, %v1213
    %v1215 = vadd.f32 %v1205, %v385
    %1217 = vrot.lane.b32.xlu0 %v1215, 64
    %v1218 = vpop.permute.xlu0 %1217
    %v1220 = vmul.f32 %v1214, %v1218
    %1222 = vrot.lane.b32.xlu0 %v1220, 64
    %v1223 = vpop.permute.xlu0 %1222
    %v1225 = vadd.f32 %v277, %v1223
    %v1226 = vtanh.pop %v1225
    %v1227 = vsub.f32 1.0, %v1214
    %1229 = vrot.lane.b32.xlu0 %v1226, 96
    %v1230 = vpop.permute.xlu0 %1229
    %v1232 = vmul.f32 %v1227, %v1230
    %v1233 = vmul.f32 %v1214, %v960
    %v1234 = vadd.f32 %v1232, %v1233
    %1236 = vrot.lane.b32.xlu0 %v1234, 96
    %v1237 = vpop.permute.xlu0 %1236
    %v1238 = vsel %vm170, %v1237, 0
    %1240 = vmatprep.subr.mxu0 0.0
    %1241 = vmatpush1.msra.mxu0 %v407
    %1242 = vmatprep.subr.mxu0 0.0
    %1243 = vmatpush1.msra.mxu0 %v408
    %1244 = vmatprep.subr.mxu0 0.0
    %1245 = vmatpush1.msra.mxu0 %v409
    %1246 = vmatprep.subr.mxu0 0.0
    %1247 = vmatpush1.msra.mxu0 %v410
    %1248 = vmatprep.subr.mxu0 0.0
    %1249 = vmatpush1.msra.mxu0 0.0
    %1250 = vmatprep.subr.mxu0 0.0
    %1251 = vmatpush1.msra.mxu0 0.0
    %1252 = vmatprep.subr.mxu0 0.0
    %1253 = vmatpush1.msra.mxu0 0.0
    %1254 = vmatprep.subr.mxu0 0.0
    %1255 = vmatpush1.msra.mxu0 0.0
    %1256 = vmatprep.subr.mxu0 0.0
    %1257 = vmatpush1.msra.mxu0 0.0
    %1258 = vmatprep.subr.mxu0 0.0
    %1259 = vmatpush1.msra.mxu0 0.0
    %1260 = vmatprep.subr.mxu0 0.0
    %1261 = vmatpush1.msra.mxu0 0.0
    %1262 = vmatprep.subr.mxu0 0.0
    %1263 = vmatpush1.msra.mxu0 0.0
    %1264 = vmatprep.subr.mxu0 0.0
    %1265 = vmatpush1.msra.mxu0 0.0
    %1266 = vmatprep.subr.mxu0 0.0
    %1267 = vmatpush1.msra.mxu0 0.0
    %1268 = vmatprep.subr.mxu0 0.0
    %1269 = vmatpush1.msra.mxu0 0.0
    %1270 = vmatprep.subr.mxu0 0.0
    %1271 = vmatpush1.msra.mxu0 0.0
    %1272 = vmatprep.subr.mxu0 0.0
    %1273 = vmatpush1.msra.mxu0 0.0
    %1274 = vmatprep.subr.mxu0 0.0
    %1275 = vmatpush1.msra.mxu0 0.0
    %1276 = vmatprep.subr.mxu0 0.0
    %1277 = vmatpush1.msra.mxu0 0.0
    %1278 = vmatprep.subr.mxu0 0.0
    %1279 = vmatpush1.msra.mxu0 0.0
    %1280 = vmatprep.subr.mxu0 0.0
    %1281 = vmatpush1.msra.mxu0 0.0
    %1282 = vmatprep.subr.mxu0 0.0
    %1283 = vmatpush1.msra.mxu0 0.0
    %1284 = vmatprep.subr.mxu0 0.0
    %1285 = vmatpush1.msra.mxu0 0.0
    %1286 = vmatprep.subr.mxu0 0.0
    %1287 = vmatpush1.msra.mxu0 0.0
    %1288 = vmatprep.subr.mxu0 0.0
    %1289 = vmatpush1.msra.mxu0 0.0
    %1290 = vmatprep.subr.mxu0 0.0
    %1291 = vmatpush1.msra.mxu0 0.0
    %1292 = vmatprep.subr.mxu0 0.0
    %1293 = vmatpush1.msra.mxu0 0.0
    %1294 = vmatprep.subr.mxu0 0.0
    %1295 = vmatpush1.msra.mxu0 0.0
    %1296 = vmatprep.subr.mxu0 0.0
    %1297 = vmatpush1.msra.mxu0 0.0
    %1298 = vmatprep.subr.mxu0 0.0
    %1299 = vmatpush1.msra.mxu0 0.0
    %1300 = vmatprep.subr.mxu0 0.0
    %1301 = vmatpush1.msra.mxu0 0.0
    %1302 = vmatprep.subr.mxu0 0.0
    %1303 = vmatpush1.msra.mxu0 0.0
    %1304 = vmatprep.mubr.f32.mxu0 0.0
    %1305 = vmatmul.mubr.f32.gmra.mrb[0].mxu0 %v1238
    %v1306 = vpop.f32.mrb[0].mxu0
    %v1307 = vadd.f32 %v117, %v1306
    %v1308 = vpop.f32.mrb[0].mxu0
    %1309 = vdwg.mxu0
    %1311 = vrot.lane.b32.xlu0 %v1137, 96
    %v1312 = vpop.permute.xlu0 %1311
    %v1313 = vsel %vm170, %v1312, 0
    %1315 = vmatprep.subr.mxu0 0.0
    %1316 = vmatpush1.msra.mxu0 %v486
    %1317 = vmatprep.subr.mxu0 0.0
    %1318 = vmatpush1.msra.mxu0 %v487
    %1319 = vmatprep.subr.mxu0 0.0
    %1320 = vmatpush1.msra.mxu0 %v488
    %1321 = vmatprep.subr.mxu0 0.0
    %1322 = vmatpush1.msra.mxu0 %v489
    %1323 = vmatprep.subr.mxu0 0.0
    %1324 = vmatpush1.msra.mxu0 0.0
    %1325 = vmatprep.subr.mxu0 0.0
    %1326 = vmatpush1.msra.mxu0 0.0
    %1327 = vmatprep.subr.mxu0 0.0
    %1328 = vmatpush1.msra.mxu0 0.0
    %1329 = vmatprep.subr.mxu0 0.0
    %1330 = vmatpush1.msra.mxu0 0.0
    %1331 = vmatprep.subr.mxu0 0.0
    %1332 = vmatpush1.msra.mxu0 0.0
    %1333 = vmatprep.subr.mxu0 0.0
    %1334 = vmatpush1.msra.mxu0 0.0
    %1335 = vmatprep.subr.mxu0 0.0
    %1336 = vmatpush1.msra.mxu0 0.0
    %1337 = vmatprep.subr.mxu0 0.0
    %1338 = vmatpush1.msra.mxu0 0.0
    %1339 = vmatprep.subr.mxu0 0.0
    %1340 = vmatpush1.msra.mxu0 0.0
    %1341 = vmatprep.subr.mxu0 0.0
    %1342 = vmatpush1.msra.mxu0 0.0
    %1343 = vmatprep.subr.mxu0 0.0
    %1344 = vmatpush1.msra.mxu0 0.0
    %1345 = vmatprep.subr.mxu0 0.0
    %1346 = vmatpush1.msra.mxu0 0.0
    %1347 = vmatprep.subr.mxu0 0.0
    %1348 = vmatpush1.msra.mxu0 0.0
    %1349 = vmatprep.subr.mxu0 0.0
    %1350 = vmatpush1.msra.mxu0 0.0
    %1351 = vmatprep.subr.mxu0 0.0
    %1352 = vmatpush1.msra.mxu0 0.0
    %1353 = vmatprep.subr.mxu0 0.0
    %1354 = vmatpush1.msra.mxu0 0.0
    %1355 = vmatprep.subr.mxu0 0.0
    %1356 = vmatpush1.msra.mxu0 0.0
    %1357 = vmatprep.subr.mxu0 0.0
    %1358 = vmatpush1.msra.mxu0 0.0
    %1359 = vmatprep.subr.mxu0 0.0
    %1360 = vmatpush1.msra.mxu0 0.0
    %1361 = vmatprep.subr.mxu0 0.0
    %1362 = vmatpush1.msra.mxu0 0.0
    %1363 = vmatprep.subr.mxu0 0.0
    %1364 = vmatpush1.msra.mxu0 0.0
    %1365 = vmatprep.subr.mxu0 0.0
    %1366 = vmatpush1.msra.mxu0 0.0
    %1367 = vmatprep.subr.mxu0 0.0
    %1368 = vmatpush1.msra.mxu0 0.0
    %1369 = vmatprep.subr.mxu0 0.0
    %1370 = vmatpush1.msra.mxu0 0.0
    %1371 = vmatprep.subr.mxu0 0.0
    %1372 = vmatpush1.msra.mxu0 0.0
    %1373 = vmatprep.subr.mxu0 0.0
    %1374 = vmatpush1.msra.mxu0 0.0
    %1375 = vmatprep.subr.mxu0 0.0
    %1376 = vmatpush1.msra.mxu0 0.0
    %1377 = vmatprep.subr.mxu0 0.0
    %1378 = vmatpush1.msra.mxu0 0.0
    %1379 = vmatprep.mubr.f32.mxu0 0.0
    %1380 = vmatmul.mubr.f32.gmra.mrb[0].mxu0 %v1313
    %v1381 = vpop.f32.mrb[0].mxu0
    %v1382 = vadd.f32 0.0, %v1381
    %v1383 = vpop.f32.mrb[0].mxu0
    %1384 = vdwg.mxu0
    %v1385 = vadd.f32 %v1307, %v1382
    %v1386 = vxor.u32 %v1385, 2147483648
    %v1387 = vmul.f32 %v1386, 1.442695
    %v1388 = vpow.pop %v1387
    %v1389 = vadd.f32 %v1388, 1.0
    %v1390 = vrcp.pop %v1389
    %v1391 = vmul.f32 1.0, %v1390
    %v1392 = vadd.f32 %v1382, %v568
    %1394 = vrot.lane.b32.xlu0 %v1392, 64
    %v1395 = vpop.permute.xlu0 %1394
    %v1397 = vmul.f32 %v1391, %v1395
    %1399 = vrot.lane.b32.xlu0 %v1397, 64
    %v1400 = vpop.permute.xlu0 %1399
    %v1402 = vadd.f32 %v1307, %v1400
    %v1403 = vtanh.pop %v1402
    %v1404 = vsub.f32 1.0, %v1391
    %1406 = vrot.lane.b32.xlu0 %v1403, 96
    %v1407 = vpop.permute.xlu0 %1406
    %v1409 = vmul.f32 %v1404, %v1407
    %v1410 = vmul.f32 %v1391, %v1137
    %v1411 = vadd.f32 %v1409, %v1410
    %1412 = vmatprep.subr.mxu0 0.0
    %1413 = vmatpush1.msra.mxu0 %v300
    %1414 = vmatprep.subr.mxu0 0.0
    %1415 = vmatpush1.msra.mxu0 %v301
    %1416 = vmatprep.subr.mxu0 0.0
    %1417 = vmatpush1.msra.mxu0 %v302
    %1418 = vmatprep.subr.mxu0 0.0
    %1419 = vmatpush1.msra.mxu0 %v303
    %1420 = vmatprep.subr.mxu0 0.0
    %1421 = vmatpush1.msra.mxu0 0.0
    %1422 = vmatprep.subr.mxu0 0.0
    %1423 = vmatpush1.msra.mxu0 0.0
    %1424 = vmatprep.subr.mxu0 0.0
    %1425 = vmatpush1.msra.mxu0 0.0
    %1426 = vmatprep.subr.mxu0 0.0
    %1427 = vmatpush1.msra.mxu0 0.0
    %1428 = vmatprep.subr.mxu0 0.0
    %1429 = vmatpush1.msra.mxu0 0.0
    %1430 = vmatprep.subr.mxu0 0.0
    %1431 = vmatpush1.msra.mxu0 0.0
    %1432 = vmatprep.subr.mxu0 0.0
    %1433 = vmatpush1.msra.mxu0 0.0
    %1434 = vmatprep.subr.mxu0 0.0
    %1435 = vmatpush1.msra.mxu0 0.0
    %1436 = vmatprep.subr.mxu0 0.0
    %1437 = vmatpush1.msra.mxu0 0.0
    %1438 = vmatprep.subr.mxu0 0.0
    %1439 = vmatpush1.msra.mxu0 0.0
    %1440 = vmatprep.subr.mxu0 0.0
    %1441 = vmatpush1.msra.mxu0 0.0
    %1442 = vmatprep.subr.mxu0 0.0
    %1443 = vmatpush1.msra.mxu0 0.0
    %1444 = vmatprep.subr.mxu0 0.0
    %1445 = vmatpush1.msra.mxu0 0.0
    %1446 = vmatprep.subr.mxu0 0.0
    %1447 = vmatpush1.msra.mxu0 0.0
    %1448 = vmatprep.subr.mxu0 0.0
    %1449 = vmatpush1.msra.mxu0 0.0
    %1450 = vmatprep.subr.mxu0 0.0
    %1451 = vmatpush1.msra.mxu0 0.0
    %1452 = vmatprep.subr.mxu0 0.0
    %1453 = vmatpush1.msra.mxu0 0.0
    %1454 = vmatprep.subr.mxu0 0.0
    %1455 = vmatpush1.msra.mxu0 0.0
    %1456 = vmatprep.subr.mxu0 0.0
    %1457 = vmatpush1.msra.mxu0 0.0
    %1458 = vmatprep.subr.mxu0 0.0
    %1459 = vmatpush1.msra.mxu0 0.0
    %1460 = vmatprep.subr.mxu0 0.0
    %1461 = vmatpush1.msra.mxu0 0.0
    %1462 = vmatprep.subr.mxu0 0.0
    %1463 = vmatpush1.msra.mxu0 0.0
    %1464 = vmatprep.subr.mxu0 0.0
    %1465 = vmatpush1.msra.mxu0 0.0
    %1466 = vmatprep.subr.mxu0 0.0
    %1467 = vmatpush1.msra.mxu0 0.0
    %1468 = vmatprep.subr.mxu0 0.0
    %1469 = vmatpush1.msra.mxu0 0.0
    %1470 = vmatprep.subr.mxu0 0.0
    %1471 = vmatpush1.msra.mxu0 0.0
    %1472 = vmatprep.subr.mxu0 0.0
    %1473 = vmatpush1.msra.mxu0 0.0
    %1474 = vmatprep.subr.mxu0 0.0
    %1475 = vmatpush1.msra.mxu0 0.0
    %1476 = vmatprep.mubr.f32.mxu0 0.0
    %1477 = vmatmul.mubr.f32.gmra.mrb[0].mxu0 %v1238
    %v1478 = vpop.f32.mrb[0].mxu0
    %v1479 = vadd.f32 0.0, %v1478
    %v1480 = vpop.f32.mrb[0].mxu0
    %1481 = vdwg.mxu0
    %v1482 = vadd.f32 %v282, %v1479
    %v1483 = vxor.u32 %v1482, 2147483648
    %v1484 = vmul.f32 %v1483, 1.442695
    %v1485 = vpow.pop %v1484
    %v1486 = vadd.f32 %v1485, 1.0
    %v1487 = vrcp.pop %v1486
    %v1488 = vmul.f32 1.0, %v1487
    %v1489 = vadd.f32 %v1479, %v385
    %1491 = vrot.lane.b32.xlu0 %v1489, 64
    %v1492 = vpop.permute.xlu0 %1491
    %v1494 = vmul.f32 %v1488, %v1492
    %1496 = vrot.lane.b32.xlu0 %v1494, 64
    %v1497 = vpop.permute.xlu0 %1496
    %v1499 = vadd.f32 %v282, %v1497
    %v1500 = vtanh.pop %v1499
    %v1501 = vsub.f32 1.0, %v1488
    %1503 = vrot.lane.b32.xlu0 %v1500, 96
    %v1504 = vpop.permute.xlu0 %1503
    %v1506 = vmul.f32 %v1501, %v1504
    %v1507 = vmul.f32 %v1488, %v1234
    %v1508 = vadd.f32 %v1506, %v1507
    %1510 = vrot.lane.b32.xlu0 %v1508, 96
    %v1511 = vpop.permute.xlu0 %1510
    %v1512 = vsel %vm170, %v1511, 0
    %1514 = vmatprep.subr.mxu0 0.0
    %1515 = vmatpush1.msra.mxu0 %v407
    %1516 = vmatprep.subr.mxu0 0.0
    %1517 = vmatpush1.msra.mxu0 %v408
    %1518 = vmatprep.subr.mxu0 0.0
    %1519 = vmatpush1.msra.mxu0 %v409
    %1520 = vmatprep.subr.mxu0 0.0
    %1521 = vmatpush1.msra.mxu0 %v410
    %1522 = vmatprep.subr.mxu0 0.0
    %1523 = vmatpush1.msra.mxu0 0.0
    %1524 = vmatprep.subr.mxu0 0.0
    %1525 = vmatpush1.msra.mxu0 0.0
    %1526 = vmatprep.subr.mxu0 0.0
    %1527 = vmatpush1.msra.mxu0 0.0
    %1528 = vmatprep.subr.mxu0 0.0
    %1529 = vmatpush1.msra.mxu0 0.0
    %1530 = vmatprep.subr.mxu0 0.0
    %1531 = vmatpush1.msra.mxu0 0.0
    %1532 = vmatprep.subr.mxu0 0.0
    %1533 = vmatpush1.msra.mxu0 0.0
    %1534 = vmatprep.subr.mxu0 0.0
    %1535 = vmatpush1.msra.mxu0 0.0
    %1536 = vmatprep.subr.mxu0 0.0
    %1537 = vmatpush1.msra.mxu0 0.0
    %1538 = vmatprep.subr.mxu0 0.0
    %1539 = vmatpush1.msra.mxu0 0.0
    %1540 = vmatprep.subr.mxu0 0.0
    %1541 = vmatpush1.msra.mxu0 0.0
    %1542 = vmatprep.subr.mxu0 0.0
    %1543 = vmatpush1.msra.mxu0 0.0
    %1544 = vmatprep.subr.mxu0 0.0
    %1545 = vmatpush1.msra.mxu0 0.0
    %1546 = vmatprep.subr.mxu0 0.0
    %1547 = vmatpush1.msra.mxu0 0.0
    %1548 = vmatprep.subr.mxu0 0.0
    %1549 = vmatpush1.msra.mxu0 0.0
    %1550 = vmatprep.subr.mxu0 0.0
    %1551 = vmatpush1.msra.mxu0 0.0
    %1552 = vmatprep.subr.mxu0 0.0
    %1553 = vmatpush1.msra.mxu0 0.0
    %1554 = vmatprep.subr.mxu0 0.0
    %1555 = vmatpush1.msra.mxu0 0.0
    %1556 = vmatprep.subr.mxu0 0.0
    %1557 = vmatpush1.msra.mxu0 0.0
    %1558 = vmatprep.subr.mxu0 0.0
    %1559 = vmatpush1.msra.mxu0 0.0
    %1560 = vmatprep.subr.mxu0 0.0
    %1561 = vmatpush1.msra.mxu0 0.0
    %1562 = vmatprep.subr.mxu0 0.0
    %1563 = vmatpush1.msra.mxu0 0.0
    %1564 = vmatprep.subr.mxu0 0.0
    %1565 = vmatpush1.msra.mxu0 0.0
    %1566 = vmatprep.subr.mxu0 0.0
    %1567 = vmatpush1.msra.mxu0 0.0
    %1568 = vmatprep.subr.mxu0 0.0
    %1569 = vmatpush1.msra.mxu0 0.0
    %1570 = vmatprep.subr.mxu0 0.0
    %1571 = vmatpush1.msra.mxu0 0.0
    %1572 = vmatprep.subr.mxu0 0.0
    %1573 = vmatpush1.msra.mxu0 0.0
    %1574 = vmatprep.subr.mxu0 0.0
    %1575 = vmatpush1.msra.mxu0 0.0
    %1576 = vmatprep.subr.mxu0 0.0
    %1577 = vmatpush1.msra.mxu0 0.0
    %1578 = vmatprep.mubr.f32.mxu0 0.0
    %1579 = vmatmul.mubr.f32.gmra.mrb[0].mxu0 %v1512
    %v1580 = vpop.f32.mrb[0].mxu0
    %v1581 = vadd.f32 %v117, %v1580
    %v1582 = vpop.f32.mrb[0].mxu0
    %1583 = vdwg.mxu0
    %1585 = vrot.lane.b32.xlu0 %v1411, 96
    %v1586 = vpop.permute.xlu0 %1585
    %v1587 = vsel %vm170, %v1586, 0
    %1589 = vmatprep.subr.mxu0 0.0
    %1590 = vmatpush1.msra.mxu0 %v486
    %1591 = vmatprep.subr.mxu0 0.0
    %1592 = vmatpush1.msra.mxu0 %v487
    %1593 = vmatprep.subr.mxu0 0.0
    %1594 = vmatpush1.msra.mxu0 %v488
    %1595 = vmatprep.subr.mxu0 0.0
    %1596 = vmatpush1.msra.mxu0 %v489
    %1597 = vmatprep.subr.mxu0 0.0
    %1598 = vmatpush1.msra.mxu0 0.0
    %1599 = vmatprep.subr.mxu0 0.0
    %1600 = vmatpush1.msra.mxu0 0.0
    %1601 = vmatprep.subr.mxu0 0.0
    %1602 = vmatpush1.msra.mxu0 0.0
    %1603 = vmatprep.subr.mxu0 0.0
    %1604 = vmatpush1.msra.mxu0 0.0
    %1605 = vmatprep.subr.mxu0 0.0
    %1606 = vmatpush1.msra.mxu0 0.0
    %1607 = vmatprep.subr.mxu0 0.0
    %1608 = vmatpush1.msra.mxu0 0.0
    %1609 = vmatprep.subr.mxu0 0.0
    %1610 = vmatpush1.msra.mxu0 0.0
    %1611 = vmatprep.subr.mxu0 0.0
    %1612 = vmatpush1.msra.mxu0 0.0
    %1613 = vmatprep.subr.mxu0 0.0
    %1614 = vmatpush1.msra.mxu0 0.0
    %1615 = vmatprep.subr.mxu0 0.0
    %1616 = vmatpush1.msra.mxu0 0.0
    %1617 = vmatprep.subr.mxu0 0.0
    %1618 = vmatpush1.msra.mxu0 0.0
    %1619 = vmatprep.subr.mxu0 0.0
    %1620 = vmatpush1.msra.mxu0 0.0
    %1621 = vmatprep.subr.mxu0 0.0
    %1622 = vmatpush1.msra.mxu0 0.0
    %1623 = vmatprep.subr.mxu0 0.0
    %1624 = vmatpush1.msra.mxu0 0.0
    %1625 = vmatprep.subr.mxu0 0.0
    %1626 = vmatpush1.msra.mxu0 0.0
    %1627 = vmatprep.subr.mxu0 0.0
    %1628 = vmatpush1.msra.mxu0 0.0
    %1629 = vmatprep.subr.mxu0 0.0
    %1630 = vmatpush1.msra.mxu0 0.0
    %1631 = vmatprep.subr.mxu0 0.0
    %1632 = vmatpush1.msra.mxu0 0.0
    %1633 = vmatprep.subr.mxu0 0.0
    %1634 = vmatpush1.msra.mxu0 0.0
    %1635 = vmatprep.subr.mxu0 0.0
    %1636 = vmatpush1.msra.mxu0 0.0
    %1637 = vmatprep.subr.mxu0 0.0
    %1638 = vmatpush1.msra.mxu0 0.0
    %1639 = vmatprep.subr.mxu0 0.0
    %1640 = vmatpush1.msra.mxu0 0.0
    %1641 = vmatprep.subr.mxu0 0.0
    %1642 = vmatpush1.msra.mxu0 0.0
    %1643 = vmatprep.subr.mxu0 0.0
    %1644 = vmatpush1.msra.mxu0 0.0
    %1645 = vmatprep.subr.mxu0 0.0
    %1646 = vmatpush1.msra.mxu0 0.0
    %1647 = vmatprep.subr.mxu0 0.0
    %1648 = vmatpush1.msra.mxu0 0.0
    %1649 = vmatprep.subr.mxu0 0.0
    %1650 = vmatpush1.msra.mxu0 0.0
    %1651 = vmatprep.subr.mxu0 0.0
    %1652 = vmatpush1.msra.mxu0 0.0
    %1653 = vmatprep.mubr.f32.mxu0 0.0
    %1654 = vmatmul.mubr.f32.gmra.mrb[0].mxu0 %v1587
    %v1655 = vpop.f32.mrb[0].mxu0
    %v1656 = vadd.f32 0.0, %v1655
    %v1657 = vpop.f32.mrb[0].mxu0
    %1658 = vdwg.mxu0
    %v1659 = vadd.f32 %v1581, %v1656
    %v1660 = vxor.u32 %v1659, 2147483648
    %v1661 = vmul.f32 %v1660, 1.442695
    %v1662 = vpow.pop %v1661
    %v1663 = vadd.f32 %v1662, 1.0
    %v1664 = vrcp.pop %v1663
    %v1665 = vmul.f32 1.0, %v1664
    %v1666 = vadd.f32 %v1656, %v568
    %1668 = vrot.lane.b32.xlu0 %v1666, 64
    %v1669 = vpop.permute.xlu0 %1668
    %v1671 = vmul.f32 %v1665, %v1669
    %1673 = vrot.lane.b32.xlu0 %v1671, 64
    %v1674 = vpop.permute.xlu0 %1673
    %v1676 = vadd.f32 %v1581, %v1674
    %v1677 = vtanh.pop %v1676
    %v1678 = vsub.f32 1.0, %v1665
    %1680 = vrot.lane.b32.xlu0 %v1677, 96
    %v1681 = vpop.permute.xlu0 %1680
    %v1683 = vmul.f32 %v1678, %v1681
    %v1684 = vmul.f32 %v1665, %v1411
    %v1685 = vadd.f32 %v1683, %v1684
    %1686 = vmatprep.subr.mxu0 0.0
    %1687 = vmatpush1.msra.mxu0 %v300
    %1688 = vmatprep.subr.mxu0 0.0
    %1689 = vmatpush1.msra.mxu0 %v301
    %1690 = vmatprep.subr.mxu0 0.0
    %1691 = vmatpush1.msra.mxu0 %v302
    %1692 = vmatprep.subr.mxu0 0.0
    %1693 = vmatpush1.msra.mxu0 %v303
    %1694 = vmatprep.subr.mxu0 0.0
    %1695 = vmatpush1.msra.mxu0 0.0
    %1696 = vmatprep.subr.mxu0 0.0
    %1697 = vmatpush1.msra.mxu0 0.0
    %1698 = vmatprep.subr.mxu0 0.0
    %1699 = vmatpush1.msra.mxu0 0.0
    %1700 = vmatprep.subr.mxu0 0.0
    %1701 = vmatpush1.msra.mxu0 0.0
    %1702 = vmatprep.subr.mxu0 0.0
    %1703 = vmatpush1.msra.mxu0 0.0
    %1704 = vmatprep.subr.mxu0 0.0
    %1705 = vmatpush1.msra.mxu0 0.0
    %1706 = vmatprep.subr.mxu0 0.0
    %1707 = vmatpush1.msra.mxu0 0.0
    %1708 = vmatprep.subr.mxu0 0.0
    %1709 = vmatpush1.msra.mxu0 0.0
    %1710 = vmatprep.subr.mxu0 0.0
    %1711 = vmatpush1.msra.mxu0 0.0
    %1712 = vmatprep.subr.mxu0 0.0
    %1713 = vmatpush1.msra.mxu0 0.0
    %1714 = vmatprep.subr.mxu0 0.0
    %1715 = vmatpush1.msra.mxu0 0.0
    %1716 = vmatprep.subr.mxu0 0.0
    %1717 = vmatpush1.msra.mxu0 0.0
    %1718 = vmatprep.subr.mxu0 0.0
    %1719 = vmatpush1.msra.mxu0 0.0
    %1720 = vmatprep.subr.mxu0 0.0
    %1721 = vmatpush1.msra.mxu0 0.0
    %1722 = vmatprep.subr.mxu0 0.0
    %1723 = vmatpush1.msra.mxu0 0.0
    %1724 = vmatprep.subr.mxu0 0.0
    %1725 = vmatpush1.msra.mxu0 0.0
    %1726 = vmatprep.subr.mxu0 0.0
    %1727 = vmatpush1.msra.mxu0 0.0
    %1728 = vmatprep.subr.mxu0 0.0
    %1729 = vmatpush1.msra.mxu0 0.0
    %1730 = vmatprep.subr.mxu0 0.0
    %1731 = vmatpush1.msra.mxu0 0.0
    %1732 = vmatprep.subr.mxu0 0.0
    %1733 = vmatpush1.msra.mxu0 0.0
    %1734 = vmatprep.subr.mxu0 0.0
    %1735 = vmatpush1.msra.mxu0 0.0
    %1736 = vmatprep.subr.mxu0 0.0
    %1737 = vmatpush1.msra.mxu0 0.0
    %1738 = vmatprep.subr.mxu0 0.0
    %1739 = vmatpush1.msra.mxu0 0.0
    %1740 = vmatprep.subr.mxu0 0.0
    %1741 = vmatpush1.msra.mxu0 0.0
    %1742 = vmatprep.subr.mxu0 0.0
    %1743 = vmatpush1.msra.mxu0 0.0
    %1744 = vmatprep.subr.mxu0 0.0
    %1745 = vmatpush1.msra.mxu0 0.0
    %1746 = vmatprep.subr.mxu0 0.0
    %1747 = vmatpush1.msra.mxu0 0.0
    %1748 = vmatprep.subr.mxu0 0.0
    %1749 = vmatpush1.msra.mxu0 0.0
    %1750 = vmatprep.mubr.f32.mxu0 0.0
    %1751 = vmatmul.mubr.f32.gmra.mrb[0].mxu0 %v1512
    %v1752 = vpop.f32.mrb[0].mxu0
    %v1753 = vadd.f32 0.0, %v1752
    %v1754 = vpop.f32.mrb[0].mxu0
    %1755 = vdwg.mxu0
    %v1756 = vadd.f32 %v287, %v1753
    %v1757 = vxor.u32 %v1756, 2147483648
    %v1758 = vmul.f32 %v1757, 1.442695
    %v1759 = vpow.pop %v1758
    %v1760 = vadd.f32 %v1759, 1.0
    %v1761 = vrcp.pop %v1760
    %v1762 = vmul.f32 1.0, %v1761
    %v1763 = vadd.f32 %v1753, %v385
    %1765 = vrot.lane.b32.xlu0 %v1763, 64
    %v1766 = vpop.permute.xlu0 %1765
    %v1768 = vmul.f32 %v1762, %v1766
    %1770 = vrot.lane.b32.xlu0 %v1768, 64
    %v1771 = vpop.permute.xlu0 %1770
    %v1773 = vadd.f32 %v287, %v1771
    %v1774 = vtanh.pop %v1773
    %v1775 = vsub.f32 1.0, %v1762
    %1777 = vrot.lane.b32.xlu0 %v1774, 96
    %v1778 = vpop.permute.xlu0 %1777
    %v1780 = vmul.f32 %v1775, %v1778
    %v1781 = vmul.f32 %v1762, %v1508
    %v1782 = vadd.f32 %v1780, %v1781
    %1784 = vrot.lane.b32.xlu0 %v1782, 96
    %v1785 = vpop.permute.xlu0 %1784
    %v1786 = vsel %vm170, %v1785, 0
    %1788 = vmatprep.subr.mxu0 0.0
    %1789 = vmatpush1.msra.mxu0 %v407
    %1790 = vmatprep.subr.mxu0 0.0
    %1791 = vmatpush1.msra.mxu0 %v408
    %1792 = vmatprep.subr.mxu0 0.0
    %1793 = vmatpush1.msra.mxu0 %v409
    %1794 = vmatprep.subr.mxu0 0.0
    %1795 = vmatpush1.msra.mxu0 %v410
    %1796 = vmatprep.subr.mxu0 0.0
    %1797 = vmatpush1.msra.mxu0 0.0
    %1798 = vmatprep.subr.mxu0 0.0
    %1799 = vmatpush1.msra.mxu0 0.0
    %1800 = vmatprep.subr.mxu0 0.0
    %1801 = vmatpush1.msra.mxu0 0.0
    %1802 = vmatprep.subr.mxu0 0.0
    %1803 = vmatpush1.msra.mxu0 0.0
    %1804 = vmatprep.subr.mxu0 0.0
    %1805 = vmatpush1.msra.mxu0 0.0
    %1806 = vmatprep.subr.mxu0 0.0
    %1807 = vmatpush1.msra.mxu0 0.0
    %1808 = vmatprep.subr.mxu0 0.0
    %1809 = vmatpush1.msra.mxu0 0.0
    %1810 = vmatprep.subr.mxu0 0.0
    %1811 = vmatpush1.msra.mxu0 0.0
    %1812 = vmatprep.subr.mxu0 0.0
    %1813 = vmatpush1.msra.mxu0 0.0
    %1814 = vmatprep.subr.mxu0 0.0
    %1815 = vmatpush1.msra.mxu0 0.0
    %1816 = vmatprep.subr.mxu0 0.0
    %1817 = vmatpush1.msra.mxu0 0.0
    %1818 = vmatprep.subr.mxu0 0.0
    %1819 = vmatpush1.msra.mxu0 0.0
    %1820 = vmatprep.subr.mxu0 0.0
    %1821 = vmatpush1.msra.mxu0 0.0
    %1822 = vmatprep.subr.mxu0 0.0
    %1823 = vmatpush1.msra.mxu0 0.0
    %1824 = vmatprep.subr.mxu0 0.0
    %1825 = vmatpush1.msra.mxu0 0.0
    %1826 = vmatprep.subr.mxu0 0.0
    %1827 = vmatpush1.msra.mxu0 0.0
    %1828 = vmatprep.subr.mxu0 0.0
    %1829 = vmatpush1.msra.mxu0 0.0
    %1830 = vmatprep.subr.mxu0 0.0
    %1831 = vmatpush1.msra.mxu0 0.0
    %1832 = vmatprep.subr.mxu0 0.0
    %1833 = vmatpush1.msra.mxu0 0.0
    %1834 = vmatprep.subr.mxu0 0.0
    %1835 = vmatpush1.msra.mxu0 0.0
    %1836 = vmatprep.subr.mxu0 0.0
    %1837 = vmatpush1.msra.mxu0 0.0
    %1838 = vmatprep.subr.mxu0 0.0
    %1839 = vmatpush1.msra.mxu0 0.0
    %1840 = vmatprep.subr.mxu0 0.0
    %1841 = vmatpush1.msra.mxu0 0.0
    %1842 = vmatprep.subr.mxu0 0.0
    %1843 = vmatpush1.msra.mxu0 0.0
    %1844 = vmatprep.subr.mxu0 0.0
    %1845 = vmatpush1.msra.mxu0 0.0
    %1846 = vmatprep.subr.mxu0 0.0
    %1847 = vmatpush1.msra.mxu0 0.0
    %1848 = vmatprep.subr.mxu0 0.0
    %1849 = vmatpush1.msra.mxu0 0.0
    %1850 = vmatprep.subr.mxu0 0.0
    %1851 = vmatpush1.msra.mxu0 0.0
    %1852 = vmatprep.mubr.f32.mxu0 0.0
    %1853 = vmatmul.mubr.f32.gmra.mrb[0].mxu0 %v1786
    %v1854 = vpop.f32.mrb[0].mxu0
    %v1855 = vadd.f32 %v117, %v1854
    %v1856 = vpop.f32.mrb[0].mxu0
    %1857 = vdwg.mxu0
    %1859 = vrot.lane.b32.xlu0 %v1685, 96
    %v1860 = vpop.permute.xlu0 %1859
    %v1861 = vsel %vm170, %v1860, 0
    %1863 = vmatprep.subr.mxu0 0.0
    %1864 = vmatpush1.msra.mxu0 %v486
    %1865 = vmatprep.subr.mxu0 0.0
    %1866 = vmatpush1.msra.mxu0 %v487
    %1867 = vmatprep.subr.mxu0 0.0
    %1868 = vmatpush1.msra.mxu0 %v488
    %1869 = vmatprep.subr.mxu0 0.0
    %1870 = vmatpush1.msra.mxu0 %v489
    %1871 = vmatprep.subr.mxu0 0.0
    %1872 = vmatpush1.msra.mxu0 0.0
    %1873 = vmatprep.subr.mxu0 0.0
    %1874 = vmatpush1.msra.mxu0 0.0
    %1875 = vmatprep.subr.mxu0 0.0
    %1876 = vmatpush1.msra.mxu0 0.0
    %1877 = vmatprep.subr.mxu0 0.0
    %1878 = vmatpush1.msra.mxu0 0.0
    %1879 = vmatprep.subr.mxu0 0.0
    %1880 = vmatpush1.msra.mxu0 0.0
    %1881 = vmatprep.subr.mxu0 0.0
    %1882 = vmatpush1.msra.mxu0 0.0
    %1883 = vmatprep.subr.mxu0 0.0
    %1884 = vmatpush1.msra.mxu0 0.0
    %1885 = vmatprep.subr.mxu0 0.0
    %1886 = vmatpush1.msra.mxu0 0.0
    %1887 = vmatprep.subr.mxu0 0.0
    %1888 = vmatpush1.msra.mxu0 0.0
    %1889 = vmatprep.subr.mxu0 0.0
    %1890 = vmatpush1.msra.mxu0 0.0
    %1891 = vmatprep.subr.mxu0 0.0
    %1892 = vmatpush1.msra.mxu0 0.0
    %1893 = vmatprep.subr.mxu0 0.0
    %1894 = vmatpush1.msra.mxu0 0.0
    %1895 = vmatprep.subr.mxu0 0.0
    %1896 = vmatpush1.msra.mxu0 0.0
    %1897 = vmatprep.subr.mxu0 0.0
    %1898 = vmatpush1.msra.mxu0 0.0
    %1899 = vmatprep.subr.mxu0 0.0
    %1900 = vmatpush1.msra.mxu0 0.0
    %1901 = vmatprep.subr.mxu0 0.0
    %1902 = vmatpush1.msra.mxu0 0.0
    %1903 = vmatprep.subr.mxu0 0.0
    %1904 = vmatpush1.msra.mxu0 0.0
    %1905 = vmatprep.subr.mxu0 0.0
    %1906 = vmatpush1.msra.mxu0 0.0
    %1907 = vmatprep.subr.mxu0 0.0
    %1908 = vmatpush1.msra.mxu0 0.0
    %1909 = vmatprep.subr.mxu0 0.0
    %1910 = vmatpush1.msra.mxu0 0.0
    %1911 = vmatprep.subr.mxu0 0.0
    %1912 = vmatpush1.msra.mxu0 0.0
    %1913 = vmatprep.subr.mxu0 0.0
    %1914 = vmatpush1.msra.mxu0 0.0
    %1915 = vmatprep.subr.mxu0 0.0
    %1916 = vmatpush1.msra.mxu0 0.0
    %1917 = vmatprep.subr.mxu0 0.0
    %1918 = vmatpush1.msra.mxu0 0.0
    %1919 = vmatprep.subr.mxu0 0.0
    %1920 = vmatpush1.msra.mxu0 0.0
    %1921 = vmatprep.subr.mxu0 0.0
    %1922 = vmatpush1.msra.mxu0 0.0
    %1923 = vmatprep.subr.mxu0 0.0
    %1924 = vmatpush1.msra.mxu0 0.0
    %1925 = vmatprep.subr.mxu0 0.0
    %1926 = vmatpush1.msra.mxu0 0.0
    %1927 = vmatprep.mubr.f32.mxu0 0.0
    %1928 = vmatmul.mubr.f32.gmra.mrb[0].mxu0 %v1861
    %v1929 = vpop.f32.mrb[0].mxu0
    %v1930 = vadd.f32 0.0, %v1929
    %v1931 = vpop.f32.mrb[0].mxu0
    %1932 = vdwg.mxu0
    %v1933 = vadd.f32 %v1855, %v1930
    %v1934 = vxor.u32 %v1933, 2147483648
    %v1935 = vmul.f32 %v1934, 1.442695
    %v1936 = vpow.pop %v1935
    %v1937 = vadd.f32 %v1936, 1.0
    %v1938 = vrcp.pop %v1937
    %v1939 = vmul.f32 1.0, %v1938
    %v1940 = vadd.f32 %v1930, %v568
    %1942 = vrot.lane.b32.xlu0 %v1940, 64
    %v1943 = vpop.permute.xlu0 %1942
    %v1945 = vmul.f32 %v1939, %v1943
    %1947 = vrot.lane.b32.xlu0 %v1945, 64
    %v1948 = vpop.permute.xlu0 %1947
    %v1950 = vadd.f32 %v1855, %v1948
    %v1951 = vtanh.pop %v1950
    %v1952 = vsub.f32 1.0, %v1939
    %1954 = vrot.lane.b32.xlu0 %v1951, 96
    %v1955 = vpop.permute.xlu0 %1954
    %v1957 = vmul.f32 %v1952, %v1955
    %v1958 = vmul.f32 %v1939, %v1685
    %v1959 = vadd.f32 %v1957, %v1958
    %1960 = vmatprep.subr.mxu0 0.0
    %1961 = vmatpush1.msra.mxu0 %v300
    %1962 = vmatprep.subr.mxu0 0.0
    %1963 = vmatpush1.msra.mxu0 %v301
    %1964 = vmatprep.subr.mxu0 0.0
    %1965 = vmatpush1.msra.mxu0 %v302
    %1966 = vmatprep.subr.mxu0 0.0
    %1967 = vmatpush1.msra.mxu0 %v303
    %1968 = vmatprep.subr.mxu0 0.0
    %1969 = vmatpush1.msra.mxu0 0.0
    %1970 = vmatprep.subr.mxu0 0.0
    %1971 = vmatpush1.msra.mxu0 0.0
    %1972 = vmatprep.subr.mxu0 0.0
    %1973 = vmatpush1.msra.mxu0 0.0
    %1974 = vmatprep.subr.mxu0 0.0
    %1975 = vmatpush1.msra.mxu0 0.0
    %1976 = vmatprep.subr.mxu0 0.0
    %1977 = vmatpush1.msra.mxu0 0.0
    %1978 = vmatprep.subr.mxu0 0.0
    %1979 = vmatpush1.msra.mxu0 0.0
    %1980 = vmatprep.subr.mxu0 0.0
    %1981 = vmatpush1.msra.mxu0 0.0
    %1982 = vmatprep.subr.mxu0 0.0
    %1983 = vmatpush1.msra.mxu0 0.0
    %1984 = vmatprep.subr.mxu0 0.0
    %1985 = vmatpush1.msra.mxu0 0.0
    %1986 = vmatprep.subr.mxu0 0.0
    %1987 = vmatpush1.msra.mxu0 0.0
    %1988 = vmatprep.subr.mxu0 0.0
    %1989 = vmatpush1.msra.mxu0 0.0
    %1990 = vmatprep.subr.mxu0 0.0
    %1991 = vmatpush1.msra.mxu0 0.0
    %1992 = vmatprep.subr.mxu0 0.0
    %1993 = vmatpush1.msra.mxu0 0.0
    %1994 = vmatprep.subr.mxu0 0.0
    %1995 = vmatpush1.msra.mxu0 0.0
    %1996 = vmatprep.subr.mxu0 0.0
    %1997 = vmatpush1.msra.mxu0 0.0
    %1998 = vmatprep.subr.mxu0 0.0
    %1999 = vmatpush1.msra.mxu0 0.0
    %2000 = vmatprep.subr.mxu0 0.0
    %2001 = vmatpush1.msra.mxu0 0.0
    %2002 = vmatprep.subr.mxu0 0.0
    %2003 = vmatpush1.msra.mxu0 0.0
    %2004 = vmatprep.subr.mxu0 0.0
    %2005 = vmatpush1.msra.mxu0 0.0
    %2006 = vmatprep.subr.mxu0 0.0
    %2007 = vmatpush1.msra.mxu0 0.0
    %2008 = vmatprep.subr.mxu0 0.0
    %2009 = vmatpush1.msra.mxu0 0.0
    %2010 = vmatprep.subr.mxu0 0.0
    %2011 = vmatpush1.msra.mxu0 0.0
    %2012 = vmatprep.subr.mxu0 0.0
    %2013 = vmatpush1.msra.mxu0 0.0
    %2014 = vmatprep.subr.mxu0 0.0
    %2015 = vmatpush1.msra.mxu0 0.0
    %2016 = vmatprep.subr.mxu0 0.0
    %2017 = vmatpush1.msra.mxu0 0.0
    %2018 = vmatprep.subr.mxu0 0.0
    %2019 = vmatpush1.msra.mxu0 0.0
    %2020 = vmatprep.subr.mxu0 0.0
    %2021 = vmatpush1.msra.mxu0 0.0
    %2022 = vmatprep.subr.mxu0 0.0
    %2023 = vmatpush1.msra.mxu0 0.0
    %2024 = vmatprep.mubr.f32.mxu0 0.0
    %2025 = vmatmul.mubr.f32.gmra.mrb[0].mxu0 %v1786
    %v2026 = vpop.f32.mrb[0].mxu0
    %v2027 = vadd.f32 0.0, %v2026
    %v2028 = vpop.f32.mrb[0].mxu0
    %2029 = vdwg.mxu0
    %v2030 = vadd.f32 %v292, %v2027
    %v2031 = vxor.u32 %v2030, 2147483648
    %v2032 = vmul.f32 %v2031, 1.442695
    %v2033 = vpow.pop %v2032
    %v2034 = vadd.f32 %v2033, 1.0
    %v2035 = vrcp.pop %v2034
    %v2036 = vmul.f32 1.0, %v2035
    %v2037 = vadd.f32 %v2027, %v385
    %2039 = vrot.lane.b32.xlu0 %v2037, 64
    %v2040 = vpop.permute.xlu0 %2039
    %v2042 = vmul.f32 %v2036, %v2040
    %2044 = vrot.lane.b32.xlu0 %v2042, 64
    %v2045 = vpop.permute.xlu0 %2044
    %v2047 = vadd.f32 %v292, %v2045
    %v2048 = vtanh.pop %v2047
    %v2049 = vsub.f32 1.0, %v2036
    %2051 = vrot.lane.b32.xlu0 %v2048, 96
    %v2052 = vpop.permute.xlu0 %2051
    %v2054 = vmul.f32 %v2049, %v2052
    %v2055 = vmul.f32 %v2036, %v1782
    %v2056 = vadd.f32 %v2054, %v2055
    %2058 = vrot.lane.b32.xlu0 %v2056, 96
    %v2059 = vpop.permute.xlu0 %2058
    %v2060 = vsel %vm170, %v2059, 0
    %2062 = vmatprep.subr.mxu0 0.0
    %2063 = vmatpush1.msra.mxu0 %v407
    %2064 = vmatprep.subr.mxu0 0.0
    %2065 = vmatpush1.msra.mxu0 %v408
    %2066 = vmatprep.subr.mxu0 0.0
    %2067 = vmatpush1.msra.mxu0 %v409
    %2068 = vmatprep.subr.mxu0 0.0
    %2069 = vmatpush1.msra.mxu0 %v410
    %2070 = vmatprep.subr.mxu0 0.0
    %2071 = vmatpush1.msra.mxu0 0.0
    %2072 = vmatprep.subr.mxu0 0.0
    %2073 = vmatpush1.msra.mxu0 0.0
    %2074 = vmatprep.subr.mxu0 0.0
    %2075 = vmatpush1.msra.mxu0 0.0
    %2076 = vmatprep.subr.mxu0 0.0
    %2077 = vmatpush1.msra.mxu0 0.0
    %2078 = vmatprep.subr.mxu0 0.0
    %2079 = vmatpush1.msra.mxu0 0.0
    %2080 = vmatprep.subr.mxu0 0.0
    %2081 = vmatpush1.msra.mxu0 0.0
    %2082 = vmatprep.subr.mxu0 0.0
    %2083 = vmatpush1.msra.mxu0 0.0
    %2084 = vmatprep.subr.mxu0 0.0
    %2085 = vmatpush1.msra.mxu0 0.0
    %2086 = vmatprep.subr.mxu0 0.0
    %2087 = vmatpush1.msra.mxu0 0.0
    %2088 = vmatprep.subr.mxu0 0.0
    %2089 = vmatpush1.msra.mxu0 0.0
    %2090 = vmatprep.subr.mxu0 0.0
    %2091 = vmatpush1.msra.mxu0 0.0
    %2092 = vmatprep.subr.mxu0 0.0
    %2093 = vmatpush1.msra.mxu0 0.0
    %2094 = vmatprep.subr.mxu0 0.0
    %2095 = vmatpush1.msra.mxu0 0.0
    %2096 = vmatprep.subr.mxu0 0.0
    %2097 = vmatpush1.msra.mxu0 0.0
    %2098 = vmatprep.subr.mxu0 0.0
    %2099 = vmatpush1.msra.mxu0 0.0
    %2100 = vmatprep.subr.mxu0 0.0
    %2101 = vmatpush1.msra.mxu0 0.0
    %2102 = vmatprep.subr.mxu0 0.0
    %2103 = vmatpush1.msra.mxu0 0.0
    %2104 = vmatprep.subr.mxu0 0.0
    %2105 = vmatpush1.msra.mxu0 0.0
    %2106 = vmatprep.subr.mxu0 0.0
    %2107 = vmatpush1.msra.mxu0 0.0
    %2108 = vmatprep.subr.mxu0 0.0
    %2109 = vmatpush1.msra.mxu0 0.0
    %2110 = vmatprep.subr.mxu0 0.0
    %2111 = vmatpush1.msra.mxu0 0.0
    %2112 = vmatprep.subr.mxu0 0.0
    %2113 = vmatpush1.msra.mxu0 0.0
    %2114 = vmatprep.subr.mxu0 0.0
    %2115 = vmatpush1.msra.mxu0 0.0
    %2116 = vmatprep.subr.mxu0 0.0
    %2117 = vmatpush1.msra.mxu0 0.0
    %2118 = vmatprep.subr.mxu0 0.0
    %2119 = vmatpush1.msra.mxu0 0.0
    %2120 = vmatprep.subr.mxu0 0.0
    %2121 = vmatpush1.msra.mxu0 0.0
    %2122 = vmatprep.subr.mxu0 0.0
    %2123 = vmatpush1.msra.mxu0 0.0
    %2124 = vmatprep.subr.mxu0 0.0
    %2125 = vmatpush1.msra.mxu0 0.0
    %2126 = vmatprep.mubr.f32.mxu0 0.0
    %2127 = vmatmul.mubr.f32.gmra.mrb[0].mxu0 %v2060
    %v2128 = vpop.f32.mrb[0].mxu0
    %v2129 = vadd.f32 %v117, %v2128
    %v2130 = vpop.f32.mrb[0].mxu0
    %2131 = vdwg.mxu0
    %2133 = vrot.lane.b32.xlu0 %v1959, 96
    %v2134 = vpop.permute.xlu0 %2133
    %v2135 = vsel %vm170, %v2134, 0
    %2137 = vmatprep.subr.mxu0 0.0
    %2138 = vmatpush1.msra.mxu0 %v486
    %2139 = vmatprep.subr.mxu0 0.0
    %2140 = vmatpush1.msra.mxu0 %v487
    %2141 = vmatprep.subr.mxu0 0.0
    %2142 = vmatpush1.msra.mxu0 %v488
    %2143 = vmatprep.subr.mxu0 0.0
    %2144 = vmatpush1.msra.mxu0 %v489
    %2145 = vmatprep.subr.mxu0 0.0
    %2146 = vmatpush1.msra.mxu0 0.0
    %2147 = vmatprep.subr.mxu0 0.0
    %2148 = vmatpush1.msra.mxu0 0.0
    %2149 = vmatprep.subr.mxu0 0.0
    %2150 = vmatpush1.msra.mxu0 0.0
    %2151 = vmatprep.subr.mxu0 0.0
    %2152 = vmatpush1.msra.mxu0 0.0
    %2153 = vmatprep.subr.mxu0 0.0
    %2154 = vmatpush1.msra.mxu0 0.0
    %2155 = vmatprep.subr.mxu0 0.0
    %2156 = vmatpush1.msra.mxu0 0.0
    %2157 = vmatprep.subr.mxu0 0.0
    %2158 = vmatpush1.msra.mxu0 0.0
    %2159 = vmatprep.subr.mxu0 0.0
    %2160 = vmatpush1.msra.mxu0 0.0
    %2161 = vmatprep.subr.mxu0 0.0
    %2162 = vmatpush1.msra.mxu0 0.0
    %2163 = vmatprep.subr.mxu0 0.0
    %2164 = vmatpush1.msra.mxu0 0.0
    %2165 = vmatprep.subr.mxu0 0.0
    %2166 = vmatpush1.msra.mxu0 0.0
    %2167 = vmatprep.subr.mxu0 0.0
    %2168 = vmatpush1.msra.mxu0 0.0
    %2169 = vmatprep.subr.mxu0 0.0
    %2170 = vmatpush1.msra.mxu0 0.0
    %2171 = vmatprep.subr.mxu0 0.0
    %2172 = vmatpush1.msra.mxu0 0.0
    %2173 = vmatprep.subr.mxu0 0.0
    %2174 = vmatpush1.msra.mxu0 0.0
    %2175 = vmatprep.subr.mxu0 0.0
    %2176 = vmatpush1.msra.mxu0 0.0
    %2177 = vmatprep.subr.mxu0 0.0
    %2178 = vmatpush1.msra.mxu0 0.0
    %2179 = vmatprep.subr.mxu0 0.0
    %2180 = vmatpush1.msra.mxu0 0.0
    %2181 = vmatprep.subr.mxu0 0.0
    %2182 = vmatpush1.msra.mxu0 0.0
    %2183 = vmatprep.subr.mxu0 0.0
    %2184 = vmatpush1.msra.mxu0 0.0
    %2185 = vmatprep.subr.mxu0 0.0
    %2186 = vmatpush1.msra.mxu0 0.0
    %2187 = vmatprep.subr.mxu0 0.0
    %2188 = vmatpush1.msra.mxu0 0.0
    %2189 = vmatprep.subr.mxu0 0.0
    %2190 = vmatpush1.msra.mxu0 0.0
    %2191 = vmatprep.subr.mxu0 0.0
    %2192 = vmatpush1.msra.mxu0 0.0
    %2193 = vmatprep.subr.mxu0 0.0
    %2194 = vmatpush1.msra.mxu0 0.0
    %2195 = vmatprep.subr.mxu0 0.0
    %2196 = vmatpush1.msra.mxu0 0.0
    %2197 = vmatprep.subr.mxu0 0.0
    %2198 = vmatpush1.msra.mxu0 0.0
    %2199 = vmatprep.subr.mxu0 0.0
    %2200 = vmatpush1.msra.mxu0 0.0
    %2201 = vmatprep.mubr.f32.mxu0 0.0
    %2202 = vmatmul.mubr.f32.gmra.mrb[0].mxu0 %v2135
    %v2203 = vpop.f32.mrb[0].mxu0
    %v2204 = vadd.f32 0.0, %v2203
    %v2205 = vpop.f32.mrb[0].mxu0
    %2206 = vdwg.mxu0
    %v2207 = vadd.f32 %v2129, %v2204
    %v2208 = vxor.u32 %v2207, 2147483648
    %v2209 = vmul.f32 %v2208, 1.442695
    %v2210 = vpow.pop %v2209
    %v2211 = vadd.f32 %v2210, 1.0
    %v2212 = vrcp.pop %v2211
    %v2213 = vmul.f32 1.0, %v2212
    %v2214 = vadd.f32 %v2204, %v568
    %2216 = vrot.lane.b32.xlu0 %v2214, 64
    %v2217 = vpop.permute.xlu0 %2216
    %v2219 = vmul.f32 %v2213, %v2217
    %2221 = vrot.lane.b32.xlu0 %v2219, 64
    %v2222 = vpop.permute.xlu0 %2221
    %v2224 = vadd.f32 %v2129, %v2222
    %v2225 = vtanh.pop %v2224
    %v2226 = vsub.f32 1.0, %v2213
    %2228 = vrot.lane.b32.xlu0 %v2225, 96
    %v2229 = vpop.permute.xlu0 %2228
    %v2231 = vmul.f32 %v2226, %v2229
    %v2232 = vmul.f32 %v2213, %v1959
    %v2233 = vadd.f32 %v2231, %v2232
    %2234 = vmatprep.subr.mxu0 0.0
    %2235 = vmatpush1.msra.mxu0 %v300
    %2236 = vmatprep.subr.mxu0 0.0
    %2237 = vmatpush1.msra.mxu0 %v301
    %2238 = vmatprep.subr.mxu0 0.0
    %2239 = vmatpush1.msra.mxu0 %v302
    %2240 = vmatprep.subr.mxu0 0.0
    %2241 = vmatpush1.msra.mxu0 %v303
    %2242 = vmatprep.subr.mxu0 0.0
    %2243 = vmatpush1.msra.mxu0 0.0
    %2244 = vmatprep.subr.mxu0 0.0
    %2245 = vmatpush1.msra.mxu0 0.0
    %2246 = vmatprep.subr.mxu0 0.0
    %2247 = vmatpush1.msra.mxu0 0.0
    %2248 = vmatprep.subr.mxu0 0.0
    %2249 = vmatpush1.msra.mxu0 0.0
    %2250 = vmatprep.subr.mxu0 0.0
    %2251 = vmatpush1.msra.mxu0 0.0
    %2252 = vmatprep.subr.mxu0 0.0
    %2253 = vmatpush1.msra.mxu0 0.0
    %2254 = vmatprep.subr.mxu0 0.0
    %2255 = vmatpush1.msra.mxu0 0.0
    %2256 = vmatprep.subr.mxu0 0.0
    %2257 = vmatpush1.msra.mxu0 0.0
    %2258 = vmatprep.subr.mxu0 0.0
    %2259 = vmatpush1.msra.mxu0 0.0
    %2260 = vmatprep.subr.mxu0 0.0
    %2261 = vmatpush1.msra.mxu0 0.0
    %2262 = vmatprep.subr.mxu0 0.0
    %2263 = vmatpush1.msra.mxu0 0.0
    %2264 = vmatprep.subr.mxu0 0.0
    %2265 = vmatpush1.msra.mxu0 0.0
    %2266 = vmatprep.subr.mxu0 0.0
    %2267 = vmatpush1.msra.mxu0 0.0
    %2268 = vmatprep.subr.mxu0 0.0
    %2269 = vmatpush1.msra.mxu0 0.0
    %2270 = vmatprep.subr.mxu0 0.0
    %2271 = vmatpush1.msra.mxu0 0.0
    %2272 = vmatprep.subr.mxu0 0.0
    %2273 = vmatpush1.msra.mxu0 0.0
    %2274 = vmatprep.subr.mxu0 0.0
    %2275 = vmatpush1.msra.mxu0 0.0
    %2276 = vmatprep.subr.mxu0 0.0
    %2277 = vmatpush1.msra.mxu0 0.0
    %2278 = vmatprep.subr.mxu0 0.0
    %2279 = vmatpush1.msra.mxu0 0.0
    %2280 = vmatprep.subr.mxu0 0.0
    %2281 = vmatpush1.msra.mxu0 0.0
    %2282 = vmatprep.subr.mxu0 0.0
    %2283 = vmatpush1.msra.mxu0 0.0
    %2284 = vmatprep.subr.mxu0 0.0
    %2285 = vmatpush1.msra.mxu0 0.0
    %2286 = vmatprep.subr.mxu0 0.0
    %2287 = vmatpush1.msra.mxu0 0.0
    %2288 = vmatprep.subr.mxu0 0.0
    %2289 = vmatpush1.msra.mxu0 0.0
    %2290 = vmatprep.subr.mxu0 0.0
    %2291 = vmatpush1.msra.mxu0 0.0
    %2292 = vmatprep.subr.mxu0 0.0
    %2293 = vmatpush1.msra.mxu0 0.0
    %2294 = vmatprep.subr.mxu0 0.0
    %2295 = vmatpush1.msra.mxu0 0.0
    %2296 = vmatprep.subr.mxu0 0.0
    %2297 = vmatpush1.msra.mxu0 0.0
    %2298 = vmatprep.mubr.f32.mxu0 0.0
    %2299 = vmatmul.mubr.f32.gmra.mrb[0].mxu0 %v2060
    %v2300 = vpop.f32.mrb[0].mxu0
    %v2301 = vadd.f32 0.0, %v2300
    %v2302 = vpop.f32.mrb[0].mxu0
    %2303 = vdwg.mxu0
    %v2304 = vadd.f32 %v297, %v2301
    %v2305 = vxor.u32 %v2304, 2147483648
    %v2306 = vmul.f32 %v2305, 1.442695
    %v2307 = vpow.pop %v2306
    %v2308 = vadd.f32 %v2307, 1.0
    %v2309 = vrcp.pop %v2308
    %v2310 = vmul.f32 1.0, %v2309
    %v2311 = vadd.f32 %v2301, %v385
    %2313 = vrot.lane.b32.xlu0 %v2311, 64
    %v2314 = vpop.permute.xlu0 %2313
    %v2316 = vmul.f32 %v2310, %v2314
    %2318 = vrot.lane.b32.xlu0 %v2316, 64
    %v2319 = vpop.permute.xlu0 %2318
    %v2321 = vadd.f32 %v297, %v2319
    %v2322 = vtanh.pop %v2321
    %v2323 = vsub.f32 1.0, %v2310
    %2325 = vrot.lane.b32.xlu0 %v2322, 96
    %v2326 = vpop.permute.xlu0 %2325
    %v2328 = vmul.f32 %v2323, %v2326
    %v2329 = vmul.f32 %v2310, %v2056
    %v2330 = vadd.f32 %v2328, %v2329
    %2332 = vrot.lane.b32.xlu0 %v2330, 96
    %v2333 = vpop.permute.xlu0 %2332
    %v2334 = vsel %vm170, %v2333, 0
    %2336 = vmatprep.subr.mxu0 0.0
    %2337 = vmatpush1.msra.mxu0 %v407
    %2338 = vmatprep.subr.mxu0 0.0
    %2339 = vmatpush1.msra.mxu0 %v408
    %2340 = vmatprep.subr.mxu0 0.0
    %2341 = vmatpush1.msra.mxu0 %v409
    %2342 = vmatprep.subr.mxu0 0.0
    %2343 = vmatpush1.msra.mxu0 %v410
    %2344 = vmatprep.subr.mxu0 0.0
    %2345 = vmatpush1.msra.mxu0 0.0
    %2346 = vmatprep.subr.mxu0 0.0
    %2347 = vmatpush1.msra.mxu0 0.0
    %2348 = vmatprep.subr.mxu0 0.0
    %2349 = vmatpush1.msra.mxu0 0.0
    %2350 = vmatprep.subr.mxu0 0.0
    %2351 = vmatpush1.msra.mxu0 0.0
    %2352 = vmatprep.subr.mxu0 0.0
    %2353 = vmatpush1.msra.mxu0 0.0
    %2354 = vmatprep.subr.mxu0 0.0
    %2355 = vmatpush1.msra.mxu0 0.0
    %2356 = vmatprep.subr.mxu0 0.0
    %2357 = vmatpush1.msra.mxu0 0.0
    %2358 = vmatprep.subr.mxu0 0.0
    %2359 = vmatpush1.msra.mxu0 0.0
    %2360 = vmatprep.subr.mxu0 0.0
    %2361 = vmatpush1.msra.mxu0 0.0
    %2362 = vmatprep.subr.mxu0 0.0
    %2363 = vmatpush1.msra.mxu0 0.0
    %2364 = vmatprep.subr.mxu0 0.0
    %2365 = vmatpush1.msra.mxu0 0.0
    %2366 = vmatprep.subr.mxu0 0.0
    %2367 = vmatpush1.msra.mxu0 0.0
    %2368 = vmatprep.subr.mxu0 0.0
    %2369 = vmatpush1.msra.mxu0 0.0
    %2370 = vmatprep.subr.mxu0 0.0
    %2371 = vmatpush1.msra.mxu0 0.0
    %2372 = vmatprep.subr.mxu0 0.0
    %2373 = vmatpush1.msra.mxu0 0.0
    %2374 = vmatprep.subr.mxu0 0.0
    %2375 = vmatpush1.msra.mxu0 0.0
    %2376 = vmatprep.subr.mxu0 0.0
    %2377 = vmatpush1.msra.mxu0 0.0
    %2378 = vmatprep.subr.mxu0 0.0
    %2379 = vmatpush1.msra.mxu0 0.0
    %2380 = vmatprep.subr.mxu0 0.0
    %2381 = vmatpush1.msra.mxu0 0.0
    %2382 = vmatprep.subr.mxu0 0.0
    %2383 = vmatpush1.msra.mxu0 0.0
    %2384 = vmatprep.subr.mxu0 0.0
    %2385 = vmatpush1.msra.mxu0 0.0
    %2386 = vmatprep.subr.mxu0 0.0
    %2387 = vmatpush1.msra.mxu0 0.0
    %2388 = vmatprep.subr.mxu0 0.0
    %2389 = vmatpush1.msra.mxu0 0.0
    %2390 = vmatprep.subr.mxu0 0.0
    %2391 = vmatpush1.msra.mxu0 0.0
    %2392 = vmatprep.subr.mxu0 0.0
    %2393 = vmatpush1.msra.mxu0 0.0
    %2394 = vmatprep.subr.mxu0 0.0
    %2395 = vmatpush1.msra.mxu0 0.0
    %2396 = vmatprep.subr.mxu0 0.0
    %2397 = vmatpush1.msra.mxu0 0.0
    %2398 = vmatprep.subr.mxu0 0.0
    %2399 = vmatpush1.msra.mxu0 0.0
    %2400 = vmatprep.mubr.f32.mxu0 0.0
    %2401 = vmatmul.mubr.f32.gmra.mrb[0].mxu0 %v2334
    %v2402 = vpop.f32.mrb[0].mxu0
    %v2403 = vadd.f32 %v117, %v2402
    %v2404 = vpop.f32.mrb[0].mxu0
    %2405 = vdwg.mxu0
    %2407 = vrot.lane.b32.xlu0 %v2233, 96
    %v2408 = vpop.permute.xlu0 %2407
    %v2409 = vsel %vm170, %v2408, 0
    %2411 = vmatprep.subr.mxu0 0.0
    %2412 = vmatpush1.msra.mxu0 %v486
    %2413 = vmatprep.subr.mxu0 0.0
    %2414 = vmatpush1.msra.mxu0 %v487
    %2415 = vmatprep.subr.mxu0 0.0
    %2416 = vmatpush1.msra.mxu0 %v488
    %2417 = vmatprep.subr.mxu0 0.0
    %2418 = vmatpush1.msra.mxu0 %v489
    %2419 = vmatprep.subr.mxu0 0.0
    %2420 = vmatpush1.msra.mxu0 0.0
    %2421 = vmatprep.subr.mxu0 0.0
    %2422 = vmatpush1.msra.mxu0 0.0
    %2423 = vmatprep.subr.mxu0 0.0
    %2424 = vmatpush1.msra.mxu0 0.0
    %2425 = vmatprep.subr.mxu0 0.0
    %2426 = vmatpush1.msra.mxu0 0.0
    %2427 = vmatprep.subr.mxu0 0.0
    %2428 = vmatpush1.msra.mxu0 0.0
    %2429 = vmatprep.subr.mxu0 0.0
    %2430 = vmatpush1.msra.mxu0 0.0
    %2431 = vmatprep.subr.mxu0 0.0
    %2432 = vmatpush1.msra.mxu0 0.0
    %2433 = vmatprep.subr.mxu0 0.0
    %2434 = vmatpush1.msra.mxu0 0.0
    %2435 = vmatprep.subr.mxu0 0.0
    %2436 = vmatpush1.msra.mxu0 0.0
    %2437 = vmatprep.subr.mxu0 0.0
    %2438 = vmatpush1.msra.mxu0 0.0
    %2439 = vmatprep.subr.mxu0 0.0
    %2440 = vmatpush1.msra.mxu0 0.0
    %2441 = vmatprep.subr.mxu0 0.0
    %2442 = vmatpush1.msra.mxu0 0.0
    %2443 = vmatprep.subr.mxu0 0.0
    %2444 = vmatpush1.msra.mxu0 0.0
    %2445 = vmatprep.subr.mxu0 0.0
    %2446 = vmatpush1.msra.mxu0 0.0
    %2447 = vmatprep.subr.mxu0 0.0
    %2448 = vmatpush1.msra.mxu0 0.0
    %2449 = vmatprep.subr.mxu0 0.0
    %2450 = vmatpush1.msra.mxu0 0.0
    %2451 = vmatprep.subr.mxu0 0.0
    %2452 = vmatpush1.msra.mxu0 0.0
    %2453 = vmatprep.subr.mxu0 0.0
    %2454 = vmatpush1.msra.mxu0 0.0
    %2455 = vmatprep.subr.mxu0 0.0
    %2456 = vmatpush1.msra.mxu0 0.0
    %2457 = vmatprep.subr.mxu0 0.0
    %2458 = vmatpush1.msra.mxu0 0.0
    %2459 = vmatprep.subr.mxu0 0.0
    %2460 = vmatpush1.msra.mxu0 0.0
    %2461 = vmatprep.subr.mxu0 0.0
    %2462 = vmatpush1.msra.mxu0 0.0
    %2463 = vmatprep.subr.mxu0 0.0
    %2464 = vmatpush1.msra.mxu0 0.0
    %2465 = vmatprep.subr.mxu0 0.0
    %2466 = vmatpush1.msra.mxu0 0.0
    %2467 = vmatprep.subr.mxu0 0.0
    %2468 = vmatpush1.msra.mxu0 0.0
    %2469 = vmatprep.subr.mxu0 0.0
    %2470 = vmatpush1.msra.mxu0 0.0
    %2471 = vmatprep.subr.mxu0 0.0
    %2472 = vmatpush1.msra.mxu0 0.0
    %2473 = vmatprep.subr.mxu0 0.0
    %2474 = vmatpush1.msra.mxu0 0.0
    %2475 = vmatprep.mubr.f32.mxu0 0.0
    %2476 = vmatmul.mubr.f32.gmra.mrb[0].mxu0 %v2409
    %v2477 = vpop.f32.mrb[0].mxu0
    %v2478 = vadd.f32 0.0, %v2477
    %v2479 = vpop.f32.mrb[0].mxu0
    %2480 = vdwg.mxu0
    %v2481 = vadd.f32 %v2403, %v2478
    %v2482 = vxor.u32 %v2481, 2147483648
    %v2483 = vmul.f32 %v2482, 1.442695
    %v2484 = vpow.pop %v2483
    %v2485 = vadd.f32 %v2484, 1.0
    %v2486 = vrcp.pop %v2485
    %v2487 = vmul.f32 1.0, %v2486
    %v2488 = vadd.f32 %v2478, %v568
    %2490 = vrot.lane.b32.xlu0 %v2488, 64
    %v2491 = vpop.permute.xlu0 %2490
    %v2493 = vmul.f32 %v2487, %v2491
    %2495 = vrot.lane.b32.xlu0 %v2493, 64
    %v2496 = vpop.permute.xlu0 %2495
    %v2498 = vadd.f32 %v2403, %v2496
    %v2499 = vtanh.pop %v2498
    %v2500 = vsub.f32 1.0, %v2487
    %2502 = vrot.lane.b32.xlu0 %v2499, 96
    %v2503 = vpop.permute.xlu0 %2502
    %v2505 = vmul.f32 %v2500, %v2503
    %v2506 = vmul.f32 %v2487, %v2233
    %v2507 = vadd.f32 %v2505, %v2506
    %v2508 = vld [vmem:[%s10] sm:$0xff]
    %v2509 = vld [vmem:[%s10 + $0x8] sm:$0xff]
    %v2510 = vld [vmem:[%s10 + $0x10] sm:$0xff]
    %v2511 = vld [vmem:[%s10 + $0x18] sm:$0xff]
    %v2512 = vld [vmem:[#allocation3] sm:$0x1]
    %v2514 = vlaneseq
    %v2515 = vshrl.u32 %v2514, 7
    %v2516 = vsub.s32 0, %v2515
    %v2517 = vrot.slane %v2512, %v2516
    %2520 = vrot.lane.b32.xlu0 %v2507, 96
    %v2521 = vpop.permute.xlu0 %2520
    %v2522 = vsel %vm170, %v2521, 0
    %2524 = vmatprep.subr.mxu0 0.0
    %2525 = vmatpush1.msra.mxu0 %v2508
    %2526 = vmatprep.subr.mxu0 0.0
    %2527 = vmatpush1.msra.mxu0 %v2509
    %2528 = vmatprep.subr.mxu0 0.0
    %2529 = vmatpush1.msra.mxu0 %v2510
    %2530 = vmatprep.subr.mxu0 0.0
    %2531 = vmatpush1.msra.mxu0 %v2511
    %2532 = vmatprep.subr.mxu0 0.0
    %2533 = vmatpush1.msra.mxu0 0.0
    %2534 = vmatprep.subr.mxu0 0.0
    %2535 = vmatpush1.msra.mxu0 0.0
    %2536 = vmatprep.subr.mxu0 0.0
    %2537 = vmatpush1.msra.mxu0 0.0
    %2538 = vmatprep.subr.mxu0 0.0
    %2539 = vmatpush1.msra.mxu0 0.0
    %2540 = vmatprep.subr.mxu0 0.0
    %2541 = vmatpush1.msra.mxu0 0.0
    %2542 = vmatprep.subr.mxu0 0.0
    %2543 = vmatpush1.msra.mxu0 0.0
    %2544 = vmatprep.subr.mxu0 0.0
    %2545 = vmatpush1.msra.mxu0 0.0
    %2546 = vmatprep.subr.mxu0 0.0
    %2547 = vmatpush1.msra.mxu0 0.0
    %2548 = vmatprep.subr.mxu0 0.0
    %2549 = vmatpush1.msra.mxu0 0.0
    %2550 = vmatprep.subr.mxu0 0.0
    %2551 = vmatpush1.msra.mxu0 0.0
    %2552 = vmatprep.subr.mxu0 0.0
    %2553 = vmatpush1.msra.mxu0 0.0
    %2554 = vmatprep.subr.mxu0 0.0
    %2555 = vmatpush1.msra.mxu0 0.0
    %2556 = vmatprep.subr.mxu0 0.0
    %2557 = vmatpush1.msra.mxu0 0.0
    %2558 = vmatprep.subr.mxu0 0.0
    %2559 = vmatpush1.msra.mxu0 0.0
    %2560 = vmatprep.subr.mxu0 0.0
    %2561 = vmatpush1.msra.mxu0 0.0
    %2562 = vmatprep.subr.mxu0 0.0
    %2563 = vmatpush1.msra.mxu0 0.0
    %2564 = vmatprep.subr.mxu0 0.0
    %2565 = vmatpush1.msra.mxu0 0.0
    %2566 = vmatprep.subr.mxu0 0.0
    %2567 = vmatpush1.msra.mxu0 0.0
    %2568 = vmatprep.subr.mxu0 0.0
    %2569 = vmatpush1.msra.mxu0 0.0
    %2570 = vmatprep.subr.mxu0 0.0
    %2571 = vmatpush1.msra.mxu0 0.0
    %2572 = vmatprep.subr.mxu0 0.0
    %2573 = vmatpush1.msra.mxu0 0.0
    %2574 = vmatprep.subr.mxu0 0.0
    %2575 = vmatpush1.msra.mxu0 0.0
    %2576 = vmatprep.subr.mxu0 0.0
    %2577 = vmatpush1.msra.mxu0 0.0
    %2578 = vmatprep.subr.mxu0 0.0
    %2579 = vmatpush1.msra.mxu0 0.0
    %2580 = vmatprep.subr.mxu0 0.0
    %2581 = vmatpush1.msra.mxu0 0.0
    %2582 = vmatprep.subr.mxu0 0.0
    %2583 = vmatpush1.msra.mxu0 0.0
    %2584 = vmatprep.subr.mxu0 0.0
    %2585 = vmatpush1.msra.mxu0 0.0
    %2586 = vmatprep.subr.mxu0 0.0
    %2587 = vmatpush1.msra.mxu0 0.0
    %2588 = vmatprep.mubr.f32.mxu0 0.0
    %2589 = vmatmul.mubr.f32.gmra.mrb[0].mxu0 %v2522
    %v2590 = vpop.f32.mrb[0].mxu0
    %v2591 = vadd.f32 %v2517, %v2590
    %v2592 = vpop.f32.mrb[0].mxu0
    %2593 = vdwg.mxu0
    %vm2594 = vcmask 130048
    %2595 = vst.msk [vmem:[%s24] sm:$0xff] %vm2594, %v2591
    %2597 = vrot.lane.b32.xlu0 %v2591, 112
    %v2598 = vpop.permute.xlu0 %2597
    %2600 = vst.msk [vmem:[%s25] sm:$0xff] %vm2594, %v2598
    %v2601 = vld [vmem:[%s1] sm:$0xff]
    %v2602 = vmul.f32 %v2591, 0.5
    %v2603 = vmul.f32 %v2602, 1.442695
    %v2604 = vpow.pop %v2603
    %2606 = vrot.lane.b32.xlu0 %v2604, 112
    %v2607 = vpop.permute.xlu0 %2606
    %v2609 = vmul.f32 %v2601, %v2607
    %v2610 = vadd.f32 %v2591, %v2609
    %v2611 = vld [vmem:[%s12] sm:$0xff]
    %v2612 = vld [vmem:[%s12 + $0x8] sm:$0xff]
    %v2613 = vld [vmem:[#allocation5] sm:$0x1]
    %v2615 = vlaneseq
    %v2616 = vshrl.u32 %v2615, 7
    %v2617 = vsub.s32 0, %v2616
    %v2618 = vrot.slane %v2613, %v2617
    %v2621 = vsel %vm2594, %v2610, 0
    %2623 = vmatprep.subr.mxu0 0.0
    %2624 = vmatpush1.msra.mxu0 %v2611
    %2625 = vmatprep.subr.mxu0 0.0
    %2626 = vmatpush1.msra.mxu0 %v2612
    %2627 = vmatprep.subr.mxu0 0.0
    %2628 = vmatpush1.msra.mxu0 0.0
    %2629 = vmatprep.subr.mxu0 0.0
    %2630 = vmatpush1.msra.mxu0 0.0
    %2631 = vmatprep.subr.mxu0 0.0
    %2632 = vmatpush1.msra.mxu0 0.0
    %2633 = vmatprep.subr.mxu0 0.0
    %2634 = vmatpush1.msra.mxu0 0.0
    %2635 = vmatprep.subr.mxu0 0.0
    %2636 = vmatpush1.msra.mxu0 0.0
    %2637 = vmatprep.subr.mxu0 0.0
    %2638 = vmatpush1.msra.mxu0 0.0
    %2639 = vmatprep.subr.mxu0 0.0
    %2640 = vmatpush1.msra.mxu0 0.0
    %2641 = vmatprep.subr.mxu0 0.0
    %2642 = vmatpush1.msra.mxu0 0.0
    %2643 = vmatprep.subr.mxu0 0.0
    %2644 = vmatpush1.msra.mxu0 0.0
    %2645 = vmatprep.subr.mxu0 0.0
    %2646 = vmatpush1.msra.mxu0 0.0
    %2647 = vmatprep.subr.mxu0 0.0
    %2648 = vmatpush1.msra.mxu0 0.0
    %2649 = vmatprep.subr.mxu0 0.0
    %2650 = vmatpush1.msra.mxu0 0.0
    %2651 = vmatprep.subr.mxu0 0.0
    %2652 = vmatpush1.msra.mxu0 0.0
    %2653 = vmatprep.subr.mxu0 0.0
    %2654 = vmatpush1.msra.mxu0 0.0
    %2655 = vmatprep.subr.mxu0 0.0
    %2656 = vmatpush1.msra.mxu0 0.0
    %2657 = vmatprep.subr.mxu0 0.0
    %2658 = vmatpush1.msra.mxu0 0.0
    %2659 = vmatprep.subr.mxu0 0.0
    %2660 = vmatpush1.msra.mxu0 0.0
    %2661 = vmatprep.subr.mxu0 0.0
    %2662 = vmatpush1.msra.mxu0 0.0
    %2663 = vmatprep.subr.mxu0 0.0
    %2664 = vmatpush1.msra.mxu0 0.0
    %2665 = vmatprep.subr.mxu0 0.0
    %2666 = vmatpush1.msra.mxu0 0.0
    %2667 = vmatprep.subr.mxu0 0.0
    %2668 = vmatpush1.msra.mxu0 0.0
    %2669 = vmatprep.subr.mxu0 0.0
    %2670 = vmatpush1.msra.mxu0 0.0
    %2671 = vmatprep.subr.mxu0 0.0
    %2672 = vmatpush1.msra.mxu0 0.0
    %2673 = vmatprep.subr.mxu0 0.0
    %2674 = vmatpush1.msra.mxu0 0.0
    %2675 = vmatprep.subr.mxu0 0.0
    %2676 = vmatpush1.msra.mxu0 0.0
    %2677 = vmatprep.subr.mxu0 0.0
    %2678 = vmatpush1.msra.mxu0 0.0
    %2679 = vmatprep.subr.mxu0 0.0
    %2680 = vmatpush1.msra.mxu0 0.0
    %2681 = vmatprep.subr.mxu0 0.0
    %2682 = vmatpush1.msra.mxu0 0.0
    %2683 = vmatprep.subr.mxu0 0.0
    %2684 = vmatpush1.msra.mxu0 0.0
    %2685 = vmatprep.subr.mxu0 0.0
    %2686 = vmatpush1.msra.mxu0 0.0
    %2687 = vmatprep.mubr.f32.mxu0 0.0
    %2688 = vmatmul.mubr.f32.gmra.mrb[0].mxu0 %v2621
    %v2689 = vpop.f32.mrb[0].mxu0
    %v2690 = vadd.f32 %v2618, %v2689
    %v2691 = vpop.f32.mrb[0].mxu0
    %2692 = vdwg.mxu0
    %v2693 = vld [vmem:[%s14] sm:$0xff]
    %v2694 = vld [vmem:[%s14 + $0x8] sm:$0xff]
    %v2695 = vld [vmem:[%s14 + $0x10] sm:$0xff]
    %v2696 = vld [vmem:[%s14 + $0x18] sm:$0xff]
    %v2698 = vsel %vm170, %v2690, 0
    %2700 = vmatprep.subr.mxu0 0.0
    %2701 = vmatpush1.msra.mxu0 %v2693
    %2702 = vmatprep.subr.mxu0 0.0
    %2703 = vmatpush1.msra.mxu0 %v2694
    %2704 = vmatprep.subr.mxu0 0.0
    %2705 = vmatpush1.msra.mxu0 %v2695
    %2706 = vmatprep.subr.mxu0 0.0
    %2707 = vmatpush1.msra.mxu0 %v2696
    %2708 = vmatprep.subr.mxu0 0.0
    %2709 = vmatpush1.msra.mxu0 0.0
    %2710 = vmatprep.subr.mxu0 0.0
    %2711 = vmatpush1.msra.mxu0 0.0
    %2712 = vmatprep.subr.mxu0 0.0
    %2713 = vmatpush1.msra.mxu0 0.0
    %2714 = vmatprep.subr.mxu0 0.0
    %2715 = vmatpush1.msra.mxu0 0.0
    %2716 = vmatprep.subr.mxu0 0.0
    %2717 = vmatpush1.msra.mxu0 0.0
    %2718 = vmatprep.subr.mxu0 0.0
    %2719 = vmatpush1.msra.mxu0 0.0
    %2720 = vmatprep.subr.mxu0 0.0
    %2721 = vmatpush1.msra.mxu0 0.0
    %2722 = vmatprep.subr.mxu0 0.0
    %2723 = vmatpush1.msra.mxu0 0.0
    %2724 = vmatprep.subr.mxu0 0.0
    %2725 = vmatpush1.msra.mxu0 0.0
    %2726 = vmatprep.subr.mxu0 0.0
    %2727 = vmatpush1.msra.mxu0 0.0
    %2728 = vmatprep.subr.mxu0 0.0
    %2729 = vmatpush1.msra.mxu0 0.0
    %2730 = vmatprep.subr.mxu0 0.0
    %2731 = vmatpush1.msra.mxu0 0.0
    %2732 = vmatprep.subr.mxu0 0.0
    %2733 = vmatpush1.msra.mxu0 0.0
    %2734 = vmatprep.subr.mxu0 0.0
    %2735 = vmatpush1.msra.mxu0 0.0
    %2736 = vmatprep.subr.mxu0 0.0
    %2737 = vmatpush1.msra.mxu0 0.0
    %2738 = vmatprep.subr.mxu0 0.0
    %2739 = vmatpush1.msra.mxu0 0.0
    %2740 = vmatprep.subr.mxu0 0.0
    %2741 = vmatpush1.msra.mxu0 0.0
    %2742 = vmatprep.subr.mxu0 0.0
    %2743 = vmatpush1.msra.mxu0 0.0
    %2744 = vmatprep.subr.mxu0 0.0
    %2745 = vmatpush1.msra.mxu0 0.0
    %2746 = vmatprep.subr.mxu0 0.0
    %2747 = vmatpush1.msra.mxu0 0.0
    %2748 = vmatprep.subr.mxu0 0.0
    %2749 = vmatpush1.msra.mxu0 0.0
    %2750 = vmatprep.subr.mxu0 0.0
    %2751 = vmatpush1.msra.mxu0 0.0
    %2752 = vmatprep.subr.mxu0 0.0
    %2753 = vmatpush1.msra.mxu0 0.0
    %2754 = vmatprep.subr.mxu0 0.0
    %2755 = vmatpush1.msra.mxu0 0.0
    %2756 = vmatprep.subr.mxu0 0.0
    %2757 = vmatpush1.msra.mxu0 0.0
    %2758 = vmatprep.subr.mxu0 0.0
    %2759 = vmatpush1.msra.mxu0 0.0
    %2760 = vmatprep.subr.mxu0 0.0
    %2761 = vmatpush1.msra.mxu0 0.0
    %2762 = vmatprep.subr.mxu0 0.0
    %2763 = vmatpush1.msra.mxu0 0.0
    %2764 = vmatprep.mubr.f32.mxu0 0.0
    %2765 = vmatmul.mubr.f32.gmra.mrb[0].mxu0 %v2698
    %v2766 = vpop.f32.mrb[0].mxu0
    %v2767 = vadd.f32 0.0, %v2766
    %v2768 = vpop.f32.mrb[0].mxu0
    %2769 = vdwg.mxu0
    %v2771 = vlaneseq
    %v2772 = vshrl.u32 %v2771, 7
    %v2773 = vsub.s32 0, %v2772
    %v2774 = vrot.slane %v126, %v2773
    %v2776 = vadd.f32 %v2774, %v2767
    %v2777 = vxor.u32 %v2776, 2147483648
    %v2778 = vmul.f32 %v2777, 1.442695
    %v2779 = vpow.pop %v2778
    %v2780 = vadd.f32 %v2779, 1.0
    %v2781 = vrcp.pop %v2780
    %v2782 = vmul.f32 1.0, %v2781
    %2783 = vrot.lane.b32.xlu0 %v144, 64
    %v2784 = vpop.permute.xlu0 %2783
    %v2786 = vadd.f32 %v2767, %v2784
    %2788 = vrot.lane.b32.xlu0 %v2786, 64
    %v2789 = vpop.permute.xlu0 %2788
    %v2791 = vmul.f32 %v2782, %v2789
    %2793 = vrot.lane.b32.xlu0 %v2791, 64
    %v2794 = vpop.permute.xlu0 %2793
    %v2796 = vadd.f32 %v2774, %v2794
    %v2797 = vtanh.pop %v2796
    %v2798 = vsub.f32 1.0, %v2782
    %2800 = vrot.lane.b32.xlu0 %v2797, 96
    %v2801 = vpop.permute.xlu0 %2800
    %v2803 = vmul.f32 %v2798, %v2801
    %2804 = vrot.lane.b32.xlu0 %v2690, 32
    %v2805 = vpop.permute.xlu0 %2804
    %v2807 = vmul.f32 %v2782, %v2805
    %v2808 = vadd.f32 %v2803, %v2807
    %v2809 = vld [vmem:[%s17] sm:$0xff]
    %v2810 = vld [vmem:[%s17 + $0x8] sm:$0xff]
    %v2811 = vld [vmem:[%s17 + $0x10] sm:$0xff]
    %v2812 = vld [vmem:[%s17 + $0x18] sm:$0xff]
    %2814 = vrot.lane.b32.xlu0 %v2808, 96
    %v2815 = vpop.permute.xlu0 %2814
    %v2816 = vsel %vm170, %v2815, 0
    %2818 = vmatprep.subr.mxu0 0.0
    %2819 = vmatpush1.msra.mxu0 %v2809
    %2820 = vmatprep.subr.mxu0 0.0
    %2821 = vmatpush1.msra.mxu0 %v2810
    %2822 = vmatprep.subr.mxu0 0.0
    %2823 = vmatpush1.msra.mxu0 %v2811
    %2824 = vmatprep.subr.mxu0 0.0
    %2825 = vmatpush1.msra.mxu0 %v2812
    %2826 = vmatprep.subr.mxu0 0.0
    %2827 = vmatpush1.msra.mxu0 0.0
    %2828 = vmatprep.subr.mxu0 0.0
    %2829 = vmatpush1.msra.mxu0 0.0
    %2830 = vmatprep.subr.mxu0 0.0
    %2831 = vmatpush1.msra.mxu0 0.0
    %2832 = vmatprep.subr.mxu0 0.0
    %2833 = vmatpush1.msra.mxu0 0.0
    %2834 = vmatprep.subr.mxu0 0.0
    %2835 = vmatpush1.msra.mxu0 0.0
    %2836 = vmatprep.subr.mxu0 0.0
    %2837 = vmatpush1.msra.mxu0 0.0
    %2838 = vmatprep.subr.mxu0 0.0
    %2839 = vmatpush1.msra.mxu0 0.0
    %2840 = vmatprep.subr.mxu0 0.0
    %2841 = vmatpush1.msra.mxu0 0.0
    %2842 = vmatprep.subr.mxu0 0.0
    %2843 = vmatpush1.msra.mxu0 0.0
    %2844 = vmatprep.subr.mxu0 0.0
    %2845 = vmatpush1.msra.mxu0 0.0
    %2846 = vmatprep.subr.mxu0 0.0
    %2847 = vmatpush1.msra.mxu0 0.0
    %2848 = vmatprep.subr.mxu0 0.0
    %2849 = vmatpush1.msra.mxu0 0.0
    %2850 = vmatprep.subr.mxu0 0.0
    %2851 = vmatpush1.msra.mxu0 0.0
    %2852 = vmatprep.subr.mxu0 0.0
    %2853 = vmatpush1.msra.mxu0 0.0
    %2854 = vmatprep.subr.mxu0 0.0
    %2855 = vmatpush1.msra.mxu0 0.0
    %2856 = vmatprep.subr.mxu0 0.0
    %2857 = vmatpush1.msra.mxu0 0.0
    %2858 = vmatprep.subr.mxu0 0.0
    %2859 = vmatpush1.msra.mxu0 0.0
    %2860 = vmatprep.subr.mxu0 0.0
    %2861 = vmatpush1.msra.mxu0 0.0
    %2862 = vmatprep.subr.mxu0 0.0
    %2863 = vmatpush1.msra.mxu0 0.0
    %2864 = vmatprep.subr.mxu0 0.0
    %2865 = vmatpush1.msra.mxu0 0.0
    %2866 = vmatprep.subr.mxu0 0.0
    %2867 = vmatpush1.msra.mxu0 0.0
    %2868 = vmatprep.subr.mxu0 0.0
    %2869 = vmatpush1.msra.mxu0 0.0
    %2870 = vmatprep.subr.mxu0 0.0
    %2871 = vmatpush1.msra.mxu0 0.0
    %2872 = vmatprep.subr.mxu0 0.0
    %2873 = vmatpush1.msra.mxu0 0.0
    %2874 = vmatprep.subr.mxu0 0.0
    %2875 = vmatpush1.msra.mxu0 0.0
    %2876 = vmatprep.subr.mxu0 0.0
    %2877 = vmatpush1.msra.mxu0 0.0
    %2878 = vmatprep.subr.mxu0 0.0
    %2879 = vmatpush1.msra.mxu0 0.0
    %2880 = vmatprep.subr.mxu0 0.0
    %2881 = vmatpush1.msra.mxu0 0.0
    %2882 = vmatprep.mubr.f32.mxu0 0.0
    %2883 = vmatmul.mubr.f32.gmra.mrb[0].mxu0 %v2816
    %v2884 = vpop.f32.mrb[0].mxu0
    %v2885 = vadd.f32 %v124, %v2884
    %v2886 = vpop.f32.mrb[0].mxu0
    %2887 = vdwg.mxu0
    %v2888 = vld [vmem:[%s18] sm:$0xff]
    %v2889 = vld [vmem:[%s18 + $0x8] sm:$0xff]
    %v2890 = vld [vmem:[%s18 + $0x10] sm:$0xff]
    %v2891 = vld [vmem:[%s18 + $0x18] sm:$0xff]
    %2892 = vmatprep.subr.mxu0 0.0
    %2893 = vmatpush1.msra.mxu0 %v2888
    %2894 = vmatprep.subr.mxu0 0.0
    %2895 = vmatpush1.msra.mxu0 %v2889
    %2896 = vmatprep.subr.mxu0 0.0
    %2897 = vmatpush1.msra.mxu0 %v2890
    %2898 = vmatprep.subr.mxu0 0.0
    %2899 = vmatpush1.msra.mxu0 %v2891
    %2900 = vmatprep.subr.mxu0 0.0
    %2901 = vmatpush1.msra.mxu0 0.0
    %2902 = vmatprep.subr.mxu0 0.0
    %2903 = vmatpush1.msra.mxu0 0.0
    %2904 = vmatprep.subr.mxu0 0.0
    %2905 = vmatpush1.msra.mxu0 0.0
    %2906 = vmatprep.subr.mxu0 0.0
    %2907 = vmatpush1.msra.mxu0 0.0
    %2908 = vmatprep.subr.mxu0 0.0
    %2909 = vmatpush1.msra.mxu0 0.0
    %2910 = vmatprep.subr.mxu0 0.0
    %2911 = vmatpush1.msra.mxu0 0.0
    %2912 = vmatprep.subr.mxu0 0.0
    %2913 = vmatpush1.msra.mxu0 0.0
    %2914 = vmatprep.subr.mxu0 0.0
    %2915 = vmatpush1.msra.mxu0 0.0
    %2916 = vmatprep.subr.mxu0 0.0
    %2917 = vmatpush1.msra.mxu0 0.0
    %2918 = vmatprep.subr.mxu0 0.0
    %2919 = vmatpush1.msra.mxu0 0.0
    %2920 = vmatprep.subr.mxu0 0.0
    %2921 = vmatpush1.msra.mxu0 0.0
    %2922 = vmatprep.subr.mxu0 0.0
    %2923 = vmatpush1.msra.mxu0 0.0
    %2924 = vmatprep.subr.mxu0 0.0
    %2925 = vmatpush1.msra.mxu0 0.0
    %2926 = vmatprep.subr.mxu0 0.0
    %2927 = vmatpush1.msra.mxu0 0.0
    %2928 = vmatprep.subr.mxu0 0.0
    %2929 = vmatpush1.msra.mxu0 0.0
    %2930 = vmatprep.subr.mxu0 0.0
    %2931 = vmatpush1.msra.mxu0 0.0
    %2932 = vmatprep.subr.mxu0 0.0
    %2933 = vmatpush1.msra.mxu0 0.0
    %2934 = vmatprep.subr.mxu0 0.0
    %2935 = vmatpush1.msra.mxu0 0.0
    %2936 = vmatprep.subr.mxu0 0.0
    %2937 = vmatpush1.msra.mxu0 0.0
    %2938 = vmatprep.subr.mxu0 0.0
    %2939 = vmatpush1.msra.mxu0 0.0
    %2940 = vmatprep.subr.mxu0 0.0
    %2941 = vmatpush1.msra.mxu0 0.0
    %2942 = vmatprep.subr.mxu0 0.0
    %2943 = vmatpush1.msra.mxu0 0.0
    %2944 = vmatprep.subr.mxu0 0.0
    %2945 = vmatpush1.msra.mxu0 0.0
    %2946 = vmatprep.subr.mxu0 0.0
    %2947 = vmatpush1.msra.mxu0 0.0
    %2948 = vmatprep.subr.mxu0 0.0
    %2949 = vmatpush1.msra.mxu0 0.0
    %2950 = vmatprep.subr.mxu0 0.0
    %2951 = vmatpush1.msra.mxu0 0.0
    %2952 = vmatprep.subr.mxu0 0.0
    %2953 = vmatpush1.msra.mxu0 0.0
    %2954 = vmatprep.subr.mxu0 0.0
    %2955 = vmatpush1.msra.mxu0 0.0
    %2956 = vmatprep.mubr.f32.mxu0 0.0
    %2957 = vmatmul.mubr.f32.gmra.mrb[0].mxu0 %v2698
    %v2958 = vpop.f32.mrb[0].mxu0
    %v2959 = vadd.f32 0.0, %v2958
    %v2960 = vpop.f32.mrb[0].mxu0
    %2961 = vdwg.mxu0
    %v2962 = vadd.f32 %v2885, %v2959
    %v2963 = vxor.u32 %v2962, 2147483648
    %v2964 = vmul.f32 %v2963, 1.442695
    %v2965 = vpow.pop %v2964
    %v2966 = vadd.f32 %v2965, 1.0
    %v2967 = vrcp.pop %v2966
    %v2968 = vmul.f32 1.0, %v2967
    %2969 = vrot.lane.b32.xlu0 %v150, 64
    %v2970 = vpop.permute.xlu0 %2969
    %v2972 = vadd.f32 %v2959, %v2970
    %2974 = vrot.lane.b32.xlu0 %v2972, 64
    %v2975 = vpop.permute.xlu0 %2974
    %v2977 = vmul.f32 %v2968, %v2975
    %2979 = vrot.lane.b32.xlu0 %v2977, 64
    %v2980 = vpop.permute.xlu0 %2979
    %v2982 = vadd.f32 %v2885, %v2980
    %v2983 = vtanh.pop %v2982
    %v2984 = vsub.f32 1.0, %v2968
    %2986 = vrot.lane.b32.xlu0 %v2983, 96
    %v2987 = vpop.permute.xlu0 %2986
    %v2989 = vmul.f32 %v2984, %v2987
    %v2990 = vmul.f32 %v2968, %v2805
    %v2991 = vadd.f32 %v2989, %v2990
    %2993 = vrot.lane.b32.xlu0 %v2991, 96
    %v2994 = vpop.permute.xlu0 %2993
    %2996 = vst.msk [vmem:[#allocation2] sm:$0xff] %vm170, %v2994
    %v2997 = vld [vmem:[%s14] sm:$0xff]
    %v2998 = vld [vmem:[%s14 + $0x8] sm:$0xff]
    %v2999 = vld [vmem:[%s14 + $0x10] sm:$0xff]
    %v3000 = vld [vmem:[%s14 + $0x18] sm:$0xff]
    %3001 = vmatprep.subr.mxu0 0.0
    %3002 = vmatpush1.msra.mxu0 %v2997
    %3003 = vmatprep.subr.mxu0 0.0
    %3004 = vmatpush1.msra.mxu0 %v2998
    %3005 = vmatprep.subr.mxu0 0.0
    %3006 = vmatpush1.msra.mxu0 %v2999
    %3007 = vmatprep.subr.mxu0 0.0
    %3008 = vmatpush1.msra.mxu0 %v3000
    %3009 = vmatprep.subr.mxu0 0.0
    %3010 = vmatpush1.msra.mxu0 0.0
    %3011 = vmatprep.subr.mxu0 0.0
    %3012 = vmatpush1.msra.mxu0 0.0
    %3013 = vmatprep.subr.mxu0 0.0
    %3014 = vmatpush1.msra.mxu0 0.0
    %3015 = vmatprep.subr.mxu0 0.0
    %3016 = vmatpush1.msra.mxu0 0.0
    %3017 = vmatprep.subr.mxu0 0.0
    %3018 = vmatpush1.msra.mxu0 0.0
    %3019 = vmatprep.subr.mxu0 0.0
    %3020 = vmatpush1.msra.mxu0 0.0
    %3021 = vmatprep.subr.mxu0 0.0
    %3022 = vmatpush1.msra.mxu0 0.0
    %3023 = vmatprep.subr.mxu0 0.0
    %3024 = vmatpush1.msra.mxu0 0.0
    %3025 = vmatprep.subr.mxu0 0.0
    %3026 = vmatpush1.msra.mxu0 0.0
    %3027 = vmatprep.subr.mxu0 0.0
    %3028 = vmatpush1.msra.mxu0 0.0
    %3029 = vmatprep.subr.mxu0 0.0
    %3030 = vmatpush1.msra.mxu0 0.0
    %3031 = vmatprep.subr.mxu0 0.0
    %3032 = vmatpush1.msra.mxu0 0.0
    %3033 = vmatprep.subr.mxu0 0.0
    %3034 = vmatpush1.msra.mxu0 0.0
    %3035 = vmatprep.subr.mxu0 0.0
    %3036 = vmatpush1.msra.mxu0 0.0
    %3037 = vmatprep.subr.mxu0 0.0
    %3038 = vmatpush1.msra.mxu0 0.0
    %3039 = vmatprep.subr.mxu0 0.0
    %3040 = vmatpush1.msra.mxu0 0.0
    %3041 = vmatprep.subr.mxu0 0.0
    %3042 = vmatpush1.msra.mxu0 0.0
    %3043 = vmatprep.subr.mxu0 0.0
    %3044 = vmatpush1.msra.mxu0 0.0
    %3045 = vmatprep.subr.mxu0 0.0
    %3046 = vmatpush1.msra.mxu0 0.0
    %3047 = vmatprep.subr.mxu0 0.0
    %3048 = vmatpush1.msra.mxu0 0.0
    %3049 = vmatprep.subr.mxu0 0.0
    %3050 = vmatpush1.msra.mxu0 0.0
    %3051 = vmatprep.subr.mxu0 0.0
    %3052 = vmatpush1.msra.mxu0 0.0
    %3053 = vmatprep.subr.mxu0 0.0
    %3054 = vmatpush1.msra.mxu0 0.0
    %3055 = vmatprep.subr.mxu0 0.0
    %3056 = vmatpush1.msra.mxu0 0.0
    %3057 = vmatprep.subr.mxu0 0.0
    %3058 = vmatpush1.msra.mxu0 0.0
    %3059 = vmatprep.subr.mxu0 0.0
    %3060 = vmatpush1.msra.mxu0 0.0
    %3061 = vmatprep.subr.mxu0 0.0
    %3062 = vmatpush1.msra.mxu0 0.0
    %3063 = vmatprep.subr.mxu0 0.0
    %3064 = vmatpush1.msra.mxu0 0.0
    %3065 = vmatprep.mubr.f32.mxu0 0.0
    %3066 = vmatmul.mubr.f32.gmra.mrb[0].mxu0 %v2816
    %v3067 = vpop.f32.mrb[0].mxu0
    %v3068 = vadd.f32 0.0, %v3067
    %v3069 = vpop.f32.mrb[0].mxu0
    %3070 = vdwg.mxu0
    %v3071 = vadd.f32 %v2774, %v3068
    %v3072 = vxor.u32 %v3071, 2147483648
    %v3073 = vmul.f32 %v3072, 1.442695
    %v3074 = vpow.pop %v3073
    %v3075 = vadd.f32 %v3074, 1.0
    %v3076 = vrcp.pop %v3075
    %v3077 = vmul.f32 1.0, %v3076
    %v3078 = vadd.f32 %v3068, %v2784
    %3080 = vrot.lane.b32.xlu0 %v3078, 64
    %v3081 = vpop.permute.xlu0 %3080
    %v3083 = vmul.f32 %v3077, %v3081
    %3085 = vrot.lane.b32.xlu0 %v3083, 64
    %v3086 = vpop.permute.xlu0 %3085
    %v3088 = vadd.f32 %v2774, %v3086
    %v3089 = vtanh.pop %v3088
    %v3090 = vsub.f32 1.0, %v3077
    %3092 = vrot.lane.b32.xlu0 %v3089, 96
    %v3093 = vpop.permute.xlu0 %3092
    %v3095 = vmul.f32 %v3090, %v3093
    %v3096 = vmul.f32 %v3077, %v2808
    %v3097 = vadd.f32 %v3095, %v3096
    %v3098 = vld [vmem:[%s17] sm:$0xff]
    %v3099 = vld [vmem:[%s17 + $0x8] sm:$0xff]
    %v3100 = vld [vmem:[%s17 + $0x10] sm:$0xff]
    %v3101 = vld [vmem:[%s17 + $0x18] sm:$0xff]
    %3103 = vrot.lane.b32.xlu0 %v3097, 96
    %v3104 = vpop.permute.xlu0 %3103
    %v3105 = vsel %vm170, %v3104, 0
    %3107 = vmatprep.subr.mxu0 0.0
    %3108 = vmatpush1.msra.mxu0 %v3098
    %3109 = vmatprep.subr.mxu0 0.0
    %3110 = vmatpush1.msra.mxu0 %v3099
    %3111 = vmatprep.subr.mxu0 0.0
    %3112 = vmatpush1.msra.mxu0 %v3100
    %3113 = vmatprep.subr.mxu0 0.0
    %3114 = vmatpush1.msra.mxu0 %v3101
    %3115 = vmatprep.subr.mxu0 0.0
    %3116 = vmatpush1.msra.mxu0 0.0
    %3117 = vmatprep.subr.mxu0 0.0
    %3118 = vmatpush1.msra.mxu0 0.0
    %3119 = vmatprep.subr.mxu0 0.0
    %3120 = vmatpush1.msra.mxu0 0.0
    %3121 = vmatprep.subr.mxu0 0.0
    %3122 = vmatpush1.msra.mxu0 0.0
    %3123 = vmatprep.subr.mxu0 0.0
    %3124 = vmatpush1.msra.mxu0 0.0
    %3125 = vmatprep.subr.mxu0 0.0
    %3126 = vmatpush1.msra.mxu0 0.0
    %3127 = vmatprep.subr.mxu0 0.0
    %3128 = vmatpush1.msra.mxu0 0.0
    %3129 = vmatprep.subr.mxu0 0.0
    %3130 = vmatpush1.msra.mxu0 0.0
    %3131 = vmatprep.subr.mxu0 0.0
    %3132 = vmatpush1.msra.mxu0 0.0
    %3133 = vmatprep.subr.mxu0 0.0
    %3134 = vmatpush1.msra.mxu0 0.0
    %3135 = vmatprep.subr.mxu0 0.0
    %3136 = vmatpush1.msra.mxu0 0.0
    %3137 = vmatprep.subr.mxu0 0.0
    %3138 = vmatpush1.msra.mxu0 0.0
    %3139 = vmatprep.subr.mxu0 0.0
    %3140 = vmatpush1.msra.mxu0 0.0
    %3141 = vmatprep.subr.mxu0 0.0
    %3142 = vmatpush1.msra.mxu0 0.0
    %3143 = vmatprep.subr.mxu0 0.0
    %3144 = vmatpush1.msra.mxu0 0.0
    %3145 = vmatprep.subr.mxu0 0.0
    %3146 = vmatpush1.msra.mxu0 0.0
    %3147 = vmatprep.subr.mxu0 0.0
    %3148 = vmatpush1.msra.mxu0 0.0
    %3149 = vmatprep.subr.mxu0 0.0
    %3150 = vmatpush1.msra.mxu0 0.0
    %3151 = vmatprep.subr.mxu0 0.0
    %3152 = vmatpush1.msra.mxu0 0.0
    %3153 = vmatprep.subr.mxu0 0.0
    %3154 = vmatpush1.msra.mxu0 0.0
    %3155 = vmatprep.subr.mxu0 0.0
    %3156 = vmatpush1.msra.mxu0 0.0
    %3157 = vmatprep.subr.mxu0 0.0
    %3158 = vmatpush1.msra.mxu0 0.0
    %3159 = vmatprep.subr.mxu0 0.0
    %3160 = vmatpush1.msra.mxu0 0.0
    %3161 = vmatprep.subr.mxu0 0.0
    %3162 = vmatpush1.msra.mxu0 0.0
    %3163 = vmatprep.subr.mxu0 0.0
    %3164 = vmatpush1.msra.mxu0 0.0
    %3165 = vmatprep.subr.mxu0 0.0
    %3166 = vmatpush1.msra.mxu0 0.0
    %3167 = vmatprep.subr.mxu0 0.0
    %3168 = vmatpush1.msra.mxu0 0.0
    %3169 = vmatprep.subr.mxu0 0.0
    %3170 = vmatpush1.msra.mxu0 0.0
    %3171 = vmatprep.mubr.f32.mxu0 0.0
    %3172 = vmatmul.mubr.f32.gmra.mrb[0].mxu0 %v3105
    %v3173 = vpop.f32.mrb[0].mxu0
    %v3174 = vadd.f32 %v124, %v3173
    %v3175 = vpop.f32.mrb[0].mxu0
    %3176 = vdwg.mxu0
    %v3177 = vld [vmem:[%s18] sm:$0xff]
    %v3178 = vld [vmem:[%s18 + $0x8] sm:$0xff]
    %v3179 = vld [vmem:[%s18 + $0x10] sm:$0xff]
    %v3180 = vld [vmem:[%s18 + $0x18] sm:$0xff]
    %v3181 = vsel %vm170, %v2994, 0
    %3183 = vmatprep.subr.mxu0 0.0
    %3184 = vmatpush1.msra.mxu0 %v3177
    %3185 = vmatprep.subr.mxu0 0.0
    %3186 = vmatpush1.msra.mxu0 %v3178
    %3187 = vmatprep.subr.mxu0 0.0
    %3188 = vmatpush1.msra.mxu0 %v3179
    %3189 = vmatprep.subr.mxu0 0.0
    %3190 = vmatpush1.msra.mxu0 %v3180
    %3191 = vmatprep.subr.mxu0 0.0
    %3192 = vmatpush1.msra.mxu0 0.0
    %3193 = vmatprep.subr.mxu0 0.0
    %3194 = vmatpush1.msra.mxu0 0.0
    %3195 = vmatprep.subr.mxu0 0.0
    %3196 = vmatpush1.msra.mxu0 0.0
    %3197 = vmatprep.subr.mxu0 0.0
    %3198 = vmatpush1.msra.mxu0 0.0
    %3199 = vmatprep.subr.mxu0 0.0
    %3200 = vmatpush1.msra.mxu0 0.0
    %3201 = vmatprep.subr.mxu0 0.0
    %3202 = vmatpush1.msra.mxu0 0.0
    %3203 = vmatprep.subr.mxu0 0.0
    %3204 = vmatpush1.msra.mxu0 0.0
    %3205 = vmatprep.subr.mxu0 0.0
    %3206 = vmatpush1.msra.mxu0 0.0
    %3207 = vmatprep.subr.mxu0 0.0
    %3208 = vmatpush1.msra.mxu0 0.0
    %3209 = vmatprep.subr.mxu0 0.0
    %3210 = vmatpush1.msra.mxu0 0.0
    %3211 = vmatprep.subr.mxu0 0.0
    %3212 = vmatpush1.msra.mxu0 0.0
    %3213 = vmatprep.subr.mxu0 0.0
    %3214 = vmatpush1.msra.mxu0 0.0
    %3215 = vmatprep.subr.mxu0 0.0
    %3216 = vmatpush1.msra.mxu0 0.0
    %3217 = vmatprep.subr.mxu0 0.0
    %3218 = vmatpush1.msra.mxu0 0.0
    %3219 = vmatprep.subr.mxu0 0.0
    %3220 = vmatpush1.msra.mxu0 0.0
    %3221 = vmatprep.subr.mxu0 0.0
    %3222 = vmatpush1.msra.mxu0 0.0
    %3223 = vmatprep.subr.mxu0 0.0
    %3224 = vmatpush1.msra.mxu0 0.0
    %3225 = vmatprep.subr.mxu0 0.0
    %3226 = vmatpush1.msra.mxu0 0.0
    %3227 = vmatprep.subr.mxu0 0.0
    %3228 = vmatpush1.msra.mxu0 0.0
    %3229 = vmatprep.subr.mxu0 0.0
    %3230 = vmatpush1.msra.mxu0 0.0
    %3231 = vmatprep.subr.mxu0 0.0
    %3232 = vmatpush1.msra.mxu0 0.0
    %3233 = vmatprep.subr.mxu0 0.0
    %3234 = vmatpush1.msra.mxu0 0.0
    %3235 = vmatprep.subr.mxu0 0.0
    %3236 = vmatpush1.msra.mxu0 0.0
    %3237 = vmatprep.subr.mxu0 0.0
    %3238 = vmatpush1.msra.mxu0 0.0
    %3239 = vmatprep.subr.mxu0 0.0
    %3240 = vmatpush1.msra.mxu0 0.0
    %3241 = vmatprep.subr.mxu0 0.0
    %3242 = vmatpush1.msra.mxu0 0.0
    %3243 = vmatprep.subr.mxu0 0.0
    %3244 = vmatpush1.msra.mxu0 0.0
    %3245 = vmatprep.subr.mxu0 0.0
    %3246 = vmatpush1.msra.mxu0 0.0
    %3247 = vmatprep.mubr.f32.mxu0 0.0
    %3248 = vmatmul.mubr.f32.gmra.mrb[0].mxu0 %v3181
    %v3249 = vpop.f32.mrb[0].mxu0
    %v3250 = vadd.f32 0.0, %v3249
    %v3251 = vpop.f32.mrb[0].mxu0
    %3252 = vdwg.mxu0
    %v3253 = vadd.f32 %v3174, %v3250
    %v3254 = vxor.u32 %v3253, 2147483648
    %v3255 = vmul.f32 %v3254, 1.442695
    %v3256 = vpow.pop %v3255
    %v3257 = vadd.f32 %v3256, 1.0
    %v3258 = vrcp.pop %v3257
    %v3259 = vmul.f32 1.0, %v3258
    %v3260 = vadd.f32 %v3250, %v2970
    %3262 = vrot.lane.b32.xlu0 %v3260, 64
    %v3263 = vpop.permute.xlu0 %3262
    %v3265 = vmul.f32 %v3259, %v3263
    %3267 = vrot.lane.b32.xlu0 %v3265, 64
    %v3268 = vpop.permute.xlu0 %3267
    %v3270 = vadd.f32 %v3174, %v3268
    %v3271 = vtanh.pop %v3270
    %v3272 = vsub.f32 1.0, %v3259
    %3274 = vrot.lane.b32.xlu0 %v3271, 96
    %v3275 = vpop.permute.xlu0 %3274
    %v3277 = vmul.f32 %v3272, %v3275
    %v3278 = vmul.f32 %v3259, %v2991
    %v3279 = vadd.f32 %v3277, %v3278
    %3281 = vrot.lane.b32.xlu0 %v3279, 96
    %v3282 = vpop.permute.xlu0 %3281
    %3284 = vst.msk [vmem:[#allocation2 + $0x8] sm:$0xff] %vm170, %v3282
    %v3285 = vld [vmem:[%s14] sm:$0xff]
    %v3286 = vld [vmem:[%s14 + $0x8] sm:$0xff]
    %v3287 = vld [vmem:[%s14 + $0x10] sm:$0xff]
    %v3288 = vld [vmem:[%s14 + $0x18] sm:$0xff]
    %3289 = vmatprep.subr.mxu0 0.0
    %3290 = vmatpush1.msra.mxu0 %v3285
    %3291 = vmatprep.subr.mxu0 0.0
    %3292 = vmatpush1.msra.mxu0 %v3286
    %3293 = vmatprep.subr.mxu0 0.0
    %3294 = vmatpush1.msra.mxu0 %v3287
    %3295 = vmatprep.subr.mxu0 0.0
    %3296 = vmatpush1.msra.mxu0 %v3288
    %3297 = vmatprep.subr.mxu0 0.0
    %3298 = vmatpush1.msra.mxu0 0.0
    %3299 = vmatprep.subr.mxu0 0.0
    %3300 = vmatpush1.msra.mxu0 0.0
    %3301 = vmatprep.subr.mxu0 0.0
    %3302 = vmatpush1.msra.mxu0 0.0
    %3303 = vmatprep.subr.mxu0 0.0
    %3304 = vmatpush1.msra.mxu0 0.0
    %3305 = vmatprep.subr.mxu0 0.0
    %3306 = vmatpush1.msra.mxu0 0.0
    %3307 = vmatprep.subr.mxu0 0.0
    %3308 = vmatpush1.msra.mxu0 0.0
    %3309 = vmatprep.subr.mxu0 0.0
    %3310 = vmatpush1.msra.mxu0 0.0
    %3311 = vmatprep.subr.mxu0 0.0
    %3312 = vmatpush1.msra.mxu0 0.0
    %3313 = vmatprep.subr.mxu0 0.0
    %3314 = vmatpush1.msra.mxu0 0.0
    %3315 = vmatprep.subr.mxu0 0.0
    %3316 = vmatpush1.msra.mxu0 0.0
    %3317 = vmatprep.subr.mxu0 0.0
    %3318 = vmatpush1.msra.mxu0 0.0
    %3319 = vmatprep.subr.mxu0 0.0
    %3320 = vmatpush1.msra.mxu0 0.0
    %3321 = vmatprep.subr.mxu0 0.0
    %3322 = vmatpush1.msra.mxu0 0.0
    %3323 = vmatprep.subr.mxu0 0.0
    %3324 = vmatpush1.msra.mxu0 0.0
    %3325 = vmatprep.subr.mxu0 0.0
    %3326 = vmatpush1.msra.mxu0 0.0
    %3327 = vmatprep.subr.mxu0 0.0
    %3328 = vmatpush1.msra.mxu0 0.0
    %3329 = vmatprep.subr.mxu0 0.0
    %3330 = vmatpush1.msra.mxu0 0.0
    %3331 = vmatprep.subr.mxu0 0.0
    %3332 = vmatpush1.msra.mxu0 0.0
    %3333 = vmatprep.subr.mxu0 0.0
    %3334 = vmatpush1.msra.mxu0 0.0
    %3335 = vmatprep.subr.mxu0 0.0
    %3336 = vmatpush1.msra.mxu0 0.0
    %3337 = vmatprep.subr.mxu0 0.0
    %3338 = vmatpush1.msra.mxu0 0.0
    %3339 = vmatprep.subr.mxu0 0.0
    %3340 = vmatpush1.msra.mxu0 0.0
    %3341 = vmatprep.subr.mxu0 0.0
    %3342 = vmatpush1.msra.mxu0 0.0
    %3343 = vmatprep.subr.mxu0 0.0
    %3344 = vmatpush1.msra.mxu0 0.0
    %3345 = vmatprep.subr.mxu0 0.0
    %3346 = vmatpush1.msra.mxu0 0.0
    %3347 = vmatprep.subr.mxu0 0.0
    %3348 = vmatpush1.msra.mxu0 0.0
    %3349 = vmatprep.subr.mxu0 0.0
    %3350 = vmatpush1.msra.mxu0 0.0
    %3351 = vmatprep.subr.mxu0 0.0
    %3352 = vmatpush1.msra.mxu0 0.0
    %3353 = vmatprep.mubr.f32.mxu0 0.0
    %3354 = vmatmul.mubr.f32.gmra.mrb[0].mxu0 %v3105
    %v3355 = vpop.f32.mrb[0].mxu0
    %v3356 = vadd.f32 0.0, %v3355
    %v3357 = vpop.f32.mrb[0].mxu0
    %3358 = vdwg.mxu0
    %v3359 = vadd.f32 %v2774, %v3356
    %v3360 = vxor.u32 %v3359, 2147483648
    %v3361 = vmul.f32 %v3360, 1.442695
    %v3362 = vpow.pop %v3361
    %v3363 = vadd.f32 %v3362, 1.0
    %v3364 = vrcp.pop %v3363
    %v3365 = vmul.f32 1.0, %v3364
    %v3366 = vadd.f32 %v3356, %v2784
    %3368 = vrot.lane.b32.xlu0 %v3366, 64
    %v3369 = vpop.permute.xlu0 %3368
    %v3371 = vmul.f32 %v3365, %v3369
    %3373 = vrot.lane.b32.xlu0 %v3371, 64
    %v3374 = vpop.permute.xlu0 %3373
    %v3376 = vadd.f32 %v2774, %v3374
    %v3377 = vtanh.pop %v3376
    %v3378 = vsub.f32 1.0, %v3365
    %3380 = vrot.lane.b32.xlu0 %v3377, 96
    %v3381 = vpop.permute.xlu0 %3380
    %v3383 = vmul.f32 %v3378, %v3381
    %v3384 = vmul.f32 %v3365, %v3097
    %v3385 = vadd.f32 %v3383, %v3384
    %v3386 = vld [vmem:[%s17] sm:$0xff]
    %v3387 = vld [vmem:[%s17 + $0x8] sm:$0xff]
    %v3388 = vld [vmem:[%s17 + $0x10] sm:$0xff]
    %v3389 = vld [vmem:[%s17 + $0x18] sm:$0xff]
    %3391 = vrot.lane.b32.xlu0 %v3385, 96
    %v3392 = vpop.permute.xlu0 %3391
    %v3393 = vsel %vm170, %v3392, 0
    %3395 = vmatprep.subr.mxu0 0.0
    %3396 = vmatpush1.msra.mxu0 %v3386
    %3397 = vmatprep.subr.mxu0 0.0
    %3398 = vmatpush1.msra.mxu0 %v3387
    %3399 = vmatprep.subr.mxu0 0.0
    %3400 = vmatpush1.msra.mxu0 %v3388
    %3401 = vmatprep.subr.mxu0 0.0
    %3402 = vmatpush1.msra.mxu0 %v3389
    %3403 = vmatprep.subr.mxu0 0.0
    %3404 = vmatpush1.msra.mxu0 0.0
    %3405 = vmatprep.subr.mxu0 0.0
    %3406 = vmatpush1.msra.mxu0 0.0
    %3407 = vmatprep.subr.mxu0 0.0
    %3408 = vmatpush1.msra.mxu0 0.0
    %3409 = vmatprep.subr.mxu0 0.0
    %3410 = vmatpush1.msra.mxu0 0.0
    %3411 = vmatprep.subr.mxu0 0.0
    %3412 = vmatpush1.msra.mxu0 0.0
    %3413 = vmatprep.subr.mxu0 0.0
    %3414 = vmatpush1.msra.mxu0 0.0
    %3415 = vmatprep.subr.mxu0 0.0
    %3416 = vmatpush1.msra.mxu0 0.0
    %3417 = vmatprep.subr.mxu0 0.0
    %3418 = vmatpush1.msra.mxu0 0.0
    %3419 = vmatprep.subr.mxu0 0.0
    %3420 = vmatpush1.msra.mxu0 0.0
    %3421 = vmatprep.subr.mxu0 0.0
    %3422 = vmatpush1.msra.mxu0 0.0
    %3423 = vmatprep.subr.mxu0 0.0
    %3424 = vmatpush1.msra.mxu0 0.0
    %3425 = vmatprep.subr.mxu0 0.0
    %3426 = vmatpush1.msra.mxu0 0.0
    %3427 = vmatprep.subr.mxu0 0.0
    %3428 = vmatpush1.msra.mxu0 0.0
    %3429 = vmatprep.subr.mxu0 0.0
    %3430 = vmatpush1.msra.mxu0 0.0
    %3431 = vmatprep.subr.mxu0 0.0
    %3432 = vmatpush1.msra.mxu0 0.0
    %3433 = vmatprep.subr.mxu0 0.0
    %3434 = vmatpush1.msra.mxu0 0.0
    %3435 = vmatprep.subr.mxu0 0.0
    %3436 = vmatpush1.msra.mxu0 0.0
    %3437 = vmatprep.subr.mxu0 0.0
    %3438 = vmatpush1.msra.mxu0 0.0
    %3439 = vmatprep.subr.mxu0 0.0
    %3440 = vmatpush1.msra.mxu0 0.0
    %3441 = vmatprep.subr.mxu0 0.0
    %3442 = vmatpush1.msra.mxu0 0.0
    %3443 = vmatprep.subr.mxu0 0.0
    %3444 = vmatpush1.msra.mxu0 0.0
    %3445 = vmatprep.subr.mxu0 0.0
    %3446 = vmatpush1.msra.mxu0 0.0
    %3447 = vmatprep.subr.mxu0 0.0
    %3448 = vmatpush1.msra.mxu0 0.0
    %3449 = vmatprep.subr.mxu0 0.0
    %3450 = vmatpush1.msra.mxu0 0.0
    %3451 = vmatprep.subr.mxu0 0.0
    %3452 = vmatpush1.msra.mxu0 0.0
    %3453 = vmatprep.subr.mxu0 0.0
    %3454 = vmatpush1.msra.mxu0 0.0
    %3455 = vmatprep.subr.mxu0 0.0
    %3456 = vmatpush1.msra.mxu0 0.0
    %3457 = vmatprep.subr.mxu0 0.0
    %3458 = vmatpush1.msra.mxu0 0.0
    %3459 = vmatprep.mubr.f32.mxu0 0.0
    %3460 = vmatmul.mubr.f32.gmra.mrb[0].mxu0 %v3393
    %v3461 = vpop.f32.mrb[0].mxu0
    %v3462 = vadd.f32 %v124, %v3461
    %v3463 = vpop.f32.mrb[0].mxu0
    %3464 = vdwg.mxu0
    %v3465 = vld [vmem:[%s18] sm:$0xff]
    %v3466 = vld [vmem:[%s18 + $0x8] sm:$0xff]
    %v3467 = vld [vmem:[%s18 + $0x10] sm:$0xff]
    %v3468 = vld [vmem:[%s18 + $0x18] sm:$0xff]
    %v3469 = vsel %vm170, %v3282, 0
    %3471 = vmatprep.subr.mxu0 0.0
    %3472 = vmatpush1.msra.mxu0 %v3465
    %3473 = vmatprep.subr.mxu0 0.0
    %3474 = vmatpush1.msra.mxu0 %v3466
    %3475 = vmatprep.subr.mxu0 0.0
    %3476 = vmatpush1.msra.mxu0 %v3467
    %3477 = vmatprep.subr.mxu0 0.0
    %3478 = vmatpush1.msra.mxu0 %v3468
    %3479 = vmatprep.subr.mxu0 0.0
    %3480 = vmatpush1.msra.mxu0 0.0
    %3481 = vmatprep.subr.mxu0 0.0
    %3482 = vmatpush1.msra.mxu0 0.0
    %3483 = vmatprep.subr.mxu0 0.0
    %3484 = vmatpush1.msra.mxu0 0.0
    %3485 = vmatprep.subr.mxu0 0.0
    %3486 = vmatpush1.msra.mxu0 0.0
    %3487 = vmatprep.subr.mxu0 0.0
    %3488 = vmatpush1.msra.mxu0 0.0
    %3489 = vmatprep.subr.mxu0 0.0
    %3490 = vmatpush1.msra.mxu0 0.0
    %3491 = vmatprep.subr.mxu0 0.0
    %3492 = vmatpush1.msra.mxu0 0.0
    %3493 = vmatprep.subr.mxu0 0.0
    %3494 = vmatpush1.msra.mxu0 0.0
    %3495 = vmatprep.subr.mxu0 0.0
    %3496 = vmatpush1.msra.mxu0 0.0
    %3497 = vmatprep.subr.mxu0 0.0
    %3498 = vmatpush1.msra.mxu0 0.0
    %3499 = vmatprep.subr.mxu0 0.0
    %3500 = vmatpush1.msra.mxu0 0.0
    %3501 = vmatprep.subr.mxu0 0.0
    %3502 = vmatpush1.msra.mxu0 0.0
    %3503 = vmatprep.subr.mxu0 0.0
    %3504 = vmatpush1.msra.mxu0 0.0
    %3505 = vmatprep.subr.mxu0 0.0
    %3506 = vmatpush1.msra.mxu0 0.0
    %3507 = vmatprep.subr.mxu0 0.0
    %3508 = vmatpush1.msra.mxu0 0.0
    %3509 = vmatprep.subr.mxu0 0.0
    %3510 = vmatpush1.msra.mxu0 0.0
    %3511 = vmatprep.subr.mxu0 0.0
    %3512 = vmatpush1.msra.mxu0 0.0
    %3513 = vmatprep.subr.mxu0 0.0
    %3514 = vmatpush1.msra.mxu0 0.0
    %3515 = vmatprep.subr.mxu0 0.0
    %3516 = vmatpush1.msra.mxu0 0.0
    %3517 = vmatprep.subr.mxu0 0.0
    %3518 = vmatpush1.msra.mxu0 0.0
    %3519 = vmatprep.subr.mxu0 0.0
    %3520 = vmatpush1.msra.mxu0 0.0
    %3521 = vmatprep.subr.mxu0 0.0
    %3522 = vmatpush1.msra.mxu0 0.0
    %3523 = vmatprep.subr.mxu0 0.0
    %3524 = vmatpush1.msra.mxu0 0.0
    %3525 = vmatprep.subr.mxu0 0.0
    %3526 = vmatpush1.msra.mxu0 0.0
    %3527 = vmatprep.subr.mxu0 0.0
    %3528 = vmatpush1.msra.mxu0 0.0
    %3529 = vmatprep.subr.mxu0 0.0
    %3530 = vmatpush1.msra.mxu0 0.0
    %3531 = vmatprep.subr.mxu0 0.0
    %3532 = vmatpush1.msra.mxu0 0.0
    %3533 = vmatprep.subr.mxu0 0.0
    %3534 = vmatpush1.msra.mxu0 0.0
    %3535 = vmatprep.mubr.f32.mxu0 0.0
    %3536 = vmatmul.mubr.f32.gmra.mrb[0].mxu0 %v3469
    %v3537 = vpop.f32.mrb[0].mxu0
    %v3538 = vadd.f32 0.0, %v3537
    %v3539 = vpop.f32.mrb[0].mxu0
    %3540 = vdwg.mxu0
    %v3541 = vadd.f32 %v3462, %v3538
    %v3542 = vxor.u32 %v3541, 2147483648
    %v3543 = vmul.f32 %v3542, 1.442695
    %v3544 = vpow.pop %v3543
    %v3545 = vadd.f32 %v3544, 1.0
    %v3546 = vrcp.pop %v3545
    %v3547 = vmul.f32 1.0, %v3546
    %v3548 = vadd.f32 %v3538, %v2970
    %3550 = vrot.lane.b32.xlu0 %v3548, 64
    %v3551 = vpop.permute.xlu0 %3550
    %v3553 = vmul.f32 %v3547, %v3551
    %3555 = vrot.lane.b32.xlu0 %v3553, 64
    %v3556 = vpop.permute.xlu0 %3555
    %v3558 = vadd.f32 %v3462, %v3556
    %v3559 = vtanh.pop %v3558
    %v3560 = vsub.f32 1.0, %v3547
    %3562 = vrot.lane.b32.xlu0 %v3559, 96
    %v3563 = vpop.permute.xlu0 %3562
    %v3565 = vmul.f32 %v3560, %v3563
    %v3566 = vmul.f32 %v3547, %v3279
    %v3567 = vadd.f32 %v3565, %v3566
    %3569 = vrot.lane.b32.xlu0 %v3567, 96
    %v3570 = vpop.permute.xlu0 %3569
    %3572 = vst.msk [vmem:[#allocation2 + $0x10] sm:$0xff] %vm170, %v3570
    %v3573 = vld [vmem:[%s14] sm:$0xff]
    %v3574 = vld [vmem:[%s14 + $0x8] sm:$0xff]
    %v3575 = vld [vmem:[%s14 + $0x10] sm:$0xff]
    %v3576 = vld [vmem:[%s14 + $0x18] sm:$0xff]
    %3577 = vmatprep.subr.mxu0 0.0
    %3578 = vmatpush1.msra.mxu0 %v3573
    %3579 = vmatprep.subr.mxu0 0.0
    %3580 = vmatpush1.msra.mxu0 %v3574
    %3581 = vmatprep.subr.mxu0 0.0
    %3582 = vmatpush1.msra.mxu0 %v3575
    %3583 = vmatprep.subr.mxu0 0.0
    %3584 = vmatpush1.msra.mxu0 %v3576
    %3585 = vmatprep.subr.mxu0 0.0
    %3586 = vmatpush1.msra.mxu0 0.0
    %3587 = vmatprep.subr.mxu0 0.0
    %3588 = vmatpush1.msra.mxu0 0.0
    %3589 = vmatprep.subr.mxu0 0.0
    %3590 = vmatpush1.msra.mxu0 0.0
    %3591 = vmatprep.subr.mxu0 0.0
    %3592 = vmatpush1.msra.mxu0 0.0
    %3593 = vmatprep.subr.mxu0 0.0
    %3594 = vmatpush1.msra.mxu0 0.0
    %3595 = vmatprep.subr.mxu0 0.0
    %3596 = vmatpush1.msra.mxu0 0.0
    %3597 = vmatprep.subr.mxu0 0.0
    %3598 = vmatpush1.msra.mxu0 0.0
    %3599 = vmatprep.subr.mxu0 0.0
    %3600 = vmatpush1.msra.mxu0 0.0
    %3601 = vmatprep.subr.mxu0 0.0
    %3602 = vmatpush1.msra.mxu0 0.0
    %3603 = vmatprep.subr.mxu0 0.0
    %3604 = vmatpush1.msra.mxu0 0.0
    %3605 = vmatprep.subr.mxu0 0.0
    %3606 = vmatpush1.msra.mxu0 0.0
    %3607 = vmatprep.subr.mxu0 0.0
    %3608 = vmatpush1.msra.mxu0 0.0
    %3609 = vmatprep.subr.mxu0 0.0
    %3610 = vmatpush1.msra.mxu0 0.0
    %3611 = vmatprep.subr.mxu0 0.0
    %3612 = vmatpush1.msra.mxu0 0.0
    %3613 = vmatprep.subr.mxu0 0.0
    %3614 = vmatpush1.msra.mxu0 0.0
    %3615 = vmatprep.subr.mxu0 0.0
    %3616 = vmatpush1.msra.mxu0 0.0
    %3617 = vmatprep.subr.mxu0 0.0
    %3618 = vmatpush1.msra.mxu0 0.0
    %3619 = vmatprep.subr.mxu0 0.0
    %3620 = vmatpush1.msra.mxu0 0.0
    %3621 = vmatprep.subr.mxu0 0.0
    %3622 = vmatpush1.msra.mxu0 0.0
    %3623 = vmatprep.subr.mxu0 0.0
    %3624 = vmatpush1.msra.mxu0 0.0
    %3625 = vmatprep.subr.mxu0 0.0
    %3626 = vmatpush1.msra.mxu0 0.0
    %3627 = vmatprep.subr.mxu0 0.0
    %3628 = vmatpush1.msra.mxu0 0.0
    %3629 = vmatprep.subr.mxu0 0.0
    %3630 = vmatpush1.msra.mxu0 0.0
    %3631 = vmatprep.subr.mxu0 0.0
    %3632 = vmatpush1.msra.mxu0 0.0
    %3633 = vmatprep.subr.mxu0 0.0
    %3634 = vmatpush1.msra.mxu0 0.0
    %3635 = vmatprep.subr.mxu0 0.0
    %3636 = vmatpush1.msra.mxu0 0.0
    %3637 = vmatprep.subr.mxu0 0.0
    %3638 = vmatpush1.msra.mxu0 0.0
    %3639 = vmatprep.subr.mxu0 0.0
    %3640 = vmatpush1.msra.mxu0 0.0
    %3641 = vmatprep.mubr.f32.mxu0 0.0
    %3642 = vmatmul.mubr.f32.gmra.mrb[0].mxu0 %v3393
    %v3643 = vpop.f32.mrb[0].mxu0
    %v3644 = vadd.f32 0.0, %v3643
    %v3645 = vpop.f32.mrb[0].mxu0
    %3646 = vdwg.mxu0
    %v3647 = vadd.f32 %v2774, %v3644
    %v3648 = vxor.u32 %v3647, 2147483648
    %v3649 = vmul.f32 %v3648, 1.442695
    %v3650 = vpow.pop %v3649
    %v3651 = vadd.f32 %v3650, 1.0
    %v3652 = vrcp.pop %v3651
    %v3653 = vmul.f32 1.0, %v3652
    %v3654 = vadd.f32 %v3644, %v2784
    %3656 = vrot.lane.b32.xlu0 %v3654, 64
    %v3657 = vpop.permute.xlu0 %3656
    %v3659 = vmul.f32 %v3653, %v3657
    %3661 = vrot.lane.b32.xlu0 %v3659, 64
    %v3662 = vpop.permute.xlu0 %3661
    %v3664 = vadd.f32 %v2774, %v3662
    %v3665 = vtanh.pop %v3664
    %v3666 = vsub.f32 1.0, %v3653
    %3668 = vrot.lane.b32.xlu0 %v3665, 96
    %v3669 = vpop.permute.xlu0 %3668
    %v3671 = vmul.f32 %v3666, %v3669
    %v3672 = vmul.f32 %v3653, %v3385
    %v3673 = vadd.f32 %v3671, %v3672
    %v3674 = vld [vmem:[%s17] sm:$0xff]
    %v3675 = vld [vmem:[%s17 + $0x8] sm:$0xff]
    %v3676 = vld [vmem:[%s17 + $0x10] sm:$0xff]
    %v3677 = vld [vmem:[%s17 + $0x18] sm:$0xff]
    %3679 = vrot.lane.b32.xlu0 %v3673, 96
    %v3680 = vpop.permute.xlu0 %3679
    %v3681 = vsel %vm170, %v3680, 0
    %3683 = vmatprep.subr.mxu0 0.0
    %3684 = vmatpush1.msra.mxu0 %v3674
    %3685 = vmatprep.subr.mxu0 0.0
    %3686 = vmatpush1.msra.mxu0 %v3675
    %3687 = vmatprep.subr.mxu0 0.0
    %3688 = vmatpush1.msra.mxu0 %v3676
    %3689 = vmatprep.subr.mxu0 0.0
    %3690 = vmatpush1.msra.mxu0 %v3677
    %3691 = vmatprep.subr.mxu0 0.0
    %3692 = vmatpush1.msra.mxu0 0.0
    %3693 = vmatprep.subr.mxu0 0.0
    %3694 = vmatpush1.msra.mxu0 0.0
    %3695 = vmatprep.subr.mxu0 0.0
    %3696 = vmatpush1.msra.mxu0 0.0
    %3697 = vmatprep.subr.mxu0 0.0
    %3698 = vmatpush1.msra.mxu0 0.0
    %3699 = vmatprep.subr.mxu0 0.0
    %3700 = vmatpush1.msra.mxu0 0.0
    %3701 = vmatprep.subr.mxu0 0.0
    %3702 = vmatpush1.msra.mxu0 0.0
    %3703 = vmatprep.subr.mxu0 0.0
    %3704 = vmatpush1.msra.mxu0 0.0
    %3705 = vmatprep.subr.mxu0 0.0
    %3706 = vmatpush1.msra.mxu0 0.0
    %3707 = vmatprep.subr.mxu0 0.0
    %3708 = vmatpush1.msra.mxu0 0.0
    %3709 = vmatprep.subr.mxu0 0.0
    %3710 = vmatpush1.msra.mxu0 0.0
    %3711 = vmatprep.subr.mxu0 0.0
    %3712 = vmatpush1.msra.mxu0 0.0
    %3713 = vmatprep.subr.mxu0 0.0
    %3714 = vmatpush1.msra.mxu0 0.0
    %3715 = vmatprep.subr.mxu0 0.0
    %3716 = vmatpush1.msra.mxu0 0.0
    %3717 = vmatprep.subr.mxu0 0.0
    %3718 = vmatpush1.msra.mxu0 0.0
    %3719 = vmatprep.subr.mxu0 0.0
    %3720 = vmatpush1.msra.mxu0 0.0
    %3721 = vmatprep.subr.mxu0 0.0
    %3722 = vmatpush1.msra.mxu0 0.0
    %3723 = vmatprep.subr.mxu0 0.0
    %3724 = vmatpush1.msra.mxu0 0.0
    %3725 = vmatprep.subr.mxu0 0.0
    %3726 = vmatpush1.msra.mxu0 0.0
    %3727 = vmatprep.subr.mxu0 0.0
    %3728 = vmatpush1.msra.mxu0 0.0
    %3729 = vmatprep.subr.mxu0 0.0
    %3730 = vmatpush1.msra.mxu0 0.0
    %3731 = vmatprep.subr.mxu0 0.0
    %3732 = vmatpush1.msra.mxu0 0.0
    %3733 = vmatprep.subr.mxu0 0.0
    %3734 = vmatpush1.msra.mxu0 0.0
    %3735 = vmatprep.subr.mxu0 0.0
    %3736 = vmatpush1.msra.mxu0 0.0
    %3737 = vmatprep.subr.mxu0 0.0
    %3738 = vmatpush1.msra.mxu0 0.0
    %3739 = vmatprep.subr.mxu0 0.0
    %3740 = vmatpush1.msra.mxu0 0.0
    %3741 = vmatprep.subr.mxu0 0.0
    %3742 = vmatpush1.msra.mxu0 0.0
    %3743 = vmatprep.subr.mxu0 0.0
    %3744 = vmatpush1.msra.mxu0 0.0
    %3745 = vmatprep.subr.mxu0 0.0
    %3746 = vmatpush1.msra.mxu0 0.0
    %3747 = vmatprep.mubr.f32.mxu0 0.0
    %3748 = vmatmul.mubr.f32.gmra.mrb[0].mxu0 %v3681
    %v3749 = vpop.f32.mrb[0].mxu0
    %v3750 = vadd.f32 %v124, %v3749
    %v3751 = vpop.f32.mrb[0].mxu0
    %3752 = vdwg.mxu0
    %v3753 = vld [vmem:[%s18] sm:$0xff]
    %v3754 = vld [vmem:[%s18 + $0x8] sm:$0xff]
    %v3755 = vld [vmem:[%s18 + $0x10] sm:$0xff]
    %v3756 = vld [vmem:[%s18 + $0x18] sm:$0xff]
    %v3757 = vsel %vm170, %v3570, 0
    %3759 = vmatprep.subr.mxu0 0.0
    %3760 = vmatpush1.msra.mxu0 %v3753
    %3761 = vmatprep.subr.mxu0 0.0
    %3762 = vmatpush1.msra.mxu0 %v3754
    %3763 = vmatprep.subr.mxu0 0.0
    %3764 = vmatpush1.msra.mxu0 %v3755
    %3765 = vmatprep.subr.mxu0 0.0
    %3766 = vmatpush1.msra.mxu0 %v3756
    %3767 = vmatprep.subr.mxu0 0.0
    %3768 = vmatpush1.msra.mxu0 0.0
    %3769 = vmatprep.subr.mxu0 0.0
    %3770 = vmatpush1.msra.mxu0 0.0
    %3771 = vmatprep.subr.mxu0 0.0
    %3772 = vmatpush1.msra.mxu0 0.0
    %3773 = vmatprep.subr.mxu0 0.0
    %3774 = vmatpush1.msra.mxu0 0.0
    %3775 = vmatprep.subr.mxu0 0.0
    %3776 = vmatpush1.msra.mxu0 0.0
    %3777 = vmatprep.subr.mxu0 0.0
    %3778 = vmatpush1.msra.mxu0 0.0
    %3779 = vmatprep.subr.mxu0 0.0
    %3780 = vmatpush1.msra.mxu0 0.0
    %3781 = vmatprep.subr.mxu0 0.0
    %3782 = vmatpush1.msra.mxu0 0.0
    %3783 = vmatprep.subr.mxu0 0.0
    %3784 = vmatpush1.msra.mxu0 0.0
    %3785 = vmatprep.subr.mxu0 0.0
    %3786 = vmatpush1.msra.mxu0 0.0
    %3787 = vmatprep.subr.mxu0 0.0
    %3788 = vmatpush1.msra.mxu0 0.0
    %3789 = vmatprep.subr.mxu0 0.0
    %3790 = vmatpush1.msra.mxu0 0.0
    %3791 = vmatprep.subr.mxu0 0.0
    %3792 = vmatpush1.msra.mxu0 0.0
    %3793 = vmatprep.subr.mxu0 0.0
    %3794 = vmatpush1.msra.mxu0 0.0
    %3795 = vmatprep.subr.mxu0 0.0
    %3796 = vmatpush1.msra.mxu0 0.0
    %3797 = vmatprep.subr.mxu0 0.0
    %3798 = vmatpush1.msra.mxu0 0.0
    %3799 = vmatprep.subr.mxu0 0.0
    %3800 = vmatpush1.msra.mxu0 0.0
    %3801 = vmatprep.subr.mxu0 0.0
    %3802 = vmatpush1.msra.mxu0 0.0
    %3803 = vmatprep.subr.mxu0 0.0
    %3804 = vmatpush1.msra.mxu0 0.0
    %3805 = vmatprep.subr.mxu0 0.0
    %3806 = vmatpush1.msra.mxu0 0.0
    %3807 = vmatprep.subr.mxu0 0.0
    %3808 = vmatpush1.msra.mxu0 0.0
    %3809 = vmatprep.subr.mxu0 0.0
    %3810 = vmatpush1.msra.mxu0 0.0
    %3811 = vmatprep.subr.mxu0 0.0
    %3812 = vmatpush1.msra.mxu0 0.0
    %3813 = vmatprep.subr.mxu0 0.0
    %3814 = vmatpush1.msra.mxu0 0.0
    %3815 = vmatprep.subr.mxu0 0.0
    %3816 = vmatpush1.msra.mxu0 0.0
    %3817 = vmatprep.subr.mxu0 0.0
    %3818 = vmatpush1.msra.mxu0 0.0
    %3819 = vmatprep.subr.mxu0 0.0
    %3820 = vmatpush1.msra.mxu0 0.0
    %3821 = vmatprep.subr.mxu0 0.0
    %3822 = vmatpush1.msra.mxu0 0.0
    %3823 = vmatprep.mubr.f32.mxu0 0.0
    %3824 = vmatmul.mubr.f32.gmra.mrb[0].mxu0 %v3757
    %v3825 = vpop.f32.mrb[0].mxu0
    %v3826 = vadd.f32 0.0, %v3825
    %v3827 = vpop.f32.mrb[0].mxu0
    %3828 = vdwg.mxu0
    %v3829 = vadd.f32 %v3750, %v3826
    %v3830 = vxor.u32 %v3829, 2147483648
    %v3831 = vmul.f32 %v3830, 1.442695
    %v3832 = vpow.pop %v3831
    %v3833 = vadd.f32 %v3832, 1.0
    %v3834 = vrcp.pop %v3833
    %v3835 = vmul.f32 1.0, %v3834
    %v3836 = vadd.f32 %v3826, %v2970
    %3838 = vrot.lane.b32.xlu0 %v3836, 64
    %v3839 = vpop.permute.xlu0 %3838
    %v3841 = vmul.f32 %v3835, %v3839
    %3843 = vrot.lane.b32.xlu0 %v3841, 64
    %v3844 = vpop.permute.xlu0 %3843
    %v3846 = vadd.f32 %v3750, %v3844
    %v3847 = vtanh.pop %v3846
    %v3848 = vsub.f32 1.0, %v3835
    %3850 = vrot.lane.b32.xlu0 %v3847, 96
    %v3851 = vpop.permute.xlu0 %3850
    %v3853 = vmul.f32 %v3848, %v3851
    %v3854 = vmul.f32 %v3835, %v3567
    %v3855 = vadd.f32 %v3853, %v3854
    %3857 = vrot.lane.b32.xlu0 %v3855, 96
    %v3858 = vpop.permute.xlu0 %3857
    %3860 = vst.msk [vmem:[#allocation2 + $0x18] sm:$0xff] %vm170, %v3858
    %v3861 = vld [vmem:[%s14] sm:$0xff]
    %v3862 = vld [vmem:[%s14 + $0x8] sm:$0xff]
    %v3863 = vld [vmem:[%s14 + $0x10] sm:$0xff]
    %v3864 = vld [vmem:[%s14 + $0x18] sm:$0xff]
    %3865 = vmatprep.subr.mxu0 0.0
    %3866 = vmatpush1.msra.mxu0 %v3861
    %3867 = vmatprep.subr.mxu0 0.0
    %3868 = vmatpush1.msra.mxu0 %v3862
    %3869 = vmatprep.subr.mxu0 0.0
    %3870 = vmatpush1.msra.mxu0 %v3863
    %3871 = vmatprep.subr.mxu0 0.0
    %3872 = vmatpush1.msra.mxu0 %v3864
    %3873 = vmatprep.subr.mxu0 0.0
    %3874 = vmatpush1.msra.mxu0 0.0
    %3875 = vmatprep.subr.mxu0 0.0
    %3876 = vmatpush1.msra.mxu0 0.0
    %3877 = vmatprep.subr.mxu0 0.0
    %3878 = vmatpush1.msra.mxu0 0.0
    %3879 = vmatprep.subr.mxu0 0.0
    %3880 = vmatpush1.msra.mxu0 0.0
    %3881 = vmatprep.subr.mxu0 0.0
    %3882 = vmatpush1.msra.mxu0 0.0
    %3883 = vmatprep.subr.mxu0 0.0
    %3884 = vmatpush1.msra.mxu0 0.0
    %3885 = vmatprep.subr.mxu0 0.0
    %3886 = vmatpush1.msra.mxu0 0.0
    %3887 = vmatprep.subr.mxu0 0.0
    %3888 = vmatpush1.msra.mxu0 0.0
    %3889 = vmatprep.subr.mxu0 0.0
    %3890 = vmatpush1.msra.mxu0 0.0
    %3891 = vmatprep.subr.mxu0 0.0
    %3892 = vmatpush1.msra.mxu0 0.0
    %3893 = vmatprep.subr.mxu0 0.0
    %3894 = vmatpush1.msra.mxu0 0.0
    %3895 = vmatprep.subr.mxu0 0.0
    %3896 = vmatpush1.msra.mxu0 0.0
    %3897 = vmatprep.subr.mxu0 0.0
    %3898 = vmatpush1.msra.mxu0 0.0
    %3899 = vmatprep.subr.mxu0 0.0
    %3900 = vmatpush1.msra.mxu0 0.0
    %3901 = vmatprep.subr.mxu0 0.0
    %3902 = vmatpush1.msra.mxu0 0.0
    %3903 = vmatprep.subr.mxu0 0.0
    %3904 = vmatpush1.msra.mxu0 0.0
    %3905 = vmatprep.subr.mxu0 0.0
    %3906 = vmatpush1.msra.mxu0 0.0
    %3907 = vmatprep.subr.mxu0 0.0
    %3908 = vmatpush1.msra.mxu0 0.0
    %3909 = vmatprep.subr.mxu0 0.0
    %3910 = vmatpush1.msra.mxu0 0.0
    %3911 = vmatprep.subr.mxu0 0.0
    %3912 = vmatpush1.msra.mxu0 0.0
    %3913 = vmatprep.subr.mxu0 0.0
    %3914 = vmatpush1.msra.mxu0 0.0
    %3915 = vmatprep.subr.mxu0 0.0
    %3916 = vmatpush1.msra.mxu0 0.0
    %3917 = vmatprep.subr.mxu0 0.0
    %3918 = vmatpush1.msra.mxu0 0.0
    %3919 = vmatprep.subr.mxu0 0.0
    %3920 = vmatpush1.msra.mxu0 0.0
    %3921 = vmatprep.subr.mxu0 0.0
    %3922 = vmatpush1.msra.mxu0 0.0
    %3923 = vmatprep.subr.mxu0 0.0
    %3924 = vmatpush1.msra.mxu0 0.0
    %3925 = vmatprep.subr.mxu0 0.0
    %3926 = vmatpush1.msra.mxu0 0.0
    %3927 = vmatprep.subr.mxu0 0.0
    %3928 = vmatpush1.msra.mxu0 0.0
    %3929 = vmatprep.mubr.f32.mxu0 0.0
    %3930 = vmatmul.mubr.f32.gmra.mrb[0].mxu0 %v3681
    %v3931 = vpop.f32.mrb[0].mxu0
    %v3932 = vadd.f32 0.0, %v3931
    %v3933 = vpop.f32.mrb[0].mxu0
    %3934 = vdwg.mxu0
    %v3935 = vadd.f32 %v2774, %v3932
    %v3936 = vxor.u32 %v3935, 2147483648
    %v3937 = vmul.f32 %v3936, 1.442695
    %v3938 = vpow.pop %v3937
    %v3939 = vadd.f32 %v3938, 1.0
    %v3940 = vrcp.pop %v3939
    %v3941 = vmul.f32 1.0, %v3940
    %v3942 = vadd.f32 %v3932, %v2784
    %3944 = vrot.lane.b32.xlu0 %v3942, 64
    %v3945 = vpop.permute.xlu0 %3944
    %v3947 = vmul.f32 %v3941, %v3945
    %3949 = vrot.lane.b32.xlu0 %v3947, 64
    %v3950 = vpop.permute.xlu0 %3949
    %v3952 = vadd.f32 %v2774, %v3950
    %v3953 = vtanh.pop %v3952
    %v3954 = vsub.f32 1.0, %v3941
    %3956 = vrot.lane.b32.xlu0 %v3953, 96
    %v3957 = vpop.permute.xlu0 %3956
    %v3959 = vmul.f32 %v3954, %v3957
    %v3960 = vmul.f32 %v3941, %v3673
    %v3961 = vadd.f32 %v3959, %v3960
    %v3962 = vld [vmem:[%s17] sm:$0xff]
    %v3963 = vld [vmem:[%s17 + $0x8] sm:$0xff]
    %v3964 = vld [vmem:[%s17 + $0x10] sm:$0xff]
    %v3965 = vld [vmem:[%s17 + $0x18] sm:$0xff]
    %3967 = vrot.lane.b32.xlu0 %v3961, 96
    %v3968 = vpop.permute.xlu0 %3967
    %v3969 = vsel %vm170, %v3968, 0
    %3971 = vmatprep.subr.mxu0 0.0
    %3972 = vmatpush1.msra.mxu0 %v3962
    %3973 = vmatprep.subr.mxu0 0.0
    %3974 = vmatpush1.msra.mxu0 %v3963
    %3975 = vmatprep.subr.mxu0 0.0
    %3976 = vmatpush1.msra.mxu0 %v3964
    %3977 = vmatprep.subr.mxu0 0.0
    %3978 = vmatpush1.msra.mxu0 %v3965
    %3979 = vmatprep.subr.mxu0 0.0
    %3980 = vmatpush1.msra.mxu0 0.0
    %3981 = vmatprep.subr.mxu0 0.0
    %3982 = vmatpush1.msra.mxu0 0.0
    %3983 = vmatprep.subr.mxu0 0.0
    %3984 = vmatpush1.msra.mxu0 0.0
    %3985 = vmatprep.subr.mxu0 0.0
    %3986 = vmatpush1.msra.mxu0 0.0
    %3987 = vmatprep.subr.mxu0 0.0
    %3988 = vmatpush1.msra.mxu0 0.0
    %3989 = vmatprep.subr.mxu0 0.0
    %3990 = vmatpush1.msra.mxu0 0.0
    %3991 = vmatprep.subr.mxu0 0.0
    %3992 = vmatpush1.msra.mxu0 0.0
    %3993 = vmatprep.subr.mxu0 0.0
    %3994 = vmatpush1.msra.mxu0 0.0
    %3995 = vmatprep.subr.mxu0 0.0
    %3996 = vmatpush1.msra.mxu0 0.0
    %3997 = vmatprep.subr.mxu0 0.0
    %3998 = vmatpush1.msra.mxu0 0.0
    %3999 = vmatprep.subr.mxu0 0.0
    %4000 = vmatpush1.msra.mxu0 0.0
    %4001 = vmatprep.subr.mxu0 0.0
    %4002 = vmatpush1.msra.mxu0 0.0
    %4003 = vmatprep.subr.mxu0 0.0
    %4004 = vmatpush1.msra.mxu0 0.0
    %4005 = vmatprep.subr.mxu0 0.0
    %4006 = vmatpush1.msra.mxu0 0.0
    %4007 = vmatprep.subr.mxu0 0.0
    %4008 = vmatpush1.msra.mxu0 0.0
    %4009 = vmatprep.subr.mxu0 0.0
    %4010 = vmatpush1.msra.mxu0 0.0
    %4011 = vmatprep.subr.mxu0 0.0
    %4012 = vmatpush1.msra.mxu0 0.0
    %4013 = vmatprep.subr.mxu0 0.0
    %4014 = vmatpush1.msra.mxu0 0.0
    %4015 = vmatprep.subr.mxu0 0.0
    %4016 = vmatpush1.msra.mxu0 0.0
    %4017 = vmatprep.subr.mxu0 0.0
    %4018 = vmatpush1.msra.mxu0 0.0
    %4019 = vmatprep.subr.mxu0 0.0
    %4020 = vmatpush1.msra.mxu0 0.0
    %4021 = vmatprep.subr.mxu0 0.0
    %4022 = vmatpush1.msra.mxu0 0.0
    %4023 = vmatprep.subr.mxu0 0.0
    %4024 = vmatpush1.msra.mxu0 0.0
    %4025 = vmatprep.subr.mxu0 0.0
    %4026 = vmatpush1.msra.mxu0 0.0
    %4027 = vmatprep.subr.mxu0 0.0
    %4028 = vmatpush1.msra.mxu0 0.0
    %4029 = vmatprep.subr.mxu0 0.0
    %4030 = vmatpush1.msra.mxu0 0.0
    %4031 = vmatprep.subr.mxu0 0.0
    %4032 = vmatpush1.msra.mxu0 0.0
    %4033 = vmatprep.subr.mxu0 0.0
    %4034 = vmatpush1.msra.mxu0 0.0
    %4035 = vmatprep.mubr.f32.mxu0 0.0
    %4036 = vmatmul.mubr.f32.gmra.mrb[0].mxu0 %v3969
    %v4037 = vpop.f32.mrb[0].mxu0
    %v4038 = vadd.f32 %v124, %v4037
    %v4039 = vpop.f32.mrb[0].mxu0
    %4040 = vdwg.mxu0
    %v4041 = vld [vmem:[%s18] sm:$0xff]
    %v4042 = vld [vmem:[%s18 + $0x8] sm:$0xff]
    %v4043 = vld [vmem:[%s18 + $0x10] sm:$0xff]
    %v4044 = vld [vmem:[%s18 + $0x18] sm:$0xff]
    %v4045 = vsel %vm170, %v3858, 0
    %4047 = vmatprep.subr.mxu0 0.0
    %4048 = vmatpush1.msra.mxu0 %v4041
    %4049 = vmatprep.subr.mxu0 0.0
    %4050 = vmatpush1.msra.mxu0 %v4042
    %4051 = vmatprep.subr.mxu0 0.0
    %4052 = vmatpush1.msra.mxu0 %v4043
    %4053 = vmatprep.subr.mxu0 0.0
    %4054 = vmatpush1.msra.mxu0 %v4044
    %4055 = vmatprep.subr.mxu0 0.0
    %4056 = vmatpush1.msra.mxu0 0.0
    %4057 = vmatprep.subr.mxu0 0.0
    %4058 = vmatpush1.msra.mxu0 0.0
    %4059 = vmatprep.subr.mxu0 0.0
    %4060 = vmatpush1.msra.mxu0 0.0
    %4061 = vmatprep.subr.mxu0 0.0
    %4062 = vmatpush1.msra.mxu0 0.0
    %4063 = vmatprep.subr.mxu0 0.0
    %4064 = vmatpush1.msra.mxu0 0.0
    %4065 = vmatprep.subr.mxu0 0.0
    %4066 = vmatpush1.msra.mxu0 0.0
    %4067 = vmatprep.subr.mxu0 0.0
    %4068 = vmatpush1.msra.mxu0 0.0
    %4069 = vmatprep.subr.mxu0 0.0
    %4070 = vmatpush1.msra.mxu0 0.0
    %4071 = vmatprep.subr.mxu0 0.0
    %4072 = vmatpush1.msra.mxu0 0.0
    %4073 = vmatprep.subr.mxu0 0.0
    %4074 = vmatpush1.msra.mxu0 0.0
    %4075 = vmatprep.subr.mxu0 0.0
    %4076 = vmatpush1.msra.mxu0 0.0
    %4077 = vmatprep.subr.mxu0 0.0
    %4078 = vmatpush1.msra.mxu0 0.0
    %4079 = vmatprep.subr.mxu0 0.0
    %4080 = vmatpush1.msra.mxu0 0.0
    %4081 = vmatprep.subr.mxu0 0.0
    %4082 = vmatpush1.msra.mxu0 0.0
    %4083 = vmatprep.subr.mxu0 0.0
    %4084 = vmatpush1.msra.mxu0 0.0
    %4085 = vmatprep.subr.mxu0 0.0
    %4086 = vmatpush1.msra.mxu0 0.0
    %4087 = vmatprep.subr.mxu0 0.0
    %4088 = vmatpush1.msra.mxu0 0.0
    %4089 = vmatprep.subr.mxu0 0.0
    %4090 = vmatpush1.msra.mxu0 0.0
    %4091 = vmatprep.subr.mxu0 0.0
    %4092 = vmatpush1.msra.mxu0 0.0
    %4093 = vmatprep.subr.mxu0 0.0
    %4094 = vmatpush1.msra.mxu0 0.0
    %4095 = vmatprep.subr.mxu0 0.0
    %4096 = vmatpush1.msra.mxu0 0.0
    %4097 = vmatprep.subr.mxu0 0.0
    %4098 = vmatpush1.msra.mxu0 0.0
    %4099 = vmatprep.subr.mxu0 0.0
    %4100 = vmatpush1.msra.mxu0 0.0
    %4101 = vmatprep.subr.mxu0 0.0
    %4102 = vmatpush1.msra.mxu0 0.0
    %4103 = vmatprep.subr.mxu0 0.0
    %4104 = vmatpush1.msra.mxu0 0.0
    %4105 = vmatprep.subr.mxu0 0.0
    %4106 = vmatpush1.msra.mxu0 0.0
    %4107 = vmatprep.subr.mxu0 0.0
    %4108 = vmatpush1.msra.mxu0 0.0
    %4109 = vmatprep.subr.mxu0 0.0
    %4110 = vmatpush1.msra.mxu0 0.0
    %4111 = vmatprep.mubr.f32.mxu0 0.0
    %4112 = vmatmul.mubr.f32.gmra.mrb[0].mxu0 %v4045
    %v4113 = vpop.f32.mrb[0].mxu0
    %v4114 = vadd.f32 0.0, %v4113
    %v4115 = vpop.f32.mrb[0].mxu0
    %4116 = vdwg.mxu0
    %v4117 = vadd.f32 %v4038, %v4114
    %v4118 = vxor.u32 %v4117, 2147483648
    %v4119 = vmul.f32 %v4118, 1.442695
    %v4120 = vpow.pop %v4119
    %v4121 = vadd.f32 %v4120, 1.0
    %v4122 = vrcp.pop %v4121
    %v4123 = vmul.f32 1.0, %v4122
    %v4124 = vadd.f32 %v4114, %v2970
    %4126 = vrot.lane.b32.xlu0 %v4124, 64
    %v4127 = vpop.permute.xlu0 %4126
    %v4129 = vmul.f32 %v4123, %v4127
    %4131 = vrot.lane.b32.xlu0 %v4129, 64
    %v4132 = vpop.permute.xlu0 %4131
    %v4134 = vadd.f32 %v4038, %v4132
    %v4135 = vtanh.pop %v4134
    %v4136 = vsub.f32 1.0, %v4123
    %4138 = vrot.lane.b32.xlu0 %v4135, 96
    %v4139 = vpop.permute.xlu0 %4138
    %v4141 = vmul.f32 %v4136, %v4139
    %v4142 = vmul.f32 %v4123, %v3855
    %v4143 = vadd.f32 %v4141, %v4142
    %4145 = vrot.lane.b32.xlu0 %v4143, 96
    %v4146 = vpop.permute.xlu0 %4145
    %4148 = vst.msk [vmem:[#allocation2 + $0x20] sm:$0xff] %vm170, %v4146
    %v4149 = vld [vmem:[%s14] sm:$0xff]
    %v4150 = vld [vmem:[%s14 + $0x8] sm:$0xff]
    %v4151 = vld [vmem:[%s14 + $0x10] sm:$0xff]
    %v4152 = vld [vmem:[%s14 + $0x18] sm:$0xff]
    %4153 = vmatprep.subr.mxu0 0.0
    %4154 = vmatpush1.msra.mxu0 %v4149
    %4155 = vmatprep.subr.mxu0 0.0
    %4156 = vmatpush1.msra.mxu0 %v4150
    %4157 = vmatprep.subr.mxu0 0.0
    %4158 = vmatpush1.msra.mxu0 %v4151
    %4159 = vmatprep.subr.mxu0 0.0
    %4160 = vmatpush1.msra.mxu0 %v4152
    %4161 = vmatprep.subr.mxu0 0.0
    %4162 = vmatpush1.msra.mxu0 0.0
    %4163 = vmatprep.subr.mxu0 0.0
    %4164 = vmatpush1.msra.mxu0 0.0
    %4165 = vmatprep.subr.mxu0 0.0
    %4166 = vmatpush1.msra.mxu0 0.0
    %4167 = vmatprep.subr.mxu0 0.0
    %4168 = vmatpush1.msra.mxu0 0.0
    %4169 = vmatprep.subr.mxu0 0.0
    %4170 = vmatpush1.msra.mxu0 0.0
    %4171 = vmatprep.subr.mxu0 0.0
    %4172 = vmatpush1.msra.mxu0 0.0
    %4173 = vmatprep.subr.mxu0 0.0
    %4174 = vmatpush1.msra.mxu0 0.0
    %4175 = vmatprep.subr.mxu0 0.0
    %4176 = vmatpush1.msra.mxu0 0.0
    %4177 = vmatprep.subr.mxu0 0.0
    %4178 = vmatpush1.msra.mxu0 0.0
    %4179 = vmatprep.subr.mxu0 0.0
    %4180 = vmatpush1.msra.mxu0 0.0
    %4181 = vmatprep.subr.mxu0 0.0
    %4182 = vmatpush1.msra.mxu0 0.0
    %4183 = vmatprep.subr.mxu0 0.0
    %4184 = vmatpush1.msra.mxu0 0.0
    %4185 = vmatprep.subr.mxu0 0.0
    %4186 = vmatpush1.msra.mxu0 0.0
    %4187 = vmatprep.subr.mxu0 0.0
    %4188 = vmatpush1.msra.mxu0 0.0
    %4189 = vmatprep.subr.mxu0 0.0
    %4190 = vmatpush1.msra.mxu0 0.0
    %4191 = vmatprep.subr.mxu0 0.0
    %4192 = vmatpush1.msra.mxu0 0.0
    %4193 = vmatprep.subr.mxu0 0.0
    %4194 = vmatpush1.msra.mxu0 0.0
    %4195 = vmatprep.subr.mxu0 0.0
    %4196 = vmatpush1.msra.mxu0 0.0
    %4197 = vmatprep.subr.mxu0 0.0
    %4198 = vmatpush1.msra.mxu0 0.0
    %4199 = vmatprep.subr.mxu0 0.0
    %4200 = vmatpush1.msra.mxu0 0.0
    %4201 = vmatprep.subr.mxu0 0.0
    %4202 = vmatpush1.msra.mxu0 0.0
    %4203 = vmatprep.subr.mxu0 0.0
    %4204 = vmatpush1.msra.mxu0 0.0
    %4205 = vmatprep.subr.mxu0 0.0
    %4206 = vmatpush1.msra.mxu0 0.0
    %4207 = vmatprep.subr.mxu0 0.0
    %4208 = vmatpush1.msra.mxu0 0.0
    %4209 = vmatprep.subr.mxu0 0.0
    %4210 = vmatpush1.msra.mxu0 0.0
    %4211 = vmatprep.subr.mxu0 0.0
    %4212 = vmatpush1.msra.mxu0 0.0
    %4213 = vmatprep.subr.mxu0 0.0
    %4214 = vmatpush1.msra.mxu0 0.0
    %4215 = vmatprep.subr.mxu0 0.0
    %4216 = vmatpush1.msra.mxu0 0.0
    %4217 = vmatprep.mubr.f32.mxu0 0.0
    %4218 = vmatmul.mubr.f32.gmra.mrb[0].mxu0 %v3969
    %v4219 = vpop.f32.mrb[0].mxu0
    %v4220 = vadd.f32 0.0, %v4219
    %v4221 = vpop.f32.mrb[0].mxu0
    %4222 = vdwg.mxu0
    %v4223 = vadd.f32 %v2774, %v4220
    %v4224 = vxor.u32 %v4223, 2147483648
    %v4225 = vmul.f32 %v4224, 1.442695
    %v4226 = vpow.pop %v4225
    %v4227 = vadd.f32 %v4226, 1.0
    %v4228 = vrcp.pop %v4227
    %v4229 = vmul.f32 1.0, %v4228
    %v4230 = vadd.f32 %v4220, %v2784
    %4232 = vrot.lane.b32.xlu0 %v4230, 64
    %v4233 = vpop.permute.xlu0 %4232
    %v4235 = vmul.f32 %v4229, %v4233
    %4237 = vrot.lane.b32.xlu0 %v4235, 64
    %v4238 = vpop.permute.xlu0 %4237
    %v4240 = vadd.f32 %v2774, %v4238
    %v4241 = vtanh.pop %v4240
    %v4242 = vsub.f32 1.0, %v4229
    %4244 = vrot.lane.b32.xlu0 %v4241, 96
    %v4245 = vpop.permute.xlu0 %4244
    %v4247 = vmul.f32 %v4242, %v4245
    %v4248 = vmul.f32 %v4229, %v3961
    %v4249 = vadd.f32 %v4247, %v4248
    %v4250 = vld [vmem:[%s17] sm:$0xff]
    %v4251 = vld [vmem:[%s17 + $0x8] sm:$0xff]
    %v4252 = vld [vmem:[%s17 + $0x10] sm:$0xff]
    %v4253 = vld [vmem:[%s17 + $0x18] sm:$0xff]
    %4255 = vrot.lane.b32.xlu0 %v4249, 96
    %v4256 = vpop.permute.xlu0 %4255
    %v4257 = vsel %vm170, %v4256, 0
    %4259 = vmatprep.subr.mxu0 0.0
    %4260 = vmatpush1.msra.mxu0 %v4250
    %4261 = vmatprep.subr.mxu0 0.0
    %4262 = vmatpush1.msra.mxu0 %v4251
    %4263 = vmatprep.subr.mxu0 0.0
    %4264 = vmatpush1.msra.mxu0 %v4252
    %4265 = vmatprep.subr.mxu0 0.0
    %4266 = vmatpush1.msra.mxu0 %v4253
    %4267 = vmatprep.subr.mxu0 0.0
    %4268 = vmatpush1.msra.mxu0 0.0
    %4269 = vmatprep.subr.mxu0 0.0
    %4270 = vmatpush1.msra.mxu0 0.0
    %4271 = vmatprep.subr.mxu0 0.0
    %4272 = vmatpush1.msra.mxu0 0.0
    %4273 = vmatprep.subr.mxu0 0.0
    %4274 = vmatpush1.msra.mxu0 0.0
    %4275 = vmatprep.subr.mxu0 0.0
    %4276 = vmatpush1.msra.mxu0 0.0
    %4277 = vmatprep.subr.mxu0 0.0
    %4278 = vmatpush1.msra.mxu0 0.0
    %4279 = vmatprep.subr.mxu0 0.0
    %4280 = vmatpush1.msra.mxu0 0.0
    %4281 = vmatprep.subr.mxu0 0.0
    %4282 = vmatpush1.msra.mxu0 0.0
    %4283 = vmatprep.subr.mxu0 0.0
    %4284 = vmatpush1.msra.mxu0 0.0
    %4285 = vmatprep.subr.mxu0 0.0
    %4286 = vmatpush1.msra.mxu0 0.0
    %4287 = vmatprep.subr.mxu0 0.0
    %4288 = vmatpush1.msra.mxu0 0.0
    %4289 = vmatprep.subr.mxu0 0.0
    %4290 = vmatpush1.msra.mxu0 0.0
    %4291 = vmatprep.subr.mxu0 0.0
    %4292 = vmatpush1.msra.mxu0 0.0
    %4293 = vmatprep.subr.mxu0 0.0
    %4294 = vmatpush1.msra.mxu0 0.0
    %4295 = vmatprep.subr.mxu0 0.0
    %4296 = vmatpush1.msra.mxu0 0.0
    %4297 = vmatprep.subr.mxu0 0.0
    %4298 = vmatpush1.msra.mxu0 0.0
    %4299 = vmatprep.subr.mxu0 0.0
    %4300 = vmatpush1.msra.mxu0 0.0
    %4301 = vmatprep.subr.mxu0 0.0
    %4302 = vmatpush1.msra.mxu0 0.0
    %4303 = vmatprep.subr.mxu0 0.0
    %4304 = vmatpush1.msra.mxu0 0.0
    %4305 = vmatprep.subr.mxu0 0.0
    %4306 = vmatpush1.msra.mxu0 0.0
    %4307 = vmatprep.subr.mxu0 0.0
    %4308 = vmatpush1.msra.mxu0 0.0
    %4309 = vmatprep.subr.mxu0 0.0
    %4310 = vmatpush1.msra.mxu0 0.0
    %4311 = vmatprep.subr.mxu0 0.0
    %4312 = vmatpush1.msra.mxu0 0.0
    %4313 = vmatprep.subr.mxu0 0.0
    %4314 = vmatpush1.msra.mxu0 0.0
    %4315 = vmatprep.subr.mxu0 0.0
    %4316 = vmatpush1.msra.mxu0 0.0
    %4317 = vmatprep.subr.mxu0 0.0
    %4318 = vmatpush1.msra.mxu0 0.0
    %4319 = vmatprep.subr.mxu0 0.0
    %4320 = vmatpush1.msra.mxu0 0.0
    %4321 = vmatprep.subr.mxu0 0.0
    %4322 = vmatpush1.msra.mxu0 0.0
    %4323 = vmatprep.mubr.f32.mxu0 0.0
    %4324 = vmatmul.mubr.f32.gmra.mrb[0].mxu0 %v4257
    %v4325 = vpop.f32.mrb[0].mxu0
    %v4326 = vadd.f32 %v124, %v4325
    %v4327 = vpop.f32.mrb[0].mxu0
    %4328 = vdwg.mxu0
    %v4329 = vld [vmem:[%s18] sm:$0xff]
    %v4330 = vld [vmem:[%s18 + $0x8] sm:$0xff]
    %v4331 = vld [vmem:[%s18 + $0x10] sm:$0xff]
    %v4332 = vld [vmem:[%s18 + $0x18] sm:$0xff]
    %v4333 = vsel %vm170, %v4146, 0
    %4335 = vmatprep.subr.mxu0 0.0
    %4336 = vmatpush1.msra.mxu0 %v4329
    %4337 = vmatprep.subr.mxu0 0.0
    %4338 = vmatpush1.msra.mxu0 %v4330
    %4339 = vmatprep.subr.mxu0 0.0
    %4340 = vmatpush1.msra.mxu0 %v4331
    %4341 = vmatprep.subr.mxu0 0.0
    %4342 = vmatpush1.msra.mxu0 %v4332
    %4343 = vmatprep.subr.mxu0 0.0
    %4344 = vmatpush1.msra.mxu0 0.0
    %4345 = vmatprep.subr.mxu0 0.0
    %4346 = vmatpush1.msra.mxu0 0.0
    %4347 = vmatprep.subr.mxu0 0.0
    %4348 = vmatpush1.msra.mxu0 0.0
    %4349 = vmatprep.subr.mxu0 0.0
    %4350 = vmatpush1.msra.mxu0 0.0
    %4351 = vmatprep.subr.mxu0 0.0
    %4352 = vmatpush1.msra.mxu0 0.0
    %4353 = vmatprep.subr.mxu0 0.0
    %4354 = vmatpush1.msra.mxu0 0.0
    %4355 = vmatprep.subr.mxu0 0.0
    %4356 = vmatpush1.msra.mxu0 0.0
    %4357 = vmatprep.subr.mxu0 0.0
    %4358 = vmatpush1.msra.mxu0 0.0
    %4359 = vmatprep.subr.mxu0 0.0
    %4360 = vmatpush1.msra.mxu0 0.0
    %4361 = vmatprep.subr.mxu0 0.0
    %4362 = vmatpush1.msra.mxu0 0.0
    %4363 = vmatprep.subr.mxu0 0.0
    %4364 = vmatpush1.msra.mxu0 0.0
    %4365 = vmatprep.subr.mxu0 0.0
    %4366 = vmatpush1.msra.mxu0 0.0
    %4367 = vmatprep.subr.mxu0 0.0
    %4368 = vmatpush1.msra.mxu0 0.0
    %4369 = vmatprep.subr.mxu0 0.0
    %4370 = vmatpush1.msra.mxu0 0.0
    %4371 = vmatprep.subr.mxu0 0.0
    %4372 = vmatpush1.msra.mxu0 0.0
    %4373 = vmatprep.subr.mxu0 0.0
    %4374 = vmatpush1.msra.mxu0 0.0
    %4375 = vmatprep.subr.mxu0 0.0
    %4376 = vmatpush1.msra.mxu0 0.0
    %4377 = vmatprep.subr.mxu0 0.0
    %4378 = vmatpush1.msra.mxu0 0.0
    %4379 = vmatprep.subr.mxu0 0.0
    %4380 = vmatpush1.msra.mxu0 0.0
    %4381 = vmatprep.subr.mxu0 0.0
    %4382 = vmatpush1.msra.mxu0 0.0
    %4383 = vmatprep.subr.mxu0 0.0
    %4384 = vmatpush1.msra.mxu0 0.0
    %4385 = vmatprep.subr.mxu0 0.0
    %4386 = vmatpush1.msra.mxu0 0.0
    %4387 = vmatprep.subr.mxu0 0.0
    %4388 = vmatpush1.msra.mxu0 0.0
    %4389 = vmatprep.subr.mxu0 0.0
    %4390 = vmatpush1.msra.mxu0 0.0
    %4391 = vmatprep.subr.mxu0 0.0
    %4392 = vmatpush1.msra.mxu0 0.0
    %4393 = vmatprep.subr.mxu0 0.0
    %4394 = vmatpush1.msra.mxu0 0.0
    %4395 = vmatprep.subr.mxu0 0.0
    %4396 = vmatpush1.msra.mxu0 0.0
    %4397 = vmatprep.subr.mxu0 0.0
    %4398 = vmatpush1.msra.mxu0 0.0
    %4399 = vmatprep.mubr.f32.mxu0 0.0
    %4400 = vmatmul.mubr.f32.gmra.mrb[0].mxu0 %v4333
    %v4401 = vpop.f32.mrb[0].mxu0
    %v4402 = vadd.f32 0.0, %v4401
    %v4403 = vpop.f32.mrb[0].mxu0
    %4404 = vdwg.mxu0
    %v4405 = vadd.f32 %v4326, %v4402
    %v4406 = vxor.u32 %v4405, 2147483648
    %v4407 = vmul.f32 %v4406, 1.442695
    %v4408 = vpow.pop %v4407
    %v4409 = vadd.f32 %v4408, 1.0
    %v4410 = vrcp.pop %v4409
    %v4411 = vmul.f32 1.0, %v4410
    %v4412 = vadd.f32 %v4402, %v2970
    %4414 = vrot.lane.b32.xlu0 %v4412, 64
    %v4415 = vpop.permute.xlu0 %4414
    %v4417 = vmul.f32 %v4411, %v4415
    %4419 = vrot.lane.b32.xlu0 %v4417, 64
    %v4420 = vpop.permute.xlu0 %4419
    %v4422 = vadd.f32 %v4326, %v4420
    %v4423 = vtanh.pop %v4422
    %v4424 = vsub.f32 1.0, %v4411
    %4426 = vrot.lane.b32.xlu0 %v4423, 96
    %v4427 = vpop.permute.xlu0 %4426
    %v4429 = vmul.f32 %v4424, %v4427
    %v4430 = vmul.f32 %v4411, %v4143
    %v4431 = vadd.f32 %v4429, %v4430
    %4433 = vrot.lane.b32.xlu0 %v4431, 96
    %v4434 = vpop.permute.xlu0 %4433
    %4436 = vst.msk [vmem:[#allocation2 + $0x28] sm:$0xff] %vm170, %v4434
    %v4437 = vld [vmem:[%s14] sm:$0xff]
    %v4438 = vld [vmem:[%s14 + $0x8] sm:$0xff]
    %v4439 = vld [vmem:[%s14 + $0x10] sm:$0xff]
    %v4440 = vld [vmem:[%s14 + $0x18] sm:$0xff]
    %4441 = vmatprep.subr.mxu0 0.0
    %4442 = vmatpush1.msra.mxu0 %v4437
    %4443 = vmatprep.subr.mxu0 0.0
    %4444 = vmatpush1.msra.mxu0 %v4438
    %4445 = vmatprep.subr.mxu0 0.0
    %4446 = vmatpush1.msra.mxu0 %v4439
    %4447 = vmatprep.subr.mxu0 0.0
    %4448 = vmatpush1.msra.mxu0 %v4440
    %4449 = vmatprep.subr.mxu0 0.0
    %4450 = vmatpush1.msra.mxu0 0.0
    %4451 = vmatprep.subr.mxu0 0.0
    %4452 = vmatpush1.msra.mxu0 0.0
    %4453 = vmatprep.subr.mxu0 0.0
    %4454 = vmatpush1.msra.mxu0 0.0
    %4455 = vmatprep.subr.mxu0 0.0
    %4456 = vmatpush1.msra.mxu0 0.0
    %4457 = vmatprep.subr.mxu0 0.0
    %4458 = vmatpush1.msra.mxu0 0.0
    %4459 = vmatprep.subr.mxu0 0.0
    %4460 = vmatpush1.msra.mxu0 0.0
    %4461 = vmatprep.subr.mxu0 0.0
    %4462 = vmatpush1.msra.mxu0 0.0
    %4463 = vmatprep.subr.mxu0 0.0
    %4464 = vmatpush1.msra.mxu0 0.0
    %4465 = vmatprep.subr.mxu0 0.0
    %4466 = vmatpush1.msra.mxu0 0.0
    %4467 = vmatprep.subr.mxu0 0.0
    %4468 = vmatpush1.msra.mxu0 0.0
    %4469 = vmatprep.subr.mxu0 0.0
    %4470 = vmatpush1.msra.mxu0 0.0
    %4471 = vmatprep.subr.mxu0 0.0
    %4472 = vmatpush1.msra.mxu0 0.0
    %4473 = vmatprep.subr.mxu0 0.0
    %4474 = vmatpush1.msra.mxu0 0.0
    %4475 = vmatprep.subr.mxu0 0.0
    %4476 = vmatpush1.msra.mxu0 0.0
    %4477 = vmatprep.subr.mxu0 0.0
    %4478 = vmatpush1.msra.mxu0 0.0
    %4479 = vmatprep.subr.mxu0 0.0
    %4480 = vmatpush1.msra.mxu0 0.0
    %4481 = vmatprep.subr.mxu0 0.0
    %4482 = vmatpush1.msra.mxu0 0.0
    %4483 = vmatprep.subr.mxu0 0.0
    %4484 = vmatpush1.msra.mxu0 0.0
    %4485 = vmatprep.subr.mxu0 0.0
    %4486 = vmatpush1.msra.mxu0 0.0
    %4487 = vmatprep.subr.mxu0 0.0
    %4488 = vmatpush1.msra.mxu0 0.0
    %4489 = vmatprep.subr.mxu0 0.0
    %4490 = vmatpush1.msra.mxu0 0.0
    %4491 = vmatprep.subr.mxu0 0.0
    %4492 = vmatpush1.msra.mxu0 0.0
    %4493 = vmatprep.subr.mxu0 0.0
    %4494 = vmatpush1.msra.mxu0 0.0
    %4495 = vmatprep.subr.mxu0 0.0
    %4496 = vmatpush1.msra.mxu0 0.0
    %4497 = vmatprep.subr.mxu0 0.0
    %4498 = vmatpush1.msra.mxu0 0.0
    %4499 = vmatprep.subr.mxu0 0.0
    %4500 = vmatpush1.msra.mxu0 0.0
    %4501 = vmatprep.subr.mxu0 0.0
    %4502 = vmatpush1.msra.mxu0 0.0
    %4503 = vmatprep.subr.mxu0 0.0
    %4504 = vmatpush1.msra.mxu0 0.0
    %4505 = vmatprep.mubr.f32.mxu0 0.0
    %4506 = vmatmul.mubr.f32.gmra.mrb[0].mxu0 %v4257
    %v4507 = vpop.f32.mrb[0].mxu0
    %v4508 = vadd.f32 0.0, %v4507
    %v4509 = vpop.f32.mrb[0].mxu0
    %4510 = vdwg.mxu0
    %v4511 = vadd.f32 %v2774, %v4508
    %v4512 = vxor.u32 %v4511, 2147483648
    %v4513 = vmul.f32 %v4512, 1.442695
    %v4514 = vpow.pop %v4513
    %v4515 = vadd.f32 %v4514, 1.0
    %v4516 = vrcp.pop %v4515
    %v4517 = vmul.f32 1.0, %v4516
    %v4518 = vadd.f32 %v4508, %v2784
    %4520 = vrot.lane.b32.xlu0 %v4518, 64
    %v4521 = vpop.permute.xlu0 %4520
    %v4523 = vmul.f32 %v4517, %v4521
    %4525 = vrot.lane.b32.xlu0 %v4523, 64
    %v4526 = vpop.permute.xlu0 %4525
    %v4528 = vadd.f32 %v2774, %v4526
    %v4529 = vtanh.pop %v4528
    %v4530 = vsub.f32 1.0, %v4517
    %4532 = vrot.lane.b32.xlu0 %v4529, 96
    %v4533 = vpop.permute.xlu0 %4532
    %v4535 = vmul.f32 %v4530, %v4533
    %v4536 = vmul.f32 %v4517, %v4249
    %v4537 = vadd.f32 %v4535, %v4536
    %v4538 = vld [vmem:[%s17] sm:$0xff]
    %v4539 = vld [vmem:[%s17 + $0x8] sm:$0xff]
    %v4540 = vld [vmem:[%s17 + $0x10] sm:$0xff]
    %v4541 = vld [vmem:[%s17 + $0x18] sm:$0xff]
    %4543 = vrot.lane.b32.xlu0 %v4537, 96
    %v4544 = vpop.permute.xlu0 %4543
    %v4545 = vsel %vm170, %v4544, 0
    %4547 = vmatprep.subr.mxu0 0.0
    %4548 = vmatpush1.msra.mxu0 %v4538
    %4549 = vmatprep.subr.mxu0 0.0
    %4550 = vmatpush1.msra.mxu0 %v4539
    %4551 = vmatprep.subr.mxu0 0.0
    %4552 = vmatpush1.msra.mxu0 %v4540
    %4553 = vmatprep.subr.mxu0 0.0
    %4554 = vmatpush1.msra.mxu0 %v4541
    %4555 = vmatprep.subr.mxu0 0.0
    %4556 = vmatpush1.msra.mxu0 0.0
    %4557 = vmatprep.subr.mxu0 0.0
    %4558 = vmatpush1.msra.mxu0 0.0
    %4559 = vmatprep.subr.mxu0 0.0
    %4560 = vmatpush1.msra.mxu0 0.0
    %4561 = vmatprep.subr.mxu0 0.0
    %4562 = vmatpush1.msra.mxu0 0.0
    %4563 = vmatprep.subr.mxu0 0.0
    %4564 = vmatpush1.msra.mxu0 0.0
    %4565 = vmatprep.subr.mxu0 0.0
    %4566 = vmatpush1.msra.mxu0 0.0
    %4567 = vmatprep.subr.mxu0 0.0
    %4568 = vmatpush1.msra.mxu0 0.0
    %4569 = vmatprep.subr.mxu0 0.0
    %4570 = vmatpush1.msra.mxu0 0.0
    %4571 = vmatprep.subr.mxu0 0.0
    %4572 = vmatpush1.msra.mxu0 0.0
    %4573 = vmatprep.subr.mxu0 0.0
    %4574 = vmatpush1.msra.mxu0 0.0
    %4575 = vmatprep.subr.mxu0 0.0
    %4576 = vmatpush1.msra.mxu0 0.0
    %4577 = vmatprep.subr.mxu0 0.0
    %4578 = vmatpush1.msra.mxu0 0.0
    %4579 = vmatprep.subr.mxu0 0.0
    %4580 = vmatpush1.msra.mxu0 0.0
    %4581 = vmatprep.subr.mxu0 0.0
    %4582 = vmatpush1.msra.mxu0 0.0
    %4583 = vmatprep.subr.mxu0 0.0
    %4584 = vmatpush1.msra.mxu0 0.0
    %4585 = vmatprep.subr.mxu0 0.0
    %4586 = vmatpush1.msra.mxu0 0.0
    %4587 = vmatprep.subr.mxu0 0.0
    %4588 = vmatpush1.msra.mxu0 0.0
    %4589 = vmatprep.subr.mxu0 0.0
    %4590 = vmatpush1.msra.mxu0 0.0
    %4591 = vmatprep.subr.mxu0 0.0
    %4592 = vmatpush1.msra.mxu0 0.0
    %4593 = vmatprep.subr.mxu0 0.0
    %4594 = vmatpush1.msra.mxu0 0.0
    %4595 = vmatprep.subr.mxu0 0.0
    %4596 = vmatpush1.msra.mxu0 0.0
    %4597 = vmatprep.subr.mxu0 0.0
    %4598 = vmatpush1.msra.mxu0 0.0
    %4599 = vmatprep.subr.mxu0 0.0
    %4600 = vmatpush1.msra.mxu0 0.0
    %4601 = vmatprep.subr.mxu0 0.0
    %4602 = vmatpush1.msra.mxu0 0.0
    %4603 = vmatprep.subr.mxu0 0.0
    %4604 = vmatpush1.msra.mxu0 0.0
    %4605 = vmatprep.subr.mxu0 0.0
    %4606 = vmatpush1.msra.mxu0 0.0
    %4607 = vmatprep.subr.mxu0 0.0
    %4608 = vmatpush1.msra.mxu0 0.0
    %4609 = vmatprep.subr.mxu0 0.0
    %4610 = vmatpush1.msra.mxu0 0.0
    %4611 = vmatprep.mubr.f32.mxu0 0.0
    %4612 = vmatmul.mubr.f32.gmra.mrb[0].mxu0 %v4545
    %v4613 = vpop.f32.mrb[0].mxu0
    %v4614 = vadd.f32 %v124, %v4613
    %v4615 = vpop.f32.mrb[0].mxu0
    %4616 = vdwg.mxu0
    %v4617 = vld [vmem:[%s18] sm:$0xff]
    %v4618 = vld [vmem:[%s18 + $0x8] sm:$0xff]
    %v4619 = vld [vmem:[%s18 + $0x10] sm:$0xff]
    %v4620 = vld [vmem:[%s18 + $0x18] sm:$0xff]
    %v4621 = vsel %vm170, %v4434, 0
    %4623 = vmatprep.subr.mxu0 0.0
    %4624 = vmatpush1.msra.mxu0 %v4617
    %4625 = vmatprep.subr.mxu0 0.0
    %4626 = vmatpush1.msra.mxu0 %v4618
    %4627 = vmatprep.subr.mxu0 0.0
    %4628 = vmatpush1.msra.mxu0 %v4619
    %4629 = vmatprep.subr.mxu0 0.0
    %4630 = vmatpush1.msra.mxu0 %v4620
    %4631 = vmatprep.subr.mxu0 0.0
    %4632 = vmatpush1.msra.mxu0 0.0
    %4633 = vmatprep.subr.mxu0 0.0
    %4634 = vmatpush1.msra.mxu0 0.0
    %4635 = vmatprep.subr.mxu0 0.0
    %4636 = vmatpush1.msra.mxu0 0.0
    %4637 = vmatprep.subr.mxu0 0.0
    %4638 = vmatpush1.msra.mxu0 0.0
    %4639 = vmatprep.subr.mxu0 0.0
    %4640 = vmatpush1.msra.mxu0 0.0
    %4641 = vmatprep.subr.mxu0 0.0
    %4642 = vmatpush1.msra.mxu0 0.0
    %4643 = vmatprep.subr.mxu0 0.0
    %4644 = vmatpush1.msra.mxu0 0.0
    %4645 = vmatprep.subr.mxu0 0.0
    %4646 = vmatpush1.msra.mxu0 0.0
    %4647 = vmatprep.subr.mxu0 0.0
    %4648 = vmatpush1.msra.mxu0 0.0
    %4649 = vmatprep.subr.mxu0 0.0
    %4650 = vmatpush1.msra.mxu0 0.0
    %4651 = vmatprep.subr.mxu0 0.0
    %4652 = vmatpush1.msra.mxu0 0.0
    %4653 = vmatprep.subr.mxu0 0.0
    %4654 = vmatpush1.msra.mxu0 0.0
    %4655 = vmatprep.subr.mxu0 0.0
    %4656 = vmatpush1.msra.mxu0 0.0
    %4657 = vmatprep.subr.mxu0 0.0
    %4658 = vmatpush1.msra.mxu0 0.0
    %4659 = vmatprep.subr.mxu0 0.0
    %4660 = vmatpush1.msra.mxu0 0.0
    %4661 = vmatprep.subr.mxu0 0.0
    %4662 = vmatpush1.msra.mxu0 0.0
    %4663 = vmatprep.subr.mxu0 0.0
    %4664 = vmatpush1.msra.mxu0 0.0
    %4665 = vmatprep.subr.mxu0 0.0
    %4666 = vmatpush1.msra.mxu0 0.0
    %4667 = vmatprep.subr.mxu0 0.0
    %4668 = vmatpush1.msra.mxu0 0.0
    %4669 = vmatprep.subr.mxu0 0.0
    %4670 = vmatpush1.msra.mxu0 0.0
    %4671 = vmatprep.subr.mxu0 0.0
    %4672 = vmatpush1.msra.mxu0 0.0
    %4673 = vmatprep.subr.mxu0 0.0
    %4674 = vmatpush1.msra.mxu0 0.0
    %4675 = vmatprep.subr.mxu0 0.0
    %4676 = vmatpush1.msra.mxu0 0.0
    %4677 = vmatprep.subr.mxu0 0.0
    %4678 = vmatpush1.msra.mxu0 0.0
    %4679 = vmatprep.subr.mxu0 0.0
    %4680 = vmatpush1.msra.mxu0 0.0
    %4681 = vmatprep.subr.mxu0 0.0
    %4682 = vmatpush1.msra.mxu0 0.0
    %4683 = vmatprep.subr.mxu0 0.0
    %4684 = vmatpush1.msra.mxu0 0.0
    %4685 = vmatprep.subr.mxu0 0.0
    %4686 = vmatpush1.msra.mxu0 0.0
    %4687 = vmatprep.mubr.f32.mxu0 0.0
    %4688 = vmatmul.mubr.f32.gmra.mrb[0].mxu0 %v4621
    %v4689 = vpop.f32.mrb[0].mxu0
    %v4690 = vadd.f32 0.0, %v4689
    %v4691 = vpop.f32.mrb[0].mxu0
    %4692 = vdwg.mxu0
    %v4693 = vadd.f32 %v4614, %v4690
    %v4694 = vxor.u32 %v4693, 2147483648
    %v4695 = vmul.f32 %v4694, 1.442695
    %v4696 = vpow.pop %v4695
    %v4697 = vadd.f32 %v4696, 1.0
    %v4698 = vrcp.pop %v4697
    %v4699 = vmul.f32 1.0, %v4698
    %v4700 = vadd.f32 %v4690, %v2970
    %4702 = vrot.lane.b32.xlu0 %v4700, 64
    %v4703 = vpop.permute.xlu0 %4702
    %v4705 = vmul.f32 %v4699, %v4703
    %4707 = vrot.lane.b32.xlu0 %v4705, 64
    %v4708 = vpop.permute.xlu0 %4707
    %v4710 = vadd.f32 %v4614, %v4708
    %v4711 = vtanh.pop %v4710
    %v4712 = vsub.f32 1.0, %v4699
    %4714 = vrot.lane.b32.xlu0 %v4711, 96
    %v4715 = vpop.permute.xlu0 %4714
    %v4717 = vmul.f32 %v4712, %v4715
    %v4718 = vmul.f32 %v4699, %v4431
    %v4719 = vadd.f32 %v4717, %v4718
    %4721 = vrot.lane.b32.xlu0 %v4719, 96
    %v4722 = vpop.permute.xlu0 %4721
    %4724 = vst.msk [vmem:[#allocation2 + $0x30] sm:$0xff] %vm170, %v4722
    %v4725 = vld [vmem:[%s14] sm:$0xff]
    %v4726 = vld [vmem:[%s14 + $0x8] sm:$0xff]
    %v4727 = vld [vmem:[%s14 + $0x10] sm:$0xff]
    %v4728 = vld [vmem:[%s14 + $0x18] sm:$0xff]
    %4729 = vmatprep.subr.mxu0 0.0
    %4730 = vmatpush1.msra.mxu0 %v4725
    %4731 = vmatprep.subr.mxu0 0.0
    %4732 = vmatpush1.msra.mxu0 %v4726
    %4733 = vmatprep.subr.mxu0 0.0
    %4734 = vmatpush1.msra.mxu0 %v4727
    %4735 = vmatprep.subr.mxu0 0.0
    %4736 = vmatpush1.msra.mxu0 %v4728
    %4737 = vmatprep.subr.mxu0 0.0
    %4738 = vmatpush1.msra.mxu0 0.0
    %4739 = vmatprep.subr.mxu0 0.0
    %4740 = vmatpush1.msra.mxu0 0.0
    %4741 = vmatprep.subr.mxu0 0.0
    %4742 = vmatpush1.msra.mxu0 0.0
    %4743 = vmatprep.subr.mxu0 0.0
    %4744 = vmatpush1.msra.mxu0 0.0
    %4745 = vmatprep.subr.mxu0 0.0
    %4746 = vmatpush1.msra.mxu0 0.0
    %4747 = vmatprep.subr.mxu0 0.0
    %4748 = vmatpush1.msra.mxu0 0.0
    %4749 = vmatprep.subr.mxu0 0.0
    %4750 = vmatpush1.msra.mxu0 0.0
    %4751 = vmatprep.subr.mxu0 0.0
    %4752 = vmatpush1.msra.mxu0 0.0
    %4753 = vmatprep.subr.mxu0 0.0
    %4754 = vmatpush1.msra.mxu0 0.0
    %4755 = vmatprep.subr.mxu0 0.0
    %4756 = vmatpush1.msra.mxu0 0.0
    %4757 = vmatprep.subr.mxu0 0.0
    %4758 = vmatpush1.msra.mxu0 0.0
    %4759 = vmatprep.subr.mxu0 0.0
    %4760 = vmatpush1.msra.mxu0 0.0
    %4761 = vmatprep.subr.mxu0 0.0
    %4762 = vmatpush1.msra.mxu0 0.0
    %4763 = vmatprep.subr.mxu0 0.0
    %4764 = vmatpush1.msra.mxu0 0.0
    %4765 = vmatprep.subr.mxu0 0.0
    %4766 = vmatpush1.msra.mxu0 0.0
    %4767 = vmatprep.subr.mxu0 0.0
    %4768 = vmatpush1.msra.mxu0 0.0
    %4769 = vmatprep.subr.mxu0 0.0
    %4770 = vmatpush1.msra.mxu0 0.0
    %4771 = vmatprep.subr.mxu0 0.0
    %4772 = vmatpush1.msra.mxu0 0.0
    %4773 = vmatprep.subr.mxu0 0.0
    %4774 = vmatpush1.msra.mxu0 0.0
    %4775 = vmatprep.subr.mxu0 0.0
    %4776 = vmatpush1.msra.mxu0 0.0
    %4777 = vmatprep.subr.mxu0 0.0
    %4778 = vmatpush1.msra.mxu0 0.0
    %4779 = vmatprep.subr.mxu0 0.0
    %4780 = vmatpush1.msra.mxu0 0.0
    %4781 = vmatprep.subr.mxu0 0.0
    %4782 = vmatpush1.msra.mxu0 0.0
    %4783 = vmatprep.subr.mxu0 0.0
    %4784 = vmatpush1.msra.mxu0 0.0
    %4785 = vmatprep.subr.mxu0 0.0
    %4786 = vmatpush1.msra.mxu0 0.0
    %4787 = vmatprep.subr.mxu0 0.0
    %4788 = vmatpush1.msra.mxu0 0.0
    %4789 = vmatprep.subr.mxu0 0.0
    %4790 = vmatpush1.msra.mxu0 0.0
    %4791 = vmatprep.subr.mxu0 0.0
    %4792 = vmatpush1.msra.mxu0 0.0
    %4793 = vmatprep.mubr.f32.mxu0 0.0
    %4794 = vmatmul.mubr.f32.gmra.mrb[0].mxu0 %v4545
    %v4795 = vpop.f32.mrb[0].mxu0
    %v4796 = vadd.f32 0.0, %v4795
    %v4797 = vpop.f32.mrb[0].mxu0
    %4798 = vdwg.mxu0
    %v4799 = vadd.f32 %v2774, %v4796
    %v4800 = vxor.u32 %v4799, 2147483648
    %v4801 = vmul.f32 %v4800, 1.442695
    %v4802 = vpow.pop %v4801
    %v4803 = vadd.f32 %v4802, 1.0
    %v4804 = vrcp.pop %v4803
    %v4805 = vmul.f32 1.0, %v4804
    %v4806 = vadd.f32 %v4796, %v2784
    %4808 = vrot.lane.b32.xlu0 %v4806, 64
    %v4809 = vpop.permute.xlu0 %4808
    %v4811 = vmul.f32 %v4805, %v4809
    %4813 = vrot.lane.b32.xlu0 %v4811, 64
    %v4814 = vpop.permute.xlu0 %4813
    %v4816 = vadd.f32 %v2774, %v4814
    %v4817 = vtanh.pop %v4816
    %v4818 = vsub.f32 1.0, %v4805
    %4820 = vrot.lane.b32.xlu0 %v4817, 96
    %v4821 = vpop.permute.xlu0 %4820
    %v4823 = vmul.f32 %v4818, %v4821
    %v4824 = vmul.f32 %v4805, %v4537
    %v4825 = vadd.f32 %v4823, %v4824
    %v4826 = vld [vmem:[%s17] sm:$0xff]
    %v4827 = vld [vmem:[%s17 + $0x8] sm:$0xff]
    %v4828 = vld [vmem:[%s17 + $0x10] sm:$0xff]
    %v4829 = vld [vmem:[%s17 + $0x18] sm:$0xff]
    %4831 = vrot.lane.b32.xlu0 %v4825, 96
    %v4832 = vpop.permute.xlu0 %4831
    %v4833 = vsel %vm170, %v4832, 0
    %4835 = vmatprep.subr.mxu0 0.0
    %4836 = vmatpush1.msra.mxu0 %v4826
    %4837 = vmatprep.subr.mxu0 0.0
    %4838 = vmatpush1.msra.mxu0 %v4827
    %4839 = vmatprep.subr.mxu0 0.0
    %4840 = vmatpush1.msra.mxu0 %v4828
    %4841 = vmatprep.subr.mxu0 0.0
    %4842 = vmatpush1.msra.mxu0 %v4829
    %4843 = vmatprep.subr.mxu0 0.0
    %4844 = vmatpush1.msra.mxu0 0.0
    %4845 = vmatprep.subr.mxu0 0.0
    %4846 = vmatpush1.msra.mxu0 0.0
    %4847 = vmatprep.subr.mxu0 0.0
    %4848 = vmatpush1.msra.mxu0 0.0
    %4849 = vmatprep.subr.mxu0 0.0
    %4850 = vmatpush1.msra.mxu0 0.0
    %4851 = vmatprep.subr.mxu0 0.0
    %4852 = vmatpush1.msra.mxu0 0.0
    %4853 = vmatprep.subr.mxu0 0.0
    %4854 = vmatpush1.msra.mxu0 0.0
    %4855 = vmatprep.subr.mxu0 0.0
    %4856 = vmatpush1.msra.mxu0 0.0
    %4857 = vmatprep.subr.mxu0 0.0
    %4858 = vmatpush1.msra.mxu0 0.0
    %4859 = vmatprep.subr.mxu0 0.0
    %4860 = vmatpush1.msra.mxu0 0.0
    %4861 = vmatprep.subr.mxu0 0.0
    %4862 = vmatpush1.msra.mxu0 0.0
    %4863 = vmatprep.subr.mxu0 0.0
    %4864 = vmatpush1.msra.mxu0 0.0
    %4865 = vmatprep.subr.mxu0 0.0
    %4866 = vmatpush1.msra.mxu0 0.0
    %4867 = vmatprep.subr.mxu0 0.0
    %4868 = vmatpush1.msra.mxu0 0.0
    %4869 = vmatprep.subr.mxu0 0.0
    %4870 = vmatpush1.msra.mxu0 0.0
    %4871 = vmatprep.subr.mxu0 0.0
    %4872 = vmatpush1.msra.mxu0 0.0
    %4873 = vmatprep.subr.mxu0 0.0
    %4874 = vmatpush1.msra.mxu0 0.0
    %4875 = vmatprep.subr.mxu0 0.0
    %4876 = vmatpush1.msra.mxu0 0.0
    %4877 = vmatprep.subr.mxu0 0.0
    %4878 = vmatpush1.msra.mxu0 0.0
    %4879 = vmatprep.subr.mxu0 0.0
    %4880 = vmatpush1.msra.mxu0 0.0
    %4881 = vmatprep.subr.mxu0 0.0
    %4882 = vmatpush1.msra.mxu0 0.0
    %4883 = vmatprep.subr.mxu0 0.0
    %4884 = vmatpush1.msra.mxu0 0.0
    %4885 = vmatprep.subr.mxu0 0.0
    %4886 = vmatpush1.msra.mxu0 0.0
    %4887 = vmatprep.subr.mxu0 0.0
    %4888 = vmatpush1.msra.mxu0 0.0
    %4889 = vmatprep.subr.mxu0 0.0
    %4890 = vmatpush1.msra.mxu0 0.0
    %4891 = vmatprep.subr.mxu0 0.0
    %4892 = vmatpush1.msra.mxu0 0.0
    %4893 = vmatprep.subr.mxu0 0.0
    %4894 = vmatpush1.msra.mxu0 0.0
    %4895 = vmatprep.subr.mxu0 0.0
    %4896 = vmatpush1.msra.mxu0 0.0
    %4897 = vmatprep.subr.mxu0 0.0
    %4898 = vmatpush1.msra.mxu0 0.0
    %4899 = vmatprep.mubr.f32.mxu0 0.0
    %4900 = vmatmul.mubr.f32.gmra.mrb[0].mxu0 %v4833
    %v4901 = vpop.f32.mrb[0].mxu0
    %v4902 = vadd.f32 %v124, %v4901
    %v4903 = vpop.f32.mrb[0].mxu0
    %4904 = vdwg.mxu0
    %v4905 = vld [vmem:[%s18] sm:$0xff]
    %v4906 = vld [vmem:[%s18 + $0x8] sm:$0xff]
    %v4907 = vld [vmem:[%s18 + $0x10] sm:$0xff]
    %v4908 = vld [vmem:[%s18 + $0x18] sm:$0xff]
    %v4909 = vsel %vm170, %v4722, 0
    %4911 = vmatprep.subr.mxu0 0.0
    %4912 = vmatpush1.msra.mxu0 %v4905
    %4913 = vmatprep.subr.mxu0 0.0
    %4914 = vmatpush1.msra.mxu0 %v4906
    %4915 = vmatprep.subr.mxu0 0.0
    %4916 = vmatpush1.msra.mxu0 %v4907
    %4917 = vmatprep.subr.mxu0 0.0
    %4918 = vmatpush1.msra.mxu0 %v4908
    %4919 = vmatprep.subr.mxu0 0.0
    %4920 = vmatpush1.msra.mxu0 0.0
    %4921 = vmatprep.subr.mxu0 0.0
    %4922 = vmatpush1.msra.mxu0 0.0
    %4923 = vmatprep.subr.mxu0 0.0
    %4924 = vmatpush1.msra.mxu0 0.0
    %4925 = vmatprep.subr.mxu0 0.0
    %4926 = vmatpush1.msra.mxu0 0.0
    %4927 = vmatprep.subr.mxu0 0.0
    %4928 = vmatpush1.msra.mxu0 0.0
    %4929 = vmatprep.subr.mxu0 0.0
    %4930 = vmatpush1.msra.mxu0 0.0
    %4931 = vmatprep.subr.mxu0 0.0
    %4932 = vmatpush1.msra.mxu0 0.0
    %4933 = vmatprep.subr.mxu0 0.0
    %4934 = vmatpush1.msra.mxu0 0.0
    %4935 = vmatprep.subr.mxu0 0.0
    %4936 = vmatpush1.msra.mxu0 0.0
    %4937 = vmatprep.subr.mxu0 0.0
    %4938 = vmatpush1.msra.mxu0 0.0
    %4939 = vmatprep.subr.mxu0 0.0
    %4940 = vmatpush1.msra.mxu0 0.0
    %4941 = vmatprep.subr.mxu0 0.0
    %4942 = vmatpush1.msra.mxu0 0.0
    %4943 = vmatprep.subr.mxu0 0.0
    %4944 = vmatpush1.msra.mxu0 0.0
    %4945 = vmatprep.subr.mxu0 0.0
    %4946 = vmatpush1.msra.mxu0 0.0
    %4947 = vmatprep.subr.mxu0 0.0
    %4948 = vmatpush1.msra.mxu0 0.0
    %4949 = vmatprep.subr.mxu0 0.0
    %4950 = vmatpush1.msra.mxu0 0.0
    %4951 = vmatprep.subr.mxu0 0.0
    %4952 = vmatpush1.msra.mxu0 0.0
    %4953 = vmatprep.subr.mxu0 0.0
    %4954 = vmatpush1.msra.mxu0 0.0
    %4955 = vmatprep.subr.mxu0 0.0
    %4956 = vmatpush1.msra.mxu0 0.0
    %4957 = vmatprep.subr.mxu0 0.0
    %4958 = vmatpush1.msra.mxu0 0.0
    %4959 = vmatprep.subr.mxu0 0.0
    %4960 = vmatpush1.msra.mxu0 0.0
    %4961 = vmatprep.subr.mxu0 0.0
    %4962 = vmatpush1.msra.mxu0 0.0
    %4963 = vmatprep.subr.mxu0 0.0
    %4964 = vmatpush1.msra.mxu0 0.0
    %4965 = vmatprep.subr.mxu0 0.0
    %4966 = vmatpush1.msra.mxu0 0.0
    %4967 = vmatprep.subr.mxu0 0.0
    %4968 = vmatpush1.msra.mxu0 0.0
    %4969 = vmatprep.subr.mxu0 0.0
    %4970 = vmatpush1.msra.mxu0 0.0
    %4971 = vmatprep.subr.mxu0 0.0
    %4972 = vmatpush1.msra.mxu0 0.0
    %4973 = vmatprep.subr.mxu0 0.0
    %4974 = vmatpush1.msra.mxu0 0.0
    %4975 = vmatprep.mubr.f32.mxu0 0.0
    %4976 = vmatmul.mubr.f32.gmra.mrb[0].mxu0 %v4909
    %v4977 = vpop.f32.mrb[0].mxu0
    %v4978 = vadd.f32 0.0, %v4977
    %v4979 = vpop.f32.mrb[0].mxu0
    %4980 = vdwg.mxu0
    %v4981 = vadd.f32 %v4902, %v4978
    %v4982 = vxor.u32 %v4981, 2147483648
    %v4983 = vmul.f32 %v4982, 1.442695
    %v4984 = vpow.pop %v4983
    %v4985 = vadd.f32 %v4984, 1.0
    %v4986 = vrcp.pop %v4985
    %v4987 = vmul.f32 1.0, %v4986
    %v4988 = vadd.f32 %v4978, %v2970
    %4990 = vrot.lane.b32.xlu0 %v4988, 64
    %v4991 = vpop.permute.xlu0 %4990
    %v4993 = vmul.f32 %v4987, %v4991
    %4995 = vrot.lane.b32.xlu0 %v4993, 64
    %v4996 = vpop.permute.xlu0 %4995
    %v4998 = vadd.f32 %v4902, %v4996
    %v4999 = vtanh.pop %v4998
    %v5000 = vsub.f32 1.0, %v4987
    %5002 = vrot.lane.b32.xlu0 %v4999, 96
    %v5003 = vpop.permute.xlu0 %5002
    %v5005 = vmul.f32 %v5000, %v5003
    %v5006 = vmul.f32 %v4987, %v4719
    %v5007 = vadd.f32 %v5005, %v5006
    %5009 = vrot.lane.b32.xlu0 %v5007, 96
    %v5010 = vpop.permute.xlu0 %5009
    %5012 = vst.msk [vmem:[#allocation2 + $0x38] sm:$0xff] %vm170, %v5010
    %v5013 = vld [vmem:[#allocation2] sm:$0xff]
    %v5014 = vld [vmem:[#allocation2 + $0x8] sm:$0xff]
    %v5015 = vld [vmem:[#allocation2 + $0x10] sm:$0xff]
    %v5016 = vld [vmem:[#allocation2 + $0x18] sm:$0xff]
    %v5017 = vld [vmem:[#allocation2 + $0x20] sm:$0xff]
    %v5018 = vld [vmem:[#allocation2 + $0x28] sm:$0xff]
    %v5019 = vld [vmem:[#allocation2 + $0x30] sm:$0xff]
    %v5020 = vld [vmem:[#allocation2 + $0x38] sm:$0xff]
    %v5021 = vld [vmem:[%s21] sm:$0xff]
    %v5022 = vld [vmem:[%s21 + $0x8] sm:$0xff]
    %v5023 = vld [vmem:[%s21 + $0x10] sm:$0xff]
    %v5024 = vld [vmem:[%s21 + $0x18] sm:$0xff]
    %v5025 = vld [vmem:[#allocation7] sm:$0x1]
    %v5027 = vlaneseq
    %v5028 = vshrl.u32 %v5027, 7
    %v5029 = vsub.s32 0, %v5028
    %v5030 = vrot.slane %v5025, %v5029
    %v5033 = vsel %vm170, %v5013, 0
    %v5036 = vsel %vm170, %v5014, 0
    %v5039 = vsel %vm170, %v5015, 0
    %v5042 = vsel %vm170, %v5016, 0
    %v5045 = vsel %vm170, %v5017, 0
    %v5048 = vsel %vm170, %v5018, 0
    %v5051 = vsel %vm170, %v5019, 0
    %v5054 = vsel %vm170, %v5020, 0
    %5056 = vmatprep.subr.mxu0 0.0
    %5057 = vmatpush1.msra.mxu0 %v5021
    %5058 = vmatprep.subr.mxu0 0.0
    %5059 = vmatpush1.msra.mxu0 %v5022
    %5060 = vmatprep.subr.mxu0 0.0
    %5061 = vmatpush1.msra.mxu0 %v5023
    %5062 = vmatprep.subr.mxu0 0.0
    %5063 = vmatpush1.msra.mxu0 %v5024
    %5064 = vmatprep.subr.mxu0 0.0
    %5065 = vmatpush1.msra.mxu0 0.0
    %5066 = vmatprep.subr.mxu0 0.0
    %5067 = vmatpush1.msra.mxu0 0.0
    %5068 = vmatprep.subr.mxu0 0.0
    %5069 = vmatpush1.msra.mxu0 0.0
    %5070 = vmatprep.subr.mxu0 0.0
    %5071 = vmatpush1.msra.mxu0 0.0
    %5072 = vmatprep.subr.mxu0 0.0
    %5073 = vmatpush1.msra.mxu0 0.0
    %5074 = vmatprep.subr.mxu0 0.0
    %5075 = vmatpush1.msra.mxu0 0.0
    %5076 = vmatprep.subr.mxu0 0.0
    %5077 = vmatpush1.msra.mxu0 0.0
    %5078 = vmatprep.subr.mxu0 0.0
    %5079 = vmatpush1.msra.mxu0 0.0
    %5080 = vmatprep.subr.mxu0 0.0
    %5081 = vmatpush1.msra.mxu0 0.0
    %5082 = vmatprep.subr.mxu0 0.0
    %5083 = vmatpush1.msra.mxu0 0.0
    %5084 = vmatprep.subr.mxu0 0.0
    %5085 = vmatpush1.msra.mxu0 0.0
    %5086 = vmatprep.subr.mxu0 0.0
    %5087 = vmatpush1.msra.mxu0 0.0
    %5088 = vmatprep.subr.mxu0 0.0
    %5089 = vmatpush1.msra.mxu0 0.0
    %5090 = vmatprep.subr.mxu0 0.0
    %5091 = vmatpush1.msra.mxu0 0.0
    %5092 = vmatprep.subr.mxu0 0.0
    %5093 = vmatpush1.msra.mxu0 0.0
    %5094 = vmatprep.subr.mxu0 0.0
    %5095 = vmatpush1.msra.mxu0 0.0
    %5096 = vmatprep.subr.mxu0 0.0
    %5097 = vmatpush1.msra.mxu0 0.0
    %5098 = vmatprep.subr.mxu0 0.0
    %5099 = vmatpush1.msra.mxu0 0.0
    %5100 = vmatprep.subr.mxu0 0.0
    %5101 = vmatpush1.msra.mxu0 0.0
    %5102 = vmatprep.subr.mxu0 0.0
    %5103 = vmatpush1.msra.mxu0 0.0
    %5104 = vmatprep.subr.mxu0 0.0
    %5105 = vmatpush1.msra.mxu0 0.0
    %5106 = vmatprep.subr.mxu0 0.0
    %5107 = vmatpush1.msra.mxu0 0.0
    %5108 = vmatprep.subr.mxu0 0.0
    %5109 = vmatpush1.msra.mxu0 0.0
    %5110 = vmatprep.subr.mxu0 0.0
    %5111 = vmatpush1.msra.mxu0 0.0
    %5112 = vmatprep.subr.mxu0 0.0
    %5113 = vmatpush1.msra.mxu0 0.0
    %5114 = vmatprep.subr.mxu0 0.0
    %5115 = vmatpush1.msra.mxu0 0.0
    %5116 = vmatprep.subr.mxu0 0.0
    %5117 = vmatpush1.msra.mxu0 0.0
    %5118 = vmatprep.subr.mxu0 0.0
    %5119 = vmatpush1.msra.mxu0 0.0
    %5120 = vmatprep.mubr.f32.mxu0 0.0
    %5121 = vmatmul.mubr.f32.gmra.mrb[0].mxu0 %v5033
    %v5122 = vpop.f32.mrb[0].mxu0
    %v5123 = vadd.f32 %v5030, %v5122
    %v5124 = vpop.f32.mrb[0].mxu0
    %5125 = vmatprep.mubr.f32.mxu0 0.0
    %5126 = vmatmul.mubr.f32.gmra.mrb[0].mxu0 %v5036
    %v5127 = vpop.f32.mrb[0].mxu0
    %v5128 = vadd.f32 %v5030, %v5127
    %v5129 = vpop.f32.mrb[0].mxu0
    %5130 = vmatprep.mubr.f32.mxu0 0.0
    %5131 = vmatmul.mubr.f32.gmra.mrb[0].mxu0 %v5039
    %v5132 = vpop.f32.mrb[0].mxu0
    %v5133 = vadd.f32 %v5030, %v5132
    %v5134 = vpop.f32.mrb[0].mxu0
    %5135 = vmatprep.mubr.f32.mxu0 0.0
    %5136 = vmatmul.mubr.f32.gmra.mrb[0].mxu0 %v5042
    %v5137 = vpop.f32.mrb[0].mxu0
    %v5138 = vadd.f32 %v5030, %v5137
    %v5139 = vpop.f32.mrb[0].mxu0
    %5140 = vmatprep.mubr.f32.mxu0 0.0
    %5141 = vmatmul.mubr.f32.gmra.mrb[0].mxu0 %v5045
    %v5142 = vpop.f32.mrb[0].mxu0
    %v5143 = vadd.f32 %v5030, %v5142
    %v5144 = vpop.f32.mrb[0].mxu0
    %5145 = vmatprep.mubr.f32.mxu0 0.0
    %5146 = vmatmul.mubr.f32.gmra.mrb[0].mxu0 %v5048
    %v5147 = vpop.f32.mrb[0].mxu0
    %v5148 = vadd.f32 %v5030, %v5147
    %v5149 = vpop.f32.mrb[0].mxu0
    %5150 = vmatprep.mubr.f32.mxu0 0.0
    %5151 = vmatmul.mubr.f32.gmra.mrb[0].mxu0 %v5051
    %v5152 = vpop.f32.mrb[0].mxu0
    %v5153 = vadd.f32 %v5030, %v5152
    %v5154 = vpop.f32.mrb[0].mxu0
    %5155 = vmatprep.mubr.f32.mxu0 0.0
    %5156 = vmatmul.mubr.f32.gmra.mrb[0].mxu0 %v5054
    %v5157 = vpop.f32.mrb[0].mxu0
    %v5158 = vadd.f32 %v5030, %v5157
    %v5159 = vpop.f32.mrb[0].mxu0
    %5160 = vdwg.mxu0
    %5161 = vst.msk [vmem:[%s23] sm:$0xff] %vm170, %v5123
    %5162 = vst.msk [vmem:[%s23 + $0x8] sm:$0xff] %vm170, %v5128
    %5163 = vst.msk [vmem:[%s23 + $0x10] sm:$0xff] %vm170, %v5133
    %5164 = vst.msk [vmem:[%s23 + $0x18] sm:$0xff] %vm170, %v5138
    %5165 = vst.msk [vmem:[%s23 + $0x20] sm:$0xff] %vm170, %v5143
    %5166 = vst.msk [vmem:[%s23 + $0x28] sm:$0xff] %vm170, %v5148
    %5167 = vst.msk [vmem:[%s23 + $0x30] sm:$0xff] %vm170, %v5153
    %5168 = vst.msk [vmem:[%s23 + $0x38] sm:$0xff] %vm170, %v5158
    // Predicated region
    $region106: #{beta_vae_forward.1} parent=1 // pred_check
      _
    $region107: #{beta_vae_forward.1} parent=1 // pred_check_branch
      %5170 = sbr.rel (0) target = $region109
    $region108: #{beta_vae_forward.1} parent=1 // pred_region
      _
    $region109: #{beta_vae_forward.1} parent=1 // pred_fallthru
      _
    // Predicated region
    $region110: #{beta_vae_forward.1} parent=1 // pred_check
      _
    $region111: #{beta_vae_forward.1} parent=1 // pred_check_branch
      %5172 = sbr.rel (0) target = $region113
    $region112: #{beta_vae_forward.1} parent=1 // pred_region
      _
    $region113: #{beta_vae_forward.1} parent=1 // pred_fallthru
      _
    // Predicated region
    $region114: #{beta_vae_forward.1} parent=1 // pred_check
      _
    $region115: #{beta_vae_forward.1} parent=1 // pred_check_branch
      %5174 = sbr.rel (0) target = $region117
    $region116: #{beta_vae_forward.1} parent=1 // pred_region
      _
    $region117: #{beta_vae_forward.1} parent=1 // pred_fallthru
      _
    // Predicated region
    $region118: #{beta_vae_forward.1} parent=1 // pred_check
      _
    $region119: #{beta_vae_forward.1} parent=1 // pred_check_branch
      %5176 = sbr.rel (0) target = $region121
    $region120: #{beta_vae_forward.1} parent=1 // pred_region
      _
    $region121: #{beta_vae_forward.1} parent=1 // pred_fallthru
      _
    // Predicated region
    $region122: #{beta_vae_forward.1} parent=1 // pred_check
      _
    $region123: #{beta_vae_forward.1} parent=1 // pred_check_branch
      %5178 = sbr.rel (0) target = $region125
    $region124: #{beta_vae_forward.1} parent=1 // pred_region
      _
    $region125: #{beta_vae_forward.1} parent=1 // pred_fallthru
      _
    // Predicated region
    $region126: #{beta_vae_forward.1} parent=1 // pred_check
      _
    $region127: #{beta_vae_forward.1} parent=1 // pred_check_branch
      %5180 = sbr.rel (0) target = $region129
    $region128: #{beta_vae_forward.1} parent=1 // pred_region
      _
    $region129: #{beta_vae_forward.1} parent=1 // pred_fallthru
      _
    %5181 = vsyncpa [#allocation4], 1
    %5182 = vsyncpa [#allocation6], 1

</llo_original>
